<compile_context>
chip_gen: v7x
topology: tpu7x:2x2x1
jax: 0.10.0
libtpu: 0.0.40
codegen_flags: <defaults>
</compile_context>

<pallas_src>
import functools

import jax
import jax.numpy as jnp
from jax.experimental import pallas as pl
from jax.experimental.pallas import tpu as pltpu


LANES = 128
_VMEM = pl.BlockSpec(memory_space=pltpu.MemorySpace.VMEM)

# (kernel, stride, Cout) for the three stride-2 convs that run as their own calls.
_CONV_CFG = (
    (5, 2, 24),
    (5, 2, 36),
    (5, 2, 48),
)


# ----------------------- generic matmul+bias(+ReLU) kernel -------------------

def _matmul_bias_relu_kernel(x_ref, w_ref, b_ref, o_ref, *, relu):
    acc = jnp.dot(x_ref[...], w_ref[...], preferred_element_type=jnp.float32)
    acc = acc + b_ref[...]
    if relu:
        acc = jnp.maximum(acc, 0.0)
    o_ref[...] = acc.astype(o_ref.dtype)


def matmul_bias_relu(x, w, b, *, relu=True):
    """(M,K) @ (K,N) + b(1,N) with optional ReLU; full arrays resident in VMEM."""
    M, K = x.shape
    K2, N = w.shape
    assert K == K2 and b.shape == (1, N)
    cost = pl.CostEstimate(
        flops=2 * M * K * N,
        transcendentals=0,
        bytes_accessed=4 * (M * K + K * N + M * N),
    )
    return pl.pallas_call(
        functools.partial(_matmul_bias_relu_kernel, relu=relu),
        out_shape=jax.ShapeDtypeStruct((M, N), jnp.float32),
        in_specs=[_VMEM, _VMEM, _VMEM],
        out_specs=_VMEM,
        cost_estimate=cost,
    )(x, w, b)


# ----------------- fused tail kernel: conv4 + conv5 + fc1..fc4 ---------------

def _tail_kernel(x3_ref, w4_ref, b4_ref, w5_ref, b5_ref,
                 w1_ref, b1_ref, w2_ref, b2_ref, w3_ref, b3_ref,
                 wo_ref, bo_ref, o_ref, *, batch):
    B = batch
    f32 = jnp.float32

    # ---- conv4: 3x3 stride-1 tap loop directly on the conv3 output.
    #      x3 rows are ordered (h3, w3, b), 6x6 spatial, 128 lanes (48 real
    #      channels, rest zero).  Output kept as 4 row-groups, one per oh4,
    #      each (4B, 64) with rows ordered (ow4, b).
    rows4 = []
    for oh in range(4):
        acc = jnp.zeros((4 * B, 64), f32)
        for di in range(3):
            for dj in range(3):
                start = ((oh + di) * 6 + dj) * B
                acc = acc + jnp.dot(x3_ref[start:start + 4 * B, :],
                                    w4_ref[di * 3 + dj],
                                    preferred_element_type=f32)
        rows4.append(jnp.maximum(acc + b4_ref[...], 0.0))   # (4B, 64)

    # ---- conv5: 3x3 stride-1 tap loop on the MXU, 2x2 output.
    acc_top = jnp.zeros((2 * B, 64), f32)                   # oh5 == 0, rows (ow5, b)
    acc_bot = jnp.zeros((2 * B, 64), f32)                   # oh5 == 1
    for di in range(3):
        for dj in range(3):
            w_tap = w5_ref[di * 3 + dj]                     # (64, 64)
            acc_top = acc_top + jnp.dot(rows4[di][dj * B:(dj + 2) * B, :], w_tap,
                                        preferred_element_type=f32)
            acc_bot = acc_bot + jnp.dot(rows4[di + 1][dj * B:(dj + 2) * B, :], w_tap,
                                        preferred_element_type=f32)
    act5_top = jnp.maximum(acc_top + b5_ref[...], 0.0)      # rows (ow5, b), oh5 = 0
    act5_bot = jnp.maximum(acc_bot + b5_ref[...], 0.0)      # rows (ow5, b), oh5 = 1

    # ---- fc1: the PyTorch (C,H,W) flatten is folded into w1 (one 64-wide
    #      chunk per spatial position j = oh5*2 + ow5), so no reshape/concat.
    acc1 = jnp.zeros((B, LANES), f32)
    for j in range(4):
        half = act5_top if j < 2 else act5_bot
        piece = half[(j % 2) * B:(j % 2) * B + B, :]        # (B, 64)
        acc1 = acc1 + jnp.dot(piece, w1_ref[j], preferred_element_type=f32)
    h = jnp.maximum(acc1 + b1_ref[...], 0.0)

    # ---- fc2..fc4, all zero-padded to 128 lanes (padding columns stay 0).
    h = jnp.maximum(jnp.dot(h, w2_ref[...], preferred_element_type=f32) + b2_ref[...], 0.0)
    h = jnp.maximum(jnp.dot(h, w3_ref[...], preferred_element_type=f32) + b3_ref[...], 0.0)
    h = jnp.dot(h, wo_ref[...], preferred_element_type=f32) + bo_ref[...]   # (B, 128)

    o_ref[...] = jnp.zeros(o_ref.shape, o_ref.dtype)
    o_ref[0:B, :] = h


def tail_forward(x3, prep, batch):
    m_out = max(8, ((batch + 7) // 8) * 8)
    flops = 2 * batch * (36 * 4 * 128 * 64 + 18 * 2 * 64 * 64
                         + 4 * 64 * 128 + 3 * 128 * 128)
    bytes_accessed = 4 * (x3.size + 9 * 128 * 64 + 9 * 64 * 64
                          + 4 * 64 * LANES + 3 * LANES * LANES
                          + 7 * LANES + m_out * LANES)
    return pl.pallas_call(
        functools.partial(_tail_kernel, batch=batch),
        out_shape=jax.ShapeDtypeStruct((m_out, LANES), jnp.float32),
        in_specs=[_VMEM] * 13,
        out_specs=_VMEM,
        cost_estimate=pl.CostEstimate(flops=flops, transcendentals=0,
                                      bytes_accessed=bytes_accessed),
    )(x3, prep["w4"], prep["b4"], prep["w5"], prep["b5"],
      prep["w1"], prep["b1"], prep["wf2"], prep["bf2"],
      prep["wf3"], prep["bf3"], prep["wfo"], prep["bfo"])


# ---------------------------- wrapper-side im2col ----------------------------

def _im2col_nhwc(x, k, s, *, row_order="bhw"):
    """x: (B,H,W,C) NHWC -> (rows, k*k*C); columns ordered (kh, kw, c)."""
    B, H, W, C = x.shape
    Ho = (H - k) // s + 1
    Wo = (W - k) // s + 1
    patches = [x[:, di:di + s * Ho:s, dj:dj + s * Wo:s, :]
               for di in range(k) for dj in range(k)]
    p = jnp.stack(patches, axis=3)                      # (B, Ho, Wo, k*k, C)
    if row_order == "hwb":
        p = p.transpose(1, 2, 0, 3, 4)                  # (Ho, Wo, B, k*k, C)
        return p.reshape(Ho * Wo * B, k * k * C), Ho, Wo
    return p.reshape(B * Ho * Wo, k * k * C), Ho, Wo


# ------------------------------ model params ---------------------------------

def init_params(key):
    """Deterministic synthetic parameters matching NvidiaModel shapes."""
    conv_shapes = [
        (24, 3, 5, 5),
        (36, 24, 5, 5),
        (48, 36, 5, 5),
        (64, 48, 3, 3),
        (64, 64, 3, 3),
    ]
    fc_shapes = [
        (256, 100),
        (100, 50),
        (50, 10),
        (10, 1),
    ]
    params = {"conv": [], "fc": []}
    keys = jax.random.split(key, len(conv_shapes) + len(fc_shapes))
    i = 0
    for shp in conv_shapes:
        fan_in = shp[1] * shp[2] * shp[3]
        bound = 1.0 / jnp.sqrt(fan_in)
        kw, kb = jax.random.split(keys[i])
        w = jax.random.uniform(kw, shp, jnp.float32, -bound, bound)
        b = jax.random.uniform(kb, (shp[0],), jnp.float32, -bound, bound)
        params["conv"].append((w, b))
        i += 1
    for (fin, fout) in fc_shapes:
        bound = 1.0 / jnp.sqrt(fin)
        kw, kb = jax.random.split(keys[i])
        w = jax.random.uniform(kw, (fin, fout), jnp.float32, -bound, bound)
        b = jax.random.uniform(kb, (fout,), jnp.float32, -bound, bound)
        params["fc"].append((w, b))
        i += 1
    return params


def _conv_w_mat(w):
    """(Cout, Cin, kh, kw) -> (kh*kw*Cin, Cout), matching the im2col column order."""
    Cout, Cin, k, _ = w.shape
    return w.transpose(2, 3, 1, 0).reshape(k * k * Cin, Cout)


def _round_up(n, m):
    return ((n + m - 1) // m) * m


def prepare_params(params):
    """One-time re-layout / zero-padding of weights into kernel-ready form."""
    prep = {"c123": []}
    # conv1..conv3: matmul weights; Cout padded to 128 lanes for dense stores,
    # K padded to a multiple of 128 for dense input loads / aligned sublanes.
    for (w, b) in params["conv"][:3]:
        cout = w.shape[0]
        wm = _conv_w_mat(w)
        kdim = wm.shape[0]
        kp = _round_up(kdim, LANES)
        prep["c123"].append(
            (jnp.pad(wm, ((0, kp - kdim), (0, LANES - cout))),
             jnp.pad(b, (0, LANES - cout)).reshape(1, LANES)))
    # conv4 as 9 per-tap (Cin, Cout) matrices; Cin padded to 128 so the tap
    # loop consumes the lane-padded conv3 output directly.
    w4, b4 = params["conv"][3]                          # (64, 48, 3, 3)
    w4t = w4.transpose(2, 3, 1, 0).reshape(9, 48, 64)
    prep["w4"] = jnp.pad(w4t, ((0, 0), (0, LANES - 48), (0, 0)))   # (9, 128, 64)
    prep["b4"] = b4.reshape(1, 64)
    # conv5 as 9 per-tap (Cin, Cout) matrices.
    w5, b5 = params["conv"][4]
    prep["w5"] = w5.transpose(2, 3, 1, 0).reshape(9, 64, 64)
    prep["b5"] = b5.reshape(1, 64)
    # fc1: reorder rows from PyTorch's (c, h, w) flatten order into one
    # 64-channel chunk per spatial position j = h*2 + w; pad N to 128.
    w1, b1 = params["fc"][0]                            # (256, 100)
    w1 = w1.reshape(64, 4, 100).transpose(1, 0, 2)      # (4, 64, 100)
    prep["w1"] = jnp.pad(w1, ((0, 0), (0, 0), (0, LANES - 100)))
    prep["b1"] = jnp.pad(b1, (0, LANES - 100)).reshape(1, LANES)
    # fc2..fc4 zero-padded to (128, 128) so the whole FC chain stays lane-dense.
    for i, name in ((1, "f2"), (2, "f3"), (3, "fo")):
        w, b = params["fc"][i]
        fin, fout = w.shape
        prep["w" + name] = jnp.pad(w, ((0, LANES - fin), (0, LANES - fout)))
        prep["b" + name] = jnp.pad(b, (0, LANES - fout)).reshape(1, LANES)
    return prep


# ------------------------------- forward pass --------------------------------

@jax.jit
def nvidia_model_forward(prep, x):
    """x: (B, 3, 70, 70) NCHW float32 -> (B, 1)."""
    B = x.shape[0]
    act = x.transpose(0, 2, 3, 1)                       # single NCHW -> NHWC relayout
    x3 = None
    n_conv = len(_CONV_CFG)
    for idx, ((k, s, cout), (w, b)) in enumerate(zip(_CONV_CFG, prep["c123"])):
        last = idx == n_conv - 1
        # conv3's rows are emitted in (oh, ow, b) order so its output feeds the
        # fused tail kernel with no intermediate XLA relayout.
        cols, Ho, Wo = _im2col_nhwc(act, k, s, row_order="hwb" if last else "bhw")
        M, K = cols.shape
        Mp = _round_up(M, 8)
        Kp = w.shape[0]
        cols = jnp.pad(cols, ((0, Mp - M), (0, Kp - K)))
        out = matmul_bias_relu(cols, w, b, relu=True)   # (Mp, 128), lane-dense
        if last:
            x3 = out                                    # consumed directly by the tail
        else:
            act = out[:M, :cout].reshape(B, Ho, Wo, cout)   # stay channels-last
    out = tail_forward(x3, prep, B)                     # (>=8, 128) padded
    return out[:B, :1]


# ----------------------------------- main -------------------------------------

if __name__ == "__main__":
    key = jax.random.PRNGKey(0)
    pkey, xkey = jax.random.split(key)
    params = init_params(pkey)
    prep = prepare_params(params)

    # Input 70x70 so the conv stack ends at 2x2 (matches 64*2*2 = 256 features).
    x = jax.random.normal(xkey, (2, 3, 70, 70), dtype=jnp.float32)

    out = nvidia_model_forward(prep, x)
    out = jax.block_until_ready(out)
    assert out.shape == (2, 1), out.shape
    print("KERNEL_OK")
</pallas_src>

<mosaic_0001>
module attributes {stable_mosaic.version = 11 : i64} {
  func.func @_matmul_bias_relu_kernel(%arg0: memref<2184x128xf32, #tpu.memory_space<vmem>>, %arg1: memref<128x128xf32, #tpu.memory_space<vmem>>, %arg2: memref<1x128xf32, #tpu.memory_space<vmem>>, %arg3: memref<2184x128xf32, #tpu.memory_space<vmem>>) attributes {dimension_semantics = [], scalar_prefetch = 0 : i64, scratch_operands = 0 : i64, tpu.core_type = #tpu.core_type<tc>} {
    %c0 = arith.constant 0 : index
    %c0_0 = arith.constant 0 : index
    %0 = vector.load %arg0[%c0, %c0_0] : memref<2184x128xf32, #tpu.memory_space<vmem>>, vector<2184x128xf32>
    %c0_1 = arith.constant 0 : index
    %c0_2 = arith.constant 0 : index
    %1 = vector.load %arg1[%c0_1, %c0_2] : memref<128x128xf32, #tpu.memory_space<vmem>>, vector<128x128xf32>
    %cst = arith.constant dense<0.000000e+00> : vector<2184x128xf32>
    %2 = tpu.matmul %0, %1, %cst {dimension_numbers = #tpu.dot_dimension_numbers<[1], [0], [0], [1], [0, 0, 1, 1], [], []>} : vector<2184x128xf32>, vector<128x128xf32>, vector<2184x128xf32> -> vector<2184x128xf32>
    %c0_3 = arith.constant 0 : index
    %c0_4 = arith.constant 0 : index
    %3 = vector.load %arg2[%c0_3, %c0_4] : memref<1x128xf32, #tpu.memory_space<vmem>>, vector<1x128xf32>
    %4 = vector.broadcast %3 : vector<1x128xf32> to vector<2184x128xf32>
    %5 = arith.addf %2, %4 : vector<2184x128xf32>
    %cst_5 = arith.constant 0.000000e+00 : f32
    %6 = vector.broadcast %cst_5 : f32 to vector<2184x128xf32>
    %7 = arith.maximumf %5, %6 : vector<2184x128xf32>
    %c0_6 = arith.constant 0 : index
    %c0_7 = arith.constant 0 : index
    %8 = vector.load %arg3[%c0_6, %c0_7] : memref<2184x128xf32, #tpu.memory_space<vmem>>, vector<2184x128xf32>
    tpu.vector_store %arg3[%c0_6, %c0_7], %7 {strides = array<i32>} : memref<2184x128xf32, #tpu.memory_space<vmem>>, vector<2184x128xf32>,
    return
  }
}

module attributes {stable_mosaic.version = 11 : i64} {
  func.func @_matmul_bias_relu_kernel(%arg0: memref<456x640xf32, #tpu.memory_space<vmem>>, %arg1: memref<640x128xf32, #tpu.memory_space<vmem>>, %arg2: memref<1x128xf32, #tpu.memory_space<vmem>>, %arg3: memref<456x128xf32, #tpu.memory_space<vmem>>) attributes {dimension_semantics = [], scalar_prefetch = 0 : i64, scratch_operands = 0 : i64, tpu.core_type = #tpu.core_type<tc>} {
    %c0 = arith.constant 0 : index
    %c0_0 = arith.constant 0 : index
    %0 = vector.load %arg0[%c0, %c0_0] : memref<456x640xf32, #tpu.memory_space<vmem>>, vector<456x640xf32>
    %c0_1 = arith.constant 0 : index
    %c0_2 = arith.constant 0 : index
    %1 = vector.load %arg1[%c0_1, %c0_2] : memref<640x128xf32, #tpu.memory_space<vmem>>, vector<640x128xf32>
    %cst = arith.constant dense<0.000000e+00> : vector<456x128xf32>
    %2 = tpu.matmul %0, %1, %cst {dimension_numbers = #tpu.dot_dimension_numbers<[1], [0], [0], [1], [0, 0, 1, 1], [], []>} : vector<456x640xf32>, vector<640x128xf32>, vector<456x128xf32> -> vector<456x128xf32>
    %c0_3 = arith.constant 0 : index
    %c0_4 = arith.constant 0 : index
    %3 = vector.load %arg2[%c0_3, %c0_4] : memref<1x128xf32, #tpu.memory_space<vmem>>, vector<1x128xf32>
    %4 = vector.broadcast %3 : vector<1x128xf32> to vector<456x128xf32>
    %5 = arith.addf %2, %4 : vector<456x128xf32>
    %cst_5 = arith.constant 0.000000e+00 : f32
    %6 = vector.broadcast %cst_5 : f32 to vector<456x128xf32>
    %7 = arith.maximumf %5, %6 : vector<456x128xf32>
    %c0_6 = arith.constant 0 : index
    %c0_7 = arith.constant 0 : index
    %8 = vector.load %arg3[%c0_6, %c0_7] : memref<456x128xf32, #tpu.memory_space<vmem>>, vector<456x128xf32>
    tpu.vector_store %arg3[%c0_6, %c0_7], %7 {strides = array<i32>} : memref<456x128xf32, #tpu.memory_space<vmem>>, vector<456x128xf32>,
    return
  }
}

module attributes {stable_mosaic.version = 11 : i64} {
  func.func @_matmul_bias_relu_kernel(%arg0: memref<72x1024xf32, #tpu.memory_space<vmem>>, %arg1: memref<1024x128xf32, #tpu.memory_space<vmem>>, %arg2: memref<1x128xf32, #tpu.memory_space<vmem>>, %arg3: memref<72x128xf32, #tpu.memory_space<vmem>>) attributes {dimension_semantics = [], scalar_prefetch = 0 : i64, scratch_operands = 0 : i64, tpu.core_type = #tpu.core_type<tc>} {
    %c0 = arith.constant 0 : index
    %c0_0 = arith.constant 0 : index
    %0 = vector.load %arg0[%c0, %c0_0] : memref<72x1024xf32, #tpu.memory_space<vmem>>, vector<72x1024xf32>
    %c0_1 = arith.constant 0 : index
    %c0_2 = arith.constant 0 : index
    %1 = vector.load %arg1[%c0_1, %c0_2] : memref<1024x128xf32, #tpu.memory_space<vmem>>, vector<1024x128xf32>
    %cst = arith.constant dense<0.000000e+00> : vector<72x128xf32>
    %2 = tpu.matmul %0, %1, %cst {dimension_numbers = #tpu.dot_dimension_numbers<[1], [0], [0], [1], [0, 0, 1, 1], [], []>} : vector<72x1024xf32>, vector<1024x128xf32>, vector<72x128xf32> -> vector<72x128xf32>
    %c0_3 = arith.constant 0 : index
    %c0_4 = arith.constant 0 : index
    %3 = vector.load %arg2[%c0_3, %c0_4] : memref<1x128xf32, #tpu.memory_space<vmem>>, vector<1x128xf32>
    %4 = vector.broadcast %3 : vector<1x128xf32> to vector<72x128xf32>
    %5 = arith.addf %2, %4 : vector<72x128xf32>
    %cst_5 = arith.constant 0.000000e+00 : f32
    %6 = vector.broadcast %cst_5 : f32 to vector<72x128xf32>
    %7 = arith.maximumf %5, %6 : vector<72x128xf32>
    %c0_6 = arith.constant 0 : index
    %c0_7 = arith.constant 0 : index
    %8 = vector.load %arg3[%c0_6, %c0_7] : memref<72x128xf32, #tpu.memory_space<vmem>>, vector<72x128xf32>
    tpu.vector_store %arg3[%c0_6, %c0_7], %7 {strides = array<i32>} : memref<72x128xf32, #tpu.memory_space<vmem>>, vector<72x128xf32>,
    return
  }
}

module attributes {stable_mosaic.version = 11 : i64} {
  func.func @_tail_kernel(%arg0: memref<72x128xf32, #tpu.memory_space<vmem>>, %arg1: memref<9x128x64xf32, #tpu.memory_space<vmem>>, %arg2: memref<1x64xf32, #tpu.memory_space<vmem>>, %arg3: memref<9x64x64xf32, #tpu.memory_space<vmem>>, %arg4: memref<1x64xf32, #tpu.memory_space<vmem>>, %arg5: memref<4x64x128xf32, #tpu.memory_space<vmem>>, %arg6: memref<1x128xf32, #tpu.memory_space<vmem>>, %arg7: memref<128x128xf32, #tpu.memory_space<vmem>>, %arg8: memref<1x128xf32, #tpu.memory_space<vmem>>, %arg9: memref<128x128xf32, #tpu.memory_space<vmem>>, %arg10: memref<1x128xf32, #tpu.memory_space<vmem>>, %arg11: memref<128x128xf32, #tpu.memory_space<vmem>>, %arg12: memref<1x128xf32, #tpu.memory_space<vmem>>, %arg13: memref<8x128xf32, #tpu.memory_space<vmem>>) attributes {dimension_semantics = [], scalar_prefetch = 0 : i64, scratch_operands = 0 : i64, tpu.core_type = #tpu.core_type<tc>} {
    %cst = arith.constant 0.000000e+00 : f32
    %0 = vector.broadcast %cst : f32 to vector<8x64xf32>
    %c0 = arith.constant 0 : index
    %c0_0 = arith.constant 0 : index
    %1 = vector.load %arg0[%c0, %c0_0] : memref<72x128xf32, #tpu.memory_space<vmem>>, vector<8x128xf32>
    %c0_1 = arith.constant 0 : index
    %c0_2 = arith.constant 0 : index
    %c0_3 = arith.constant 0 : index
    %2 = vector.load %arg1[%c0_1, %c0_2, %c0_3] : memref<9x128x64xf32, #tpu.memory_space<vmem>>, vector<1x128x64xf32>
    %3 = vector.shape_cast %2 : vector<1x128x64xf32> to vector<128x64xf32>
    %cst_4 = arith.constant dense<0.000000e+00> : vector<8x64xf32>
    %4 = tpu.matmul %1, %3, %cst_4 {dimension_numbers = #tpu.dot_dimension_numbers<[1], [0], [0], [1], [0, 0, 1, 1], [], []>} : vector<8x128xf32>, vector<128x64xf32>, vector<8x64xf32> -> vector<8x64xf32>
    %5 = arith.addf %0, %4 : vector<8x64xf32>
    %c2 = arith.constant 2 : index
    %c0_5 = arith.constant 0 : index
    %6 = vector.load %arg0[%c2, %c0_5] : memref<72x128xf32, #tpu.memory_space<vmem>>, vector<8x128xf32>
    %c1 = arith.constant 1 : index
    %c0_6 = arith.constant 0 : index
    %c0_7 = arith.constant 0 : index
    %7 = vector.load %arg1[%c1, %c0_6, %c0_7] : memref<9x128x64xf32, #tpu.memory_space<vmem>>, vector<1x128x64xf32>
    %8 = vector.shape_cast %7 : vector<1x128x64xf32> to vector<128x64xf32>
    %cst_8 = arith.constant dense<0.000000e+00> : vector<8x64xf32>
    %9 = tpu.matmul %6, %8, %cst_8 {dimension_numbers = #tpu.dot_dimension_numbers<[1], [0], [0], [1], [0, 0, 1, 1], [], []>} : vector<8x128xf32>, vector<128x64xf32>, vector<8x64xf32> -> vector<8x64xf32>
    %10 = arith.addf %5, %9 : vector<8x64xf32>
    %c4 = arith.constant 4 : index
    %c0_9 = arith.constant 0 : index
    %11 = vector.load %arg0[%c4, %c0_9] : memref<72x128xf32, #tpu.memory_space<vmem>>, vector<8x128xf32>
    %c2_10 = arith.constant 2 : index
    %c0_11 = arith.constant 0 : index
    %c0_12 = arith.constant 0 : index
    %12 = vector.load %arg1[%c2_10, %c0_11, %c0_12] : memref<9x128x64xf32, #tpu.memory_space<vmem>>, vector<1x128x64xf32>
    %13 = vector.shape_cast %12 : vector<1x128x64xf32> to vector<128x64xf32>
    %cst_13 = arith.constant dense<0.000000e+00> : vector<8x64xf32>
    %14 = tpu.matmul %11, %13, %cst_13 {dimension_numbers = #tpu.dot_dimension_numbers<[1], [0], [0], [1], [0, 0, 1, 1], [], []>} : vector<8x128xf32>, vector<128x64xf32>, vector<8x64xf32> -> vector<8x64xf32>
    %15 = arith.addf %10, %14 : vector<8x64xf32>
    %c12 = arith.constant 12 : index
    %c0_14 = arith.constant 0 : index
    %16 = vector.load %arg0[%c12, %c0_14] : memref<72x128xf32, #tpu.memory_space<vmem>>, vector<8x128xf32>
    %c3 = arith.constant 3 : index
    %c0_15 = arith.constant 0 : index
    %c0_16 = arith.constant 0 : index
    %17 = vector.load %arg1[%c3, %c0_15, %c0_16] : memref<9x128x64xf32, #tpu.memory_space<vmem>>, vector<1x128x64xf32>
    %18 = vector.shape_cast %17 : vector<1x128x64xf32> to vector<128x64xf32>
    %cst_17 = arith.constant dense<0.000000e+00> : vector<8x64xf32>
    %19 = tpu.matmul %16, %18, %cst_17 {dimension_numbers = #tpu.dot_dimension_numbers<[1], [0], [0], [1], [0, 0, 1, 1], [], []>} : vector<8x128xf32>, vector<128x64xf32>, vector<8x64xf32> -> vector<8x64xf32>
    %20 = arith.addf %15, %19 : vector<8x64xf32>
    %c14 = arith.constant 14 : index
    %c0_18 = arith.constant 0 : index
    %21 = vector.load %arg0[%c14, %c0_18] : memref<72x128xf32, #tpu.memory_space<vmem>>, vector<8x128xf32>
    %c4_19 = arith.constant 4 : index
    %c0_20 = arith.constant 0 : index
    %c0_21 = arith.constant 0 : index
    %22 = vector.load %arg1[%c4_19, %c0_20, %c0_21] : memref<9x128x64xf32, #tpu.memory_space<vmem>>, vector<1x128x64xf32>
    %23 = vector.shape_cast %22 : vector<1x128x64xf32> to vector<128x64xf32>
    %cst_22 = arith.constant dense<0.000000e+00> : vector<8x64xf32>
    %24 = tpu.matmul %21, %23, %cst_22 {dimension_numbers = #tpu.dot_dimension_numbers<[1], [0], [0], [1], [0, 0, 1, 1], [], []>} : vector<8x128xf32>, vector<128x64xf32>, vector<8x64xf32> -> vector<8x64xf32>
    %25 = arith.addf %20, %24 : vector<8x64xf32>
    %c16 = arith.constant 16 : index
    %c0_23 = arith.constant 0 : index
    %26 = vector.load %arg0[%c16, %c0_23] : memref<72x128xf32, #tpu.memory_space<vmem>>, vector<8x128xf32>
    %c5 = arith.constant 5 : index
    %c0_24 = arith.constant 0 : index
    %c0_25 = arith.constant 0 : index
    %27 = vector.load %arg1[%c5, %c0_24, %c0_25] : memref<9x128x64xf32, #tpu.memory_space<vmem>>, vector<1x128x64xf32>
    %28 = vector.shape_cast %27 : vector<1x128x64xf32> to vector<128x64xf32>
    %cst_26 = arith.constant dense<0.000000e+00> : vector<8x64xf32>
    %29 = tpu.matmul %26, %28, %cst_26 {dimension_numbers = #tpu.dot_dimension_numbers<[1], [0], [0], [1], [0, 0, 1, 1], [], []>} : vector<8x128xf32>, vector<128x64xf32>, vector<8x64xf32> -> vector<8x64xf32>
    %30 = arith.addf %25, %29 : vector<8x64xf32>
    %c24 = arith.constant 24 : index
    %c0_27 = arith.constant 0 : index
    %31 = vector.load %arg0[%c24, %c0_27] : memref<72x128xf32, #tpu.memory_space<vmem>>, vector<8x128xf32>
    %c6 = arith.constant 6 : index
    %c0_28 = arith.constant 0 : index
    %c0_29 = arith.constant 0 : index
    %32 = vector.load %arg1[%c6, %c0_28, %c0_29] : memref<9x128x64xf32, #tpu.memory_space<vmem>>, vector<1x128x64xf32>
    %33 = vector.shape_cast %32 : vector<1x128x64xf32> to vector<128x64xf32>
    %cst_30 = arith.constant dense<0.000000e+00> : vector<8x64xf32>
    %34 = tpu.matmul %31, %33, %cst_30 {dimension_numbers = #tpu.dot_dimension_numbers<[1], [0], [0], [1], [0, 0, 1, 1], [], []>} : vector<8x128xf32>, vector<128x64xf32>, vector<8x64xf32> -> vector<8x64xf32>
    %35 = arith.addf %30, %34 : vector<8x64xf32>
    %c26 = arith.constant 26 : index
    %c0_31 = arith.constant 0 : index
    %36 = vector.load %arg0[%c26, %c0_31] : memref<72x128xf32, #tpu.memory_space<vmem>>, vector<8x128xf32>
    %c7 = arith.constant 7 : index
    %c0_32 = arith.constant 0 : index
    %c0_33 = arith.constant 0 : index
    %37 = vector.load %arg1[%c7, %c0_32, %c0_33] : memref<9x128x64xf32, #tpu.memory_space<vmem>>, vector<1x128x64xf32>
    %38 = vector.shape_cast %37 : vector<1x128x64xf32> to vector<128x64xf32>
    %cst_34 = arith.constant dense<0.000000e+00> : vector<8x64xf32>
    %39 = tpu.matmul %36, %38, %cst_34 {dimension_numbers = #tpu.dot_dimension_numbers<[1], [0], [0], [1], [0, 0, 1, 1], [], []>} : vector<8x128xf32>, vector<128x64xf32>, vector<8x64xf32> -> vector<8x64xf32>
    %40 = arith.addf %35, %39 : vector<8x64xf32>
    %c28 = arith.constant 28 : index
    %c0_35 = arith.constant 0 : index
    %41 = vector.load %arg0[%c28, %c0_35] : memref<72x128xf32, #tpu.memory_space<vmem>>, vector<8x128xf32>
    %c8 = arith.constant 8 : index
    %c0_36 = arith.constant 0 : index
    %c0_37 = arith.constant 0 : index
    %42 = vector.load %arg1[%c8, %c0_36, %c0_37] : memref<9x128x64xf32, #tpu.memory_space<vmem>>, vector<1x128x64xf32>
    %43 = vector.shape_cast %42 : vector<1x128x64xf32> to vector<128x64xf32>
    %cst_38 = arith.constant dense<0.000000e+00> : vector<8x64xf32>
    %44 = tpu.matmul %41, %43, %cst_38 {dimension_numbers = #tpu.dot_dimension_numbers<[1], [0], [0], [1], [0, 0, 1, 1], [], []>} : vector<8x128xf32>, vector<128x64xf32>, vector<8x64xf32> -> vector<8x64xf32>
    %45 = arith.addf %40, %44 : vector<8x64xf32>
    %c0_39 = arith.constant 0 : index
    %c0_40 = arith.constant 0 : index
    %46 = vector.load %arg2[%c0_39, %c0_40] : memref<1x64xf32, #tpu.memory_space<vmem>>, vector<1x64xf32>
    %47 = vector.broadcast %46 : vector<1x64xf32> to vector<8x64xf32>
    %48 = arith.addf %45, %47 : vector<8x64xf32>
    %cst_41 = arith.constant 0.000000e+00 : f32
    %49 = vector.broadcast %cst_41 : f32 to vector<8x64xf32>
    %50 = arith.maximumf %48, %49 : vector<8x64xf32>
    %cst_42 = arith.constant 0.000000e+00 : f32
    %51 = vector.broadcast %cst_42 : f32 to vector<8x64xf32>
    %c12_43 = arith.constant 12 : index
    %c0_44 = arith.constant 0 : index
    %52 = vector.load %arg0[%c12_43, %c0_44] : memref<72x128xf32, #tpu.memory_space<vmem>>, vector<8x128xf32>
    %c0_45 = arith.constant 0 : index
    %c0_46 = arith.constant 0 : index
    %c0_47 = arith.constant 0 : index
    %53 = vector.load %arg1[%c0_45, %c0_46, %c0_47] : memref<9x128x64xf32, #tpu.memory_space<vmem>>, vector<1x128x64xf32>
    %54 = vector.shape_cast %53 : vector<1x128x64xf32> to vector<128x64xf32>
    %cst_48 = arith.constant dense<0.000000e+00> : vector<8x64xf32>
    %55 = tpu.matmul %52, %54, %cst_48 {dimension_numbers = #tpu.dot_dimension_numbers<[1], [0], [0], [1], [0, 0, 1, 1], [], []>} : vector<8x128xf32>, vector<128x64xf32>, vector<8x64xf32> -> vector<8x64xf32>
    %56 = arith.addf %51, %55 : vector<8x64xf32>
    %c14_49 = arith.constant 14 : index
    %c0_50 = arith.constant 0 : index
    %57 = vector.load %arg0[%c14_49, %c0_50] : memref<72x128xf32, #tpu.memory_space<vmem>>, vector<8x128xf32>
    %c1_51 = arith.constant 1 : index
    %c0_52 = arith.constant 0 : index
    %c0_53 = arith.constant 0 : index
    %58 = vector.load %arg1[%c1_51, %c0_52, %c0_53] : memref<9x128x64xf32, #tpu.memory_space<vmem>>, vector<1x128x64xf32>
    %59 = vector.shape_cast %58 : vector<1x128x64xf32> to vector<128x64xf32>
    %cst_54 = arith.constant dense<0.000000e+00> : vector<8x64xf32>
    %60 = tpu.matmul %57, %59, %cst_54 {dimension_numbers = #tpu.dot_dimension_numbers<[1], [0], [0], [1], [0, 0, 1, 1], [], []>} : vector<8x128xf32>, vector<128x64xf32>, vector<8x64xf32> -> vector<8x64xf32>
    %61 = arith.addf %56, %60 : vector<8x64xf32>
    %c16_55 = arith.constant 16 : index
    %c0_56 = arith.constant 0 : index
    %62 = vector.load %arg0[%c16_55, %c0_56] : memref<72x128xf32, #tpu.memory_space<vmem>>, vector<8x128xf32>
    %c2_57 = arith.constant 2 : index
    %c0_58 = arith.constant 0 : index
    %c0_59 = arith.constant 0 : index
    %63 = vector.load %arg1[%c2_57, %c0_58, %c0_59] : memref<9x128x64xf32, #tpu.memory_space<vmem>>, vector<1x128x64xf32>
    %64 = vector.shape_cast %63 : vector<1x128x64xf32> to vector<128x64xf32>
    %cst_60 = arith.constant dense<0.000000e+00> : vector<8x64xf32>
    %65 = tpu.matmul %62, %64, %cst_60 {dimension_numbers = #tpu.dot_dimension_numbers<[1], [0], [0], [1], [0, 0, 1, 1], [], []>} : vector<8x128xf32>, vector<128x64xf32>, vector<8x64xf32> -> vector<8x64xf32>
    %66 = arith.addf %61, %65 : vector<8x64xf32>
    %c24_61 = arith.constant 24 : index
    %c0_62 = arith.constant 0 : index
    %67 = vector.load %arg0[%c24_61, %c0_62] : memref<72x128xf32, #tpu.memory_space<vmem>>, vector<8x128xf32>
    %c3_63 = arith.constant 3 : index
    %c0_64 = arith.constant 0 : index
    %c0_65 = arith.constant 0 : index
    %68 = vector.load %arg1[%c3_63, %c0_64, %c0_65] : memref<9x128x64xf32, #tpu.memory_space<vmem>>, vector<1x128x64xf32>
    %69 = vector.shape_cast %68 : vector<1x128x64xf32> to vector<128x64xf32>
    %cst_66 = arith.constant dense<0.000000e+00> : vector<8x64xf32>
    %70 = tpu.matmul %67, %69, %cst_66 {dimension_numbers = #tpu.dot_dimension_numbers<[1], [0], [0], [1], [0, 0, 1, 1], [], []>} : vector<8x128xf32>, vector<128x64xf32>, vector<8x64xf32> -> vector<8x64xf32>
    %71 = arith.addf %66, %70 : vector<8x64xf32>
    %c26_67 = arith.constant 26 : index
    %c0_68 = arith.constant 0 : index
    %72 = vector.load %arg0[%c26_67, %c0_68] : memref<72x128xf32, #tpu.memory_space<vmem>>, vector<8x128xf32>
    %c4_69 = arith.constant 4 : index
    %c0_70 = arith.constant 0 : index
    %c0_71 = arith.constant 0 : index
    %73 = vector.load %arg1[%c4_69, %c0_70, %c0_71] : memref<9x128x64xf32, #tpu.memory_space<vmem>>, vector<1x128x64xf32>
    %74 = vector.shape_cast %73 : vector<1x128x64xf32> to vector<128x64xf32>
    %cst_72 = arith.constant dense<0.000000e+00> : vector<8x64xf32>
    %75 = tpu.matmul %72, %74, %cst_72 {dimension_numbers = #tpu.dot_dimension_numbers<[1], [0], [0], [1], [0, 0, 1, 1], [], []>} : vector<8x128xf32>, vector<128x64xf32>, vector<8x64xf32> -> vector<8x64xf32>
    %76 = arith.addf %71, %75 : vector<8x64xf32>
    %c28_73 = arith.constant 28 : index
    %c0_74 = arith.constant 0 : index
    %77 = vector.load %arg0[%c28_73, %c0_74] : memref<72x128xf32, #tpu.memory_space<vmem>>, vector<8x128xf32>
    %c5_75 = arith.constant 5 : index
    %c0_76 = arith.constant 0 : index
    %c0_77 = arith.constant 0 : index
    %78 = vector.load %arg1[%c5_75, %c0_76, %c0_77] : memref<9x128x64xf32, #tpu.memory_space<vmem>>, vector<1x128x64xf32>
    %79 = vector.shape_cast %78 : vector<1x128x64xf32> to vector<128x64xf32>
    %cst_78 = arith.constant dense<0.000000e+00> : vector<8x64xf32>
    %80 = tpu.matmul %77, %79, %cst_78 {dimension_numbers = #tpu.dot_dimension_numbers<[1], [0], [0], [1], [0, 0, 1, 1], [], []>} : vector<8x128xf32>, vector<128x64xf32>, vector<8x64xf32> -> vector<8x64xf32>
    %81 = arith.addf %76, %80 : vector<8x64xf32>
    %c36 = arith.constant 36 : index
    %c0_79 = arith.constant 0 : index
    %82 = vector.load %arg0[%c36, %c0_79] : memref<72x128xf32, #tpu.memory_space<vmem>>, vector<8x128xf32>
    %c6_80 = arith.constant 6 : index
    %c0_81 = arith.constant 0 : index
    %c0_82 = arith.constant 0 : index
    %83 = vector.load %arg1[%c6_80, %c0_81, %c0_82] : memref<9x128x64xf32, #tpu.memory_space<vmem>>, vector<1x128x64xf32>
    %84 = vector.shape_cast %83 : vector<1x128x64xf32> to vector<128x64xf32>
    %cst_83 = arith.constant dense<0.000000e+00> : vector<8x64xf32>
    %85 = tpu.matmul %82, %84, %cst_83 {dimension_numbers = #tpu.dot_dimension_numbers<[1], [0], [0], [1], [0, 0, 1, 1], [], []>} : vector<8x128xf32>, vector<128x64xf32>, vector<8x64xf32> -> vector<8x64xf32>
    %86 = arith.addf %81, %85 : vector<8x64xf32>
    %c38 = arith.constant 38 : index
    %c0_84 = arith.constant 0 : index
    %87 = vector.load %arg0[%c38, %c0_84] : memref<72x128xf32, #tpu.memory_space<vmem>>, vector<8x128xf32>
    %c7_85 = arith.constant 7 : index
    %c0_86 = arith.constant 0 : index
    %c0_87 = arith.constant 0 : index
    %88 = vector.load %arg1[%c7_85, %c0_86, %c0_87] : memref<9x128x64xf32, #tpu.memory_space<vmem>>, vector<1x128x64xf32>
    %89 = vector.shape_cast %88 : vector<1x128x64xf32> to vector<128x64xf32>
    %cst_88 = arith.constant dense<0.000000e+00> : vector<8x64xf32>
    %90 = tpu.matmul %87, %89, %cst_88 {dimension_numbers = #tpu.dot_dimension_numbers<[1], [0], [0], [1], [0, 0, 1, 1], [], []>} : vector<8x128xf32>, vector<128x64xf32>, vector<8x64xf32> -> vector<8x64xf32>
    %91 = arith.addf %86, %90 : vector<8x64xf32>
    %c40 = arith.constant 40 : index
    %c0_89 = arith.constant 0 : index
    %92 = vector.load %arg0[%c40, %c0_89] : memref<72x128xf32, #tpu.memory_space<vmem>>, vector<8x128xf32>
    %c8_90 = arith.constant 8 : index
    %c0_91 = arith.constant 0 : index
    %c0_92 = arith.constant 0 : index
    %93 = vector.load %arg1[%c8_90, %c0_91, %c0_92] : memref<9x128x64xf32, #tpu.memory_space<vmem>>, vector<1x128x64xf32>
    %94 = vector.shape_cast %93 : vector<1x128x64xf32> to vector<128x64xf32>
    %cst_93 = arith.constant dense<0.000000e+00> : vector<8x64xf32>
    %95 = tpu.matmul %92, %94, %cst_93 {dimension_numbers = #tpu.dot_dimension_numbers<[1], [0], [0], [1], [0, 0, 1, 1], [], []>} : vector<8x128xf32>, vector<128x64xf32>, vector<8x64xf32> -> vector<8x64xf32>
    %96 = arith.addf %91, %95 : vector<8x64xf32>
    %c0_94 = arith.constant 0 : index
    %c0_95 = arith.constant 0 : index
    %97 = vector.load %arg2[%c0_94, %c0_95] : memref<1x64xf32, #tpu.memory_space<vmem>>, vector<1x64xf32>
    %98 = vector.broadcast %97 : vector<1x64xf32> to vector<8x64xf32>
    %99 = arith.addf %96, %98 : vector<8x64xf32>
    %cst_96 = arith.constant 0.000000e+00 : f32
    %100 = vector.broadcast %cst_96 : f32 to vector<8x64xf32>
    %101 = arith.maximumf %99, %100 : vector<8x64xf32>
    %cst_97 = arith.constant 0.000000e+00 : f32
    %102 = vector.broadcast %cst_97 : f32 to vector<8x64xf32>
    %c24_98 = arith.constant 24 : index
    %c0_99 = arith.constant 0 : index
    %103 = vector.load %arg0[%c24_98, %c0_99] : memref<72x128xf32, #tpu.memory_space<vmem>>, vector<8x128xf32>
    %c0_100 = arith.constant 0 : index
    %c0_101 = arith.constant 0 : index
    %c0_102 = arith.constant 0 : index
    %104 = vector.load %arg1[%c0_100, %c0_101, %c0_102] : memref<9x128x64xf32, #tpu.memory_space<vmem>>, vector<1x128x64xf32>
    %105 = vector.shape_cast %104 : vector<1x128x64xf32> to vector<128x64xf32>
    %cst_103 = arith.constant dense<0.000000e+00> : vector<8x64xf32>
    %106 = tpu.matmul %103, %105, %cst_103 {dimension_numbers = #tpu.dot_dimension_numbers<[1], [0], [0], [1], [0, 0, 1, 1], [], []>} : vector<8x128xf32>, vector<128x64xf32>, vector<8x64xf32> -> vector<8x64xf32>
    %107 = arith.addf %102, %106 : vector<8x64xf32>
    %c26_104 = arith.constant 26 : index
    %c0_105 = arith.constant 0 : index
    %108 = vector.load %arg0[%c26_104, %c0_105] : memref<72x128xf32, #tpu.memory_space<vmem>>, vector<8x128xf32>
    %c1_106 = arith.constant 1 : index
    %c0_107 = arith.constant 0 : index
    %c0_108 = arith.constant 0 : index
    %109 = vector.load %arg1[%c1_106, %c0_107, %c0_108] : memref<9x128x64xf32, #tpu.memory_space<vmem>>, vector<1x128x64xf32>
    %110 = vector.shape_cast %109 : vector<1x128x64xf32> to vector<128x64xf32>
    %cst_109 = arith.constant dense<0.000000e+00> : vector<8x64xf32>
    %111 = tpu.matmul %108, %110, %cst_109 {dimension_numbers = #tpu.dot_dimension_numbers<[1], [0], [0], [1], [0, 0, 1, 1], [], []>} : vector<8x128xf32>, vector<128x64xf32>, vector<8x64xf32> -> vector<8x64xf32>
    %112 = arith.addf %107, %111 : vector<8x64xf32>
    %c28_110 = arith.constant 28 : index
    %c0_111 = arith.constant 0 : index
    %113 = vector.load %arg0[%c28_110, %c0_111] : memref<72x128xf32, #tpu.memory_space<vmem>>, vector<8x128xf32>
    %c2_112 = arith.constant 2 : index
    %c0_113 = arith.constant 0 : index
    %c0_114 = arith.constant 0 : index
    %114 = vector.load %arg1[%c2_112, %c0_113, %c0_114] : memref<9x128x64xf32, #tpu.memory_space<vmem>>, vector<1x128x64xf32>
    %115 = vector.shape_cast %114 : vector<1x128x64xf32> to vector<128x64xf32>
    %cst_115 = arith.constant dense<0.000000e+00> : vector<8x64xf32>
    %116 = tpu.matmul %113, %115, %cst_115 {dimension_numbers = #tpu.dot_dimension_numbers<[1], [0], [0], [1], [0, 0, 1, 1], [], []>} : vector<8x128xf32>, vector<128x64xf32>, vector<8x64xf32> -> vector<8x64xf32>
    %117 = arith.addf %112, %116 : vector<8x64xf32>
    %c36_116 = arith.constant 36 : index
    %c0_117 = arith.constant 0 : index
    %118 = vector.load %arg0[%c36_116, %c0_117] : memref<72x128xf32, #tpu.memory_space<vmem>>, vector<8x128xf32>
    %c3_118 = arith.constant 3 : index
    %c0_119 = arith.constant 0 : index
    %c0_120 = arith.constant 0 : index
    %119 = vector.load %arg1[%c3_118, %c0_119, %c0_120] : memref<9x128x64xf32, #tpu.memory_space<vmem>>, vector<1x128x64xf32>
    %120 = vector.shape_cast %119 : vector<1x128x64xf32> to vector<128x64xf32>
    %cst_121 = arith.constant dense<0.000000e+00> : vector<8x64xf32>
    %121 = tpu.matmul %118, %120, %cst_121 {dimension_numbers = #tpu.dot_dimension_numbers<[1], [0], [0], [1], [0, 0, 1, 1], [], []>} : vector<8x128xf32>, vector<128x64xf32>, vector<8x64xf32> -> vector<8x64xf32>
    %122 = arith.addf %117, %121 : vector<8x64xf32>
    %c38_122 = arith.constant 38 : index
    %c0_123 = arith.constant 0 : index
    %123 = vector.load %arg0[%c38_122, %c0_123] : memref<72x128xf32, #tpu.memory_space<vmem>>, vector<8x128xf32>
    %c4_124 = arith.constant 4 : index
    %c0_125 = arith.constant 0 : index
    %c0_126 = arith.constant 0 : index
    %124 = vector.load %arg1[%c4_124, %c0_125, %c0_126] : memref<9x128x64xf32, #tpu.memory_space<vmem>>, vector<1x128x64xf32>
    %125 = vector.shape_cast %124 : vector<1x128x64xf32> to vector<128x64xf32>
    %cst_127 = arith.constant dense<0.000000e+00> : vector<8x64xf32>
    %126 = tpu.matmul %123, %125, %cst_127 {dimension_numbers = #tpu.dot_dimension_numbers<[1], [0], [0], [1], [0, 0, 1, 1], [], []>} : vector<8x128xf32>, vector<128x64xf32>, vector<8x64xf32> -> vector<8x64xf32>
    %127 = arith.addf %122, %126 : vector<8x64xf32>
    %c40_128 = arith.constant 40 : index
    %c0_129 = arith.constant 0 : index
    %128 = vector.load %arg0[%c40_128, %c0_129] : memref<72x128xf32, #tpu.memory_space<vmem>>, vector<8x128xf32>
    %c5_130 = arith.constant 5 : index
    %c0_131 = arith.constant 0 : index
    %c0_132 = arith.constant 0 : index
    %129 = vector.load %arg1[%c5_130, %c0_131, %c0_132] : memref<9x128x64xf32, #tpu.memory_space<vmem>>, vector<1x128x64xf32>
    %130 = vector.shape_cast %129 : vector<1x128x64xf32> to vector<128x64xf32>
    %cst_133 = arith.constant dense<0.000000e+00> : vector<8x64xf32>
    %131 = tpu.matmul %128, %130, %cst_133 {dimension_numbers = #tpu.dot_dimension_numbers<[1], [0], [0], [1], [0, 0, 1, 1], [], []>} : vector<8x128xf32>, vector<128x64xf32>, vector<8x64xf32> -> vector<8x64xf32>
    %132 = arith.addf %127, %131 : vector<8x64xf32>
    %c48 = arith.constant 48 : index
    %c0_134 = arith.constant 0 : index
    %133 = vector.load %arg0[%c48, %c0_134] : memref<72x128xf32, #tpu.memory_space<vmem>>, vector<8x128xf32>
    %c6_135 = arith.constant 6 : index
    %c0_136 = arith.constant 0 : index
    %c0_137 = arith.constant 0 : index
    %134 = vector.load %arg1[%c6_135, %c0_136, %c0_137] : memref<9x128x64xf32, #tpu.memory_space<vmem>>, vector<1x128x64xf32>
    %135 = vector.shape_cast %134 : vector<1x128x64xf32> to vector<128x64xf32>
    %cst_138 = arith.constant dense<0.000000e+00> : vector<8x64xf32>
    %136 = tpu.matmul %133, %135, %cst_138 {dimension_numbers = #tpu.dot_dimension_numbers<[1], [0], [0], [1], [0, 0, 1, 1], [], []>} : vector<8x128xf32>, vector<128x64xf32>, vector<8x64xf32> -> vector<8x64xf32>
    %137 = arith.addf %132, %136 : vector<8x64xf32>
    %c50 = arith.constant 50 : index
    %c0_139 = arith.constant 0 : index
    %138 = vector.load %arg0[%c50, %c0_139] : memref<72x128xf32, #tpu.memory_space<vmem>>, vector<8x128xf32>
    %c7_140 = arith.constant 7 : index
    %c0_141 = arith.constant 0 : index
    %c0_142 = arith.constant 0 : index
    %139 = vector.load %arg1[%c7_140, %c0_141, %c0_142] : memref<9x128x64xf32, #tpu.memory_space<vmem>>, vector<1x128x64xf32>
    %140 = vector.shape_cast %139 : vector<1x128x64xf32> to vector<128x64xf32>
    %cst_143 = arith.constant dense<0.000000e+00> : vector<8x64xf32>
    %141 = tpu.matmul %138, %140, %cst_143 {dimension_numbers = #tpu.dot_dimension_numbers<[1], [0], [0], [1], [0, 0, 1, 1], [], []>} : vector<8x128xf32>, vector<128x64xf32>, vector<8x64xf32> -> vector<8x64xf32>
    %142 = arith.addf %137, %141 : vector<8x64xf32>
    %c52 = arith.constant 52 : index
    %c0_144 = arith.constant 0 : index
    %143 = vector.load %arg0[%c52, %c0_144] : memref<72x128xf32, #tpu.memory_space<vmem>>, vector<8x128xf32>
    %c8_145 = arith.constant 8 : index
    %c0_146 = arith.constant 0 : index
    %c0_147 = arith.constant 0 : index
    %144 = vector.load %arg1[%c8_145, %c0_146, %c0_147] : memref<9x128x64xf32, #tpu.memory_space<vmem>>, vector<1x128x64xf32>
    %145 = vector.shape_cast %144 : vector<1x128x64xf32> to vector<128x64xf32>
    %cst_148 = arith.constant dense<0.000000e+00> : vector<8x64xf32>
    %146 = tpu.matmul %143, %145, %cst_148 {dimension_numbers = #tpu.dot_dimension_numbers<[1], [0], [0], [1], [0, 0, 1, 1], [], []>} : vector<8x128xf32>, vector<128x64xf32>, vector<8x64xf32> -> vector<8x64xf32>
    %147 = arith.addf %142, %146 : vector<8x64xf32>
    %c0_149 = arith.constant 0 : index
    %c0_150 = arith.constant 0 : index
    %148 = vector.load %arg2[%c0_149, %c0_150] : memref<1x64xf32, #tpu.memory_space<vmem>>, vector<1x64xf32>
    %149 = vector.broadcast %148 : vector<1x64xf32> to vector<8x64xf32>
    %150 = arith.addf %147, %149 : vector<8x64xf32>
    %cst_151 = arith.constant 0.000000e+00 : f32
    %151 = vector.broadcast %cst_151 : f32 to vector<8x64xf32>
    %152 = arith.maximumf %150, %151 : vector<8x64xf32>
    %cst_152 = arith.constant 0.000000e+00 : f32
    %153 = vector.broadcast %cst_152 : f32 to vector<8x64xf32>
    %c36_153 = arith.constant 36 : index
    %c0_154 = arith.constant 0 : index
    %154 = vector.load %arg0[%c36_153, %c0_154] : memref<72x128xf32, #tpu.memory_space<vmem>>, vector<8x128xf32>
    %c0_155 = arith.constant 0 : index
    %c0_156 = arith.constant 0 : index
    %c0_157 = arith.constant 0 : index
    %155 = vector.load %arg1[%c0_155, %c0_156, %c0_157] : memref<9x128x64xf32, #tpu.memory_space<vmem>>, vector<1x128x64xf32>
    %156 = vector.shape_cast %155 : vector<1x128x64xf32> to vector<128x64xf32>
    %cst_158 = arith.constant dense<0.000000e+00> : vector<8x64xf32>
    %157 = tpu.matmul %154, %156, %cst_158 {dimension_numbers = #tpu.dot_dimension_numbers<[1], [0], [0], [1], [0, 0, 1, 1], [], []>} : vector<8x128xf32>, vector<128x64xf32>, vector<8x64xf32> -> vector<8x64xf32>
    %158 = arith.addf %153, %157 : vector<8x64xf32>
    %c38_159 = arith.constant 38 : index
    %c0_160 = arith.constant 0 : index
    %159 = vector.load %arg0[%c38_159, %c0_160] : memref<72x128xf32, #tpu.memory_space<vmem>>, vector<8x128xf32>
    %c1_161 = arith.constant 1 : index
    %c0_162 = arith.constant 0 : index
    %c0_163 = arith.constant 0 : index
    %160 = vector.load %arg1[%c1_161, %c0_162, %c0_163] : memref<9x128x64xf32, #tpu.memory_space<vmem>>, vector<1x128x64xf32>
    %161 = vector.shape_cast %160 : vector<1x128x64xf32> to vector<128x64xf32>
    %cst_164 = arith.constant dense<0.000000e+00> : vector<8x64xf32>
    %162 = tpu.matmul %159, %161, %cst_164 {dimension_numbers = #tpu.dot_dimension_numbers<[1], [0], [0], [1], [0, 0, 1, 1], [], []>} : vector<8x128xf32>, vector<128x64xf32>, vector<8x64xf32> -> vector<8x64xf32>
    %163 = arith.addf %158, %162 : vector<8x64xf32>
    %c40_165 = arith.constant 40 : index
    %c0_166 = arith.constant 0 : index
    %164 = vector.load %arg0[%c40_165, %c0_166] : memref<72x128xf32, #tpu.memory_space<vmem>>, vector<8x128xf32>
    %c2_167 = arith.constant 2 : index
    %c0_168 = arith.constant 0 : index
    %c0_169 = arith.constant 0 : index
    %165 = vector.load %arg1[%c2_167, %c0_168, %c0_169] : memref<9x128x64xf32, #tpu.memory_space<vmem>>, vector<1x128x64xf32>
    %166 = vector.shape_cast %165 : vector<1x128x64xf32> to vector<128x64xf32>
    %cst_170 = arith.constant dense<0.000000e+00> : vector<8x64xf32>
    %167 = tpu.matmul %164, %166, %cst_170 {dimension_numbers = #tpu.dot_dimension_numbers<[1], [0], [0], [1], [0, 0, 1, 1], [], []>} : vector<8x128xf32>, vector<128x64xf32>, vector<8x64xf32> -> vector<8x64xf32>
    %168 = arith.addf %163, %167 : vector<8x64xf32>
    %c48_171 = arith.constant 48 : index
    %c0_172 = arith.constant 0 : index
    %169 = vector.load %arg0[%c48_171, %c0_172] : memref<72x128xf32, #tpu.memory_space<vmem>>, vector<8x128xf32>
    %c3_173 = arith.constant 3 : index
    %c0_174 = arith.constant 0 : index
    %c0_175 = arith.constant 0 : index
    %170 = vector.load %arg1[%c3_173, %c0_174, %c0_175] : memref<9x128x64xf32, #tpu.memory_space<vmem>>, vector<1x128x64xf32>
    %171 = vector.shape_cast %170 : vector<1x128x64xf32> to vector<128x64xf32>
    %cst_176 = arith.constant dense<0.000000e+00> : vector<8x64xf32>
    %172 = tpu.matmul %169, %171, %cst_176 {dimension_numbers = #tpu.dot_dimension_numbers<[1], [0], [0], [1], [0, 0, 1, 1], [], []>} : vector<8x128xf32>, vector<128x64xf32>, vector<8x64xf32> -> vector<8x64xf32>
    %173 = arith.addf %168, %172 : vector<8x64xf32>
    %c50_177 = arith.constant 50 : index
    %c0_178 = arith.constant 0 : index
    %174 = vector.load %arg0[%c50_177, %c0_178] : memref<72x128xf32, #tpu.memory_space<vmem>>, vector<8x128xf32>
    %c4_179 = arith.constant 4 : index
    %c0_180 = arith.constant 0 : index
    %c0_181 = arith.constant 0 : index
    %175 = vector.load %arg1[%c4_179, %c0_180, %c0_181] : memref<9x128x64xf32, #tpu.memory_space<vmem>>, vector<1x128x64xf32>
    %176 = vector.shape_cast %175 : vector<1x128x64xf32> to vector<128x64xf32>
    %cst_182 = arith.constant dense<0.000000e+00> : vector<8x64xf32>
    %177 = tpu.matmul %174, %176, %cst_182 {dimension_numbers = #tpu.dot_dimension_numbers<[1], [0], [0], [1], [0, 0, 1, 1], [], []>} : vector<8x128xf32>, vector<128x64xf32>, vector<8x64xf32> -> vector<8x64xf32>
    %178 = arith.addf %173, %177 : vector<8x64xf32>
    %c52_183 = arith.constant 52 : index
    %c0_184 = arith.constant 0 : index
    %179 = vector.load %arg0[%c52_183, %c0_184] : memref<72x128xf32, #tpu.memory_space<vmem>>, vector<8x128xf32>
    %c5_185 = arith.constant 5 : index
    %c0_186 = arith.constant 0 : index
    %c0_187 = arith.constant 0 : index
    %180 = vector.load %arg1[%c5_185, %c0_186, %c0_187] : memref<9x128x64xf32, #tpu.memory_space<vmem>>, vector<1x128x64xf32>
    %181 = vector.shape_cast %180 : vector<1x128x64xf32> to vector<128x64xf32>
    %cst_188 = arith.constant dense<0.000000e+00> : vector<8x64xf32>
    %182 = tpu.matmul %179, %181, %cst_188 {dimension_numbers = #tpu.dot_dimension_numbers<[1], [0], [0], [1], [0, 0, 1, 1], [], []>} : vector<8x128xf32>, vector<128x64xf32>, vector<8x64xf32> -> vector<8x64xf32>
    %183 = arith.addf %178, %182 : vector<8x64xf32>
    %c60 = arith.constant 60 : index
    %c0_189 = arith.constant 0 : index
    %184 = vector.load %arg0[%c60, %c0_189] : memref<72x128xf32, #tpu.memory_space<vmem>>, vector<8x128xf32>
    %c6_190 = arith.constant 6 : index
    %c0_191 = arith.constant 0 : index
    %c0_192 = arith.constant 0 : index
    %185 = vector.load %arg1[%c6_190, %c0_191, %c0_192] : memref<9x128x64xf32, #tpu.memory_space<vmem>>, vector<1x128x64xf32>
    %186 = vector.shape_cast %185 : vector<1x128x64xf32> to vector<128x64xf32>
    %cst_193 = arith.constant dense<0.000000e+00> : vector<8x64xf32>
    %187 = tpu.matmul %184, %186, %cst_193 {dimension_numbers = #tpu.dot_dimension_numbers<[1], [0], [0], [1], [0, 0, 1, 1], [], []>} : vector<8x128xf32>, vector<128x64xf32>, vector<8x64xf32> -> vector<8x64xf32>
    %188 = arith.addf %183, %187 : vector<8x64xf32>
    %c62 = arith.constant 62 : index
    %c0_194 = arith.constant 0 : index
    %189 = vector.load %arg0[%c62, %c0_194] : memref<72x128xf32, #tpu.memory_space<vmem>>, vector<8x128xf32>
    %c7_195 = arith.constant 7 : index
    %c0_196 = arith.constant 0 : index
    %c0_197 = arith.constant 0 : index
    %190 = vector.load %arg1[%c7_195, %c0_196, %c0_197] : memref<9x128x64xf32, #tpu.memory_space<vmem>>, vector<1x128x64xf32>
    %191 = vector.shape_cast %190 : vector<1x128x64xf32> to vector<128x64xf32>
    %cst_198 = arith.constant dense<0.000000e+00> : vector<8x64xf32>
    %192 = tpu.matmul %189, %191, %cst_198 {dimension_numbers = #tpu.dot_dimension_numbers<[1], [0], [0], [1], [0, 0, 1, 1], [], []>} : vector<8x128xf32>, vector<128x64xf32>, vector<8x64xf32> -> vector<8x64xf32>
    %193 = arith.addf %188, %192 : vector<8x64xf32>
    %c64 = arith.constant 64 : index
    %c0_199 = arith.constant 0 : index
    %194 = vector.load %arg0[%c64, %c0_199] : memref<72x128xf32, #tpu.memory_space<vmem>>, vector<8x128xf32>
    %c8_200 = arith.constant 8 : index
    %c0_201 = arith.constant 0 : index
    %c0_202 = arith.constant 0 : index
    %195 = vector.load %arg1[%c8_200, %c0_201, %c0_202] : memref<9x128x64xf32, #tpu.memory_space<vmem>>, vector<1x128x64xf32>
    %196 = vector.shape_cast %195 : vector<1x128x64xf32> to vector<128x64xf32>
    %cst_203 = arith.constant dense<0.000000e+00> : vector<8x64xf32>
    %197 = tpu.matmul %194, %196, %cst_203 {dimension_numbers = #tpu.dot_dimension_numbers<[1], [0], [0], [1], [0, 0, 1, 1], [], []>} : vector<8x128xf32>, vector<128x64xf32>, vector<8x64xf32> -> vector<8x64xf32>
    %198 = arith.addf %193, %197 : vector<8x64xf32>
    %c0_204 = arith.constant 0 : index
    %c0_205 = arith.constant 0 : index
    %199 = vector.load %arg2[%c0_204, %c0_205] : memref<1x64xf32, #tpu.memory_space<vmem>>, vector<1x64xf32>
    %200 = vector.broadcast %199 : vector<1x64xf32> to vector<8x64xf32>
    %201 = arith.addf %198, %200 : vector<8x64xf32>
    %cst_206 = arith.constant 0.000000e+00 : f32
    %202 = vector.broadcast %cst_206 : f32 to vector<8x64xf32>
    %203 = arith.maximumf %201, %202 : vector<8x64xf32>
    %cst_207 = arith.constant 0.000000e+00 : f32
    %204 = vector.broadcast %cst_207 : f32 to vector<4x64xf32>
    %cst_208 = arith.constant 0.000000e+00 : f32
    %205 = vector.broadcast %cst_208 : f32 to vector<4x64xf32>
    %c0_209 = arith.constant 0 : index
    %c0_210 = arith.constant 0 : index
    %c0_211 = arith.constant 0 : index
    %206 = vector.load %arg3[%c0_209, %c0_210, %c0_211] : memref<9x64x64xf32, #tpu.memory_space<vmem>>, vector<1x64x64xf32>
    %207 = vector.shape_cast %206 : vector<1x64x64xf32> to vector<64x64xf32>
    %208 = vector.extract_strided_slice %50 {offsets = [0, 0], sizes = [4, 64], strides = [1, 1]} : vector<8x64xf32> to vector<4x64xf32>
    %cst_212 = arith.constant dense<0.000000e+00> : vector<4x64xf32>
    %209 = tpu.matmul %208, %207, %cst_212 {dimension_numbers = #tpu.dot_dimension_numbers<[1], [0], [0], [1], [0, 0, 1, 1], [], []>} : vector<4x64xf32>, vector<64x64xf32>, vector<4x64xf32> -> vector<4x64xf32>
    %210 = arith.addf %204, %209 : vector<4x64xf32>
    %211 = vector.extract_strided_slice %101 {offsets = [0, 0], sizes = [4, 64], strides = [1, 1]} : vector<8x64xf32> to vector<4x64xf32>
    %cst_213 = arith.constant dense<0.000000e+00> : vector<4x64xf32>
    %212 = tpu.matmul %211, %207, %cst_213 {dimension_numbers = #tpu.dot_dimension_numbers<[1], [0], [0], [1], [0, 0, 1, 1], [], []>} : vector<4x64xf32>, vector<64x64xf32>, vector<4x64xf32> -> vector<4x64xf32>
    %213 = arith.addf %205, %212 : vector<4x64xf32>
    %c1_214 = arith.constant 1 : index
    %c0_215 = arith.constant 0 : index
    %c0_216 = arith.constant 0 : index
    %214 = vector.load %arg3[%c1_214, %c0_215, %c0_216] : memref<9x64x64xf32, #tpu.memory_space<vmem>>, vector<1x64x64xf32>
    %215 = vector.shape_cast %214 : vector<1x64x64xf32> to vector<64x64xf32>
    %216 = vector.extract_strided_slice %50 {offsets = [2, 0], sizes = [4, 64], strides = [1, 1]} : vector<8x64xf32> to vector<4x64xf32>
    %cst_217 = arith.constant dense<0.000000e+00> : vector<4x64xf32>
    %217 = tpu.matmul %216, %215, %cst_217 {dimension_numbers = #tpu.dot_dimension_numbers<[1], [0], [0], [1], [0, 0, 1, 1], [], []>} : vector<4x64xf32>, vector<64x64xf32>, vector<4x64xf32> -> vector<4x64xf32>
    %218 = arith.addf %210, %217 : vector<4x64xf32>
    %219 = vector.extract_strided_slice %101 {offsets = [2, 0], sizes = [4, 64], strides = [1, 1]} : vector<8x64xf32> to vector<4x64xf32>
    %cst_218 = arith.constant dense<0.000000e+00> : vector<4x64xf32>
    %220 = tpu.matmul %219, %215, %cst_218 {dimension_numbers = #tpu.dot_dimension_numbers<[1], [0], [0], [1], [0, 0, 1, 1], [], []>} : vector<4x64xf32>, vector<64x64xf32>, vector<4x64xf32> -> vector<4x64xf32>
    %221 = arith.addf %213, %220 : vector<4x64xf32>
    %c2_219 = arith.constant 2 : index
    %c0_220 = arith.constant 0 : index
    %c0_221 = arith.constant 0 : index
    %222 = vector.load %arg3[%c2_219, %c0_220, %c0_221] : memref<9x64x64xf32, #tpu.memory_space<vmem>>, vector<1x64x64xf32>
    %223 = vector.shape_cast %222 : vector<1x64x64xf32> to vector<64x64xf32>
    %224 = vector.extract_strided_slice %50 {offsets = [4, 0], sizes = [4, 64], strides = [1, 1]} : vector<8x64xf32> to vector<4x64xf32>
    %cst_222 = arith.constant dense<0.000000e+00> : vector<4x64xf32>
    %225 = tpu.matmul %224, %223, %cst_222 {dimension_numbers = #tpu.dot_dimension_numbers<[1], [0], [0], [1], [0, 0, 1, 1], [], []>} : vector<4x64xf32>, vector<64x64xf32>, vector<4x64xf32> -> vector<4x64xf32>
    %226 = arith.addf %218, %225 : vector<4x64xf32>
    %227 = vector.extract_strided_slice %101 {offsets = [4, 0], sizes = [4, 64], strides = [1, 1]} : vector<8x64xf32> to vector<4x64xf32>
    %cst_223 = arith.constant dense<0.000000e+00> : vector<4x64xf32>
    %228 = tpu.matmul %227, %223, %cst_223 {dimension_numbers = #tpu.dot_dimension_numbers<[1], [0], [0], [1], [0, 0, 1, 1], [], []>} : vector<4x64xf32>, vector<64x64xf32>, vector<4x64xf32> -> vector<4x64xf32>
    %229 = arith.addf %221, %228 : vector<4x64xf32>
    %c3_224 = arith.constant 3 : index
    %c0_225 = arith.constant 0 : index
    %c0_226 = arith.constant 0 : index
    %230 = vector.load %arg3[%c3_224, %c0_225, %c0_226] : memref<9x64x64xf32, #tpu.memory_space<vmem>>, vector<1x64x64xf32>
    %231 = vector.shape_cast %230 : vector<1x64x64xf32> to vector<64x64xf32>
    %232 = vector.extract_strided_slice %101 {offsets = [0, 0], sizes = [4, 64], strides = [1, 1]} : vector<8x64xf32> to vector<4x64xf32>
    %cst_227 = arith.constant dense<0.000000e+00> : vector<4x64xf32>
    %233 = tpu.matmul %232, %231, %cst_227 {dimension_numbers = #tpu.dot_dimension_numbers<[1], [0], [0], [1], [0, 0, 1, 1], [], []>} : vector<4x64xf32>, vector<64x64xf32>, vector<4x64xf32> -> vector<4x64xf32>
    %234 = arith.addf %226, %233 : vector<4x64xf32>
    %235 = vector.extract_strided_slice %152 {offsets = [0, 0], sizes = [4, 64], strides = [1, 1]} : vector<8x64xf32> to vector<4x64xf32>
    %cst_228 = arith.constant dense<0.000000e+00> : vector<4x64xf32>
    %236 = tpu.matmul %235, %231, %cst_228 {dimension_numbers = #tpu.dot_dimension_numbers<[1], [0], [0], [1], [0, 0, 1, 1], [], []>} : vector<4x64xf32>, vector<64x64xf32>, vector<4x64xf32> -> vector<4x64xf32>
    %237 = arith.addf %229, %236 : vector<4x64xf32>
    %c4_229 = arith.constant 4 : index
    %c0_230 = arith.constant 0 : index
    %c0_231 = arith.constant 0 : index
    %238 = vector.load %arg3[%c4_229, %c0_230, %c0_231] : memref<9x64x64xf32, #tpu.memory_space<vmem>>, vector<1x64x64xf32>
    %239 = vector.shape_cast %238 : vector<1x64x64xf32> to vector<64x64xf32>
    %240 = vector.extract_strided_slice %101 {offsets = [2, 0], sizes = [4, 64], strides = [1, 1]} : vector<8x64xf32> to vector<4x64xf32>
    %cst_232 = arith.constant dense<0.000000e+00> : vector<4x64xf32>
    %241 = tpu.matmul %240, %239, %cst_232 {dimension_numbers = #tpu.dot_dimension_numbers<[1], [0], [0], [1], [0, 0, 1, 1], [], []>} : vector<4x64xf32>, vector<64x64xf32>, vector<4x64xf32> -> vector<4x64xf32>
    %242 = arith.addf %234, %241 : vector<4x64xf32>
    %243 = vector.extract_strided_slice %152 {offsets = [2, 0], sizes = [4, 64], strides = [1, 1]} : vector<8x64xf32> to vector<4x64xf32>
    %cst_233 = arith.constant dense<0.000000e+00> : vector<4x64xf32>
    %244 = tpu.matmul %243, %239, %cst_233 {dimension_numbers = #tpu.dot_dimension_numbers<[1], [0], [0], [1], [0, 0, 1, 1], [], []>} : vector<4x64xf32>, vector<64x64xf32>, vector<4x64xf32> -> vector<4x64xf32>
    %245 = arith.addf %237, %244 : vector<4x64xf32>
    %c5_234 = arith.constant 5 : index
    %c0_235 = arith.constant 0 : index
    %c0_236 = arith.constant 0 : index
    %246 = vector.load %arg3[%c5_234, %c0_235, %c0_236] : memref<9x64x64xf32, #tpu.memory_space<vmem>>, vector<1x64x64xf32>
    %247 = vector.shape_cast %246 : vector<1x64x64xf32> to vector<64x64xf32>
    %248 = vector.extract_strided_slice %101 {offsets = [4, 0], sizes = [4, 64], strides = [1, 1]} : vector<8x64xf32> to vector<4x64xf32>
    %cst_237 = arith.constant dense<0.000000e+00> : vector<4x64xf32>
    %249 = tpu.matmul %248, %247, %cst_237 {dimension_numbers = #tpu.dot_dimension_numbers<[1], [0], [0], [1], [0, 0, 1, 1], [], []>} : vector<4x64xf32>, vector<64x64xf32>, vector<4x64xf32> -> vector<4x64xf32>
    %250 = arith.addf %242, %249 : vector<4x64xf32>
    %251 = vector.extract_strided_slice %152 {offsets = [4, 0], sizes = [4, 64], strides = [1, 1]} : vector<8x64xf32> to vector<4x64xf32>
    %cst_238 = arith.constant dense<0.000000e+00> : vector<4x64xf32>
    %252 = tpu.matmul %251, %247, %cst_238 {dimension_numbers = #tpu.dot_dimension_numbers<[1], [0], [0], [1], [0, 0, 1, 1], [], []>} : vector<4x64xf32>, vector<64x64xf32>, vector<4x64xf32> -> vector<4x64xf32>
    %253 = arith.addf %245, %252 : vector<4x64xf32>
    %c6_239 = arith.constant 6 : index
    %c0_240 = arith.constant 0 : index
    %c0_241 = arith.constant 0 : index
    %254 = vector.load %arg3[%c6_239, %c0_240, %c0_241] : memref<9x64x64xf32, #tpu.memory_space<vmem>>, vector<1x64x64xf32>
    %255 = vector.shape_cast %254 : vector<1x64x64xf32> to vector<64x64xf32>
    %256 = vector.extract_strided_slice %152 {offsets = [0, 0], sizes = [4, 64], strides = [1, 1]} : vector<8x64xf32> to vector<4x64xf32>
    %cst_242 = arith.constant dense<0.000000e+00> : vector<4x64xf32>
    %257 = tpu.matmul %256, %255, %cst_242 {dimension_numbers = #tpu.dot_dimension_numbers<[1], [0], [0], [1], [0, 0, 1, 1], [], []>} : vector<4x64xf32>, vector<64x64xf32>, vector<4x64xf32> -> vector<4x64xf32>
    %258 = arith.addf %250, %257 : vector<4x64xf32>
    %259 = vector.extract_strided_slice %203 {offsets = [0, 0], sizes = [4, 64], strides = [1, 1]} : vector<8x64xf32> to vector<4x64xf32>
    %cst_243 = arith.constant dense<0.000000e+00> : vector<4x64xf32>
    %260 = tpu.matmul %259, %255, %cst_243 {dimension_numbers = #tpu.dot_dimension_numbers<[1], [0], [0], [1], [0, 0, 1, 1], [], []>} : vector<4x64xf32>, vector<64x64xf32>, vector<4x64xf32> -> vector<4x64xf32>
    %261 = arith.addf %253, %260 : vector<4x64xf32>
    %c7_244 = arith.constant 7 : index
    %c0_245 = arith.constant 0 : index
    %c0_246 = arith.constant 0 : index
    %262 = vector.load %arg3[%c7_244, %c0_245, %c0_246] : memref<9x64x64xf32, #tpu.memory_space<vmem>>, vector<1x64x64xf32>
    %263 = vector.shape_cast %262 : vector<1x64x64xf32> to vector<64x64xf32>
    %264 = vector.extract_strided_slice %152 {offsets = [2, 0], sizes = [4, 64], strides = [1, 1]} : vector<8x64xf32> to vector<4x64xf32>
    %cst_247 = arith.constant dense<0.000000e+00> : vector<4x64xf32>
    %265 = tpu.matmul %264, %263, %cst_247 {dimension_numbers = #tpu.dot_dimension_numbers<[1], [0], [0], [1], [0, 0, 1, 1], [], []>} : vector<4x64xf32>, vector<64x64xf32>, vector<4x64xf32> -> vector<4x64xf32>
    %266 = arith.addf %258, %265 : vector<4x64xf32>
    %267 = vector.extract_strided_slice %203 {offsets = [2, 0], sizes = [4, 64], strides = [1, 1]} : vector<8x64xf32> to vector<4x64xf32>
    %cst_248 = arith.constant dense<0.000000e+00> : vector<4x64xf32>
    %268 = tpu.matmul %267, %263, %cst_248 {dimension_numbers = #tpu.dot_dimension_numbers<[1], [0], [0], [1], [0, 0, 1, 1], [], []>} : vector<4x64xf32>, vector<64x64xf32>, vector<4x64xf32> -> vector<4x64xf32>
    %269 = arith.addf %261, %268 : vector<4x64xf32>
    %c8_249 = arith.constant 8 : index
    %c0_250 = arith.constant 0 : index
    %c0_251 = arith.constant 0 : index
    %270 = vector.load %arg3[%c8_249, %c0_250, %c0_251] : memref<9x64x64xf32, #tpu.memory_space<vmem>>, vector<1x64x64xf32>
    %271 = vector.shape_cast %270 : vector<1x64x64xf32> to vector<64x64xf32>
    %272 = vector.extract_strided_slice %152 {offsets = [4, 0], sizes = [4, 64], strides = [1, 1]} : vector<8x64xf32> to vector<4x64xf32>
    %cst_252 = arith.constant dense<0.000000e+00> : vector<4x64xf32>
    %273 = tpu.matmul %272, %271, %cst_252 {dimension_numbers = #tpu.dot_dimension_numbers<[1], [0], [0], [1], [0, 0, 1, 1], [], []>} : vector<4x64xf32>, vector<64x64xf32>, vector<4x64xf32> -> vector<4x64xf32>
    %274 = arith.addf %266, %273 : vector<4x64xf32>
    %275 = vector.extract_strided_slice %203 {offsets = [4, 0], sizes = [4, 64], strides = [1, 1]} : vector<8x64xf32> to vector<4x64xf32>
    %cst_253 = arith.constant dense<0.000000e+00> : vector<4x64xf32>
    %276 = tpu.matmul %275, %271, %cst_253 {dimension_numbers = #tpu.dot_dimension_numbers<[1], [0], [0], [1], [0, 0, 1, 1], [], []>} : vector<4x64xf32>, vector<64x64xf32>, vector<4x64xf32> -> vector<4x64xf32>
    %277 = arith.addf %269, %276 : vector<4x64xf32>
    %c0_254 = arith.constant 0 : index
    %c0_255 = arith.constant 0 : index
    %278 = vector.load %arg4[%c0_254, %c0_255] : memref<1x64xf32, #tpu.memory_space<vmem>>, vector<1x64xf32>
    %279 = vector.broadcast %278 : vector<1x64xf32> to vector<4x64xf32>
    %280 = arith.addf %274, %279 : vector<4x64xf32>
    %cst_256 = arith.constant 0.000000e+00 : f32
    %281 = vector.broadcast %cst_256 : f32 to vector<4x64xf32>
    %282 = arith.maximumf %280, %281 : vector<4x64xf32>
    %c0_257 = arith.constant 0 : index
    %c0_258 = arith.constant 0 : index
    %283 = vector.load %arg4[%c0_257, %c0_258] : memref<1x64xf32, #tpu.memory_space<vmem>>, vector<1x64xf32>
    %284 = vector.broadcast %283 : vector<1x64xf32> to vector<4x64xf32>
    %285 = arith.addf %277, %284 : vector<4x64xf32>
    %cst_259 = arith.constant 0.000000e+00 : f32
    %286 = vector.broadcast %cst_259 : f32 to vector<4x64xf32>
    %287 = arith.maximumf %285, %286 : vector<4x64xf32>
    %cst_260 = arith.constant 0.000000e+00 : f32
    %288 = vector.broadcast %cst_260 : f32 to vector<2x128xf32>
    %289 = vector.extract_strided_slice %282 {offsets = [0, 0], sizes = [2, 64], strides = [1, 1]} : vector<4x64xf32> to vector<2x64xf32>
    %c0_261 = arith.constant 0 : index
    %c0_262 = arith.constant 0 : index
    %c0_263 = arith.constant 0 : index
    %290 = vector.load %arg5[%c0_261, %c0_262, %c0_263] : memref<4x64x128xf32, #tpu.memory_space<vmem>>, vector<1x64x128xf32>
    %291 = vector.shape_cast %290 : vector<1x64x128xf32> to vector<64x128xf32>
    %cst_264 = arith.constant dense<0.000000e+00> : vector<2x128xf32>
    %292 = tpu.matmul %289, %291, %cst_264 {dimension_numbers = #tpu.dot_dimension_numbers<[1], [0], [0], [1], [0, 0, 1, 1], [], []>} : vector<2x64xf32>, vector<64x128xf32>, vector<2x128xf32> -> vector<2x128xf32>
    %293 = arith.addf %288, %292 : vector<2x128xf32>
    %294 = vector.extract_strided_slice %282 {offsets = [2, 0], sizes = [2, 64], strides = [1, 1]} : vector<4x64xf32> to vector<2x64xf32>
    %c1_265 = arith.constant 1 : index
    %c0_266 = arith.constant 0 : index
    %c0_267 = arith.constant 0 : index
    %295 = vector.load %arg5[%c1_265, %c0_266, %c0_267] : memref<4x64x128xf32, #tpu.memory_space<vmem>>, vector<1x64x128xf32>
    %296 = vector.shape_cast %295 : vector<1x64x128xf32> to vector<64x128xf32>
    %cst_268 = arith.constant dense<0.000000e+00> : vector<2x128xf32>
    %297 = tpu.matmul %294, %296, %cst_268 {dimension_numbers = #tpu.dot_dimension_numbers<[1], [0], [0], [1], [0, 0, 1, 1], [], []>} : vector<2x64xf32>, vector<64x128xf32>, vector<2x128xf32> -> vector<2x128xf32>
    %298 = arith.addf %293, %297 : vector<2x128xf32>
    %299 = vector.extract_strided_slice %287 {offsets = [0, 0], sizes = [2, 64], strides = [1, 1]} : vector<4x64xf32> to vector<2x64xf32>
    %c2_269 = arith.constant 2 : index
    %c0_270 = arith.constant 0 : index
    %c0_271 = arith.constant 0 : index
    %300 = vector.load %arg5[%c2_269, %c0_270, %c0_271] : memref<4x64x128xf32, #tpu.memory_space<vmem>>, vector<1x64x128xf32>
    %301 = vector.shape_cast %300 : vector<1x64x128xf32> to vector<64x128xf32>
    %cst_272 = arith.constant dense<0.000000e+00> : vector<2x128xf32>
    %302 = tpu.matmul %299, %301, %cst_272 {dimension_numbers = #tpu.dot_dimension_numbers<[1], [0], [0], [1], [0, 0, 1, 1], [], []>} : vector<2x64xf32>, vector<64x128xf32>, vector<2x128xf32> -> vector<2x128xf32>
    %303 = arith.addf %298, %302 : vector<2x128xf32>
    %304 = vector.extract_strided_slice %287 {offsets = [2, 0], sizes = [2, 64], strides = [1, 1]} : vector<4x64xf32> to vector<2x64xf32>
    %c3_273 = arith.constant 3 : index
    %c0_274 = arith.constant 0 : index
    %c0_275 = arith.constant 0 : index
    %305 = vector.load %arg5[%c3_273, %c0_274, %c0_275] : memref<4x64x128xf32, #tpu.memory_space<vmem>>, vector<1x64x128xf32>
    %306 = vector.shape_cast %305 : vector<1x64x128xf32> to vector<64x128xf32>
    %cst_276 = arith.constant dense<0.000000e+00> : vector<2x128xf32>
    %307 = tpu.matmul %304, %306, %cst_276 {dimension_numbers = #tpu.dot_dimension_numbers<[1], [0], [0], [1], [0, 0, 1, 1], [], []>} : vector<2x64xf32>, vector<64x128xf32>, vector<2x128xf32> -> vector<2x128xf32>
    %308 = arith.addf %303, %307 : vector<2x128xf32>
    %c0_277 = arith.constant 0 : index
    %c0_278 = arith.constant 0 : index
    %309 = vector.load %arg6[%c0_277, %c0_278] : memref<1x128xf32, #tpu.memory_space<vmem>>, vector<1x128xf32>
    %310 = vector.broadcast %309 : vector<1x128xf32> to vector<2x128xf32>
    %311 = arith.addf %308, %310 : vector<2x128xf32>
    %cst_279 = arith.constant 0.000000e+00 : f32
    %312 = vector.broadcast %cst_279 : f32 to vector<2x128xf32>
    %313 = arith.maximumf %311, %312 : vector<2x128xf32>
    %c0_280 = arith.constant 0 : index
    %c0_281 = arith.constant 0 : index
    %314 = vector.load %arg7[%c0_280, %c0_281] : memref<128x128xf32, #tpu.memory_space<vmem>>, vector<128x128xf32>
    %cst_282 = arith.constant dense<0.000000e+00> : vector<2x128xf32>
    %315 = tpu.matmul %313, %314, %cst_282 {dimension_numbers = #tpu.dot_dimension_numbers<[1], [0], [0], [1], [0, 0, 1, 1], [], []>} : vector<2x128xf32>, vector<128x128xf32>, vector<2x128xf32> -> vector<2x128xf32>
    %c0_283 = arith.constant 0 : index
    %c0_284 = arith.constant 0 : index
    %316 = vector.load %arg8[%c0_283, %c0_284] : memref<1x128xf32, #tpu.memory_space<vmem>>, vector<1x128xf32>
    %317 = vector.broadcast %316 : vector<1x128xf32> to vector<2x128xf32>
    %318 = arith.addf %315, %317 : vector<2x128xf32>
    %cst_285 = arith.constant 0.000000e+00 : f32
    %319 = vector.broadcast %cst_285 : f32 to vector<2x128xf32>
    %320 = arith.maximumf %318, %319 : vector<2x128xf32>
    %c0_286 = arith.constant 0 : index
    %c0_287 = arith.constant 0 : index
    %321 = vector.load %arg9[%c0_286, %c0_287] : memref<128x128xf32, #tpu.memory_space<vmem>>, vector<128x128xf32>
    %cst_288 = arith.constant dense<0.000000e+00> : vector<2x128xf32>
    %322 = tpu.matmul %320, %321, %cst_288 {dimension_numbers = #tpu.dot_dimension_numbers<[1], [0], [0], [1], [0, 0, 1, 1], [], []>} : vector<2x128xf32>, vector<128x128xf32>, vector<2x128xf32> -> vector<2x128xf32>
    %c0_289 = arith.constant 0 : index
    %c0_290 = arith.constant 0 : index
    %323 = vector.load %arg10[%c0_289, %c0_290] : memref<1x128xf32, #tpu.memory_space<vmem>>, vector<1x128xf32>
    %324 = vector.broadcast %323 : vector<1x128xf32> to vector<2x128xf32>
    %325 = arith.addf %322, %324 : vector<2x128xf32>
    %cst_291 = arith.constant 0.000000e+00 : f32
    %326 = vector.broadcast %cst_291 : f32 to vector<2x128xf32>
    %327 = arith.maximumf %325, %326 : vector<2x128xf32>
    %c0_292 = arith.constant 0 : index
    %c0_293 = arith.constant 0 : index
    %328 = vector.load %arg11[%c0_292, %c0_293] : memref<128x128xf32, #tpu.memory_space<vmem>>, vector<128x128xf32>
    %cst_294 = arith.constant dense<0.000000e+00> : vector<2x128xf32>
    %329 = tpu.matmul %327, %328, %cst_294 {dimension_numbers = #tpu.dot_dimension_numbers<[1], [0], [0], [1], [0, 0, 1, 1], [], []>} : vector<2x128xf32>, vector<128x128xf32>, vector<2x128xf32> -> vector<2x128xf32>
    %c0_295 = arith.constant 0 : index
    %c0_296 = arith.constant 0 : index
    %330 = vector.load %arg12[%c0_295, %c0_296] : memref<1x128xf32, #tpu.memory_space<vmem>>, vector<1x128xf32>
    %331 = vector.broadcast %330 : vector<1x128xf32> to vector<2x128xf32>
    %332 = arith.addf %329, %331 : vector<2x128xf32>
    %cst_297 = arith.constant 0.000000e+00 : f32
    %333 = vector.broadcast %cst_297 : f32 to vector<8x128xf32>
    %c0_298 = arith.constant 0 : index
    %c0_299 = arith.constant 0 : index
    %334 = vector.load %arg13[%c0_298, %c0_299] : memref<8x128xf32, #tpu.memory_space<vmem>>, vector<8x128xf32>
    tpu.vector_store %arg13[%c0_298, %c0_299], %333 {strides = array<i32>} : memref<8x128xf32, #tpu.memory_space<vmem>>, vector<8x128xf32>,
    %c0_300 = arith.constant 0 : index
    %c0_301 = arith.constant 0 : index
    %335 = vector.load %arg13[%c0_300, %c0_301] : memref<8x128xf32, #tpu.memory_space<vmem>>, vector<2x128xf32>
    tpu.vector_store %arg13[%c0_300, %c0_301], %332 {strides = array<i32>} : memref<8x128xf32, #tpu.memory_space<vmem>>, vector<2x128xf32>,
    return
  }
}

</mosaic_0001>

<llo_original>
// kernel: nvidia_model_forward.4
$region0: #{nvidia_model_forward.4}
  #allocation0 [shape = 'u32[]', space=smem, size = 0x4, offset = 0x4, fixed_abs, tag = 'smem constant byte address 0x4 - core index']
  #allocation1 [shape = 'u32[144,128]{1,0:T(1,128)}', space=vmem, size = 0x12000, scoped, tag = 'internal scratch']
  %s0 = inlined_call_operand.vmem [shape: f32[2184,128], index: 0, kind: input, shape index: {}]
  %s1 = inlined_call_operand.vmem [shape: f32[128,128], index: 1, kind: input, shape index: {}]
  %s2 = inlined_call_operand.vmem [shape: f32[1,128], index: 2, kind: input, shape index: {}]
  %s3 = inlined_call_operand.vmem [shape: f32[2184,128], index: 3, kind: output, shape index: {}]
  %s4 = sld [smem:[#allocation0]]
  $region22: #{nvidia_model_forward.4} parent=0
    _
  %s6 = ssub.s32 1, %s4
  %s7 = scalar_select 0, %s6, %s4
  // Predicated region
  $region2: #{nvidia_model_forward.4} parent=0 // pred_check
    _
  $region3: #{nvidia_model_forward.4} parent=0 // pred_check_branch
    %9 = sbr.rel (0) target = $region5
  $region4: #{nvidia_model_forward.4} parent=0 // pred_region
    _
  $region5: #{nvidia_model_forward.4} parent=0 // pred_fallthru
    _
  // Predicated region
  $region6: #{nvidia_model_forward.4} parent=0 // pred_check
    _
  $region7: #{nvidia_model_forward.4} parent=0 // pred_check_branch
    %11 = sbr.rel (0) target = $region9
  $region8: #{nvidia_model_forward.4} parent=0 // pred_region
    _
  $region9: #{nvidia_model_forward.4} parent=0 // pred_fallthru
    _
  // Predicated region
  $region10: #{nvidia_model_forward.4} parent=0 // pred_check
    _
  $region11: #{nvidia_model_forward.4} parent=0 // pred_check_branch
    %13 = sbr.rel (0) target = $region13
  $region12: #{nvidia_model_forward.4} parent=0 // pred_region
    _
  $region13: #{nvidia_model_forward.4} parent=0 // pred_fallthru
    _
  %v14 = vld [vmem:[%s0] sm:$0xff]
  %v15 = vld [vmem:[%s0 + $0x8] sm:$0xff]
  %v16 = vld [vmem:[%s0 + $0x10] sm:$0xff]
  %v17 = vld [vmem:[%s0 + $0x18] sm:$0xff]
  %v18 = vld [vmem:[%s0 + $0x20] sm:$0xff]
  %v19 = vld [vmem:[%s0 + $0x28] sm:$0xff]
  %v20 = vld [vmem:[%s0 + $0x30] sm:$0xff]
  %v21 = vld [vmem:[%s0 + $0x38] sm:$0xff]
  %v22 = vld [vmem:[%s0 + $0x40] sm:$0xff]
  %v23 = vld [vmem:[%s0 + $0x48] sm:$0xff]
  %v24 = vld [vmem:[%s0 + $0x50] sm:$0xff]
  %v25 = vld [vmem:[%s0 + $0x58] sm:$0xff]
  %v26 = vld [vmem:[%s0 + $0x60] sm:$0xff]
  %v27 = vld [vmem:[%s0 + $0x68] sm:$0xff]
  %v28 = vld [vmem:[%s0 + $0x70] sm:$0xff]
  %v29 = vld [vmem:[%s0 + $0x78] sm:$0xff]
  %v30 = vld [vmem:[%s0 + $0x80] sm:$0xff]
  %v31 = vld [vmem:[%s0 + $0x88] sm:$0xff]
  %v32 = vld [vmem:[%s0 + $0x90] sm:$0xff]
  %v33 = vld [vmem:[%s0 + $0x98] sm:$0xff]
  %v34 = vld [vmem:[%s0 + $0xa0] sm:$0xff]
  %v35 = vld [vmem:[%s0 + $0xa8] sm:$0xff]
  %v36 = vld [vmem:[%s0 + $0xb0] sm:$0xff]
  %v37 = vld [vmem:[%s0 + $0xb8] sm:$0xff]
  %v38 = vld [vmem:[%s0 + $0xc0] sm:$0xff]
  %v39 = vld [vmem:[%s0 + $0xc8] sm:$0xff]
  %v40 = vld [vmem:[%s0 + $0xd0] sm:$0xff]
  %v41 = vld [vmem:[%s0 + $0xd8] sm:$0xff]
  %v42 = vld [vmem:[%s0 + $0xe0] sm:$0xff]
  %v43 = vld [vmem:[%s0 + $0xe8] sm:$0xff]
  %v44 = vld [vmem:[%s0 + $0xf0] sm:$0xff]
  %v45 = vld [vmem:[%s0 + $0xf8] sm:$0xff]
  %v46 = vld [vmem:[%s0 + $0x100] sm:$0xff]
  %v47 = vld [vmem:[%s0 + $0x108] sm:$0xff]
  %v48 = vld [vmem:[%s0 + $0x110] sm:$0xff]
  %v49 = vld [vmem:[%s0 + $0x118] sm:$0xff]
  %v50 = vld [vmem:[%s0 + $0x120] sm:$0xff]
  %v51 = vld [vmem:[%s0 + $0x128] sm:$0xff]
  %v52 = vld [vmem:[%s0 + $0x130] sm:$0xff]
  %v53 = vld [vmem:[%s0 + $0x138] sm:$0xff]
  %v54 = vld [vmem:[%s0 + $0x140] sm:$0xff]
  %v55 = vld [vmem:[%s0 + $0x148] sm:$0xff]
  %v56 = vld [vmem:[%s0 + $0x150] sm:$0xff]
  %v57 = vld [vmem:[%s0 + $0x158] sm:$0xff]
  %v58 = vld [vmem:[%s0 + $0x160] sm:$0xff]
  %v59 = vld [vmem:[%s0 + $0x168] sm:$0xff]
  %v60 = vld [vmem:[%s0 + $0x170] sm:$0xff]
  %v61 = vld [vmem:[%s0 + $0x178] sm:$0xff]
  %v62 = vld [vmem:[%s0 + $0x180] sm:$0xff]
  %v63 = vld [vmem:[%s0 + $0x188] sm:$0xff]
  %v64 = vld [vmem:[%s0 + $0x190] sm:$0xff]
  %v65 = vld [vmem:[%s0 + $0x198] sm:$0xff]
  %v66 = vld [vmem:[%s0 + $0x1a0] sm:$0xff]
  %v67 = vld [vmem:[%s0 + $0x1a8] sm:$0xff]
  %v68 = vld [vmem:[%s0 + $0x1b0] sm:$0xff]
  %v69 = vld [vmem:[%s0 + $0x1b8] sm:$0xff]
  %v70 = vld [vmem:[%s0 + $0x1c0] sm:$0xff]
  %v71 = vld [vmem:[%s0 + $0x1c8] sm:$0xff]
  %v72 = vld [vmem:[%s0 + $0x1d0] sm:$0xff]
  %v73 = vld [vmem:[%s0 + $0x1d8] sm:$0xff]
  %v74 = vld [vmem:[%s0 + $0x1e0] sm:$0xff]
  %v75 = vld [vmem:[%s0 + $0x1e8] sm:$0xff]
  %v76 = vld [vmem:[%s0 + $0x1f0] sm:$0xff]
  %v77 = vld [vmem:[%s0 + $0x1f8] sm:$0xff]
  %v78 = vld [vmem:[%s0 + $0x200] sm:$0xff]
  %v79 = vld [vmem:[%s0 + $0x208] sm:$0xff]
  %v80 = vld [vmem:[%s0 + $0x210] sm:$0xff]
  %v81 = vld [vmem:[%s0 + $0x218] sm:$0xff]
  %v82 = vld [vmem:[%s0 + $0x220] sm:$0xff]
  %v83 = vld [vmem:[%s0 + $0x228] sm:$0xff]
  %v84 = vld [vmem:[%s0 + $0x230] sm:$0xff]
  %v85 = vld [vmem:[%s0 + $0x238] sm:$0xff]
  %v86 = vld [vmem:[%s0 + $0x240] sm:$0xff]
  %v87 = vld [vmem:[%s0 + $0x248] sm:$0xff]
  %v88 = vld [vmem:[%s0 + $0x250] sm:$0xff]
  %v89 = vld [vmem:[%s0 + $0x258] sm:$0xff]
  %v90 = vld [vmem:[%s0 + $0x260] sm:$0xff]
  %v91 = vld [vmem:[%s0 + $0x268] sm:$0xff]
  %v92 = vld [vmem:[%s0 + $0x270] sm:$0xff]
  %v93 = vld [vmem:[%s0 + $0x278] sm:$0xff]
  %v94 = vld [vmem:[%s0 + $0x280] sm:$0xff]
  %v95 = vld [vmem:[%s0 + $0x288] sm:$0xff]
  %v96 = vld [vmem:[%s0 + $0x290] sm:$0xff]
  %v97 = vld [vmem:[%s0 + $0x298] sm:$0xff]
  %v98 = vld [vmem:[%s0 + $0x2a0] sm:$0xff]
  %v99 = vld [vmem:[%s0 + $0x2a8] sm:$0xff]
  %v100 = vld [vmem:[%s0 + $0x2b0] sm:$0xff]
  %v101 = vld [vmem:[%s0 + $0x2b8] sm:$0xff]
  %v102 = vld [vmem:[%s0 + $0x2c0] sm:$0xff]
  %v103 = vld [vmem:[%s0 + $0x2c8] sm:$0xff]
  %v104 = vld [vmem:[%s0 + $0x2d0] sm:$0xff]
  %v105 = vld [vmem:[%s0 + $0x2d8] sm:$0xff]
  %v106 = vld [vmem:[%s0 + $0x2e0] sm:$0xff]
  %v107 = vld [vmem:[%s0 + $0x2e8] sm:$0xff]
  %v108 = vld [vmem:[%s0 + $0x2f0] sm:$0xff]
  %v109 = vld [vmem:[%s0 + $0x2f8] sm:$0xff]
  %v110 = vld [vmem:[%s0 + $0x300] sm:$0xff]
  %v111 = vld [vmem:[%s0 + $0x308] sm:$0xff]
  %v112 = vld [vmem:[%s0 + $0x310] sm:$0xff]
  %v113 = vld [vmem:[%s0 + $0x318] sm:$0xff]
  %v114 = vld [vmem:[%s0 + $0x320] sm:$0xff]
  %v115 = vld [vmem:[%s0 + $0x328] sm:$0xff]
  %v116 = vld [vmem:[%s0 + $0x330] sm:$0xff]
  %v117 = vld [vmem:[%s0 + $0x338] sm:$0xff]
  %v118 = vld [vmem:[%s0 + $0x340] sm:$0xff]
  %v119 = vld [vmem:[%s0 + $0x348] sm:$0xff]
  %v120 = vld [vmem:[%s0 + $0x350] sm:$0xff]
  %v121 = vld [vmem:[%s0 + $0x358] sm:$0xff]
  %v122 = vld [vmem:[%s0 + $0x360] sm:$0xff]
  %v123 = vld [vmem:[%s0 + $0x368] sm:$0xff]
  %v124 = vld [vmem:[%s0 + $0x370] sm:$0xff]
  %v125 = vld [vmem:[%s0 + $0x378] sm:$0xff]
  %v126 = vld [vmem:[%s0 + $0x380] sm:$0xff]
  %v127 = vld [vmem:[%s0 + $0x388] sm:$0xff]
  %v128 = vld [vmem:[%s0 + $0x390] sm:$0xff]
  %v129 = vld [vmem:[%s0 + $0x398] sm:$0xff]
  %v130 = vld [vmem:[%s0 + $0x3a0] sm:$0xff]
  %v131 = vld [vmem:[%s0 + $0x3a8] sm:$0xff]
  %v132 = vld [vmem:[%s0 + $0x3b0] sm:$0xff]
  %v133 = vld [vmem:[%s0 + $0x3b8] sm:$0xff]
  %v134 = vld [vmem:[%s0 + $0x3c0] sm:$0xff]
  %v135 = vld [vmem:[%s0 + $0x3c8] sm:$0xff]
  %v136 = vld [vmem:[%s0 + $0x3d0] sm:$0xff]
  %v137 = vld [vmem:[%s0 + $0x3d8] sm:$0xff]
  %v138 = vld [vmem:[%s0 + $0x3e0] sm:$0xff]
  %v139 = vld [vmem:[%s0 + $0x3e8] sm:$0xff]
  %v140 = vld [vmem:[%s0 + $0x3f0] sm:$0xff]
  %v141 = vld [vmem:[%s0 + $0x3f8] sm:$0xff]
  %v142 = vld [vmem:[%s0 + $0x400] sm:$0xff]
  %v143 = vld [vmem:[%s0 + $0x408] sm:$0xff]
  %v144 = vld [vmem:[%s0 + $0x410] sm:$0xff]
  %v145 = vld [vmem:[%s0 + $0x418] sm:$0xff]
  %v146 = vld [vmem:[%s0 + $0x420] sm:$0xff]
  %v147 = vld [vmem:[%s0 + $0x428] sm:$0xff]
  %v148 = vld [vmem:[%s0 + $0x430] sm:$0xff]
  %v149 = vld [vmem:[%s0 + $0x438] sm:$0xff]
  %v150 = vld [vmem:[%s0 + $0x440] sm:$0xff]
  %v151 = vld [vmem:[%s0 + $0x448] sm:$0xff]
  %v152 = vld [vmem:[%s0 + $0x450] sm:$0xff]
  %v153 = vld [vmem:[%s0 + $0x458] sm:$0xff]
  %v154 = vld [vmem:[%s0 + $0x460] sm:$0xff]
  %v155 = vld [vmem:[%s0 + $0x468] sm:$0xff]
  %v156 = vld [vmem:[%s0 + $0x470] sm:$0xff]
  %v157 = vld [vmem:[%s0 + $0x478] sm:$0xff]
  %v158 = vld [vmem:[%s0 + $0x480] sm:$0xff]
  %v159 = vld [vmem:[%s0 + $0x488] sm:$0xff]
  %v160 = vld [vmem:[%s0 + $0x490] sm:$0xff]
  %v161 = vld [vmem:[%s0 + $0x498] sm:$0xff]
  %v162 = vld [vmem:[%s0 + $0x4a0] sm:$0xff]
  %v163 = vld [vmem:[%s0 + $0x4a8] sm:$0xff]
  %v164 = vld [vmem:[%s0 + $0x4b0] sm:$0xff]
  %v165 = vld [vmem:[%s0 + $0x4b8] sm:$0xff]
  %v166 = vld [vmem:[%s0 + $0x4c0] sm:$0xff]
  %v167 = vld [vmem:[%s0 + $0x4c8] sm:$0xff]
  %v168 = vld [vmem:[%s0 + $0x4d0] sm:$0xff]
  %v169 = vld [vmem:[%s0 + $0x4d8] sm:$0xff]
  %v170 = vld [vmem:[%s0 + $0x4e0] sm:$0xff]
  %v171 = vld [vmem:[%s0 + $0x4e8] sm:$0xff]
  %v172 = vld [vmem:[%s0 + $0x4f0] sm:$0xff]
  %v173 = vld [vmem:[%s0 + $0x4f8] sm:$0xff]
  %v174 = vld [vmem:[%s0 + $0x500] sm:$0xff]
  %v175 = vld [vmem:[%s0 + $0x508] sm:$0xff]
  %v176 = vld [vmem:[%s0 + $0x510] sm:$0xff]
  %v177 = vld [vmem:[%s0 + $0x518] sm:$0xff]
  %v178 = vld [vmem:[%s0 + $0x520] sm:$0xff]
  %v179 = vld [vmem:[%s0 + $0x528] sm:$0xff]
  %v180 = vld [vmem:[%s0 + $0x530] sm:$0xff]
  %v181 = vld [vmem:[%s0 + $0x538] sm:$0xff]
  %v182 = vld [vmem:[%s0 + $0x540] sm:$0xff]
  %v183 = vld [vmem:[%s0 + $0x548] sm:$0xff]
  %v184 = vld [vmem:[%s0 + $0x550] sm:$0xff]
  %v185 = vld [vmem:[%s0 + $0x558] sm:$0xff]
  %v186 = vld [vmem:[%s0 + $0x560] sm:$0xff]
  %v187 = vld [vmem:[%s0 + $0x568] sm:$0xff]
  %v188 = vld [vmem:[%s0 + $0x570] sm:$0xff]
  %v189 = vld [vmem:[%s0 + $0x578] sm:$0xff]
  %v190 = vld [vmem:[%s0 + $0x580] sm:$0xff]
  %v191 = vld [vmem:[%s0 + $0x588] sm:$0xff]
  %v192 = vld [vmem:[%s0 + $0x590] sm:$0xff]
  %v193 = vld [vmem:[%s0 + $0x598] sm:$0xff]
  %v194 = vld [vmem:[%s0 + $0x5a0] sm:$0xff]
  %v195 = vld [vmem:[%s0 + $0x5a8] sm:$0xff]
  %v196 = vld [vmem:[%s0 + $0x5b0] sm:$0xff]
  %v197 = vld [vmem:[%s0 + $0x5b8] sm:$0xff]
  %v198 = vld [vmem:[%s0 + $0x5c0] sm:$0xff]
  %v199 = vld [vmem:[%s0 + $0x5c8] sm:$0xff]
  %v200 = vld [vmem:[%s0 + $0x5d0] sm:$0xff]
  %v201 = vld [vmem:[%s0 + $0x5d8] sm:$0xff]
  %v202 = vld [vmem:[%s0 + $0x5e0] sm:$0xff]
  %v203 = vld [vmem:[%s0 + $0x5e8] sm:$0xff]
  %v204 = vld [vmem:[%s0 + $0x5f0] sm:$0xff]
  %v205 = vld [vmem:[%s0 + $0x5f8] sm:$0xff]
  %v206 = vld [vmem:[%s0 + $0x600] sm:$0xff]
  %v207 = vld [vmem:[%s0 + $0x608] sm:$0xff]
  %v208 = vld [vmem:[%s0 + $0x610] sm:$0xff]
  %v209 = vld [vmem:[%s0 + $0x618] sm:$0xff]
  %v210 = vld [vmem:[%s0 + $0x620] sm:$0xff]
  %v211 = vld [vmem:[%s0 + $0x628] sm:$0xff]
  %v212 = vld [vmem:[%s0 + $0x630] sm:$0xff]
  %v213 = vld [vmem:[%s0 + $0x638] sm:$0xff]
  %v214 = vld [vmem:[%s0 + $0x640] sm:$0xff]
  %v215 = vld [vmem:[%s0 + $0x648] sm:$0xff]
  %v216 = vld [vmem:[%s0 + $0x650] sm:$0xff]
  %v217 = vld [vmem:[%s0 + $0x658] sm:$0xff]
  %v218 = vld [vmem:[%s0 + $0x660] sm:$0xff]
  %v219 = vld [vmem:[%s0 + $0x668] sm:$0xff]
  %v220 = vld [vmem:[%s0 + $0x670] sm:$0xff]
  %v221 = vld [vmem:[%s0 + $0x678] sm:$0xff]
  %v222 = vld [vmem:[%s0 + $0x680] sm:$0xff]
  %v223 = vld [vmem:[%s0 + $0x688] sm:$0xff]
  %v224 = vld [vmem:[%s0 + $0x690] sm:$0xff]
  %v225 = vld [vmem:[%s0 + $0x698] sm:$0xff]
  %v226 = vld [vmem:[%s0 + $0x6a0] sm:$0xff]
  %v227 = vld [vmem:[%s0 + $0x6a8] sm:$0xff]
  %v228 = vld [vmem:[%s0 + $0x6b0] sm:$0xff]
  %v229 = vld [vmem:[%s0 + $0x6b8] sm:$0xff]
  %v230 = vld [vmem:[%s0 + $0x6c0] sm:$0xff]
  %v231 = vld [vmem:[%s0 + $0x6c8] sm:$0xff]
  %v232 = vld [vmem:[%s0 + $0x6d0] sm:$0xff]
  %v233 = vld [vmem:[%s0 + $0x6d8] sm:$0xff]
  %v234 = vld [vmem:[%s0 + $0x6e0] sm:$0xff]
  %v235 = vld [vmem:[%s0 + $0x6e8] sm:$0xff]
  %v236 = vld [vmem:[%s0 + $0x6f0] sm:$0xff]
  %v237 = vld [vmem:[%s0 + $0x6f8] sm:$0xff]
  %v238 = vld [vmem:[%s0 + $0x700] sm:$0xff]
  %v239 = vld [vmem:[%s0 + $0x708] sm:$0xff]
  %v240 = vld [vmem:[%s0 + $0x710] sm:$0xff]
  %v241 = vld [vmem:[%s0 + $0x718] sm:$0xff]
  %v242 = vld [vmem:[%s0 + $0x720] sm:$0xff]
  %v243 = vld [vmem:[%s0 + $0x728] sm:$0xff]
  %v244 = vld [vmem:[%s0 + $0x730] sm:$0xff]
  %v245 = vld [vmem:[%s0 + $0x738] sm:$0xff]
  %v246 = vld [vmem:[%s0 + $0x740] sm:$0xff]
  %v247 = vld [vmem:[%s0 + $0x748] sm:$0xff]
  %v248 = vld [vmem:[%s0 + $0x750] sm:$0xff]
  %v249 = vld [vmem:[%s0 + $0x758] sm:$0xff]
  %v250 = vld [vmem:[%s0 + $0x760] sm:$0xff]
  %v251 = vld [vmem:[%s0 + $0x768] sm:$0xff]
  %v252 = vld [vmem:[%s0 + $0x770] sm:$0xff]
  %v253 = vld [vmem:[%s0 + $0x778] sm:$0xff]
  %v254 = vld [vmem:[%s0 + $0x780] sm:$0xff]
  %v255 = vld [vmem:[%s0 + $0x788] sm:$0xff]
  %v256 = vld [vmem:[%s0 + $0x790] sm:$0xff]
  %v257 = vld [vmem:[%s0 + $0x798] sm:$0xff]
  %v258 = vld [vmem:[%s0 + $0x7a0] sm:$0xff]
  %v259 = vld [vmem:[%s0 + $0x7a8] sm:$0xff]
  %v260 = vld [vmem:[%s0 + $0x7b0] sm:$0xff]
  %v261 = vld [vmem:[%s0 + $0x7b8] sm:$0xff]
  %v262 = vld [vmem:[%s0 + $0x7c0] sm:$0xff]
  %v263 = vld [vmem:[%s0 + $0x7c8] sm:$0xff]
  %v264 = vld [vmem:[%s0 + $0x7d0] sm:$0xff]
  %v265 = vld [vmem:[%s0 + $0x7d8] sm:$0xff]
  %v266 = vld [vmem:[%s0 + $0x7e0] sm:$0xff]
  %v267 = vld [vmem:[%s0 + $0x7e8] sm:$0xff]
  %v268 = vld [vmem:[%s0 + $0x7f0] sm:$0xff]
  %v269 = vld [vmem:[%s0 + $0x7f8] sm:$0xff]
  %v270 = vld [vmem:[%s0 + $0x800] sm:$0xff]
  %v271 = vld [vmem:[%s0 + $0x808] sm:$0xff]
  %v272 = vld [vmem:[%s0 + $0x810] sm:$0xff]
  %v273 = vld [vmem:[%s0 + $0x818] sm:$0xff]
  %v274 = vld [vmem:[%s0 + $0x820] sm:$0xff]
  %v275 = vld [vmem:[%s0 + $0x828] sm:$0xff]
  %v276 = vld [vmem:[%s0 + $0x830] sm:$0xff]
  %v277 = vld [vmem:[%s0 + $0x838] sm:$0xff]
  %v278 = vld [vmem:[%s0 + $0x840] sm:$0xff]
  %v279 = vld [vmem:[%s0 + $0x848] sm:$0xff]
  %v280 = vld [vmem:[%s0 + $0x850] sm:$0xff]
  %v281 = vld [vmem:[%s0 + $0x858] sm:$0xff]
  %v282 = vld [vmem:[%s0 + $0x860] sm:$0xff]
  %v283 = vld [vmem:[%s0 + $0x868] sm:$0xff]
  %v284 = vld [vmem:[%s0 + $0x870] sm:$0xff]
  %v285 = vld [vmem:[%s0 + $0x878] sm:$0xff]
  %v286 = vld [vmem:[%s0 + $0x880] sm:$0xff]
  %v287 = vld [vmem:[%s1] sm:$0xff]
  %v288 = vld [vmem:[%s1 + $0x8] sm:$0xff]
  %v289 = vld [vmem:[%s1 + $0x10] sm:$0xff]
  %v290 = vld [vmem:[%s1 + $0x18] sm:$0xff]
  %v291 = vld [vmem:[%s1 + $0x20] sm:$0xff]
  %v292 = vld [vmem:[%s1 + $0x28] sm:$0xff]
  %v293 = vld [vmem:[%s1 + $0x30] sm:$0xff]
  %v294 = vld [vmem:[%s1 + $0x38] sm:$0xff]
  %v295 = vld [vmem:[%s1 + $0x40] sm:$0xff]
  %v296 = vld [vmem:[%s1 + $0x48] sm:$0xff]
  %v297 = vld [vmem:[%s1 + $0x50] sm:$0xff]
  %v298 = vld [vmem:[%s1 + $0x58] sm:$0xff]
  %v299 = vld [vmem:[%s1 + $0x60] sm:$0xff]
  %v300 = vld [vmem:[%s1 + $0x68] sm:$0xff]
  %v301 = vld [vmem:[%s1 + $0x70] sm:$0xff]
  %v302 = vld [vmem:[%s1 + $0x78] sm:$0xff]
  %v303 = vld [vmem:[%s2] sm:$0x1]
  %v305 = vlaneseq
  %v306 = vshrl.u32 %v305, 7
  %v307 = vsub.s32 0, %v306
  %v308 = vrot.slane %v303, %v307
  %310 = vmatprep.subr.mxu0 0.0
  %311 = vmatpush1.msra.mxu0 %v287
  %312 = vmatprep.subr.mxu0 0.0
  %313 = vmatpush1.msra.mxu0 %v288
  %314 = vmatprep.subr.mxu0 0.0
  %315 = vmatpush1.msra.mxu0 %v289
  %316 = vmatprep.subr.mxu0 0.0
  %317 = vmatpush1.msra.mxu0 %v290
  %318 = vmatprep.subr.mxu0 0.0
  %319 = vmatpush1.msra.mxu0 %v291
  %320 = vmatprep.subr.mxu0 0.0
  %321 = vmatpush1.msra.mxu0 %v292
  %322 = vmatprep.subr.mxu0 0.0
  %323 = vmatpush1.msra.mxu0 %v293
  %324 = vmatprep.subr.mxu0 0.0
  %325 = vmatpush1.msra.mxu0 %v294
  %326 = vmatprep.subr.mxu0 0.0
  %327 = vmatpush1.msra.mxu0 %v295
  %328 = vmatprep.subr.mxu0 0.0
  %329 = vmatpush1.msra.mxu0 %v296
  %330 = vmatprep.subr.mxu0 0.0
  %331 = vmatpush1.msra.mxu0 %v297
  %332 = vmatprep.subr.mxu0 0.0
  %333 = vmatpush1.msra.mxu0 %v298
  %334 = vmatprep.subr.mxu0 0.0
  %335 = vmatpush1.msra.mxu0 %v299
  %336 = vmatprep.subr.mxu0 0.0
  %337 = vmatpush1.msra.mxu0 %v300
  %338 = vmatprep.subr.mxu0 0.0
  %339 = vmatpush1.msra.mxu0 %v301
  %340 = vmatprep.subr.mxu0 0.0
  %341 = vmatpush1.msra.mxu0 %v302
  %342 = vmatprep.subr.mxu0 0.0
  %343 = vmatpush1.msra.mxu0 0.0
  %344 = vmatprep.subr.mxu0 0.0
  %345 = vmatpush1.msra.mxu0 0.0
  %346 = vmatprep.subr.mxu0 0.0
  %347 = vmatpush1.msra.mxu0 0.0
  %348 = vmatprep.subr.mxu0 0.0
  %349 = vmatpush1.msra.mxu0 0.0
  %350 = vmatprep.subr.mxu0 0.0
  %351 = vmatpush1.msra.mxu0 0.0
  %352 = vmatprep.subr.mxu0 0.0
  %353 = vmatpush1.msra.mxu0 0.0
  %354 = vmatprep.subr.mxu0 0.0
  %355 = vmatpush1.msra.mxu0 0.0
  %356 = vmatprep.subr.mxu0 0.0
  %357 = vmatpush1.msra.mxu0 0.0
  %358 = vmatprep.subr.mxu0 0.0
  %359 = vmatpush1.msra.mxu0 0.0
  %360 = vmatprep.subr.mxu0 0.0
  %361 = vmatpush1.msra.mxu0 0.0
  %362 = vmatprep.subr.mxu0 0.0
  %363 = vmatpush1.msra.mxu0 0.0
  %364 = vmatprep.subr.mxu0 0.0
  %365 = vmatpush1.msra.mxu0 0.0
  %366 = vmatprep.subr.mxu0 0.0
  %367 = vmatpush1.msra.mxu0 0.0
  %368 = vmatprep.subr.mxu0 0.0
  %369 = vmatpush1.msra.mxu0 0.0
  %370 = vmatprep.subr.mxu0 0.0
  %371 = vmatpush1.msra.mxu0 0.0
  %372 = vmatprep.subr.mxu0 0.0
  %373 = vmatpush1.msra.mxu0 0.0
  %374 = vmatprep.mubr.f32.mxu0 0.0
  %375 = vmatmul.mubr.f32.gmra.mrb[0].mxu0 %v14
  %v376 = vpop.f32.mrb[0].mxu0
  %v377 = vadd.f32 %v308, %v376
  %v378 = vpop.f32.mrb[0].mxu0
  %379 = vmatprep.mubr.f32.mxu0 0.0
  %380 = vmatmul.mubr.f32.gmra.mrb[0].mxu0 %v15
  %v381 = vpop.f32.mrb[0].mxu0
  %v382 = vadd.f32 %v308, %v381
  %v383 = vpop.f32.mrb[0].mxu0
  %384 = vmatprep.mubr.f32.mxu0 0.0
  %385 = vmatmul.mubr.f32.gmra.mrb[0].mxu0 %v16
  %v386 = vpop.f32.mrb[0].mxu0
  %v387 = vadd.f32 %v308, %v386
  %v388 = vpop.f32.mrb[0].mxu0
  %389 = vmatprep.mubr.f32.mxu0 0.0
  %390 = vmatmul.mubr.f32.gmra.mrb[0].mxu0 %v17
  %v391 = vpop.f32.mrb[0].mxu0
  %v392 = vadd.f32 %v308, %v391
  %v393 = vpop.f32.mrb[0].mxu0
  %394 = vmatprep.mubr.f32.mxu0 0.0
  %395 = vmatmul.mubr.f32.gmra.mrb[0].mxu0 %v18
  %v396 = vpop.f32.mrb[0].mxu0
  %v397 = vadd.f32 %v308, %v396
  %v398 = vpop.f32.mrb[0].mxu0
  %399 = vmatprep.mubr.f32.mxu0 0.0
  %400 = vmatmul.mubr.f32.gmra.mrb[0].mxu0 %v19
  %v401 = vpop.f32.mrb[0].mxu0
  %v402 = vadd.f32 %v308, %v401
  %v403 = vpop.f32.mrb[0].mxu0
  %404 = vmatprep.mubr.f32.mxu0 0.0
  %405 = vmatmul.mubr.f32.gmra.mrb[0].mxu0 %v20
  %v406 = vpop.f32.mrb[0].mxu0
  %v407 = vadd.f32 %v308, %v406
  %v408 = vpop.f32.mrb[0].mxu0
  %409 = vmatprep.mubr.f32.mxu0 0.0
  %410 = vmatmul.mubr.f32.gmra.mrb[0].mxu0 %v21
  %v411 = vpop.f32.mrb[0].mxu0
  %v412 = vadd.f32 %v308, %v411
  %v413 = vpop.f32.mrb[0].mxu0
  %414 = vmatprep.mubr.f32.mxu0 0.0
  %415 = vmatmul.mubr.f32.gmra.mrb[0].mxu0 %v22
  %v416 = vpop.f32.mrb[0].mxu0
  %v417 = vadd.f32 %v308, %v416
  %v418 = vpop.f32.mrb[0].mxu0
  %419 = vmatprep.mubr.f32.mxu0 0.0
  %420 = vmatmul.mubr.f32.gmra.mrb[0].mxu0 %v23
  %v421 = vpop.f32.mrb[0].mxu0
  %v422 = vadd.f32 %v308, %v421
  %v423 = vpop.f32.mrb[0].mxu0
  %424 = vmatprep.mubr.f32.mxu0 0.0
  %425 = vmatmul.mubr.f32.gmra.mrb[0].mxu0 %v24
  %v426 = vpop.f32.mrb[0].mxu0
  %v427 = vadd.f32 %v308, %v426
  %v428 = vpop.f32.mrb[0].mxu0
  %429 = vmatprep.mubr.f32.mxu0 0.0
  %430 = vmatmul.mubr.f32.gmra.mrb[0].mxu0 %v25
  %v431 = vpop.f32.mrb[0].mxu0
  %v432 = vadd.f32 %v308, %v431
  %v433 = vpop.f32.mrb[0].mxu0
  %434 = vmatprep.mubr.f32.mxu0 0.0
  %435 = vmatmul.mubr.f32.gmra.mrb[0].mxu0 %v26
  %v436 = vpop.f32.mrb[0].mxu0
  %v437 = vadd.f32 %v308, %v436
  %v438 = vpop.f32.mrb[0].mxu0
  %439 = vmatprep.mubr.f32.mxu0 0.0
  %440 = vmatmul.mubr.f32.gmra.mrb[0].mxu0 %v27
  %v441 = vpop.f32.mrb[0].mxu0
  %v442 = vadd.f32 %v308, %v441
  %v443 = vpop.f32.mrb[0].mxu0
  %444 = vmatprep.mubr.f32.mxu0 0.0
  %445 = vmatmul.mubr.f32.gmra.mrb[0].mxu0 %v28
  %v446 = vpop.f32.mrb[0].mxu0
  %v447 = vadd.f32 %v308, %v446
  %v448 = vpop.f32.mrb[0].mxu0
  %449 = vmatprep.mubr.f32.mxu0 0.0
  %450 = vmatmul.mubr.f32.gmra.mrb[0].mxu0 %v29
  %v451 = vpop.f32.mrb[0].mxu0
  %v452 = vadd.f32 %v308, %v451
  %v453 = vpop.f32.mrb[0].mxu0
  %454 = vmatprep.mubr.f32.mxu0 0.0
  %455 = vmatmul.mubr.f32.gmra.mrb[0].mxu0 %v30
  %v456 = vpop.f32.mrb[0].mxu0
  %v457 = vadd.f32 %v308, %v456
  %v458 = vpop.f32.mrb[0].mxu0
  %459 = vmatprep.mubr.f32.mxu0 0.0
  %460 = vmatmul.mubr.f32.gmra.mrb[0].mxu0 %v31
  %v461 = vpop.f32.mrb[0].mxu0
  %v462 = vadd.f32 %v308, %v461
  %v463 = vpop.f32.mrb[0].mxu0
  %464 = vmatprep.mubr.f32.mxu0 0.0
  %465 = vmatmul.mubr.f32.gmra.mrb[0].mxu0 %v32
  %v466 = vpop.f32.mrb[0].mxu0
  %v467 = vadd.f32 %v308, %v466
  %v468 = vpop.f32.mrb[0].mxu0
  %469 = vmatprep.mubr.f32.mxu0 0.0
  %470 = vmatmul.mubr.f32.gmra.mrb[0].mxu0 %v33
  %v471 = vpop.f32.mrb[0].mxu0
  %v472 = vadd.f32 %v308, %v471
  %v473 = vpop.f32.mrb[0].mxu0
  %474 = vmatprep.mubr.f32.mxu0 0.0
  %475 = vmatmul.mubr.f32.gmra.mrb[0].mxu0 %v34
  %v476 = vpop.f32.mrb[0].mxu0
  %v477 = vadd.f32 %v308, %v476
  %v478 = vpop.f32.mrb[0].mxu0
  %479 = vmatprep.mubr.f32.mxu0 0.0
  %480 = vmatmul.mubr.f32.gmra.mrb[0].mxu0 %v35
  %v481 = vpop.f32.mrb[0].mxu0
  %v482 = vadd.f32 %v308, %v481
  %v483 = vpop.f32.mrb[0].mxu0
  %484 = vmatprep.mubr.f32.mxu0 0.0
  %485 = vmatmul.mubr.f32.gmra.mrb[0].mxu0 %v36
  %v486 = vpop.f32.mrb[0].mxu0
  %v487 = vadd.f32 %v308, %v486
  %v488 = vpop.f32.mrb[0].mxu0
  %489 = vmatprep.mubr.f32.mxu0 0.0
  %490 = vmatmul.mubr.f32.gmra.mrb[0].mxu0 %v37
  %v491 = vpop.f32.mrb[0].mxu0
  %v492 = vadd.f32 %v308, %v491
  %v493 = vpop.f32.mrb[0].mxu0
  %494 = vmatprep.mubr.f32.mxu0 0.0
  %495 = vmatmul.mubr.f32.gmra.mrb[0].mxu0 %v38
  %v496 = vpop.f32.mrb[0].mxu0
  %v497 = vadd.f32 %v308, %v496
  %v498 = vpop.f32.mrb[0].mxu0
  %499 = vmatprep.mubr.f32.mxu0 0.0
  %500 = vmatmul.mubr.f32.gmra.mrb[0].mxu0 %v39
  %v501 = vpop.f32.mrb[0].mxu0
  %v502 = vadd.f32 %v308, %v501
  %v503 = vpop.f32.mrb[0].mxu0
  %504 = vmatprep.mubr.f32.mxu0 0.0
  %505 = vmatmul.mubr.f32.gmra.mrb[0].mxu0 %v40
  %v506 = vpop.f32.mrb[0].mxu0
  %v507 = vadd.f32 %v308, %v506
  %v508 = vpop.f32.mrb[0].mxu0
  %509 = vmatprep.mubr.f32.mxu0 0.0
  %510 = vmatmul.mubr.f32.gmra.mrb[0].mxu0 %v41
  %v511 = vpop.f32.mrb[0].mxu0
  %v512 = vadd.f32 %v308, %v511
  %v513 = vpop.f32.mrb[0].mxu0
  %514 = vmatprep.mubr.f32.mxu0 0.0
  %515 = vmatmul.mubr.f32.gmra.mrb[0].mxu0 %v42
  %v516 = vpop.f32.mrb[0].mxu0
  %v517 = vadd.f32 %v308, %v516
  %v518 = vpop.f32.mrb[0].mxu0
  %519 = vmatprep.mubr.f32.mxu0 0.0
  %520 = vmatmul.mubr.f32.gmra.mrb[0].mxu0 %v43
  %v521 = vpop.f32.mrb[0].mxu0
  %v522 = vadd.f32 %v308, %v521
  %v523 = vpop.f32.mrb[0].mxu0
  %524 = vmatprep.mubr.f32.mxu0 0.0
  %525 = vmatmul.mubr.f32.gmra.mrb[0].mxu0 %v44
  %v526 = vpop.f32.mrb[0].mxu0
  %v527 = vadd.f32 %v308, %v526
  %v528 = vpop.f32.mrb[0].mxu0
  %529 = vmatprep.mubr.f32.mxu0 0.0
  %530 = vmatmul.mubr.f32.gmra.mrb[0].mxu0 %v45
  %v531 = vpop.f32.mrb[0].mxu0
  %v532 = vadd.f32 %v308, %v531
  %v533 = vpop.f32.mrb[0].mxu0
  %534 = vmatprep.mubr.f32.mxu0 0.0
  %535 = vmatmul.mubr.f32.gmra.mrb[0].mxu0 %v46
  %v536 = vpop.f32.mrb[0].mxu0
  %v537 = vadd.f32 %v308, %v536
  %v538 = vpop.f32.mrb[0].mxu0
  %539 = vmatprep.mubr.f32.mxu0 0.0
  %540 = vmatmul.mubr.f32.gmra.mrb[0].mxu0 %v47
  %v541 = vpop.f32.mrb[0].mxu0
  %v542 = vadd.f32 %v308, %v541
  %v543 = vpop.f32.mrb[0].mxu0
  %544 = vmatprep.mubr.f32.mxu0 0.0
  %545 = vmatmul.mubr.f32.gmra.mrb[0].mxu0 %v48
  %v546 = vpop.f32.mrb[0].mxu0
  %v547 = vadd.f32 %v308, %v546
  %v548 = vpop.f32.mrb[0].mxu0
  %549 = vmatprep.mubr.f32.mxu0 0.0
  %550 = vmatmul.mubr.f32.gmra.mrb[0].mxu0 %v49
  %v551 = vpop.f32.mrb[0].mxu0
  %v552 = vadd.f32 %v308, %v551
  %v553 = vpop.f32.mrb[0].mxu0
  %554 = vmatprep.mubr.f32.mxu0 0.0
  %555 = vmatmul.mubr.f32.gmra.mrb[0].mxu0 %v50
  %v556 = vpop.f32.mrb[0].mxu0
  %v557 = vadd.f32 %v308, %v556
  %v558 = vpop.f32.mrb[0].mxu0
  %559 = vmatprep.mubr.f32.mxu0 0.0
  %560 = vmatmul.mubr.f32.gmra.mrb[0].mxu0 %v51
  %v561 = vpop.f32.mrb[0].mxu0
  %v562 = vadd.f32 %v308, %v561
  %v563 = vpop.f32.mrb[0].mxu0
  %564 = vmatprep.mubr.f32.mxu0 0.0
  %565 = vmatmul.mubr.f32.gmra.mrb[0].mxu0 %v52
  %v566 = vpop.f32.mrb[0].mxu0
  %v567 = vadd.f32 %v308, %v566
  %v568 = vpop.f32.mrb[0].mxu0
  %569 = vmatprep.mubr.f32.mxu0 0.0
  %570 = vmatmul.mubr.f32.gmra.mrb[0].mxu0 %v53
  %v571 = vpop.f32.mrb[0].mxu0
  %v572 = vadd.f32 %v308, %v571
  %v573 = vpop.f32.mrb[0].mxu0
  %574 = vmatprep.mubr.f32.mxu0 0.0
  %575 = vmatmul.mubr.f32.gmra.mrb[0].mxu0 %v54
  %v576 = vpop.f32.mrb[0].mxu0
  %v577 = vadd.f32 %v308, %v576
  %v578 = vpop.f32.mrb[0].mxu0
  %579 = vmatprep.mubr.f32.mxu0 0.0
  %580 = vmatmul.mubr.f32.gmra.mrb[0].mxu0 %v55
  %v581 = vpop.f32.mrb[0].mxu0
  %v582 = vadd.f32 %v308, %v581
  %v583 = vpop.f32.mrb[0].mxu0
  %584 = vmatprep.mubr.f32.mxu0 0.0
  %585 = vmatmul.mubr.f32.gmra.mrb[0].mxu0 %v56
  %v586 = vpop.f32.mrb[0].mxu0
  %v587 = vadd.f32 %v308, %v586
  %v588 = vpop.f32.mrb[0].mxu0
  %589 = vmatprep.mubr.f32.mxu0 0.0
  %590 = vmatmul.mubr.f32.gmra.mrb[0].mxu0 %v57
  %v591 = vpop.f32.mrb[0].mxu0
  %v592 = vadd.f32 %v308, %v591
  %v593 = vpop.f32.mrb[0].mxu0
  %594 = vmatprep.mubr.f32.mxu0 0.0
  %595 = vmatmul.mubr.f32.gmra.mrb[0].mxu0 %v58
  %v596 = vpop.f32.mrb[0].mxu0
  %v597 = vadd.f32 %v308, %v596
  %v598 = vpop.f32.mrb[0].mxu0
  %599 = vmatprep.mubr.f32.mxu0 0.0
  %600 = vmatmul.mubr.f32.gmra.mrb[0].mxu0 %v59
  %v601 = vpop.f32.mrb[0].mxu0
  %v602 = vadd.f32 %v308, %v601
  %v603 = vpop.f32.mrb[0].mxu0
  %604 = vmatprep.mubr.f32.mxu0 0.0
  %605 = vmatmul.mubr.f32.gmra.mrb[0].mxu0 %v60
  %v606 = vpop.f32.mrb[0].mxu0
  %v607 = vadd.f32 %v308, %v606
  %v608 = vpop.f32.mrb[0].mxu0
  %609 = vmatprep.mubr.f32.mxu0 0.0
  %610 = vmatmul.mubr.f32.gmra.mrb[0].mxu0 %v61
  %v611 = vpop.f32.mrb[0].mxu0
  %v612 = vadd.f32 %v308, %v611
  %v613 = vpop.f32.mrb[0].mxu0
  %614 = vmatprep.mubr.f32.mxu0 0.0
  %615 = vmatmul.mubr.f32.gmra.mrb[0].mxu0 %v62
  %v616 = vpop.f32.mrb[0].mxu0
  %v617 = vadd.f32 %v308, %v616
  %v618 = vpop.f32.mrb[0].mxu0
  %619 = vmatprep.mubr.f32.mxu0 0.0
  %620 = vmatmul.mubr.f32.gmra.mrb[0].mxu0 %v63
  %v621 = vpop.f32.mrb[0].mxu0
  %v622 = vadd.f32 %v308, %v621
  %v623 = vpop.f32.mrb[0].mxu0
  %624 = vmatprep.mubr.f32.mxu0 0.0
  %625 = vmatmul.mubr.f32.gmra.mrb[0].mxu0 %v64
  %v626 = vpop.f32.mrb[0].mxu0
  %v627 = vadd.f32 %v308, %v626
  %v628 = vpop.f32.mrb[0].mxu0
  %629 = vmatprep.mubr.f32.mxu0 0.0
  %630 = vmatmul.mubr.f32.gmra.mrb[0].mxu0 %v65
  %v631 = vpop.f32.mrb[0].mxu0
  %v632 = vadd.f32 %v308, %v631
  %v633 = vpop.f32.mrb[0].mxu0
  %634 = vmatprep.mubr.f32.mxu0 0.0
  %635 = vmatmul.mubr.f32.gmra.mrb[0].mxu0 %v66
  %v636 = vpop.f32.mrb[0].mxu0
  %v637 = vadd.f32 %v308, %v636
  %v638 = vpop.f32.mrb[0].mxu0
  %639 = vmatprep.mubr.f32.mxu0 0.0
  %640 = vmatmul.mubr.f32.gmra.mrb[0].mxu0 %v67
  %v641 = vpop.f32.mrb[0].mxu0
  %v642 = vadd.f32 %v308, %v641
  %v643 = vpop.f32.mrb[0].mxu0
  %644 = vmatprep.mubr.f32.mxu0 0.0
  %645 = vmatmul.mubr.f32.gmra.mrb[0].mxu0 %v68
  %v646 = vpop.f32.mrb[0].mxu0
  %v647 = vadd.f32 %v308, %v646
  %v648 = vpop.f32.mrb[0].mxu0
  %649 = vmatprep.mubr.f32.mxu0 0.0
  %650 = vmatmul.mubr.f32.gmra.mrb[0].mxu0 %v69
  %v651 = vpop.f32.mrb[0].mxu0
  %v652 = vadd.f32 %v308, %v651
  %v653 = vpop.f32.mrb[0].mxu0
  %654 = vmatprep.mubr.f32.mxu0 0.0
  %655 = vmatmul.mubr.f32.gmra.mrb[0].mxu0 %v70
  %v656 = vpop.f32.mrb[0].mxu0
  %v657 = vadd.f32 %v308, %v656
  %v658 = vpop.f32.mrb[0].mxu0
  %659 = vmatprep.mubr.f32.mxu0 0.0
  %660 = vmatmul.mubr.f32.gmra.mrb[0].mxu0 %v71
  %v661 = vpop.f32.mrb[0].mxu0
  %v662 = vadd.f32 %v308, %v661
  %v663 = vpop.f32.mrb[0].mxu0
  %664 = vmatprep.mubr.f32.mxu0 0.0
  %665 = vmatmul.mubr.f32.gmra.mrb[0].mxu0 %v72
  %v666 = vpop.f32.mrb[0].mxu0
  %v667 = vadd.f32 %v308, %v666
  %v668 = vpop.f32.mrb[0].mxu0
  %669 = vmatprep.mubr.f32.mxu0 0.0
  %670 = vmatmul.mubr.f32.gmra.mrb[0].mxu0 %v73
  %v671 = vpop.f32.mrb[0].mxu0
  %v672 = vadd.f32 %v308, %v671
  %v673 = vpop.f32.mrb[0].mxu0
  %674 = vmatprep.mubr.f32.mxu0 0.0
  %675 = vmatmul.mubr.f32.gmra.mrb[0].mxu0 %v74
  %v676 = vpop.f32.mrb[0].mxu0
  %v677 = vadd.f32 %v308, %v676
  %v678 = vpop.f32.mrb[0].mxu0
  %679 = vmatprep.mubr.f32.mxu0 0.0
  %680 = vmatmul.mubr.f32.gmra.mrb[0].mxu0 %v75
  %v681 = vpop.f32.mrb[0].mxu0
  %v682 = vadd.f32 %v308, %v681
  %v683 = vpop.f32.mrb[0].mxu0
  %684 = vmatprep.mubr.f32.mxu0 0.0
  %685 = vmatmul.mubr.f32.gmra.mrb[0].mxu0 %v76
  %v686 = vpop.f32.mrb[0].mxu0
  %v687 = vadd.f32 %v308, %v686
  %v688 = vpop.f32.mrb[0].mxu0
  %689 = vmatprep.mubr.f32.mxu0 0.0
  %690 = vmatmul.mubr.f32.gmra.mrb[0].mxu0 %v77
  %v691 = vpop.f32.mrb[0].mxu0
  %v692 = vadd.f32 %v308, %v691
  %v693 = vpop.f32.mrb[0].mxu0
  %694 = vmatprep.mubr.f32.mxu0 0.0
  %695 = vmatmul.mubr.f32.gmra.mrb[0].mxu0 %v78
  %v696 = vpop.f32.mrb[0].mxu0
  %v697 = vadd.f32 %v308, %v696
  %v698 = vpop.f32.mrb[0].mxu0
  %699 = vmatprep.mubr.f32.mxu0 0.0
  %700 = vmatmul.mubr.f32.gmra.mrb[0].mxu0 %v79
  %v701 = vpop.f32.mrb[0].mxu0
  %v702 = vadd.f32 %v308, %v701
  %v703 = vpop.f32.mrb[0].mxu0
  %704 = vmatprep.mubr.f32.mxu0 0.0
  %705 = vmatmul.mubr.f32.gmra.mrb[0].mxu0 %v80
  %v706 = vpop.f32.mrb[0].mxu0
  %v707 = vadd.f32 %v308, %v706
  %v708 = vpop.f32.mrb[0].mxu0
  %709 = vmatprep.mubr.f32.mxu0 0.0
  %710 = vmatmul.mubr.f32.gmra.mrb[0].mxu0 %v81
  %v711 = vpop.f32.mrb[0].mxu0
  %v712 = vadd.f32 %v308, %v711
  %v713 = vpop.f32.mrb[0].mxu0
  %714 = vmatprep.mubr.f32.mxu0 0.0
  %715 = vmatmul.mubr.f32.gmra.mrb[0].mxu0 %v82
  %v716 = vpop.f32.mrb[0].mxu0
  %v717 = vadd.f32 %v308, %v716
  %v718 = vpop.f32.mrb[0].mxu0
  %719 = vmatprep.mubr.f32.mxu0 0.0
  %720 = vmatmul.mubr.f32.gmra.mrb[0].mxu0 %v83
  %v721 = vpop.f32.mrb[0].mxu0
  %v722 = vadd.f32 %v308, %v721
  %v723 = vpop.f32.mrb[0].mxu0
  %724 = vmatprep.mubr.f32.mxu0 0.0
  %725 = vmatmul.mubr.f32.gmra.mrb[0].mxu0 %v84
  %v726 = vpop.f32.mrb[0].mxu0
  %v727 = vadd.f32 %v308, %v726
  %v728 = vpop.f32.mrb[0].mxu0
  %729 = vmatprep.mubr.f32.mxu0 0.0
  %730 = vmatmul.mubr.f32.gmra.mrb[0].mxu0 %v85
  %v731 = vpop.f32.mrb[0].mxu0
  %v732 = vadd.f32 %v308, %v731
  %v733 = vpop.f32.mrb[0].mxu0
  %734 = vmatprep.mubr.f32.mxu0 0.0
  %735 = vmatmul.mubr.f32.gmra.mrb[0].mxu0 %v86
  %v736 = vpop.f32.mrb[0].mxu0
  %v737 = vadd.f32 %v308, %v736
  %v738 = vpop.f32.mrb[0].mxu0
  %739 = vmatprep.mubr.f32.mxu0 0.0
  %740 = vmatmul.mubr.f32.gmra.mrb[0].mxu0 %v87
  %v741 = vpop.f32.mrb[0].mxu0
  %v742 = vadd.f32 %v308, %v741
  %v743 = vpop.f32.mrb[0].mxu0
  %744 = vmatprep.mubr.f32.mxu0 0.0
  %745 = vmatmul.mubr.f32.gmra.mrb[0].mxu0 %v88
  %v746 = vpop.f32.mrb[0].mxu0
  %v747 = vadd.f32 %v308, %v746
  %v748 = vpop.f32.mrb[0].mxu0
  %749 = vmatprep.mubr.f32.mxu0 0.0
  %750 = vmatmul.mubr.f32.gmra.mrb[0].mxu0 %v89
  %v751 = vpop.f32.mrb[0].mxu0
  %v752 = vadd.f32 %v308, %v751
  %v753 = vpop.f32.mrb[0].mxu0
  %754 = vmatprep.mubr.f32.mxu0 0.0
  %755 = vmatmul.mubr.f32.gmra.mrb[0].mxu0 %v90
  %v756 = vpop.f32.mrb[0].mxu0
  %v757 = vadd.f32 %v308, %v756
  %v758 = vpop.f32.mrb[0].mxu0
  %759 = vmatprep.mubr.f32.mxu0 0.0
  %760 = vmatmul.mubr.f32.gmra.mrb[0].mxu0 %v91
  %v761 = vpop.f32.mrb[0].mxu0
  %v762 = vadd.f32 %v308, %v761
  %v763 = vpop.f32.mrb[0].mxu0
  %764 = vmatprep.mubr.f32.mxu0 0.0
  %765 = vmatmul.mubr.f32.gmra.mrb[0].mxu0 %v92
  %v766 = vpop.f32.mrb[0].mxu0
  %v767 = vadd.f32 %v308, %v766
  %v768 = vpop.f32.mrb[0].mxu0
  %769 = vmatprep.mubr.f32.mxu0 0.0
  %770 = vmatmul.mubr.f32.gmra.mrb[0].mxu0 %v93
  %v771 = vpop.f32.mrb[0].mxu0
  %v772 = vadd.f32 %v308, %v771
  %v773 = vpop.f32.mrb[0].mxu0
  %774 = vmatprep.mubr.f32.mxu0 0.0
  %775 = vmatmul.mubr.f32.gmra.mrb[0].mxu0 %v94
  %v776 = vpop.f32.mrb[0].mxu0
  %v777 = vadd.f32 %v308, %v776
  %v778 = vpop.f32.mrb[0].mxu0
  %779 = vmatprep.mubr.f32.mxu0 0.0
  %780 = vmatmul.mubr.f32.gmra.mrb[0].mxu0 %v95
  %v781 = vpop.f32.mrb[0].mxu0
  %v782 = vadd.f32 %v308, %v781
  %v783 = vpop.f32.mrb[0].mxu0
  %784 = vmatprep.mubr.f32.mxu0 0.0
  %785 = vmatmul.mubr.f32.gmra.mrb[0].mxu0 %v96
  %v786 = vpop.f32.mrb[0].mxu0
  %v787 = vadd.f32 %v308, %v786
  %v788 = vpop.f32.mrb[0].mxu0
  %789 = vmatprep.mubr.f32.mxu0 0.0
  %790 = vmatmul.mubr.f32.gmra.mrb[0].mxu0 %v97
  %v791 = vpop.f32.mrb[0].mxu0
  %v792 = vadd.f32 %v308, %v791
  %v793 = vpop.f32.mrb[0].mxu0
  %794 = vmatprep.mubr.f32.mxu0 0.0
  %795 = vmatmul.mubr.f32.gmra.mrb[0].mxu0 %v98
  %v796 = vpop.f32.mrb[0].mxu0
  %v797 = vadd.f32 %v308, %v796
  %v798 = vpop.f32.mrb[0].mxu0
  %799 = vmatprep.mubr.f32.mxu0 0.0
  %800 = vmatmul.mubr.f32.gmra.mrb[0].mxu0 %v99
  %v801 = vpop.f32.mrb[0].mxu0
  %v802 = vadd.f32 %v308, %v801
  %v803 = vpop.f32.mrb[0].mxu0
  %804 = vmatprep.mubr.f32.mxu0 0.0
  %805 = vmatmul.mubr.f32.gmra.mrb[0].mxu0 %v100
  %v806 = vpop.f32.mrb[0].mxu0
  %v807 = vadd.f32 %v308, %v806
  %v808 = vpop.f32.mrb[0].mxu0
  %809 = vmatprep.mubr.f32.mxu0 0.0
  %810 = vmatmul.mubr.f32.gmra.mrb[0].mxu0 %v101
  %v811 = vpop.f32.mrb[0].mxu0
  %v812 = vadd.f32 %v308, %v811
  %v813 = vpop.f32.mrb[0].mxu0
  %814 = vmatprep.mubr.f32.mxu0 0.0
  %815 = vmatmul.mubr.f32.gmra.mrb[0].mxu0 %v102
  %v816 = vpop.f32.mrb[0].mxu0
  %v817 = vadd.f32 %v308, %v816
  %v818 = vpop.f32.mrb[0].mxu0
  %819 = vmatprep.mubr.f32.mxu0 0.0
  %820 = vmatmul.mubr.f32.gmra.mrb[0].mxu0 %v103
  %v821 = vpop.f32.mrb[0].mxu0
  %v822 = vadd.f32 %v308, %v821
  %v823 = vpop.f32.mrb[0].mxu0
  %824 = vmatprep.mubr.f32.mxu0 0.0
  %825 = vmatmul.mubr.f32.gmra.mrb[0].mxu0 %v104
  %v826 = vpop.f32.mrb[0].mxu0
  %v827 = vadd.f32 %v308, %v826
  %v828 = vpop.f32.mrb[0].mxu0
  %829 = vmatprep.mubr.f32.mxu0 0.0
  %830 = vmatmul.mubr.f32.gmra.mrb[0].mxu0 %v105
  %v831 = vpop.f32.mrb[0].mxu0
  %v832 = vadd.f32 %v308, %v831
  %v833 = vpop.f32.mrb[0].mxu0
  %834 = vmatprep.mubr.f32.mxu0 0.0
  %835 = vmatmul.mubr.f32.gmra.mrb[0].mxu0 %v106
  %v836 = vpop.f32.mrb[0].mxu0
  %v837 = vadd.f32 %v308, %v836
  %v838 = vpop.f32.mrb[0].mxu0
  %839 = vmatprep.mubr.f32.mxu0 0.0
  %840 = vmatmul.mubr.f32.gmra.mrb[0].mxu0 %v107
  %v841 = vpop.f32.mrb[0].mxu0
  %v842 = vadd.f32 %v308, %v841
  %v843 = vpop.f32.mrb[0].mxu0
  %844 = vmatprep.mubr.f32.mxu0 0.0
  %845 = vmatmul.mubr.f32.gmra.mrb[0].mxu0 %v108
  %v846 = vpop.f32.mrb[0].mxu0
  %v847 = vadd.f32 %v308, %v846
  %v848 = vpop.f32.mrb[0].mxu0
  %849 = vmatprep.mubr.f32.mxu0 0.0
  %850 = vmatmul.mubr.f32.gmra.mrb[0].mxu0 %v109
  %v851 = vpop.f32.mrb[0].mxu0
  %v852 = vadd.f32 %v308, %v851
  %v853 = vpop.f32.mrb[0].mxu0
  %854 = vmatprep.mubr.f32.mxu0 0.0
  %855 = vmatmul.mubr.f32.gmra.mrb[0].mxu0 %v110
  %v856 = vpop.f32.mrb[0].mxu0
  %v857 = vadd.f32 %v308, %v856
  %v858 = vpop.f32.mrb[0].mxu0
  %859 = vmatprep.mubr.f32.mxu0 0.0
  %860 = vmatmul.mubr.f32.gmra.mrb[0].mxu0 %v111
  %v861 = vpop.f32.mrb[0].mxu0
  %v862 = vadd.f32 %v308, %v861
  %v863 = vpop.f32.mrb[0].mxu0
  %864 = vmatprep.mubr.f32.mxu0 0.0
  %865 = vmatmul.mubr.f32.gmra.mrb[0].mxu0 %v112
  %v866 = vpop.f32.mrb[0].mxu0
  %v867 = vadd.f32 %v308, %v866
  %v868 = vpop.f32.mrb[0].mxu0
  %869 = vmatprep.mubr.f32.mxu0 0.0
  %870 = vmatmul.mubr.f32.gmra.mrb[0].mxu0 %v113
  %v871 = vpop.f32.mrb[0].mxu0
  %v872 = vadd.f32 %v308, %v871
  %v873 = vpop.f32.mrb[0].mxu0
  %874 = vmatprep.mubr.f32.mxu0 0.0
  %875 = vmatmul.mubr.f32.gmra.mrb[0].mxu0 %v114
  %v876 = vpop.f32.mrb[0].mxu0
  %v877 = vadd.f32 %v308, %v876
  %v878 = vpop.f32.mrb[0].mxu0
  %879 = vmatprep.mubr.f32.mxu0 0.0
  %880 = vmatmul.mubr.f32.gmra.mrb[0].mxu0 %v115
  %v881 = vpop.f32.mrb[0].mxu0
  %v882 = vadd.f32 %v308, %v881
  %v883 = vpop.f32.mrb[0].mxu0
  %884 = vmatprep.mubr.f32.mxu0 0.0
  %885 = vmatmul.mubr.f32.gmra.mrb[0].mxu0 %v116
  %v886 = vpop.f32.mrb[0].mxu0
  %v887 = vadd.f32 %v308, %v886
  %v888 = vpop.f32.mrb[0].mxu0
  %889 = vmatprep.mubr.f32.mxu0 0.0
  %890 = vmatmul.mubr.f32.gmra.mrb[0].mxu0 %v117
  %v891 = vpop.f32.mrb[0].mxu0
  %v892 = vadd.f32 %v308, %v891
  %v893 = vpop.f32.mrb[0].mxu0
  %894 = vmatprep.mubr.f32.mxu0 0.0
  %895 = vmatmul.mubr.f32.gmra.mrb[0].mxu0 %v118
  %v896 = vpop.f32.mrb[0].mxu0
  %v897 = vadd.f32 %v308, %v896
  %v898 = vpop.f32.mrb[0].mxu0
  %899 = vmatprep.mubr.f32.mxu0 0.0
  %900 = vmatmul.mubr.f32.gmra.mrb[0].mxu0 %v119
  %v901 = vpop.f32.mrb[0].mxu0
  %v902 = vadd.f32 %v308, %v901
  %v903 = vpop.f32.mrb[0].mxu0
  %904 = vmatprep.mubr.f32.mxu0 0.0
  %905 = vmatmul.mubr.f32.gmra.mrb[0].mxu0 %v120
  %v906 = vpop.f32.mrb[0].mxu0
  %v907 = vadd.f32 %v308, %v906
  %v908 = vpop.f32.mrb[0].mxu0
  %909 = vmatprep.mubr.f32.mxu0 0.0
  %910 = vmatmul.mubr.f32.gmra.mrb[0].mxu0 %v121
  %v911 = vpop.f32.mrb[0].mxu0
  %v912 = vadd.f32 %v308, %v911
  %v913 = vpop.f32.mrb[0].mxu0
  %914 = vmatprep.mubr.f32.mxu0 0.0
  %915 = vmatmul.mubr.f32.gmra.mrb[0].mxu0 %v122
  %v916 = vpop.f32.mrb[0].mxu0
  %v917 = vadd.f32 %v308, %v916
  %v918 = vpop.f32.mrb[0].mxu0
  %919 = vmatprep.mubr.f32.mxu0 0.0
  %920 = vmatmul.mubr.f32.gmra.mrb[0].mxu0 %v123
  %v921 = vpop.f32.mrb[0].mxu0
  %v922 = vadd.f32 %v308, %v921
  %v923 = vpop.f32.mrb[0].mxu0
  %924 = vmatprep.mubr.f32.mxu0 0.0
  %925 = vmatmul.mubr.f32.gmra.mrb[0].mxu0 %v124
  %v926 = vpop.f32.mrb[0].mxu0
  %v927 = vadd.f32 %v308, %v926
  %v928 = vpop.f32.mrb[0].mxu0
  %929 = vmatprep.mubr.f32.mxu0 0.0
  %930 = vmatmul.mubr.f32.gmra.mrb[0].mxu0 %v125
  %v931 = vpop.f32.mrb[0].mxu0
  %v932 = vadd.f32 %v308, %v931
  %v933 = vpop.f32.mrb[0].mxu0
  %934 = vmatprep.mubr.f32.mxu0 0.0
  %935 = vmatmul.mubr.f32.gmra.mrb[0].mxu0 %v126
  %v936 = vpop.f32.mrb[0].mxu0
  %v937 = vadd.f32 %v308, %v936
  %v938 = vpop.f32.mrb[0].mxu0
  %939 = vmatprep.mubr.f32.mxu0 0.0
  %940 = vmatmul.mubr.f32.gmra.mrb[0].mxu0 %v127
  %v941 = vpop.f32.mrb[0].mxu0
  %v942 = vadd.f32 %v308, %v941
  %v943 = vpop.f32.mrb[0].mxu0
  %944 = vmatprep.mubr.f32.mxu0 0.0
  %945 = vmatmul.mubr.f32.gmra.mrb[0].mxu0 %v128
  %v946 = vpop.f32.mrb[0].mxu0
  %v947 = vadd.f32 %v308, %v946
  %v948 = vpop.f32.mrb[0].mxu0
  %949 = vmatprep.mubr.f32.mxu0 0.0
  %950 = vmatmul.mubr.f32.gmra.mrb[0].mxu0 %v129
  %v951 = vpop.f32.mrb[0].mxu0
  %v952 = vadd.f32 %v308, %v951
  %v953 = vpop.f32.mrb[0].mxu0
  %954 = vmatprep.mubr.f32.mxu0 0.0
  %955 = vmatmul.mubr.f32.gmra.mrb[0].mxu0 %v130
  %v956 = vpop.f32.mrb[0].mxu0
  %v957 = vadd.f32 %v308, %v956
  %v958 = vpop.f32.mrb[0].mxu0
  %959 = vmatprep.mubr.f32.mxu0 0.0
  %960 = vmatmul.mubr.f32.gmra.mrb[0].mxu0 %v131
  %v961 = vpop.f32.mrb[0].mxu0
  %v962 = vadd.f32 %v308, %v961
  %v963 = vpop.f32.mrb[0].mxu0
  %964 = vmatprep.mubr.f32.mxu0 0.0
  %965 = vmatmul.mubr.f32.gmra.mrb[0].mxu0 %v132
  %v966 = vpop.f32.mrb[0].mxu0
  %v967 = vadd.f32 %v308, %v966
  %v968 = vpop.f32.mrb[0].mxu0
  %969 = vmatprep.mubr.f32.mxu0 0.0
  %970 = vmatmul.mubr.f32.gmra.mrb[0].mxu0 %v133
  %v971 = vpop.f32.mrb[0].mxu0
  %v972 = vadd.f32 %v308, %v971
  %v973 = vpop.f32.mrb[0].mxu0
  %974 = vmatprep.mubr.f32.mxu0 0.0
  %975 = vmatmul.mubr.f32.gmra.mrb[0].mxu0 %v134
  %v976 = vpop.f32.mrb[0].mxu0
  %v977 = vadd.f32 %v308, %v976
  %v978 = vpop.f32.mrb[0].mxu0
  %979 = vmatprep.mubr.f32.mxu0 0.0
  %980 = vmatmul.mubr.f32.gmra.mrb[0].mxu0 %v135
  %v981 = vpop.f32.mrb[0].mxu0
  %v982 = vadd.f32 %v308, %v981
  %v983 = vpop.f32.mrb[0].mxu0
  %984 = vmatprep.mubr.f32.mxu0 0.0
  %985 = vmatmul.mubr.f32.gmra.mrb[0].mxu0 %v136
  %v986 = vpop.f32.mrb[0].mxu0
  %v987 = vadd.f32 %v308, %v986
  %v988 = vpop.f32.mrb[0].mxu0
  %989 = vmatprep.mubr.f32.mxu0 0.0
  %990 = vmatmul.mubr.f32.gmra.mrb[0].mxu0 %v137
  %v991 = vpop.f32.mrb[0].mxu0
  %v992 = vadd.f32 %v308, %v991
  %v993 = vpop.f32.mrb[0].mxu0
  %994 = vmatprep.mubr.f32.mxu0 0.0
  %995 = vmatmul.mubr.f32.gmra.mrb[0].mxu0 %v138
  %v996 = vpop.f32.mrb[0].mxu0
  %v997 = vadd.f32 %v308, %v996
  %v998 = vpop.f32.mrb[0].mxu0
  %999 = vmatprep.mubr.f32.mxu0 0.0
  %1000 = vmatmul.mubr.f32.gmra.mrb[0].mxu0 %v139
  %v1001 = vpop.f32.mrb[0].mxu0
  %v1002 = vadd.f32 %v308, %v1001
  %v1003 = vpop.f32.mrb[0].mxu0
  %1004 = vmatprep.mubr.f32.mxu0 0.0
  %1005 = vmatmul.mubr.f32.gmra.mrb[0].mxu0 %v140
  %v1006 = vpop.f32.mrb[0].mxu0
  %v1007 = vadd.f32 %v308, %v1006
  %v1008 = vpop.f32.mrb[0].mxu0
  %1009 = vmatprep.mubr.f32.mxu0 0.0
  %1010 = vmatmul.mubr.f32.gmra.mrb[0].mxu0 %v141
  %v1011 = vpop.f32.mrb[0].mxu0
  %v1012 = vadd.f32 %v308, %v1011
  %v1013 = vpop.f32.mrb[0].mxu0
  %1014 = vmatprep.mubr.f32.mxu0 0.0
  %1015 = vmatmul.mubr.f32.gmra.mrb[0].mxu0 %v142
  %v1016 = vpop.f32.mrb[0].mxu0
  %v1017 = vadd.f32 %v308, %v1016
  %v1018 = vpop.f32.mrb[0].mxu0
  %1019 = vmatprep.mubr.f32.mxu0 0.0
  %1020 = vmatmul.mubr.f32.gmra.mrb[0].mxu0 %v143
  %v1021 = vpop.f32.mrb[0].mxu0
  %v1022 = vadd.f32 %v308, %v1021
  %v1023 = vpop.f32.mrb[0].mxu0
  %1024 = vmatprep.mubr.f32.mxu0 0.0
  %1025 = vmatmul.mubr.f32.gmra.mrb[0].mxu0 %v144
  %v1026 = vpop.f32.mrb[0].mxu0
  %v1027 = vadd.f32 %v308, %v1026
  %v1028 = vpop.f32.mrb[0].mxu0
  %1029 = vmatprep.mubr.f32.mxu0 0.0
  %1030 = vmatmul.mubr.f32.gmra.mrb[0].mxu0 %v145
  %v1031 = vpop.f32.mrb[0].mxu0
  %v1032 = vadd.f32 %v308, %v1031
  %v1033 = vpop.f32.mrb[0].mxu0
  %1034 = vmatprep.mubr.f32.mxu0 0.0
  %1035 = vmatmul.mubr.f32.gmra.mrb[0].mxu0 %v146
  %v1036 = vpop.f32.mrb[0].mxu0
  %v1037 = vadd.f32 %v308, %v1036
  %v1038 = vpop.f32.mrb[0].mxu0
  %1039 = vmatprep.mubr.f32.mxu0 0.0
  %1040 = vmatmul.mubr.f32.gmra.mrb[0].mxu0 %v147
  %v1041 = vpop.f32.mrb[0].mxu0
  %v1042 = vadd.f32 %v308, %v1041
  %v1043 = vpop.f32.mrb[0].mxu0
  %1044 = vmatprep.mubr.f32.mxu0 0.0
  %1045 = vmatmul.mubr.f32.gmra.mrb[0].mxu0 %v148
  %v1046 = vpop.f32.mrb[0].mxu0
  %v1047 = vadd.f32 %v308, %v1046
  %v1048 = vpop.f32.mrb[0].mxu0
  %1049 = vmatprep.mubr.f32.mxu0 0.0
  %1050 = vmatmul.mubr.f32.gmra.mrb[0].mxu0 %v149
  %v1051 = vpop.f32.mrb[0].mxu0
  %v1052 = vadd.f32 %v308, %v1051
  %v1053 = vpop.f32.mrb[0].mxu0
  %1054 = vmatprep.mubr.f32.mxu0 0.0
  %1055 = vmatmul.mubr.f32.gmra.mrb[0].mxu0 %v150
  %v1056 = vpop.f32.mrb[0].mxu0
  %v1057 = vadd.f32 %v308, %v1056
  %v1058 = vpop.f32.mrb[0].mxu0
  %1059 = vmatprep.mubr.f32.mxu0 0.0
  %1060 = vmatmul.mubr.f32.gmra.mrb[0].mxu0 %v151
  %v1061 = vpop.f32.mrb[0].mxu0
  %v1062 = vadd.f32 %v308, %v1061
  %v1063 = vpop.f32.mrb[0].mxu0
  %1064 = vmatprep.mubr.f32.mxu0 0.0
  %1065 = vmatmul.mubr.f32.gmra.mrb[0].mxu0 %v152
  %v1066 = vpop.f32.mrb[0].mxu0
  %v1067 = vadd.f32 %v308, %v1066
  %v1068 = vpop.f32.mrb[0].mxu0
  %1069 = vmatprep.mubr.f32.mxu0 0.0
  %1070 = vmatmul.mubr.f32.gmra.mrb[0].mxu0 %v153
  %v1071 = vpop.f32.mrb[0].mxu0
  %v1072 = vadd.f32 %v308, %v1071
  %v1073 = vpop.f32.mrb[0].mxu0
  %1074 = vmatprep.mubr.f32.mxu0 0.0
  %1075 = vmatmul.mubr.f32.gmra.mrb[0].mxu0 %v154
  %v1076 = vpop.f32.mrb[0].mxu0
  %v1077 = vadd.f32 %v308, %v1076
  %v1078 = vpop.f32.mrb[0].mxu0
  %1079 = vmatprep.mubr.f32.mxu0 0.0
  %1080 = vmatmul.mubr.f32.gmra.mrb[0].mxu0 %v155
  %v1081 = vpop.f32.mrb[0].mxu0
  %v1082 = vadd.f32 %v308, %v1081
  %v1083 = vpop.f32.mrb[0].mxu0
  %1084 = vmatprep.mubr.f32.mxu0 0.0
  %1085 = vmatmul.mubr.f32.gmra.mrb[0].mxu0 %v156
  %v1086 = vpop.f32.mrb[0].mxu0
  %v1087 = vadd.f32 %v308, %v1086
  %v1088 = vpop.f32.mrb[0].mxu0
  %1089 = vmatprep.mubr.f32.mxu0 0.0
  %1090 = vmatmul.mubr.f32.gmra.mrb[0].mxu0 %v157
  %v1091 = vpop.f32.mrb[0].mxu0
  %v1092 = vadd.f32 %v308, %v1091
  %v1093 = vpop.f32.mrb[0].mxu0
  %1094 = vmatprep.mubr.f32.mxu0 0.0
  %1095 = vmatmul.mubr.f32.gmra.mrb[0].mxu0 %v158
  %v1096 = vpop.f32.mrb[0].mxu0
  %v1097 = vadd.f32 %v308, %v1096
  %v1098 = vpop.f32.mrb[0].mxu0
  %1099 = vmatprep.mubr.f32.mxu0 0.0
  %1100 = vmatmul.mubr.f32.gmra.mrb[0].mxu0 %v159
  %v1101 = vpop.f32.mrb[0].mxu0
  %v1102 = vadd.f32 %v308, %v1101
  %v1103 = vpop.f32.mrb[0].mxu0
  %1104 = vmatprep.mubr.f32.mxu0 0.0
  %1105 = vmatmul.mubr.f32.gmra.mrb[0].mxu0 %v160
  %v1106 = vpop.f32.mrb[0].mxu0
  %v1107 = vadd.f32 %v308, %v1106
  %v1108 = vpop.f32.mrb[0].mxu0
  %1109 = vmatprep.mubr.f32.mxu0 0.0
  %1110 = vmatmul.mubr.f32.gmra.mrb[0].mxu0 %v161
  %v1111 = vpop.f32.mrb[0].mxu0
  %v1112 = vadd.f32 %v308, %v1111
  %v1113 = vpop.f32.mrb[0].mxu0
  %1114 = vmatprep.mubr.f32.mxu0 0.0
  %1115 = vmatmul.mubr.f32.gmra.mrb[0].mxu0 %v162
  %v1116 = vpop.f32.mrb[0].mxu0
  %v1117 = vadd.f32 %v308, %v1116
  %v1118 = vpop.f32.mrb[0].mxu0
  %1119 = vmatprep.mubr.f32.mxu0 0.0
  %1120 = vmatmul.mubr.f32.gmra.mrb[0].mxu0 %v163
  %v1121 = vpop.f32.mrb[0].mxu0
  %v1122 = vadd.f32 %v308, %v1121
  %v1123 = vpop.f32.mrb[0].mxu0
  %1124 = vmatprep.mubr.f32.mxu0 0.0
  %1125 = vmatmul.mubr.f32.gmra.mrb[0].mxu0 %v164
  %v1126 = vpop.f32.mrb[0].mxu0
  %v1127 = vadd.f32 %v308, %v1126
  %v1128 = vpop.f32.mrb[0].mxu0
  %1129 = vmatprep.mubr.f32.mxu0 0.0
  %1130 = vmatmul.mubr.f32.gmra.mrb[0].mxu0 %v165
  %v1131 = vpop.f32.mrb[0].mxu0
  %v1132 = vadd.f32 %v308, %v1131
  %v1133 = vpop.f32.mrb[0].mxu0
  %1134 = vmatprep.mubr.f32.mxu0 0.0
  %1135 = vmatmul.mubr.f32.gmra.mrb[0].mxu0 %v166
  %v1136 = vpop.f32.mrb[0].mxu0
  %v1137 = vadd.f32 %v308, %v1136
  %v1138 = vpop.f32.mrb[0].mxu0
  %1139 = vmatprep.mubr.f32.mxu0 0.0
  %1140 = vmatmul.mubr.f32.gmra.mrb[0].mxu0 %v167
  %v1141 = vpop.f32.mrb[0].mxu0
  %v1142 = vadd.f32 %v308, %v1141
  %v1143 = vpop.f32.mrb[0].mxu0
  %1144 = vmatprep.mubr.f32.mxu0 0.0
  %1145 = vmatmul.mubr.f32.gmra.mrb[0].mxu0 %v168
  %v1146 = vpop.f32.mrb[0].mxu0
  %v1147 = vadd.f32 %v308, %v1146
  %v1148 = vpop.f32.mrb[0].mxu0
  %1149 = vmatprep.mubr.f32.mxu0 0.0
  %1150 = vmatmul.mubr.f32.gmra.mrb[0].mxu0 %v169
  %v1151 = vpop.f32.mrb[0].mxu0
  %v1152 = vadd.f32 %v308, %v1151
  %v1153 = vpop.f32.mrb[0].mxu0
  %1154 = vmatprep.mubr.f32.mxu0 0.0
  %1155 = vmatmul.mubr.f32.gmra.mrb[0].mxu0 %v170
  %v1156 = vpop.f32.mrb[0].mxu0
  %v1157 = vadd.f32 %v308, %v1156
  %v1158 = vpop.f32.mrb[0].mxu0
  %1159 = vmatprep.mubr.f32.mxu0 0.0
  %1160 = vmatmul.mubr.f32.gmra.mrb[0].mxu0 %v171
  %v1161 = vpop.f32.mrb[0].mxu0
  %v1162 = vadd.f32 %v308, %v1161
  %v1163 = vpop.f32.mrb[0].mxu0
  %1164 = vmatprep.mubr.f32.mxu0 0.0
  %1165 = vmatmul.mubr.f32.gmra.mrb[0].mxu0 %v172
  %v1166 = vpop.f32.mrb[0].mxu0
  %v1167 = vadd.f32 %v308, %v1166
  %v1168 = vpop.f32.mrb[0].mxu0
  %1169 = vmatprep.mubr.f32.mxu0 0.0
  %1170 = vmatmul.mubr.f32.gmra.mrb[0].mxu0 %v173
  %v1171 = vpop.f32.mrb[0].mxu0
  %v1172 = vadd.f32 %v308, %v1171
  %v1173 = vpop.f32.mrb[0].mxu0
  %1174 = vmatprep.mubr.f32.mxu0 0.0
  %1175 = vmatmul.mubr.f32.gmra.mrb[0].mxu0 %v174
  %v1176 = vpop.f32.mrb[0].mxu0
  %v1177 = vadd.f32 %v308, %v1176
  %v1178 = vpop.f32.mrb[0].mxu0
  %1179 = vmatprep.mubr.f32.mxu0 0.0
  %1180 = vmatmul.mubr.f32.gmra.mrb[0].mxu0 %v175
  %v1181 = vpop.f32.mrb[0].mxu0
  %v1182 = vadd.f32 %v308, %v1181
  %v1183 = vpop.f32.mrb[0].mxu0
  %1184 = vmatprep.mubr.f32.mxu0 0.0
  %1185 = vmatmul.mubr.f32.gmra.mrb[0].mxu0 %v176
  %v1186 = vpop.f32.mrb[0].mxu0
  %v1187 = vadd.f32 %v308, %v1186
  %v1188 = vpop.f32.mrb[0].mxu0
  %1189 = vmatprep.mubr.f32.mxu0 0.0
  %1190 = vmatmul.mubr.f32.gmra.mrb[0].mxu0 %v177
  %v1191 = vpop.f32.mrb[0].mxu0
  %v1192 = vadd.f32 %v308, %v1191
  %v1193 = vpop.f32.mrb[0].mxu0
  %1194 = vmatprep.mubr.f32.mxu0 0.0
  %1195 = vmatmul.mubr.f32.gmra.mrb[0].mxu0 %v178
  %v1196 = vpop.f32.mrb[0].mxu0
  %v1197 = vadd.f32 %v308, %v1196
  %v1198 = vpop.f32.mrb[0].mxu0
  %1199 = vmatprep.mubr.f32.mxu0 0.0
  %1200 = vmatmul.mubr.f32.gmra.mrb[0].mxu0 %v179
  %v1201 = vpop.f32.mrb[0].mxu0
  %v1202 = vadd.f32 %v308, %v1201
  %v1203 = vpop.f32.mrb[0].mxu0
  %1204 = vmatprep.mubr.f32.mxu0 0.0
  %1205 = vmatmul.mubr.f32.gmra.mrb[0].mxu0 %v180
  %v1206 = vpop.f32.mrb[0].mxu0
  %v1207 = vadd.f32 %v308, %v1206
  %v1208 = vpop.f32.mrb[0].mxu0
  %1209 = vmatprep.mubr.f32.mxu0 0.0
  %1210 = vmatmul.mubr.f32.gmra.mrb[0].mxu0 %v181
  %v1211 = vpop.f32.mrb[0].mxu0
  %v1212 = vadd.f32 %v308, %v1211
  %v1213 = vpop.f32.mrb[0].mxu0
  %1214 = vmatprep.mubr.f32.mxu0 0.0
  %1215 = vmatmul.mubr.f32.gmra.mrb[0].mxu0 %v182
  %v1216 = vpop.f32.mrb[0].mxu0
  %v1217 = vadd.f32 %v308, %v1216
  %v1218 = vpop.f32.mrb[0].mxu0
  %1219 = vmatprep.mubr.f32.mxu0 0.0
  %1220 = vmatmul.mubr.f32.gmra.mrb[0].mxu0 %v183
  %v1221 = vpop.f32.mrb[0].mxu0
  %v1222 = vadd.f32 %v308, %v1221
  %v1223 = vpop.f32.mrb[0].mxu0
  %1224 = vmatprep.mubr.f32.mxu0 0.0
  %1225 = vmatmul.mubr.f32.gmra.mrb[0].mxu0 %v184
  %v1226 = vpop.f32.mrb[0].mxu0
  %v1227 = vadd.f32 %v308, %v1226
  %v1228 = vpop.f32.mrb[0].mxu0
  %1229 = vmatprep.mubr.f32.mxu0 0.0
  %1230 = vmatmul.mubr.f32.gmra.mrb[0].mxu0 %v185
  %v1231 = vpop.f32.mrb[0].mxu0
  %v1232 = vadd.f32 %v308, %v1231
  %v1233 = vpop.f32.mrb[0].mxu0
  %1234 = vmatprep.mubr.f32.mxu0 0.0
  %1235 = vmatmul.mubr.f32.gmra.mrb[0].mxu0 %v186
  %v1236 = vpop.f32.mrb[0].mxu0
  %v1237 = vadd.f32 %v308, %v1236
  %v1238 = vpop.f32.mrb[0].mxu0
  %1239 = vmatprep.mubr.f32.mxu0 0.0
  %1240 = vmatmul.mubr.f32.gmra.mrb[0].mxu0 %v187
  %v1241 = vpop.f32.mrb[0].mxu0
  %v1242 = vadd.f32 %v308, %v1241
  %v1243 = vpop.f32.mrb[0].mxu0
  %1244 = vmatprep.mubr.f32.mxu0 0.0
  %1245 = vmatmul.mubr.f32.gmra.mrb[0].mxu0 %v188
  %v1246 = vpop.f32.mrb[0].mxu0
  %v1247 = vadd.f32 %v308, %v1246
  %v1248 = vpop.f32.mrb[0].mxu0
  %1249 = vmatprep.mubr.f32.mxu0 0.0
  %1250 = vmatmul.mubr.f32.gmra.mrb[0].mxu0 %v189
  %v1251 = vpop.f32.mrb[0].mxu0
  %v1252 = vadd.f32 %v308, %v1251
  %v1253 = vpop.f32.mrb[0].mxu0
  %1254 = vmatprep.mubr.f32.mxu0 0.0
  %1255 = vmatmul.mubr.f32.gmra.mrb[0].mxu0 %v190
  %v1256 = vpop.f32.mrb[0].mxu0
  %v1257 = vadd.f32 %v308, %v1256
  %v1258 = vpop.f32.mrb[0].mxu0
  %1259 = vmatprep.mubr.f32.mxu0 0.0
  %1260 = vmatmul.mubr.f32.gmra.mrb[0].mxu0 %v191
  %v1261 = vpop.f32.mrb[0].mxu0
  %v1262 = vadd.f32 %v308, %v1261
  %v1263 = vpop.f32.mrb[0].mxu0
  %1264 = vmatprep.mubr.f32.mxu0 0.0
  %1265 = vmatmul.mubr.f32.gmra.mrb[0].mxu0 %v192
  %v1266 = vpop.f32.mrb[0].mxu0
  %v1267 = vadd.f32 %v308, %v1266
  %v1268 = vpop.f32.mrb[0].mxu0
  %1269 = vmatprep.mubr.f32.mxu0 0.0
  %1270 = vmatmul.mubr.f32.gmra.mrb[0].mxu0 %v193
  %v1271 = vpop.f32.mrb[0].mxu0
  %v1272 = vadd.f32 %v308, %v1271
  %v1273 = vpop.f32.mrb[0].mxu0
  %1274 = vmatprep.mubr.f32.mxu0 0.0
  %1275 = vmatmul.mubr.f32.gmra.mrb[0].mxu0 %v194
  %v1276 = vpop.f32.mrb[0].mxu0
  %v1277 = vadd.f32 %v308, %v1276
  %v1278 = vpop.f32.mrb[0].mxu0
  %1279 = vmatprep.mubr.f32.mxu0 0.0
  %1280 = vmatmul.mubr.f32.gmra.mrb[0].mxu0 %v195
  %v1281 = vpop.f32.mrb[0].mxu0
  %v1282 = vadd.f32 %v308, %v1281
  %v1283 = vpop.f32.mrb[0].mxu0
  %1284 = vmatprep.mubr.f32.mxu0 0.0
  %1285 = vmatmul.mubr.f32.gmra.mrb[0].mxu0 %v196
  %v1286 = vpop.f32.mrb[0].mxu0
  %v1287 = vadd.f32 %v308, %v1286
  %v1288 = vpop.f32.mrb[0].mxu0
  %1289 = vmatprep.mubr.f32.mxu0 0.0
  %1290 = vmatmul.mubr.f32.gmra.mrb[0].mxu0 %v197
  %v1291 = vpop.f32.mrb[0].mxu0
  %v1292 = vadd.f32 %v308, %v1291
  %v1293 = vpop.f32.mrb[0].mxu0
  %1294 = vmatprep.mubr.f32.mxu0 0.0
  %1295 = vmatmul.mubr.f32.gmra.mrb[0].mxu0 %v198
  %v1296 = vpop.f32.mrb[0].mxu0
  %v1297 = vadd.f32 %v308, %v1296
  %v1298 = vpop.f32.mrb[0].mxu0
  %1299 = vmatprep.mubr.f32.mxu0 0.0
  %1300 = vmatmul.mubr.f32.gmra.mrb[0].mxu0 %v199
  %v1301 = vpop.f32.mrb[0].mxu0
  %v1302 = vadd.f32 %v308, %v1301
  %v1303 = vpop.f32.mrb[0].mxu0
  %1304 = vmatprep.mubr.f32.mxu0 0.0
  %1305 = vmatmul.mubr.f32.gmra.mrb[0].mxu0 %v200
  %v1306 = vpop.f32.mrb[0].mxu0
  %v1307 = vadd.f32 %v308, %v1306
  %v1308 = vpop.f32.mrb[0].mxu0
  %1309 = vmatprep.mubr.f32.mxu0 0.0
  %1310 = vmatmul.mubr.f32.gmra.mrb[0].mxu0 %v201
  %v1311 = vpop.f32.mrb[0].mxu0
  %v1312 = vadd.f32 %v308, %v1311
  %v1313 = vpop.f32.mrb[0].mxu0
  %1314 = vmatprep.mubr.f32.mxu0 0.0
  %1315 = vmatmul.mubr.f32.gmra.mrb[0].mxu0 %v202
  %v1316 = vpop.f32.mrb[0].mxu0
  %v1317 = vadd.f32 %v308, %v1316
  %v1318 = vpop.f32.mrb[0].mxu0
  %1319 = vmatprep.mubr.f32.mxu0 0.0
  %1320 = vmatmul.mubr.f32.gmra.mrb[0].mxu0 %v203
  %v1321 = vpop.f32.mrb[0].mxu0
  %v1322 = vadd.f32 %v308, %v1321
  %v1323 = vpop.f32.mrb[0].mxu0
  %1324 = vmatprep.mubr.f32.mxu0 0.0
  %1325 = vmatmul.mubr.f32.gmra.mrb[0].mxu0 %v204
  %v1326 = vpop.f32.mrb[0].mxu0
  %v1327 = vadd.f32 %v308, %v1326
  %v1328 = vpop.f32.mrb[0].mxu0
  %1329 = vmatprep.mubr.f32.mxu0 0.0
  %1330 = vmatmul.mubr.f32.gmra.mrb[0].mxu0 %v205
  %v1331 = vpop.f32.mrb[0].mxu0
  %v1332 = vadd.f32 %v308, %v1331
  %v1333 = vpop.f32.mrb[0].mxu0
  %1334 = vmatprep.mubr.f32.mxu0 0.0
  %1335 = vmatmul.mubr.f32.gmra.mrb[0].mxu0 %v206
  %v1336 = vpop.f32.mrb[0].mxu0
  %v1337 = vadd.f32 %v308, %v1336
  %v1338 = vpop.f32.mrb[0].mxu0
  %1339 = vmatprep.mubr.f32.mxu0 0.0
  %1340 = vmatmul.mubr.f32.gmra.mrb[0].mxu0 %v207
  %v1341 = vpop.f32.mrb[0].mxu0
  %v1342 = vadd.f32 %v308, %v1341
  %v1343 = vpop.f32.mrb[0].mxu0
  %1344 = vmatprep.mubr.f32.mxu0 0.0
  %1345 = vmatmul.mubr.f32.gmra.mrb[0].mxu0 %v208
  %v1346 = vpop.f32.mrb[0].mxu0
  %v1347 = vadd.f32 %v308, %v1346
  %v1348 = vpop.f32.mrb[0].mxu0
  %1349 = vmatprep.mubr.f32.mxu0 0.0
  %1350 = vmatmul.mubr.f32.gmra.mrb[0].mxu0 %v209
  %v1351 = vpop.f32.mrb[0].mxu0
  %v1352 = vadd.f32 %v308, %v1351
  %v1353 = vpop.f32.mrb[0].mxu0
  %1354 = vmatprep.mubr.f32.mxu0 0.0
  %1355 = vmatmul.mubr.f32.gmra.mrb[0].mxu0 %v210
  %v1356 = vpop.f32.mrb[0].mxu0
  %v1357 = vadd.f32 %v308, %v1356
  %v1358 = vpop.f32.mrb[0].mxu0
  %1359 = vmatprep.mubr.f32.mxu0 0.0
  %1360 = vmatmul.mubr.f32.gmra.mrb[0].mxu0 %v211
  %v1361 = vpop.f32.mrb[0].mxu0
  %v1362 = vadd.f32 %v308, %v1361
  %v1363 = vpop.f32.mrb[0].mxu0
  %1364 = vmatprep.mubr.f32.mxu0 0.0
  %1365 = vmatmul.mubr.f32.gmra.mrb[0].mxu0 %v212
  %v1366 = vpop.f32.mrb[0].mxu0
  %v1367 = vadd.f32 %v308, %v1366
  %v1368 = vpop.f32.mrb[0].mxu0
  %1369 = vmatprep.mubr.f32.mxu0 0.0
  %1370 = vmatmul.mubr.f32.gmra.mrb[0].mxu0 %v213
  %v1371 = vpop.f32.mrb[0].mxu0
  %v1372 = vadd.f32 %v308, %v1371
  %v1373 = vpop.f32.mrb[0].mxu0
  %1374 = vmatprep.mubr.f32.mxu0 0.0
  %1375 = vmatmul.mubr.f32.gmra.mrb[0].mxu0 %v214
  %v1376 = vpop.f32.mrb[0].mxu0
  %v1377 = vadd.f32 %v308, %v1376
  %v1378 = vpop.f32.mrb[0].mxu0
  %1379 = vmatprep.mubr.f32.mxu0 0.0
  %1380 = vmatmul.mubr.f32.gmra.mrb[0].mxu0 %v215
  %v1381 = vpop.f32.mrb[0].mxu0
  %v1382 = vadd.f32 %v308, %v1381
  %v1383 = vpop.f32.mrb[0].mxu0
  %1384 = vmatprep.mubr.f32.mxu0 0.0
  %1385 = vmatmul.mubr.f32.gmra.mrb[0].mxu0 %v216
  %v1386 = vpop.f32.mrb[0].mxu0
  %v1387 = vadd.f32 %v308, %v1386
  %v1388 = vpop.f32.mrb[0].mxu0
  %1389 = vmatprep.mubr.f32.mxu0 0.0
  %1390 = vmatmul.mubr.f32.gmra.mrb[0].mxu0 %v217
  %v1391 = vpop.f32.mrb[0].mxu0
  %v1392 = vadd.f32 %v308, %v1391
  %v1393 = vpop.f32.mrb[0].mxu0
  %1394 = vmatprep.mubr.f32.mxu0 0.0
  %1395 = vmatmul.mubr.f32.gmra.mrb[0].mxu0 %v218
  %v1396 = vpop.f32.mrb[0].mxu0
  %v1397 = vadd.f32 %v308, %v1396
  %v1398 = vpop.f32.mrb[0].mxu0
  %1399 = vmatprep.mubr.f32.mxu0 0.0
  %1400 = vmatmul.mubr.f32.gmra.mrb[0].mxu0 %v219
  %v1401 = vpop.f32.mrb[0].mxu0
  %v1402 = vadd.f32 %v308, %v1401
  %v1403 = vpop.f32.mrb[0].mxu0
  %1404 = vmatprep.mubr.f32.mxu0 0.0
  %1405 = vmatmul.mubr.f32.gmra.mrb[0].mxu0 %v220
  %v1406 = vpop.f32.mrb[0].mxu0
  %v1407 = vadd.f32 %v308, %v1406
  %v1408 = vpop.f32.mrb[0].mxu0
  %1409 = vmatprep.mubr.f32.mxu0 0.0
  %1410 = vmatmul.mubr.f32.gmra.mrb[0].mxu0 %v221
  %v1411 = vpop.f32.mrb[0].mxu0
  %v1412 = vadd.f32 %v308, %v1411
  %v1413 = vpop.f32.mrb[0].mxu0
  %1414 = vmatprep.mubr.f32.mxu0 0.0
  %1415 = vmatmul.mubr.f32.gmra.mrb[0].mxu0 %v222
  %v1416 = vpop.f32.mrb[0].mxu0
  %v1417 = vadd.f32 %v308, %v1416
  %v1418 = vpop.f32.mrb[0].mxu0
  %1419 = vmatprep.mubr.f32.mxu0 0.0
  %1420 = vmatmul.mubr.f32.gmra.mrb[0].mxu0 %v223
  %v1421 = vpop.f32.mrb[0].mxu0
  %v1422 = vadd.f32 %v308, %v1421
  %v1423 = vpop.f32.mrb[0].mxu0
  %1424 = vmatprep.mubr.f32.mxu0 0.0
  %1425 = vmatmul.mubr.f32.gmra.mrb[0].mxu0 %v224
  %v1426 = vpop.f32.mrb[0].mxu0
  %v1427 = vadd.f32 %v308, %v1426
  %v1428 = vpop.f32.mrb[0].mxu0
  %1429 = vmatprep.mubr.f32.mxu0 0.0
  %1430 = vmatmul.mubr.f32.gmra.mrb[0].mxu0 %v225
  %v1431 = vpop.f32.mrb[0].mxu0
  %v1432 = vadd.f32 %v308, %v1431
  %v1433 = vpop.f32.mrb[0].mxu0
  %1434 = vmatprep.mubr.f32.mxu0 0.0
  %1435 = vmatmul.mubr.f32.gmra.mrb[0].mxu0 %v226
  %v1436 = vpop.f32.mrb[0].mxu0
  %v1437 = vadd.f32 %v308, %v1436
  %v1438 = vpop.f32.mrb[0].mxu0
  %1439 = vmatprep.mubr.f32.mxu0 0.0
  %1440 = vmatmul.mubr.f32.gmra.mrb[0].mxu0 %v227
  %v1441 = vpop.f32.mrb[0].mxu0
  %v1442 = vadd.f32 %v308, %v1441
  %v1443 = vpop.f32.mrb[0].mxu0
  %1444 = vmatprep.mubr.f32.mxu0 0.0
  %1445 = vmatmul.mubr.f32.gmra.mrb[0].mxu0 %v228
  %v1446 = vpop.f32.mrb[0].mxu0
  %v1447 = vadd.f32 %v308, %v1446
  %v1448 = vpop.f32.mrb[0].mxu0
  %1449 = vmatprep.mubr.f32.mxu0 0.0
  %1450 = vmatmul.mubr.f32.gmra.mrb[0].mxu0 %v229
  %v1451 = vpop.f32.mrb[0].mxu0
  %v1452 = vadd.f32 %v308, %v1451
  %v1453 = vpop.f32.mrb[0].mxu0
  %1454 = vmatprep.mubr.f32.mxu0 0.0
  %1455 = vmatmul.mubr.f32.gmra.mrb[0].mxu0 %v230
  %v1456 = vpop.f32.mrb[0].mxu0
  %v1457 = vadd.f32 %v308, %v1456
  %v1458 = vpop.f32.mrb[0].mxu0
  %1459 = vmatprep.mubr.f32.mxu0 0.0
  %1460 = vmatmul.mubr.f32.gmra.mrb[0].mxu0 %v231
  %v1461 = vpop.f32.mrb[0].mxu0
  %v1462 = vadd.f32 %v308, %v1461
  %v1463 = vpop.f32.mrb[0].mxu0
  %1464 = vmatprep.mubr.f32.mxu0 0.0
  %1465 = vmatmul.mubr.f32.gmra.mrb[0].mxu0 %v232
  %v1466 = vpop.f32.mrb[0].mxu0
  %v1467 = vadd.f32 %v308, %v1466
  %v1468 = vpop.f32.mrb[0].mxu0
  %1469 = vmatprep.mubr.f32.mxu0 0.0
  %1470 = vmatmul.mubr.f32.gmra.mrb[0].mxu0 %v233
  %v1471 = vpop.f32.mrb[0].mxu0
  %v1472 = vadd.f32 %v308, %v1471
  %v1473 = vpop.f32.mrb[0].mxu0
  %1474 = vmatprep.mubr.f32.mxu0 0.0
  %1475 = vmatmul.mubr.f32.gmra.mrb[0].mxu0 %v234
  %v1476 = vpop.f32.mrb[0].mxu0
  %v1477 = vadd.f32 %v308, %v1476
  %v1478 = vpop.f32.mrb[0].mxu0
  %1479 = vmatprep.mubr.f32.mxu0 0.0
  %1480 = vmatmul.mubr.f32.gmra.mrb[0].mxu0 %v235
  %v1481 = vpop.f32.mrb[0].mxu0
  %v1482 = vadd.f32 %v308, %v1481
  %v1483 = vpop.f32.mrb[0].mxu0
  %1484 = vmatprep.mubr.f32.mxu0 0.0
  %1485 = vmatmul.mubr.f32.gmra.mrb[0].mxu0 %v236
  %v1486 = vpop.f32.mrb[0].mxu0
  %v1487 = vadd.f32 %v308, %v1486
  %v1488 = vpop.f32.mrb[0].mxu0
  %1489 = vmatprep.mubr.f32.mxu0 0.0
  %1490 = vmatmul.mubr.f32.gmra.mrb[0].mxu0 %v237
  %v1491 = vpop.f32.mrb[0].mxu0
  %v1492 = vadd.f32 %v308, %v1491
  %v1493 = vpop.f32.mrb[0].mxu0
  %1494 = vmatprep.mubr.f32.mxu0 0.0
  %1495 = vmatmul.mubr.f32.gmra.mrb[0].mxu0 %v238
  %v1496 = vpop.f32.mrb[0].mxu0
  %v1497 = vadd.f32 %v308, %v1496
  %v1498 = vpop.f32.mrb[0].mxu0
  %1499 = vmatprep.mubr.f32.mxu0 0.0
  %1500 = vmatmul.mubr.f32.gmra.mrb[0].mxu0 %v239
  %v1501 = vpop.f32.mrb[0].mxu0
  %v1502 = vadd.f32 %v308, %v1501
  %v1503 = vpop.f32.mrb[0].mxu0
  %1504 = vmatprep.mubr.f32.mxu0 0.0
  %1505 = vmatmul.mubr.f32.gmra.mrb[0].mxu0 %v240
  %v1506 = vpop.f32.mrb[0].mxu0
  %v1507 = vadd.f32 %v308, %v1506
  %v1508 = vpop.f32.mrb[0].mxu0
  %1509 = vmatprep.mubr.f32.mxu0 0.0
  %1510 = vmatmul.mubr.f32.gmra.mrb[0].mxu0 %v241
  %v1511 = vpop.f32.mrb[0].mxu0
  %v1512 = vadd.f32 %v308, %v1511
  %v1513 = vpop.f32.mrb[0].mxu0
  %1514 = vmatprep.mubr.f32.mxu0 0.0
  %1515 = vmatmul.mubr.f32.gmra.mrb[0].mxu0 %v242
  %v1516 = vpop.f32.mrb[0].mxu0
  %v1517 = vadd.f32 %v308, %v1516
  %v1518 = vpop.f32.mrb[0].mxu0
  %1519 = vmatprep.mubr.f32.mxu0 0.0
  %1520 = vmatmul.mubr.f32.gmra.mrb[0].mxu0 %v243
  %v1521 = vpop.f32.mrb[0].mxu0
  %v1522 = vadd.f32 %v308, %v1521
  %v1523 = vpop.f32.mrb[0].mxu0
  %1524 = vmatprep.mubr.f32.mxu0 0.0
  %1525 = vmatmul.mubr.f32.gmra.mrb[0].mxu0 %v244
  %v1526 = vpop.f32.mrb[0].mxu0
  %v1527 = vadd.f32 %v308, %v1526
  %v1528 = vpop.f32.mrb[0].mxu0
  %1529 = vmatprep.mubr.f32.mxu0 0.0
  %1530 = vmatmul.mubr.f32.gmra.mrb[0].mxu0 %v245
  %v1531 = vpop.f32.mrb[0].mxu0
  %v1532 = vadd.f32 %v308, %v1531
  %v1533 = vpop.f32.mrb[0].mxu0
  %1534 = vmatprep.mubr.f32.mxu0 0.0
  %1535 = vmatmul.mubr.f32.gmra.mrb[0].mxu0 %v246
  %v1536 = vpop.f32.mrb[0].mxu0
  %v1537 = vadd.f32 %v308, %v1536
  %v1538 = vpop.f32.mrb[0].mxu0
  %1539 = vmatprep.mubr.f32.mxu0 0.0
  %1540 = vmatmul.mubr.f32.gmra.mrb[0].mxu0 %v247
  %v1541 = vpop.f32.mrb[0].mxu0
  %v1542 = vadd.f32 %v308, %v1541
  %v1543 = vpop.f32.mrb[0].mxu0
  %1544 = vmatprep.mubr.f32.mxu0 0.0
  %1545 = vmatmul.mubr.f32.gmra.mrb[0].mxu0 %v248
  %v1546 = vpop.f32.mrb[0].mxu0
  %v1547 = vadd.f32 %v308, %v1546
  %v1548 = vpop.f32.mrb[0].mxu0
  %1549 = vmatprep.mubr.f32.mxu0 0.0
  %1550 = vmatmul.mubr.f32.gmra.mrb[0].mxu0 %v249
  %v1551 = vpop.f32.mrb[0].mxu0
  %v1552 = vadd.f32 %v308, %v1551
  %v1553 = vpop.f32.mrb[0].mxu0
  %1554 = vmatprep.mubr.f32.mxu0 0.0
  %1555 = vmatmul.mubr.f32.gmra.mrb[0].mxu0 %v250
  %v1556 = vpop.f32.mrb[0].mxu0
  %v1557 = vadd.f32 %v308, %v1556
  %v1558 = vpop.f32.mrb[0].mxu0
  %1559 = vmatprep.mubr.f32.mxu0 0.0
  %1560 = vmatmul.mubr.f32.gmra.mrb[0].mxu0 %v251
  %v1561 = vpop.f32.mrb[0].mxu0
  %v1562 = vadd.f32 %v308, %v1561
  %v1563 = vpop.f32.mrb[0].mxu0
  %1564 = vmatprep.mubr.f32.mxu0 0.0
  %1565 = vmatmul.mubr.f32.gmra.mrb[0].mxu0 %v252
  %v1566 = vpop.f32.mrb[0].mxu0
  %v1567 = vadd.f32 %v308, %v1566
  %v1568 = vpop.f32.mrb[0].mxu0
  %1569 = vmatprep.mubr.f32.mxu0 0.0
  %1570 = vmatmul.mubr.f32.gmra.mrb[0].mxu0 %v253
  %v1571 = vpop.f32.mrb[0].mxu0
  %v1572 = vadd.f32 %v308, %v1571
  %v1573 = vpop.f32.mrb[0].mxu0
  %1574 = vmatprep.mubr.f32.mxu0 0.0
  %1575 = vmatmul.mubr.f32.gmra.mrb[0].mxu0 %v254
  %v1576 = vpop.f32.mrb[0].mxu0
  %v1577 = vadd.f32 %v308, %v1576
  %v1578 = vpop.f32.mrb[0].mxu0
  %1579 = vmatprep.mubr.f32.mxu0 0.0
  %1580 = vmatmul.mubr.f32.gmra.mrb[0].mxu0 %v255
  %v1581 = vpop.f32.mrb[0].mxu0
  %v1582 = vadd.f32 %v308, %v1581
  %v1583 = vpop.f32.mrb[0].mxu0
  %1584 = vmatprep.mubr.f32.mxu0 0.0
  %1585 = vmatmul.mubr.f32.gmra.mrb[0].mxu0 %v256
  %v1586 = vpop.f32.mrb[0].mxu0
  %v1587 = vadd.f32 %v308, %v1586
  %v1588 = vpop.f32.mrb[0].mxu0
  %1589 = vmatprep.mubr.f32.mxu0 0.0
  %1590 = vmatmul.mubr.f32.gmra.mrb[0].mxu0 %v257
  %v1591 = vpop.f32.mrb[0].mxu0
  %v1592 = vadd.f32 %v308, %v1591
  %v1593 = vpop.f32.mrb[0].mxu0
  %1594 = vmatprep.mubr.f32.mxu0 0.0
  %1595 = vmatmul.mubr.f32.gmra.mrb[0].mxu0 %v258
  %v1596 = vpop.f32.mrb[0].mxu0
  %v1597 = vadd.f32 %v308, %v1596
  %v1598 = vpop.f32.mrb[0].mxu0
  %1599 = vmatprep.mubr.f32.mxu0 0.0
  %1600 = vmatmul.mubr.f32.gmra.mrb[0].mxu0 %v259
  %v1601 = vpop.f32.mrb[0].mxu0
  %v1602 = vadd.f32 %v308, %v1601
  %v1603 = vpop.f32.mrb[0].mxu0
  %1604 = vmatprep.mubr.f32.mxu0 0.0
  %1605 = vmatmul.mubr.f32.gmra.mrb[0].mxu0 %v260
  %v1606 = vpop.f32.mrb[0].mxu0
  %v1607 = vadd.f32 %v308, %v1606
  %v1608 = vpop.f32.mrb[0].mxu0
  %1609 = vmatprep.mubr.f32.mxu0 0.0
  %1610 = vmatmul.mubr.f32.gmra.mrb[0].mxu0 %v261
  %v1611 = vpop.f32.mrb[0].mxu0
  %v1612 = vadd.f32 %v308, %v1611
  %v1613 = vpop.f32.mrb[0].mxu0
  %1614 = vmatprep.mubr.f32.mxu0 0.0
  %1615 = vmatmul.mubr.f32.gmra.mrb[0].mxu0 %v262
  %v1616 = vpop.f32.mrb[0].mxu0
  %v1617 = vadd.f32 %v308, %v1616
  %v1618 = vpop.f32.mrb[0].mxu0
  %1619 = vmatprep.mubr.f32.mxu0 0.0
  %1620 = vmatmul.mubr.f32.gmra.mrb[0].mxu0 %v263
  %v1621 = vpop.f32.mrb[0].mxu0
  %v1622 = vadd.f32 %v308, %v1621
  %v1623 = vpop.f32.mrb[0].mxu0
  %1624 = vmatprep.mubr.f32.mxu0 0.0
  %1625 = vmatmul.mubr.f32.gmra.mrb[0].mxu0 %v264
  %v1626 = vpop.f32.mrb[0].mxu0
  %v1627 = vadd.f32 %v308, %v1626
  %v1628 = vpop.f32.mrb[0].mxu0
  %1629 = vmatprep.mubr.f32.mxu0 0.0
  %1630 = vmatmul.mubr.f32.gmra.mrb[0].mxu0 %v265
  %v1631 = vpop.f32.mrb[0].mxu0
  %v1632 = vadd.f32 %v308, %v1631
  %v1633 = vpop.f32.mrb[0].mxu0
  %1634 = vmatprep.mubr.f32.mxu0 0.0
  %1635 = vmatmul.mubr.f32.gmra.mrb[0].mxu0 %v266
  %v1636 = vpop.f32.mrb[0].mxu0
  %v1637 = vadd.f32 %v308, %v1636
  %v1638 = vpop.f32.mrb[0].mxu0
  %1639 = vmatprep.mubr.f32.mxu0 0.0
  %1640 = vmatmul.mubr.f32.gmra.mrb[0].mxu0 %v267
  %v1641 = vpop.f32.mrb[0].mxu0
  %v1642 = vadd.f32 %v308, %v1641
  %v1643 = vpop.f32.mrb[0].mxu0
  %1644 = vmatprep.mubr.f32.mxu0 0.0
  %1645 = vmatmul.mubr.f32.gmra.mrb[0].mxu0 %v268
  %v1646 = vpop.f32.mrb[0].mxu0
  %v1647 = vadd.f32 %v308, %v1646
  %v1648 = vpop.f32.mrb[0].mxu0
  %1649 = vmatprep.mubr.f32.mxu0 0.0
  %1650 = vmatmul.mubr.f32.gmra.mrb[0].mxu0 %v269
  %v1651 = vpop.f32.mrb[0].mxu0
  %v1652 = vadd.f32 %v308, %v1651
  %v1653 = vpop.f32.mrb[0].mxu0
  %1654 = vmatprep.mubr.f32.mxu0 0.0
  %1655 = vmatmul.mubr.f32.gmra.mrb[0].mxu0 %v270
  %v1656 = vpop.f32.mrb[0].mxu0
  %v1657 = vadd.f32 %v308, %v1656
  %v1658 = vpop.f32.mrb[0].mxu0
  %1659 = vmatprep.mubr.f32.mxu0 0.0
  %1660 = vmatmul.mubr.f32.gmra.mrb[0].mxu0 %v271
  %v1661 = vpop.f32.mrb[0].mxu0
  %v1662 = vadd.f32 %v308, %v1661
  %v1663 = vpop.f32.mrb[0].mxu0
  %1664 = vmatprep.mubr.f32.mxu0 0.0
  %1665 = vmatmul.mubr.f32.gmra.mrb[0].mxu0 %v272
  %v1666 = vpop.f32.mrb[0].mxu0
  %v1667 = vadd.f32 %v308, %v1666
  %v1668 = vpop.f32.mrb[0].mxu0
  %1669 = vmatprep.mubr.f32.mxu0 0.0
  %1670 = vmatmul.mubr.f32.gmra.mrb[0].mxu0 %v273
  %v1671 = vpop.f32.mrb[0].mxu0
  %v1672 = vadd.f32 %v308, %v1671
  %v1673 = vpop.f32.mrb[0].mxu0
  %1674 = vmatprep.mubr.f32.mxu0 0.0
  %1675 = vmatmul.mubr.f32.gmra.mrb[0].mxu0 %v274
  %v1676 = vpop.f32.mrb[0].mxu0
  %v1677 = vadd.f32 %v308, %v1676
  %v1678 = vpop.f32.mrb[0].mxu0
  %1679 = vmatprep.mubr.f32.mxu0 0.0
  %1680 = vmatmul.mubr.f32.gmra.mrb[0].mxu0 %v275
  %v1681 = vpop.f32.mrb[0].mxu0
  %v1682 = vadd.f32 %v308, %v1681
  %v1683 = vpop.f32.mrb[0].mxu0
  %1684 = vmatprep.mubr.f32.mxu0 0.0
  %1685 = vmatmul.mubr.f32.gmra.mrb[0].mxu0 %v276
  %v1686 = vpop.f32.mrb[0].mxu0
  %v1687 = vadd.f32 %v308, %v1686
  %v1688 = vpop.f32.mrb[0].mxu0
  %1689 = vmatprep.mubr.f32.mxu0 0.0
  %1690 = vmatmul.mubr.f32.gmra.mrb[0].mxu0 %v277
  %v1691 = vpop.f32.mrb[0].mxu0
  %v1692 = vadd.f32 %v308, %v1691
  %v1693 = vpop.f32.mrb[0].mxu0
  %1694 = vmatprep.mubr.f32.mxu0 0.0
  %1695 = vmatmul.mubr.f32.gmra.mrb[0].mxu0 %v278
  %v1696 = vpop.f32.mrb[0].mxu0
  %v1697 = vadd.f32 %v308, %v1696
  %v1698 = vpop.f32.mrb[0].mxu0
  %1699 = vmatprep.mubr.f32.mxu0 0.0
  %1700 = vmatmul.mubr.f32.gmra.mrb[0].mxu0 %v279
  %v1701 = vpop.f32.mrb[0].mxu0
  %v1702 = vadd.f32 %v308, %v1701
  %v1703 = vpop.f32.mrb[0].mxu0
  %1704 = vmatprep.mubr.f32.mxu0 0.0
  %1705 = vmatmul.mubr.f32.gmra.mrb[0].mxu0 %v280
  %v1706 = vpop.f32.mrb[0].mxu0
  %v1707 = vadd.f32 %v308, %v1706
  %v1708 = vpop.f32.mrb[0].mxu0
  %1709 = vmatprep.mubr.f32.mxu0 0.0
  %1710 = vmatmul.mubr.f32.gmra.mrb[0].mxu0 %v281
  %v1711 = vpop.f32.mrb[0].mxu0
  %v1712 = vadd.f32 %v308, %v1711
  %v1713 = vpop.f32.mrb[0].mxu0
  %1714 = vmatprep.mubr.f32.mxu0 0.0
  %1715 = vmatmul.mubr.f32.gmra.mrb[0].mxu0 %v282
  %v1716 = vpop.f32.mrb[0].mxu0
  %v1717 = vadd.f32 %v308, %v1716
  %v1718 = vpop.f32.mrb[0].mxu0
  %1719 = vmatprep.mubr.f32.mxu0 0.0
  %1720 = vmatmul.mubr.f32.gmra.mrb[0].mxu0 %v283
  %v1721 = vpop.f32.mrb[0].mxu0
  %v1722 = vadd.f32 %v308, %v1721
  %v1723 = vpop.f32.mrb[0].mxu0
  %1724 = vmatprep.mubr.f32.mxu0 0.0
  %1725 = vmatmul.mubr.f32.gmra.mrb[0].mxu0 %v284
  %v1726 = vpop.f32.mrb[0].mxu0
  %v1727 = vadd.f32 %v308, %v1726
  %v1728 = vpop.f32.mrb[0].mxu0
  %1729 = vmatprep.mubr.f32.mxu0 0.0
  %1730 = vmatmul.mubr.f32.gmra.mrb[0].mxu0 %v285
  %v1731 = vpop.f32.mrb[0].mxu0
  %v1732 = vadd.f32 %v308, %v1731
  %v1733 = vpop.f32.mrb[0].mxu0
  %1734 = vmatprep.mubr.f32.mxu0 0.0
  %1735 = vmatmul.mubr.f32.gmra.mrb[0].mxu0 %v286
  %v1736 = vpop.f32.mrb[0].mxu0
  %v1737 = vadd.f32 %v308, %v1736
  %v1738 = vpop.f32.mrb[0].mxu0
  %1739 = vdwg.mxu0
  %v1740 = vmax.f32 %v377, 0.0
  %v1741 = vmax.f32 %v382, 0.0
  %v1742 = vmax.f32 %v387, 0.0
  %v1743 = vmax.f32 %v392, 0.0
  %v1744 = vmax.f32 %v397, 0.0
  %v1745 = vmax.f32 %v402, 0.0
  %v1746 = vmax.f32 %v407, 0.0
  %v1747 = vmax.f32 %v412, 0.0
  %v1748 = vmax.f32 %v417, 0.0
  %v1749 = vmax.f32 %v422, 0.0
  %v1750 = vmax.f32 %v427, 0.0
  %v1751 = vmax.f32 %v432, 0.0
  %v1752 = vmax.f32 %v437, 0.0
  %v1753 = vmax.f32 %v442, 0.0
  %v1754 = vmax.f32 %v447, 0.0
  %v1755 = vmax.f32 %v452, 0.0
  %v1756 = vmax.f32 %v457, 0.0
  %v1757 = vmax.f32 %v462, 0.0
  %v1758 = vmax.f32 %v467, 0.0
  %v1759 = vmax.f32 %v472, 0.0
  %v1760 = vmax.f32 %v477, 0.0
  %v1761 = vmax.f32 %v482, 0.0
  %v1762 = vmax.f32 %v487, 0.0
  %v1763 = vmax.f32 %v492, 0.0
  %v1764 = vmax.f32 %v497, 0.0
  %v1765 = vmax.f32 %v502, 0.0
  %v1766 = vmax.f32 %v507, 0.0
  %v1767 = vmax.f32 %v512, 0.0
  %v1768 = vmax.f32 %v517, 0.0
  %v1769 = vmax.f32 %v522, 0.0
  %v1770 = vmax.f32 %v527, 0.0
  %v1771 = vmax.f32 %v532, 0.0
  %v1772 = vmax.f32 %v537, 0.0
  %v1773 = vmax.f32 %v542, 0.0
  %v1774 = vmax.f32 %v547, 0.0
  %v1775 = vmax.f32 %v552, 0.0
  %v1776 = vmax.f32 %v557, 0.0
  %v1777 = vmax.f32 %v562, 0.0
  %v1778 = vmax.f32 %v567, 0.0
  %v1779 = vmax.f32 %v572, 0.0
  %v1780 = vmax.f32 %v577, 0.0
  %v1781 = vmax.f32 %v582, 0.0
  %v1782 = vmax.f32 %v587, 0.0
  %v1783 = vmax.f32 %v592, 0.0
  %v1784 = vmax.f32 %v597, 0.0
  %v1785 = vmax.f32 %v602, 0.0
  %v1786 = vmax.f32 %v607, 0.0
  %v1787 = vmax.f32 %v612, 0.0
  %v1788 = vmax.f32 %v617, 0.0
  %v1789 = vmax.f32 %v622, 0.0
  %v1790 = vmax.f32 %v627, 0.0
  %v1791 = vmax.f32 %v632, 0.0
  %v1792 = vmax.f32 %v637, 0.0
  %v1793 = vmax.f32 %v642, 0.0
  %v1794 = vmax.f32 %v647, 0.0
  %v1795 = vmax.f32 %v652, 0.0
  %v1796 = vmax.f32 %v657, 0.0
  %v1797 = vmax.f32 %v662, 0.0
  %v1798 = vmax.f32 %v667, 0.0
  %v1799 = vmax.f32 %v672, 0.0
  %v1800 = vmax.f32 %v677, 0.0
  %v1801 = vmax.f32 %v682, 0.0
  %v1802 = vmax.f32 %v687, 0.0
  %v1803 = vmax.f32 %v692, 0.0
  %v1804 = vmax.f32 %v697, 0.0
  %v1805 = vmax.f32 %v702, 0.0
  %v1806 = vmax.f32 %v707, 0.0
  %v1807 = vmax.f32 %v712, 0.0
  %v1808 = vmax.f32 %v717, 0.0
  %v1809 = vmax.f32 %v722, 0.0
  %v1810 = vmax.f32 %v727, 0.0
  %v1811 = vmax.f32 %v732, 0.0
  %v1812 = vmax.f32 %v737, 0.0
  %v1813 = vmax.f32 %v742, 0.0
  %v1814 = vmax.f32 %v747, 0.0
  %v1815 = vmax.f32 %v752, 0.0
  %v1816 = vmax.f32 %v757, 0.0
  %v1817 = vmax.f32 %v762, 0.0
  %v1818 = vmax.f32 %v767, 0.0
  %v1819 = vmax.f32 %v772, 0.0
  %v1820 = vmax.f32 %v777, 0.0
  %v1821 = vmax.f32 %v782, 0.0
  %v1822 = vmax.f32 %v787, 0.0
  %v1823 = vmax.f32 %v792, 0.0
  %v1824 = vmax.f32 %v797, 0.0
  %v1825 = vmax.f32 %v802, 0.0
  %v1826 = vmax.f32 %v807, 0.0
  %v1827 = vmax.f32 %v812, 0.0
  %v1828 = vmax.f32 %v817, 0.0
  %v1829 = vmax.f32 %v822, 0.0
  %v1830 = vmax.f32 %v827, 0.0
  %v1831 = vmax.f32 %v832, 0.0
  %v1832 = vmax.f32 %v837, 0.0
  %v1833 = vmax.f32 %v842, 0.0
  %v1834 = vmax.f32 %v847, 0.0
  %v1835 = vmax.f32 %v852, 0.0
  %v1836 = vmax.f32 %v857, 0.0
  %v1837 = vmax.f32 %v862, 0.0
  %v1838 = vmax.f32 %v867, 0.0
  %v1839 = vmax.f32 %v872, 0.0
  %v1840 = vmax.f32 %v877, 0.0
  %v1841 = vmax.f32 %v882, 0.0
  %v1842 = vmax.f32 %v887, 0.0
  %v1843 = vmax.f32 %v892, 0.0
  %v1844 = vmax.f32 %v897, 0.0
  %v1845 = vmax.f32 %v902, 0.0
  %v1846 = vmax.f32 %v907, 0.0
  %v1847 = vmax.f32 %v912, 0.0
  %v1848 = vmax.f32 %v917, 0.0
  %v1849 = vmax.f32 %v922, 0.0
  %v1850 = vmax.f32 %v927, 0.0
  %v1851 = vmax.f32 %v932, 0.0
  %v1852 = vmax.f32 %v937, 0.0
  %v1853 = vmax.f32 %v942, 0.0
  %v1854 = vmax.f32 %v947, 0.0
  %v1855 = vmax.f32 %v952, 0.0
  %v1856 = vmax.f32 %v957, 0.0
  %v1857 = vmax.f32 %v962, 0.0
  %v1858 = vmax.f32 %v967, 0.0
  %v1859 = vmax.f32 %v972, 0.0
  %v1860 = vmax.f32 %v977, 0.0
  %v1861 = vmax.f32 %v982, 0.0
  %v1862 = vmax.f32 %v987, 0.0
  %v1863 = vmax.f32 %v992, 0.0
  %v1864 = vmax.f32 %v997, 0.0
  %v1865 = vmax.f32 %v1002, 0.0
  %v1866 = vmax.f32 %v1007, 0.0
  %v1867 = vmax.f32 %v1012, 0.0
  %v1868 = vmax.f32 %v1017, 0.0
  %v1869 = vmax.f32 %v1022, 0.0
  %v1870 = vmax.f32 %v1027, 0.0
  %v1871 = vmax.f32 %v1032, 0.0
  %v1872 = vmax.f32 %v1037, 0.0
  %v1873 = vmax.f32 %v1042, 0.0
  %v1874 = vmax.f32 %v1047, 0.0
  %v1875 = vmax.f32 %v1052, 0.0
  %v1876 = vmax.f32 %v1057, 0.0
  %v1877 = vmax.f32 %v1062, 0.0
  %v1878 = vmax.f32 %v1067, 0.0
  %v1879 = vmax.f32 %v1072, 0.0
  %v1880 = vmax.f32 %v1077, 0.0
  %v1881 = vmax.f32 %v1082, 0.0
  %v1882 = vmax.f32 %v1087, 0.0
  %v1883 = vmax.f32 %v1092, 0.0
  %v1884 = vmax.f32 %v1097, 0.0
  %v1885 = vmax.f32 %v1102, 0.0
  %v1886 = vmax.f32 %v1107, 0.0
  %v1887 = vmax.f32 %v1112, 0.0
  %v1888 = vmax.f32 %v1117, 0.0
  %v1889 = vmax.f32 %v1122, 0.0
  %v1890 = vmax.f32 %v1127, 0.0
  %v1891 = vmax.f32 %v1132, 0.0
  %v1892 = vmax.f32 %v1137, 0.0
  %v1893 = vmax.f32 %v1142, 0.0
  %v1894 = vmax.f32 %v1147, 0.0
  %v1895 = vmax.f32 %v1152, 0.0
  %v1896 = vmax.f32 %v1157, 0.0
  %v1897 = vmax.f32 %v1162, 0.0
  %v1898 = vmax.f32 %v1167, 0.0
  %v1899 = vmax.f32 %v1172, 0.0
  %v1900 = vmax.f32 %v1177, 0.0
  %v1901 = vmax.f32 %v1182, 0.0
  %v1902 = vmax.f32 %v1187, 0.0
  %v1903 = vmax.f32 %v1192, 0.0
  %v1904 = vmax.f32 %v1197, 0.0
  %v1905 = vmax.f32 %v1202, 0.0
  %v1906 = vmax.f32 %v1207, 0.0
  %v1907 = vmax.f32 %v1212, 0.0
  %v1908 = vmax.f32 %v1217, 0.0
  %v1909 = vmax.f32 %v1222, 0.0
  %v1910 = vmax.f32 %v1227, 0.0
  %v1911 = vmax.f32 %v1232, 0.0
  %v1912 = vmax.f32 %v1237, 0.0
  %v1913 = vmax.f32 %v1242, 0.0
  %v1914 = vmax.f32 %v1247, 0.0
  %v1915 = vmax.f32 %v1252, 0.0
  %v1916 = vmax.f32 %v1257, 0.0
  %v1917 = vmax.f32 %v1262, 0.0
  %v1918 = vmax.f32 %v1267, 0.0
  %v1919 = vmax.f32 %v1272, 0.0
  %v1920 = vmax.f32 %v1277, 0.0
  %v1921 = vmax.f32 %v1282, 0.0
  %v1922 = vmax.f32 %v1287, 0.0
  %v1923 = vmax.f32 %v1292, 0.0
  %v1924 = vmax.f32 %v1297, 0.0
  %v1925 = vmax.f32 %v1302, 0.0
  %v1926 = vmax.f32 %v1307, 0.0
  %v1927 = vmax.f32 %v1312, 0.0
  %v1928 = vmax.f32 %v1317, 0.0
  %v1929 = vmax.f32 %v1322, 0.0
  %v1930 = vmax.f32 %v1327, 0.0
  %v1931 = vmax.f32 %v1332, 0.0
  %v1932 = vmax.f32 %v1337, 0.0
  %v1933 = vmax.f32 %v1342, 0.0
  %v1934 = vmax.f32 %v1347, 0.0
  %v1935 = vmax.f32 %v1352, 0.0
  %v1936 = vmax.f32 %v1357, 0.0
  %v1937 = vmax.f32 %v1362, 0.0
  %v1938 = vmax.f32 %v1367, 0.0
  %v1939 = vmax.f32 %v1372, 0.0
  %v1940 = vmax.f32 %v1377, 0.0
  %v1941 = vmax.f32 %v1382, 0.0
  %v1942 = vmax.f32 %v1387, 0.0
  %v1943 = vmax.f32 %v1392, 0.0
  %v1944 = vmax.f32 %v1397, 0.0
  %v1945 = vmax.f32 %v1402, 0.0
  %v1946 = vmax.f32 %v1407, 0.0
  %v1947 = vmax.f32 %v1412, 0.0
  %v1948 = vmax.f32 %v1417, 0.0
  %v1949 = vmax.f32 %v1422, 0.0
  %v1950 = vmax.f32 %v1427, 0.0
  %v1951 = vmax.f32 %v1432, 0.0
  %v1952 = vmax.f32 %v1437, 0.0
  %v1953 = vmax.f32 %v1442, 0.0
  %v1954 = vmax.f32 %v1447, 0.0
  %v1955 = vmax.f32 %v1452, 0.0
  %v1956 = vmax.f32 %v1457, 0.0
  %v1957 = vmax.f32 %v1462, 0.0
  %v1958 = vmax.f32 %v1467, 0.0
  %v1959 = vmax.f32 %v1472, 0.0
  %v1960 = vmax.f32 %v1477, 0.0
  %v1961 = vmax.f32 %v1482, 0.0
  %v1962 = vmax.f32 %v1487, 0.0
  %v1963 = vmax.f32 %v1492, 0.0
  %v1964 = vmax.f32 %v1497, 0.0
  %v1965 = vmax.f32 %v1502, 0.0
  %v1966 = vmax.f32 %v1507, 0.0
  %v1967 = vmax.f32 %v1512, 0.0
  %v1968 = vmax.f32 %v1517, 0.0
  %v1969 = vmax.f32 %v1522, 0.0
  %v1970 = vmax.f32 %v1527, 0.0
  %v1971 = vmax.f32 %v1532, 0.0
  %v1972 = vmax.f32 %v1537, 0.0
  %v1973 = vmax.f32 %v1542, 0.0
  %v1974 = vmax.f32 %v1547, 0.0
  %v1975 = vmax.f32 %v1552, 0.0
  %v1976 = vmax.f32 %v1557, 0.0
  %v1977 = vmax.f32 %v1562, 0.0
  %v1978 = vmax.f32 %v1567, 0.0
  %v1979 = vmax.f32 %v1572, 0.0
  %v1980 = vmax.f32 %v1577, 0.0
  %v1981 = vmax.f32 %v1582, 0.0
  %v1982 = vmax.f32 %v1587, 0.0
  %v1983 = vmax.f32 %v1592, 0.0
  %v1984 = vmax.f32 %v1597, 0.0
  %v1985 = vmax.f32 %v1602, 0.0
  %v1986 = vmax.f32 %v1607, 0.0
  %v1987 = vmax.f32 %v1612, 0.0
  %v1988 = vmax.f32 %v1617, 0.0
  %v1989 = vmax.f32 %v1622, 0.0
  %v1990 = vmax.f32 %v1627, 0.0
  %v1991 = vmax.f32 %v1632, 0.0
  %v1992 = vmax.f32 %v1637, 0.0
  %v1993 = vmax.f32 %v1642, 0.0
  %v1994 = vmax.f32 %v1647, 0.0
  %v1995 = vmax.f32 %v1652, 0.0
  %v1996 = vmax.f32 %v1657, 0.0
  %v1997 = vmax.f32 %v1662, 0.0
  %v1998 = vmax.f32 %v1667, 0.0
  %v1999 = vmax.f32 %v1672, 0.0
  %v2000 = vmax.f32 %v1677, 0.0
  %v2001 = vmax.f32 %v1682, 0.0
  %v2002 = vmax.f32 %v1687, 0.0
  %v2003 = vmax.f32 %v1692, 0.0
  %v2004 = vmax.f32 %v1697, 0.0
  %v2005 = vmax.f32 %v1702, 0.0
  %v2006 = vmax.f32 %v1707, 0.0
  %v2007 = vmax.f32 %v1712, 0.0
  %v2008 = vmax.f32 %v1717, 0.0
  %v2009 = vmax.f32 %v1722, 0.0
  %v2010 = vmax.f32 %v1727, 0.0
  %v2011 = vmax.f32 %v1732, 0.0
  %v2012 = vmax.f32 %v1737, 0.0
  %2013 = vst [vmem:[%s3] sm:$0xff] %v1740
  %2014 = vst [vmem:[%s3 + $0x8] sm:$0xff] %v1741
  %2015 = vst [vmem:[%s3 + $0x10] sm:$0xff] %v1742
  %2016 = vst [vmem:[%s3 + $0x18] sm:$0xff] %v1743
  %2017 = vst [vmem:[%s3 + $0x20] sm:$0xff] %v1744
  %2018 = vst [vmem:[%s3 + $0x28] sm:$0xff] %v1745
  %2019 = vst [vmem:[%s3 + $0x30] sm:$0xff] %v1746
  %2020 = vst [vmem:[%s3 + $0x38] sm:$0xff] %v1747
  %2021 = vst [vmem:[%s3 + $0x40] sm:$0xff] %v1748
  %2022 = vst [vmem:[%s3 + $0x48] sm:$0xff] %v1749
  %2023 = vst [vmem:[%s3 + $0x50] sm:$0xff] %v1750
  %2024 = vst [vmem:[%s3 + $0x58] sm:$0xff] %v1751
  %2025 = vst [vmem:[%s3 + $0x60] sm:$0xff] %v1752
  %2026 = vst [vmem:[%s3 + $0x68] sm:$0xff] %v1753
  %2027 = vst [vmem:[%s3 + $0x70] sm:$0xff] %v1754
  %2028 = vst [vmem:[%s3 + $0x78] sm:$0xff] %v1755
  %2029 = vst [vmem:[%s3 + $0x80] sm:$0xff] %v1756
  %2030 = vst [vmem:[%s3 + $0x88] sm:$0xff] %v1757
  %2031 = vst [vmem:[%s3 + $0x90] sm:$0xff] %v1758
  %2032 = vst [vmem:[%s3 + $0x98] sm:$0xff] %v1759
  %2033 = vst [vmem:[%s3 + $0xa0] sm:$0xff] %v1760
  %2034 = vst [vmem:[%s3 + $0xa8] sm:$0xff] %v1761
  %2035 = vst [vmem:[%s3 + $0xb0] sm:$0xff] %v1762
  %2036 = vst [vmem:[%s3 + $0xb8] sm:$0xff] %v1763
  %2037 = vst [vmem:[%s3 + $0xc0] sm:$0xff] %v1764
  %2038 = vst [vmem:[%s3 + $0xc8] sm:$0xff] %v1765
  %2039 = vst [vmem:[%s3 + $0xd0] sm:$0xff] %v1766
  %2040 = vst [vmem:[%s3 + $0xd8] sm:$0xff] %v1767
  %2041 = vst [vmem:[%s3 + $0xe0] sm:$0xff] %v1768
  %2042 = vst [vmem:[%s3 + $0xe8] sm:$0xff] %v1769
  %2043 = vst [vmem:[%s3 + $0xf0] sm:$0xff] %v1770
  %2044 = vst [vmem:[%s3 + $0xf8] sm:$0xff] %v1771
  %2045 = vst [vmem:[%s3 + $0x100] sm:$0xff] %v1772
  %2046 = vst [vmem:[%s3 + $0x108] sm:$0xff] %v1773
  %2047 = vst [vmem:[%s3 + $0x110] sm:$0xff] %v1774
  %2048 = vst [vmem:[%s3 + $0x118] sm:$0xff] %v1775
  %2049 = vst [vmem:[%s3 + $0x120] sm:$0xff] %v1776
  %2050 = vst [vmem:[%s3 + $0x128] sm:$0xff] %v1777
  %2051 = vst [vmem:[%s3 + $0x130] sm:$0xff] %v1778
  %2052 = vst [vmem:[%s3 + $0x138] sm:$0xff] %v1779
  %2053 = vst [vmem:[%s3 + $0x140] sm:$0xff] %v1780
  %2054 = vst [vmem:[%s3 + $0x148] sm:$0xff] %v1781
  %2055 = vst [vmem:[%s3 + $0x150] sm:$0xff] %v1782
  %2056 = vst [vmem:[%s3 + $0x158] sm:$0xff] %v1783
  %2057 = vst [vmem:[%s3 + $0x160] sm:$0xff] %v1784
  %2058 = vst [vmem:[%s3 + $0x168] sm:$0xff] %v1785
  %2059 = vst [vmem:[%s3 + $0x170] sm:$0xff] %v1786
  %2060 = vst [vmem:[%s3 + $0x178] sm:$0xff] %v1787
  %2061 = vst [vmem:[%s3 + $0x180] sm:$0xff] %v1788
  %2062 = vst [vmem:[%s3 + $0x188] sm:$0xff] %v1789
  %2063 = vst [vmem:[%s3 + $0x190] sm:$0xff] %v1790
  %2064 = vst [vmem:[%s3 + $0x198] sm:$0xff] %v1791
  %2065 = vst [vmem:[%s3 + $0x1a0] sm:$0xff] %v1792
  %2066 = vst [vmem:[%s3 + $0x1a8] sm:$0xff] %v1793
  %2067 = vst [vmem:[%s3 + $0x1b0] sm:$0xff] %v1794
  %2068 = vst [vmem:[%s3 + $0x1b8] sm:$0xff] %v1795
  %2069 = vst [vmem:[%s3 + $0x1c0] sm:$0xff] %v1796
  %2070 = vst [vmem:[%s3 + $0x1c8] sm:$0xff] %v1797
  %2071 = vst [vmem:[%s3 + $0x1d0] sm:$0xff] %v1798
  %2072 = vst [vmem:[%s3 + $0x1d8] sm:$0xff] %v1799
  %2073 = vst [vmem:[%s3 + $0x1e0] sm:$0xff] %v1800
  %2074 = vst [vmem:[%s3 + $0x1e8] sm:$0xff] %v1801
  %2075 = vst [vmem:[%s3 + $0x1f0] sm:$0xff] %v1802
  %2076 = vst [vmem:[%s3 + $0x1f8] sm:$0xff] %v1803
  %2077 = vst [vmem:[%s3 + $0x200] sm:$0xff] %v1804
  %2078 = vst [vmem:[%s3 + $0x208] sm:$0xff] %v1805
  %2079 = vst [vmem:[%s3 + $0x210] sm:$0xff] %v1806
  %2080 = vst [vmem:[%s3 + $0x218] sm:$0xff] %v1807
  %2081 = vst [vmem:[%s3 + $0x220] sm:$0xff] %v1808
  %2082 = vst [vmem:[%s3 + $0x228] sm:$0xff] %v1809
  %2083 = vst [vmem:[%s3 + $0x230] sm:$0xff] %v1810
  %2084 = vst [vmem:[%s3 + $0x238] sm:$0xff] %v1811
  %2085 = vst [vmem:[%s3 + $0x240] sm:$0xff] %v1812
  %2086 = vst [vmem:[%s3 + $0x248] sm:$0xff] %v1813
  %2087 = vst [vmem:[%s3 + $0x250] sm:$0xff] %v1814
  %2088 = vst [vmem:[%s3 + $0x258] sm:$0xff] %v1815
  %2089 = vst [vmem:[%s3 + $0x260] sm:$0xff] %v1816
  %2090 = vst [vmem:[%s3 + $0x268] sm:$0xff] %v1817
  %2091 = vst [vmem:[%s3 + $0x270] sm:$0xff] %v1818
  %2092 = vst [vmem:[%s3 + $0x278] sm:$0xff] %v1819
  %2093 = vst [vmem:[%s3 + $0x280] sm:$0xff] %v1820
  %2094 = vst [vmem:[%s3 + $0x288] sm:$0xff] %v1821
  %2095 = vst [vmem:[%s3 + $0x290] sm:$0xff] %v1822
  %2096 = vst [vmem:[%s3 + $0x298] sm:$0xff] %v1823
  %2097 = vst [vmem:[%s3 + $0x2a0] sm:$0xff] %v1824
  %2098 = vst [vmem:[%s3 + $0x2a8] sm:$0xff] %v1825
  %2099 = vst [vmem:[%s3 + $0x2b0] sm:$0xff] %v1826
  %2100 = vst [vmem:[%s3 + $0x2b8] sm:$0xff] %v1827
  %2101 = vst [vmem:[%s3 + $0x2c0] sm:$0xff] %v1828
  %2102 = vst [vmem:[%s3 + $0x2c8] sm:$0xff] %v1829
  %2103 = vst [vmem:[%s3 + $0x2d0] sm:$0xff] %v1830
  %2104 = vst [vmem:[%s3 + $0x2d8] sm:$0xff] %v1831
  %2105 = vst [vmem:[%s3 + $0x2e0] sm:$0xff] %v1832
  %2106 = vst [vmem:[%s3 + $0x2e8] sm:$0xff] %v1833
  %2107 = vst [vmem:[%s3 + $0x2f0] sm:$0xff] %v1834
  %2108 = vst [vmem:[%s3 + $0x2f8] sm:$0xff] %v1835
  %2109 = vst [vmem:[%s3 + $0x300] sm:$0xff] %v1836
  %2110 = vst [vmem:[%s3 + $0x308] sm:$0xff] %v1837
  %2111 = vst [vmem:[%s3 + $0x310] sm:$0xff] %v1838
  %2112 = vst [vmem:[%s3 + $0x318] sm:$0xff] %v1839
  %2113 = vst [vmem:[%s3 + $0x320] sm:$0xff] %v1840
  %2114 = vst [vmem:[%s3 + $0x328] sm:$0xff] %v1841
  %2115 = vst [vmem:[%s3 + $0x330] sm:$0xff] %v1842
  %2116 = vst [vmem:[%s3 + $0x338] sm:$0xff] %v1843
  %2117 = vst [vmem:[%s3 + $0x340] sm:$0xff] %v1844
  %2118 = vst [vmem:[%s3 + $0x348] sm:$0xff] %v1845
  %2119 = vst [vmem:[%s3 + $0x350] sm:$0xff] %v1846
  %2120 = vst [vmem:[%s3 + $0x358] sm:$0xff] %v1847
  %2121 = vst [vmem:[%s3 + $0x360] sm:$0xff] %v1848
  %2122 = vst [vmem:[%s3 + $0x368] sm:$0xff] %v1849
  %2123 = vst [vmem:[%s3 + $0x370] sm:$0xff] %v1850
  %2124 = vst [vmem:[%s3 + $0x378] sm:$0xff] %v1851
  %2125 = vst [vmem:[%s3 + $0x380] sm:$0xff] %v1852
  %2126 = vst [vmem:[%s3 + $0x388] sm:$0xff] %v1853
  %2127 = vst [vmem:[%s3 + $0x390] sm:$0xff] %v1854
  %2128 = vst [vmem:[%s3 + $0x398] sm:$0xff] %v1855
  %2129 = vst [vmem:[%s3 + $0x3a0] sm:$0xff] %v1856
  %2130 = vst [vmem:[%s3 + $0x3a8] sm:$0xff] %v1857
  %2131 = vst [vmem:[%s3 + $0x3b0] sm:$0xff] %v1858
  %2132 = vst [vmem:[%s3 + $0x3b8] sm:$0xff] %v1859
  %2133 = vst [vmem:[%s3 + $0x3c0] sm:$0xff] %v1860
  %2134 = vst [vmem:[%s3 + $0x3c8] sm:$0xff] %v1861
  %2135 = vst [vmem:[%s3 + $0x3d0] sm:$0xff] %v1862
  %2136 = vst [vmem:[%s3 + $0x3d8] sm:$0xff] %v1863
  %2137 = vst [vmem:[%s3 + $0x3e0] sm:$0xff] %v1864
  %2138 = vst [vmem:[%s3 + $0x3e8] sm:$0xff] %v1865
  %2139 = vst [vmem:[%s3 + $0x3f0] sm:$0xff] %v1866
  %2140 = vst [vmem:[%s3 + $0x3f8] sm:$0xff] %v1867
  %2141 = vst [vmem:[%s3 + $0x400] sm:$0xff] %v1868
  %2142 = vst [vmem:[%s3 + $0x408] sm:$0xff] %v1869
  %2143 = vst [vmem:[%s3 + $0x410] sm:$0xff] %v1870
  %2144 = vst [vmem:[%s3 + $0x418] sm:$0xff] %v1871
  %2145 = vst [vmem:[%s3 + $0x420] sm:$0xff] %v1872
  %2146 = vst [vmem:[%s3 + $0x428] sm:$0xff] %v1873
  %2147 = vst [vmem:[%s3 + $0x430] sm:$0xff] %v1874
  %2148 = vst [vmem:[%s3 + $0x438] sm:$0xff] %v1875
  %2149 = vst [vmem:[%s3 + $0x440] sm:$0xff] %v1876
  %2150 = vst [vmem:[%s3 + $0x448] sm:$0xff] %v1877
  %2151 = vst [vmem:[%s3 + $0x450] sm:$0xff] %v1878
  %2152 = vst [vmem:[%s3 + $0x458] sm:$0xff] %v1879
  %2153 = vst [vmem:[%s3 + $0x460] sm:$0xff] %v1880
  %2154 = vst [vmem:[%s3 + $0x468] sm:$0xff] %v1881
  %2155 = vst [vmem:[%s3 + $0x470] sm:$0xff] %v1882
  %2156 = vst [vmem:[%s3 + $0x478] sm:$0xff] %v1883
  %2157 = vst [vmem:[%s3 + $0x480] sm:$0xff] %v1884
  %2158 = vst [vmem:[%s3 + $0x488] sm:$0xff] %v1885
  %2159 = vst [vmem:[%s3 + $0x490] sm:$0xff] %v1886
  %2160 = vst [vmem:[%s3 + $0x498] sm:$0xff] %v1887
  %2161 = vst [vmem:[%s3 + $0x4a0] sm:$0xff] %v1888
  %2162 = vst [vmem:[%s3 + $0x4a8] sm:$0xff] %v1889
  %2163 = vst [vmem:[%s3 + $0x4b0] sm:$0xff] %v1890
  %2164 = vst [vmem:[%s3 + $0x4b8] sm:$0xff] %v1891
  %2165 = vst [vmem:[%s3 + $0x4c0] sm:$0xff] %v1892
  %2166 = vst [vmem:[%s3 + $0x4c8] sm:$0xff] %v1893
  %2167 = vst [vmem:[%s3 + $0x4d0] sm:$0xff] %v1894
  %2168 = vst [vmem:[%s3 + $0x4d8] sm:$0xff] %v1895
  %2169 = vst [vmem:[%s3 + $0x4e0] sm:$0xff] %v1896
  %2170 = vst [vmem:[%s3 + $0x4e8] sm:$0xff] %v1897
  %2171 = vst [vmem:[%s3 + $0x4f0] sm:$0xff] %v1898
  %2172 = vst [vmem:[%s3 + $0x4f8] sm:$0xff] %v1899
  %2173 = vst [vmem:[%s3 + $0x500] sm:$0xff] %v1900
  %2174 = vst [vmem:[%s3 + $0x508] sm:$0xff] %v1901
  %2175 = vst [vmem:[%s3 + $0x510] sm:$0xff] %v1902
  %2176 = vst [vmem:[%s3 + $0x518] sm:$0xff] %v1903
  %2177 = vst [vmem:[%s3 + $0x520] sm:$0xff] %v1904
  %2178 = vst [vmem:[%s3 + $0x528] sm:$0xff] %v1905
  %2179 = vst [vmem:[%s3 + $0x530] sm:$0xff] %v1906
  %2180 = vst [vmem:[%s3 + $0x538] sm:$0xff] %v1907
  %2181 = vst [vmem:[%s3 + $0x540] sm:$0xff] %v1908
  %2182 = vst [vmem:[%s3 + $0x548] sm:$0xff] %v1909
  %2183 = vst [vmem:[%s3 + $0x550] sm:$0xff] %v1910
  %2184 = vst [vmem:[%s3 + $0x558] sm:$0xff] %v1911
  %2185 = vst [vmem:[%s3 + $0x560] sm:$0xff] %v1912
  %2186 = vst [vmem:[%s3 + $0x568] sm:$0xff] %v1913
  %2187 = vst [vmem:[%s3 + $0x570] sm:$0xff] %v1914
  %2188 = vst [vmem:[%s3 + $0x578] sm:$0xff] %v1915
  %2189 = vst [vmem:[%s3 + $0x580] sm:$0xff] %v1916
  %2190 = vst [vmem:[%s3 + $0x588] sm:$0xff] %v1917
  %2191 = vst [vmem:[%s3 + $0x590] sm:$0xff] %v1918
  %2192 = vst [vmem:[%s3 + $0x598] sm:$0xff] %v1919
  %2193 = vst [vmem:[%s3 + $0x5a0] sm:$0xff] %v1920
  %2194 = vst [vmem:[%s3 + $0x5a8] sm:$0xff] %v1921
  %2195 = vst [vmem:[%s3 + $0x5b0] sm:$0xff] %v1922
  %2196 = vst [vmem:[%s3 + $0x5b8] sm:$0xff] %v1923
  %2197 = vst [vmem:[%s3 + $0x5c0] sm:$0xff] %v1924
  %2198 = vst [vmem:[%s3 + $0x5c8] sm:$0xff] %v1925
  %2199 = vst [vmem:[%s3 + $0x5d0] sm:$0xff] %v1926
  %2200 = vst [vmem:[%s3 + $0x5d8] sm:$0xff] %v1927
  %2201 = vst [vmem:[%s3 + $0x5e0] sm:$0xff] %v1928
  %2202 = vst [vmem:[%s3 + $0x5e8] sm:$0xff] %v1929
  %2203 = vst [vmem:[%s3 + $0x5f0] sm:$0xff] %v1930
  %2204 = vst [vmem:[%s3 + $0x5f8] sm:$0xff] %v1931
  %2205 = vst [vmem:[%s3 + $0x600] sm:$0xff] %v1932
  %2206 = vst [vmem:[%s3 + $0x608] sm:$0xff] %v1933
  %2207 = vst [vmem:[%s3 + $0x610] sm:$0xff] %v1934
  %2208 = vst [vmem:[%s3 + $0x618] sm:$0xff] %v1935
  %2209 = vst [vmem:[%s3 + $0x620] sm:$0xff] %v1936
  %2210 = vst [vmem:[%s3 + $0x628] sm:$0xff] %v1937
  %2211 = vst [vmem:[%s3 + $0x630] sm:$0xff] %v1938
  %2212 = vst [vmem:[%s3 + $0x638] sm:$0xff] %v1939
  %2213 = vst [vmem:[%s3 + $0x640] sm:$0xff] %v1940
  %2214 = vst [vmem:[%s3 + $0x648] sm:$0xff] %v1941
  %2215 = vst [vmem:[%s3 + $0x650] sm:$0xff] %v1942
  %2216 = vst [vmem:[%s3 + $0x658] sm:$0xff] %v1943
  %2217 = vst [vmem:[%s3 + $0x660] sm:$0xff] %v1944
  %2218 = vst [vmem:[%s3 + $0x668] sm:$0xff] %v1945
  %2219 = vst [vmem:[%s3 + $0x670] sm:$0xff] %v1946
  %2220 = vst [vmem:[%s3 + $0x678] sm:$0xff] %v1947
  %2221 = vst [vmem:[%s3 + $0x680] sm:$0xff] %v1948
  %2222 = vst [vmem:[%s3 + $0x688] sm:$0xff] %v1949
  %2223 = vst [vmem:[%s3 + $0x690] sm:$0xff] %v1950
  %2224 = vst [vmem:[%s3 + $0x698] sm:$0xff] %v1951
  %2225 = vst [vmem:[%s3 + $0x6a0] sm:$0xff] %v1952
  %2226 = vst [vmem:[%s3 + $0x6a8] sm:$0xff] %v1953
  %2227 = vst [vmem:[%s3 + $0x6b0] sm:$0xff] %v1954
  %2228 = vst [vmem:[%s3 + $0x6b8] sm:$0xff] %v1955
  %2229 = vst [vmem:[%s3 + $0x6c0] sm:$0xff] %v1956
  %2230 = vst [vmem:[%s3 + $0x6c8] sm:$0xff] %v1957
  %2231 = vst [vmem:[%s3 + $0x6d0] sm:$0xff] %v1958
  %2232 = vst [vmem:[%s3 + $0x6d8] sm:$0xff] %v1959
  %2233 = vst [vmem:[%s3 + $0x6e0] sm:$0xff] %v1960
  %2234 = vst [vmem:[%s3 + $0x6e8] sm:$0xff] %v1961
  %2235 = vst [vmem:[%s3 + $0x6f0] sm:$0xff] %v1962
  %2236 = vst [vmem:[%s3 + $0x6f8] sm:$0xff] %v1963
  %2237 = vst [vmem:[%s3 + $0x700] sm:$0xff] %v1964
  %2238 = vst [vmem:[%s3 + $0x708] sm:$0xff] %v1965
  %2239 = vst [vmem:[%s3 + $0x710] sm:$0xff] %v1966
  %2240 = vst [vmem:[%s3 + $0x718] sm:$0xff] %v1967
  %2241 = vst [vmem:[%s3 + $0x720] sm:$0xff] %v1968
  %2242 = vst [vmem:[%s3 + $0x728] sm:$0xff] %v1969
  %2243 = vst [vmem:[%s3 + $0x730] sm:$0xff] %v1970
  %2244 = vst [vmem:[%s3 + $0x738] sm:$0xff] %v1971
  %2245 = vst [vmem:[%s3 + $0x740] sm:$0xff] %v1972
  %2246 = vst [vmem:[%s3 + $0x748] sm:$0xff] %v1973
  %2247 = vst [vmem:[%s3 + $0x750] sm:$0xff] %v1974
  %2248 = vst [vmem:[%s3 + $0x758] sm:$0xff] %v1975
  %2249 = vst [vmem:[%s3 + $0x760] sm:$0xff] %v1976
  %2250 = vst [vmem:[%s3 + $0x768] sm:$0xff] %v1977
  %2251 = vst [vmem:[%s3 + $0x770] sm:$0xff] %v1978
  %2252 = vst [vmem:[%s3 + $0x778] sm:$0xff] %v1979
  %2253 = vst [vmem:[%s3 + $0x780] sm:$0xff] %v1980
  %2254 = vst [vmem:[%s3 + $0x788] sm:$0xff] %v1981
  %2255 = vst [vmem:[%s3 + $0x790] sm:$0xff] %v1982
  %2256 = vst [vmem:[%s3 + $0x798] sm:$0xff] %v1983
  %2257 = vst [vmem:[%s3 + $0x7a0] sm:$0xff] %v1984
  %2258 = vst [vmem:[%s3 + $0x7a8] sm:$0xff] %v1985
  %2259 = vst [vmem:[%s3 + $0x7b0] sm:$0xff] %v1986
  %2260 = vst [vmem:[%s3 + $0x7b8] sm:$0xff] %v1987
  %2261 = vst [vmem:[%s3 + $0x7c0] sm:$0xff] %v1988
  %2262 = vst [vmem:[%s3 + $0x7c8] sm:$0xff] %v1989
  %2263 = vst [vmem:[%s3 + $0x7d0] sm:$0xff] %v1990
  %2264 = vst [vmem:[%s3 + $0x7d8] sm:$0xff] %v1991
  %2265 = vst [vmem:[%s3 + $0x7e0] sm:$0xff] %v1992
  %2266 = vst [vmem:[%s3 + $0x7e8] sm:$0xff] %v1993
  %2267 = vst [vmem:[%s3 + $0x7f0] sm:$0xff] %v1994
  %2268 = vst [vmem:[%s3 + $0x7f8] sm:$0xff] %v1995
  %2269 = vst [vmem:[%s3 + $0x800] sm:$0xff] %v1996
  %2270 = vst [vmem:[%s3 + $0x808] sm:$0xff] %v1997
  %2271 = vst [vmem:[%s3 + $0x810] sm:$0xff] %v1998
  %2272 = vst [vmem:[%s3 + $0x818] sm:$0xff] %v1999
  %2273 = vst [vmem:[%s3 + $0x820] sm:$0xff] %v2000
  %2274 = vst [vmem:[%s3 + $0x828] sm:$0xff] %v2001
  %2275 = vst [vmem:[%s3 + $0x830] sm:$0xff] %v2002
  %2276 = vst [vmem:[%s3 + $0x838] sm:$0xff] %v2003
  %2277 = vst [vmem:[%s3 + $0x840] sm:$0xff] %v2004
  %2278 = vst [vmem:[%s3 + $0x848] sm:$0xff] %v2005
  %2279 = vst [vmem:[%s3 + $0x850] sm:$0xff] %v2006
  %2280 = vst [vmem:[%s3 + $0x858] sm:$0xff] %v2007
  %2281 = vst [vmem:[%s3 + $0x860] sm:$0xff] %v2008
  %2282 = vst [vmem:[%s3 + $0x868] sm:$0xff] %v2009
  %2283 = vst [vmem:[%s3 + $0x870] sm:$0xff] %v2010
  %2284 = vst [vmem:[%s3 + $0x878] sm:$0xff] %v2011
  %2285 = vst [vmem:[%s3 + $0x880] sm:$0xff] %v2012
  // Predicated region
  $region14: #{nvidia_model_forward.4} parent=0 // pred_check
    _
  $region15: #{nvidia_model_forward.4} parent=0 // pred_check_branch
    %2287 = sbr.rel (0) target = $region17
  $region16: #{nvidia_model_forward.4} parent=0 // pred_region
    _
  $region17: #{nvidia_model_forward.4} parent=0 // pred_fallthru
    _
  // Predicated region
  $region18: #{nvidia_model_forward.4} parent=0 // pred_check
    _
  $region19: #{nvidia_model_forward.4} parent=0 // pred_check_branch
    %2289 = sbr.rel (0) target = $region21
  $region20: #{nvidia_model_forward.4} parent=0 // pred_region
    _
  $region21: #{nvidia_model_forward.4} parent=0 // pred_fallthru
    _

// kernel: nvidia_model_forward.5
$region0: #{nvidia_model_forward.5}
  #allocation0 [shape = 'u32[]', space=smem, size = 0x4, offset = 0x4, fixed_abs, tag = 'smem constant byte address 0x4 - core index']
  #allocation1 [shape = 'u32[144,128]{1,0:T(1,128)}', space=vmem, size = 0x12000, scoped, tag = 'internal scratch']
  %s0 = inlined_call_operand.vmem [shape: f32[456,640], index: 0, kind: input, shape index: {}]
  %s1 = inlined_call_operand.vmem [shape: f32[640,128], index: 1, kind: input, shape index: {}]
  %s2 = inlined_call_operand.vmem [shape: f32[1,128], index: 2, kind: input, shape index: {}]
  %s3 = inlined_call_operand.vmem [shape: f32[456,128], index: 3, kind: output, shape index: {}]
  %s4 = sld [smem:[#allocation0]]
  $region22: #{nvidia_model_forward.5} parent=0
    _
  %s6 = ssub.s32 1, %s4
  %s7 = scalar_select 0, %s6, %s4
  // Predicated region
  $region2: #{nvidia_model_forward.5} parent=0 // pred_check
    _
  $region3: #{nvidia_model_forward.5} parent=0 // pred_check_branch
    %9 = sbr.rel (0) target = $region5
  $region4: #{nvidia_model_forward.5} parent=0 // pred_region
    _
  $region5: #{nvidia_model_forward.5} parent=0 // pred_fallthru
    _
  // Predicated region
  $region6: #{nvidia_model_forward.5} parent=0 // pred_check
    _
  $region7: #{nvidia_model_forward.5} parent=0 // pred_check_branch
    %11 = sbr.rel (0) target = $region9
  $region8: #{nvidia_model_forward.5} parent=0 // pred_region
    _
  $region9: #{nvidia_model_forward.5} parent=0 // pred_fallthru
    _
  // Predicated region
  $region10: #{nvidia_model_forward.5} parent=0 // pred_check
    _
  $region11: #{nvidia_model_forward.5} parent=0 // pred_check_branch
    %13 = sbr.rel (0) target = $region13
  $region12: #{nvidia_model_forward.5} parent=0 // pred_region
    _
  $region13: #{nvidia_model_forward.5} parent=0 // pred_fallthru
    _
  %v14 = vld [vmem:[%s0] sm:$0xff]
  %v15 = vld [vmem:[%s0 + $0x8] sm:$0xff]
  %v16 = vld [vmem:[%s0 + $0x10] sm:$0xff]
  %v17 = vld [vmem:[%s0 + $0x18] sm:$0xff]
  %v18 = vld [vmem:[%s0 + $0x20] sm:$0xff]
  %v19 = vld [vmem:[%s0 + $0x28] sm:$0xff]
  %v20 = vld [vmem:[%s0 + $0x30] sm:$0xff]
  %v21 = vld [vmem:[%s0 + $0x38] sm:$0xff]
  %v22 = vld [vmem:[%s0 + $0x40] sm:$0xff]
  %v23 = vld [vmem:[%s0 + $0x48] sm:$0xff]
  %v24 = vld [vmem:[%s0 + $0x50] sm:$0xff]
  %v25 = vld [vmem:[%s0 + $0x58] sm:$0xff]
  %v26 = vld [vmem:[%s0 + $0x60] sm:$0xff]
  %v27 = vld [vmem:[%s0 + $0x68] sm:$0xff]
  %v28 = vld [vmem:[%s0 + $0x70] sm:$0xff]
  %v29 = vld [vmem:[%s0 + $0x78] sm:$0xff]
  %v30 = vld [vmem:[%s0 + $0x80] sm:$0xff]
  %v31 = vld [vmem:[%s0 + $0x88] sm:$0xff]
  %v32 = vld [vmem:[%s0 + $0x90] sm:$0xff]
  %v33 = vld [vmem:[%s0 + $0x98] sm:$0xff]
  %v34 = vld [vmem:[%s0 + $0xa0] sm:$0xff]
  %v35 = vld [vmem:[%s0 + $0xa8] sm:$0xff]
  %v36 = vld [vmem:[%s0 + $0xb0] sm:$0xff]
  %v37 = vld [vmem:[%s0 + $0xb8] sm:$0xff]
  %v38 = vld [vmem:[%s0 + $0xc0] sm:$0xff]
  %v39 = vld [vmem:[%s0 + $0xc8] sm:$0xff]
  %v40 = vld [vmem:[%s0 + $0xd0] sm:$0xff]
  %v41 = vld [vmem:[%s0 + $0xd8] sm:$0xff]
  %v42 = vld [vmem:[%s0 + $0xe0] sm:$0xff]
  %v43 = vld [vmem:[%s0 + $0xe8] sm:$0xff]
  %v44 = vld [vmem:[%s0 + $0xf0] sm:$0xff]
  %v45 = vld [vmem:[%s0 + $0xf8] sm:$0xff]
  %v46 = vld [vmem:[%s0 + $0x100] sm:$0xff]
  %v47 = vld [vmem:[%s0 + $0x108] sm:$0xff]
  %v48 = vld [vmem:[%s0 + $0x110] sm:$0xff]
  %v49 = vld [vmem:[%s0 + $0x118] sm:$0xff]
  %v50 = vld [vmem:[%s0 + $0x120] sm:$0xff]
  %v51 = vld [vmem:[%s0 + $0x128] sm:$0xff]
  %v52 = vld [vmem:[%s0 + $0x130] sm:$0xff]
  %v53 = vld [vmem:[%s0 + $0x138] sm:$0xff]
  %v54 = vld [vmem:[%s0 + $0x140] sm:$0xff]
  %v55 = vld [vmem:[%s0 + $0x148] sm:$0xff]
  %v56 = vld [vmem:[%s0 + $0x150] sm:$0xff]
  %v57 = vld [vmem:[%s0 + $0x158] sm:$0xff]
  %v58 = vld [vmem:[%s0 + $0x160] sm:$0xff]
  %v59 = vld [vmem:[%s0 + $0x168] sm:$0xff]
  %v60 = vld [vmem:[%s0 + $0x170] sm:$0xff]
  %v61 = vld [vmem:[%s0 + $0x178] sm:$0xff]
  %v62 = vld [vmem:[%s0 + $0x180] sm:$0xff]
  %v63 = vld [vmem:[%s0 + $0x188] sm:$0xff]
  %v64 = vld [vmem:[%s0 + $0x190] sm:$0xff]
  %v65 = vld [vmem:[%s0 + $0x198] sm:$0xff]
  %v66 = vld [vmem:[%s0 + $0x1a0] sm:$0xff]
  %v67 = vld [vmem:[%s0 + $0x1a8] sm:$0xff]
  %v68 = vld [vmem:[%s0 + $0x1b0] sm:$0xff]
  %v69 = vld [vmem:[%s0 + $0x1b8] sm:$0xff]
  %v70 = vld [vmem:[%s0 + $0x1c0] sm:$0xff]
  %v71 = vld [vmem:[%s0 + $0x1c8] sm:$0xff]
  %v72 = vld [vmem:[%s0 + $0x1d0] sm:$0xff]
  %v73 = vld [vmem:[%s0 + $0x1d8] sm:$0xff]
  %v74 = vld [vmem:[%s0 + $0x1e0] sm:$0xff]
  %v75 = vld [vmem:[%s0 + $0x1e8] sm:$0xff]
  %v76 = vld [vmem:[%s0 + $0x1f0] sm:$0xff]
  %v77 = vld [vmem:[%s0 + $0x1f8] sm:$0xff]
  %v78 = vld [vmem:[%s0 + $0x200] sm:$0xff]
  %v79 = vld [vmem:[%s0 + $0x208] sm:$0xff]
  %v80 = vld [vmem:[%s0 + $0x210] sm:$0xff]
  %v81 = vld [vmem:[%s0 + $0x218] sm:$0xff]
  %v82 = vld [vmem:[%s0 + $0x220] sm:$0xff]
  %v83 = vld [vmem:[%s0 + $0x228] sm:$0xff]
  %v84 = vld [vmem:[%s0 + $0x230] sm:$0xff]
  %v85 = vld [vmem:[%s0 + $0x238] sm:$0xff]
  %v86 = vld [vmem:[%s0 + $0x240] sm:$0xff]
  %v87 = vld [vmem:[%s0 + $0x248] sm:$0xff]
  %v88 = vld [vmem:[%s0 + $0x250] sm:$0xff]
  %v89 = vld [vmem:[%s0 + $0x258] sm:$0xff]
  %v90 = vld [vmem:[%s0 + $0x260] sm:$0xff]
  %v91 = vld [vmem:[%s0 + $0x268] sm:$0xff]
  %v92 = vld [vmem:[%s0 + $0x270] sm:$0xff]
  %v93 = vld [vmem:[%s0 + $0x278] sm:$0xff]
  %v94 = vld [vmem:[%s0 + $0x280] sm:$0xff]
  %v95 = vld [vmem:[%s0 + $0x288] sm:$0xff]
  %v96 = vld [vmem:[%s0 + $0x290] sm:$0xff]
  %v97 = vld [vmem:[%s0 + $0x298] sm:$0xff]
  %v98 = vld [vmem:[%s0 + $0x2a0] sm:$0xff]
  %v99 = vld [vmem:[%s0 + $0x2a8] sm:$0xff]
  %v100 = vld [vmem:[%s0 + $0x2b0] sm:$0xff]
  %v101 = vld [vmem:[%s0 + $0x2b8] sm:$0xff]
  %v102 = vld [vmem:[%s0 + $0x2c0] sm:$0xff]
  %v103 = vld [vmem:[%s0 + $0x2c8] sm:$0xff]
  %v104 = vld [vmem:[%s0 + $0x2d0] sm:$0xff]
  %v105 = vld [vmem:[%s0 + $0x2d8] sm:$0xff]
  %v106 = vld [vmem:[%s0 + $0x2e0] sm:$0xff]
  %v107 = vld [vmem:[%s0 + $0x2e8] sm:$0xff]
  %v108 = vld [vmem:[%s0 + $0x2f0] sm:$0xff]
  %v109 = vld [vmem:[%s0 + $0x2f8] sm:$0xff]
  %v110 = vld [vmem:[%s0 + $0x300] sm:$0xff]
  %v111 = vld [vmem:[%s0 + $0x308] sm:$0xff]
  %v112 = vld [vmem:[%s0 + $0x310] sm:$0xff]
  %v113 = vld [vmem:[%s0 + $0x318] sm:$0xff]
  %v114 = vld [vmem:[%s0 + $0x320] sm:$0xff]
  %v115 = vld [vmem:[%s0 + $0x328] sm:$0xff]
  %v116 = vld [vmem:[%s0 + $0x330] sm:$0xff]
  %v117 = vld [vmem:[%s0 + $0x338] sm:$0xff]
  %v118 = vld [vmem:[%s0 + $0x340] sm:$0xff]
  %v119 = vld [vmem:[%s0 + $0x348] sm:$0xff]
  %v120 = vld [vmem:[%s0 + $0x350] sm:$0xff]
  %v121 = vld [vmem:[%s0 + $0x358] sm:$0xff]
  %v122 = vld [vmem:[%s0 + $0x360] sm:$0xff]
  %v123 = vld [vmem:[%s0 + $0x368] sm:$0xff]
  %v124 = vld [vmem:[%s0 + $0x370] sm:$0xff]
  %v125 = vld [vmem:[%s0 + $0x378] sm:$0xff]
  %v126 = vld [vmem:[%s0 + $0x380] sm:$0xff]
  %v127 = vld [vmem:[%s0 + $0x388] sm:$0xff]
  %v128 = vld [vmem:[%s0 + $0x390] sm:$0xff]
  %v129 = vld [vmem:[%s0 + $0x398] sm:$0xff]
  %v130 = vld [vmem:[%s0 + $0x3a0] sm:$0xff]
  %v131 = vld [vmem:[%s0 + $0x3a8] sm:$0xff]
  %v132 = vld [vmem:[%s0 + $0x3b0] sm:$0xff]
  %v133 = vld [vmem:[%s0 + $0x3b8] sm:$0xff]
  %v134 = vld [vmem:[%s0 + $0x3c0] sm:$0xff]
  %v135 = vld [vmem:[%s0 + $0x3c8] sm:$0xff]
  %v136 = vld [vmem:[%s0 + $0x3d0] sm:$0xff]
  %v137 = vld [vmem:[%s0 + $0x3d8] sm:$0xff]
  %v138 = vld [vmem:[%s0 + $0x3e0] sm:$0xff]
  %v139 = vld [vmem:[%s0 + $0x3e8] sm:$0xff]
  %v140 = vld [vmem:[%s0 + $0x3f0] sm:$0xff]
  %v141 = vld [vmem:[%s0 + $0x3f8] sm:$0xff]
  %v142 = vld [vmem:[%s0 + $0x400] sm:$0xff]
  %v143 = vld [vmem:[%s0 + $0x408] sm:$0xff]
  %v144 = vld [vmem:[%s0 + $0x410] sm:$0xff]
  %v145 = vld [vmem:[%s0 + $0x418] sm:$0xff]
  %v146 = vld [vmem:[%s0 + $0x420] sm:$0xff]
  %v147 = vld [vmem:[%s0 + $0x428] sm:$0xff]
  %v148 = vld [vmem:[%s0 + $0x430] sm:$0xff]
  %v149 = vld [vmem:[%s0 + $0x438] sm:$0xff]
  %v150 = vld [vmem:[%s0 + $0x440] sm:$0xff]
  %v151 = vld [vmem:[%s0 + $0x448] sm:$0xff]
  %v152 = vld [vmem:[%s0 + $0x450] sm:$0xff]
  %v153 = vld [vmem:[%s0 + $0x458] sm:$0xff]
  %v154 = vld [vmem:[%s0 + $0x460] sm:$0xff]
  %v155 = vld [vmem:[%s0 + $0x468] sm:$0xff]
  %v156 = vld [vmem:[%s0 + $0x470] sm:$0xff]
  %v157 = vld [vmem:[%s0 + $0x478] sm:$0xff]
  %v158 = vld [vmem:[%s0 + $0x480] sm:$0xff]
  %v159 = vld [vmem:[%s0 + $0x488] sm:$0xff]
  %v160 = vld [vmem:[%s0 + $0x490] sm:$0xff]
  %v161 = vld [vmem:[%s0 + $0x498] sm:$0xff]
  %v162 = vld [vmem:[%s0 + $0x4a0] sm:$0xff]
  %v163 = vld [vmem:[%s0 + $0x4a8] sm:$0xff]
  %v164 = vld [vmem:[%s0 + $0x4b0] sm:$0xff]
  %v165 = vld [vmem:[%s0 + $0x4b8] sm:$0xff]
  %v166 = vld [vmem:[%s0 + $0x4c0] sm:$0xff]
  %v167 = vld [vmem:[%s0 + $0x4c8] sm:$0xff]
  %v168 = vld [vmem:[%s0 + $0x4d0] sm:$0xff]
  %v169 = vld [vmem:[%s0 + $0x4d8] sm:$0xff]
  %v170 = vld [vmem:[%s0 + $0x4e0] sm:$0xff]
  %v171 = vld [vmem:[%s0 + $0x4e8] sm:$0xff]
  %v172 = vld [vmem:[%s0 + $0x4f0] sm:$0xff]
  %v173 = vld [vmem:[%s0 + $0x4f8] sm:$0xff]
  %v174 = vld [vmem:[%s0 + $0x500] sm:$0xff]
  %v175 = vld [vmem:[%s0 + $0x508] sm:$0xff]
  %v176 = vld [vmem:[%s0 + $0x510] sm:$0xff]
  %v177 = vld [vmem:[%s0 + $0x518] sm:$0xff]
  %v178 = vld [vmem:[%s0 + $0x520] sm:$0xff]
  %v179 = vld [vmem:[%s0 + $0x528] sm:$0xff]
  %v180 = vld [vmem:[%s0 + $0x530] sm:$0xff]
  %v181 = vld [vmem:[%s0 + $0x538] sm:$0xff]
  %v182 = vld [vmem:[%s0 + $0x540] sm:$0xff]
  %v183 = vld [vmem:[%s0 + $0x548] sm:$0xff]
  %v184 = vld [vmem:[%s0 + $0x550] sm:$0xff]
  %v185 = vld [vmem:[%s0 + $0x558] sm:$0xff]
  %v186 = vld [vmem:[%s0 + $0x560] sm:$0xff]
  %v187 = vld [vmem:[%s0 + $0x568] sm:$0xff]
  %v188 = vld [vmem:[%s0 + $0x570] sm:$0xff]
  %v189 = vld [vmem:[%s0 + $0x578] sm:$0xff]
  %v190 = vld [vmem:[%s0 + $0x580] sm:$0xff]
  %v191 = vld [vmem:[%s0 + $0x588] sm:$0xff]
  %v192 = vld [vmem:[%s0 + $0x590] sm:$0xff]
  %v193 = vld [vmem:[%s0 + $0x598] sm:$0xff]
  %v194 = vld [vmem:[%s0 + $0x5a0] sm:$0xff]
  %v195 = vld [vmem:[%s0 + $0x5a8] sm:$0xff]
  %v196 = vld [vmem:[%s0 + $0x5b0] sm:$0xff]
  %v197 = vld [vmem:[%s0 + $0x5b8] sm:$0xff]
  %v198 = vld [vmem:[%s0 + $0x5c0] sm:$0xff]
  %v199 = vld [vmem:[%s0 + $0x5c8] sm:$0xff]
  %v200 = vld [vmem:[%s0 + $0x5d0] sm:$0xff]
  %v201 = vld [vmem:[%s0 + $0x5d8] sm:$0xff]
  %v202 = vld [vmem:[%s0 + $0x5e0] sm:$0xff]
  %v203 = vld [vmem:[%s0 + $0x5e8] sm:$0xff]
  %v204 = vld [vmem:[%s0 + $0x5f0] sm:$0xff]
  %v205 = vld [vmem:[%s0 + $0x5f8] sm:$0xff]
  %v206 = vld [vmem:[%s0 + $0x600] sm:$0xff]
  %v207 = vld [vmem:[%s0 + $0x608] sm:$0xff]
  %v208 = vld [vmem:[%s0 + $0x610] sm:$0xff]
  %v209 = vld [vmem:[%s0 + $0x618] sm:$0xff]
  %v210 = vld [vmem:[%s0 + $0x620] sm:$0xff]
  %v211 = vld [vmem:[%s0 + $0x628] sm:$0xff]
  %v212 = vld [vmem:[%s0 + $0x630] sm:$0xff]
  %v213 = vld [vmem:[%s0 + $0x638] sm:$0xff]
  %v214 = vld [vmem:[%s0 + $0x640] sm:$0xff]
  %v215 = vld [vmem:[%s0 + $0x648] sm:$0xff]
  %v216 = vld [vmem:[%s0 + $0x650] sm:$0xff]
  %v217 = vld [vmem:[%s0 + $0x658] sm:$0xff]
  %v218 = vld [vmem:[%s0 + $0x660] sm:$0xff]
  %v219 = vld [vmem:[%s0 + $0x668] sm:$0xff]
  %v220 = vld [vmem:[%s0 + $0x670] sm:$0xff]
  %v221 = vld [vmem:[%s0 + $0x678] sm:$0xff]
  %v222 = vld [vmem:[%s0 + $0x680] sm:$0xff]
  %v223 = vld [vmem:[%s0 + $0x688] sm:$0xff]
  %v224 = vld [vmem:[%s0 + $0x690] sm:$0xff]
  %v225 = vld [vmem:[%s0 + $0x698] sm:$0xff]
  %v226 = vld [vmem:[%s0 + $0x6a0] sm:$0xff]
  %v227 = vld [vmem:[%s0 + $0x6a8] sm:$0xff]
  %v228 = vld [vmem:[%s0 + $0x6b0] sm:$0xff]
  %v229 = vld [vmem:[%s0 + $0x6b8] sm:$0xff]
  %v230 = vld [vmem:[%s0 + $0x6c0] sm:$0xff]
  %v231 = vld [vmem:[%s0 + $0x6c8] sm:$0xff]
  %v232 = vld [vmem:[%s0 + $0x6d0] sm:$0xff]
  %v233 = vld [vmem:[%s0 + $0x6d8] sm:$0xff]
  %v234 = vld [vmem:[%s0 + $0x6e0] sm:$0xff]
  %v235 = vld [vmem:[%s0 + $0x6e8] sm:$0xff]
  %v236 = vld [vmem:[%s0 + $0x6f0] sm:$0xff]
  %v237 = vld [vmem:[%s0 + $0x6f8] sm:$0xff]
  %v238 = vld [vmem:[%s0 + $0x700] sm:$0xff]
  %v239 = vld [vmem:[%s0 + $0x708] sm:$0xff]
  %v240 = vld [vmem:[%s0 + $0x710] sm:$0xff]
  %v241 = vld [vmem:[%s0 + $0x718] sm:$0xff]
  %v242 = vld [vmem:[%s0 + $0x720] sm:$0xff]
  %v243 = vld [vmem:[%s0 + $0x728] sm:$0xff]
  %v244 = vld [vmem:[%s0 + $0x730] sm:$0xff]
  %v245 = vld [vmem:[%s0 + $0x738] sm:$0xff]
  %v246 = vld [vmem:[%s0 + $0x740] sm:$0xff]
  %v247 = vld [vmem:[%s0 + $0x748] sm:$0xff]
  %v248 = vld [vmem:[%s0 + $0x750] sm:$0xff]
  %v249 = vld [vmem:[%s0 + $0x758] sm:$0xff]
  %v250 = vld [vmem:[%s0 + $0x760] sm:$0xff]
  %v251 = vld [vmem:[%s0 + $0x768] sm:$0xff]
  %v252 = vld [vmem:[%s0 + $0x770] sm:$0xff]
  %v253 = vld [vmem:[%s0 + $0x778] sm:$0xff]
  %v254 = vld [vmem:[%s0 + $0x780] sm:$0xff]
  %v255 = vld [vmem:[%s0 + $0x788] sm:$0xff]
  %v256 = vld [vmem:[%s0 + $0x790] sm:$0xff]
  %v257 = vld [vmem:[%s0 + $0x798] sm:$0xff]
  %v258 = vld [vmem:[%s0 + $0x7a0] sm:$0xff]
  %v259 = vld [vmem:[%s0 + $0x7a8] sm:$0xff]
  %v260 = vld [vmem:[%s0 + $0x7b0] sm:$0xff]
  %v261 = vld [vmem:[%s0 + $0x7b8] sm:$0xff]
  %v262 = vld [vmem:[%s0 + $0x7c0] sm:$0xff]
  %v263 = vld [vmem:[%s0 + $0x7c8] sm:$0xff]
  %v264 = vld [vmem:[%s0 + $0x7d0] sm:$0xff]
  %v265 = vld [vmem:[%s0 + $0x7d8] sm:$0xff]
  %v266 = vld [vmem:[%s0 + $0x7e0] sm:$0xff]
  %v267 = vld [vmem:[%s0 + $0x7e8] sm:$0xff]
  %v268 = vld [vmem:[%s0 + $0x7f0] sm:$0xff]
  %v269 = vld [vmem:[%s0 + $0x7f8] sm:$0xff]
  %v270 = vld [vmem:[%s0 + $0x800] sm:$0xff]
  %v271 = vld [vmem:[%s0 + $0x808] sm:$0xff]
  %v272 = vld [vmem:[%s0 + $0x810] sm:$0xff]
  %v273 = vld [vmem:[%s0 + $0x818] sm:$0xff]
  %v274 = vld [vmem:[%s0 + $0x820] sm:$0xff]
  %v275 = vld [vmem:[%s0 + $0x828] sm:$0xff]
  %v276 = vld [vmem:[%s0 + $0x830] sm:$0xff]
  %v277 = vld [vmem:[%s0 + $0x838] sm:$0xff]
  %v278 = vld [vmem:[%s0 + $0x840] sm:$0xff]
  %v279 = vld [vmem:[%s0 + $0x848] sm:$0xff]
  %v280 = vld [vmem:[%s0 + $0x850] sm:$0xff]
  %v281 = vld [vmem:[%s0 + $0x858] sm:$0xff]
  %v282 = vld [vmem:[%s0 + $0x860] sm:$0xff]
  %v283 = vld [vmem:[%s0 + $0x868] sm:$0xff]
  %v284 = vld [vmem:[%s0 + $0x870] sm:$0xff]
  %v285 = vld [vmem:[%s0 + $0x878] sm:$0xff]
  %v286 = vld [vmem:[%s0 + $0x880] sm:$0xff]
  %v287 = vld [vmem:[%s0 + $0x888] sm:$0xff]
  %v288 = vld [vmem:[%s0 + $0x890] sm:$0xff]
  %v289 = vld [vmem:[%s0 + $0x898] sm:$0xff]
  %v290 = vld [vmem:[%s0 + $0x8a0] sm:$0xff]
  %v291 = vld [vmem:[%s0 + $0x8a8] sm:$0xff]
  %v292 = vld [vmem:[%s0 + $0x8b0] sm:$0xff]
  %v293 = vld [vmem:[%s0 + $0x8b8] sm:$0xff]
  %v294 = vld [vmem:[%s0 + $0x8c0] sm:$0xff]
  %v295 = vld [vmem:[%s0 + $0x8c8] sm:$0xff]
  %v296 = vld [vmem:[%s0 + $0x8d0] sm:$0xff]
  %v297 = vld [vmem:[%s0 + $0x8d8] sm:$0xff]
  %v298 = vld [vmem:[%s0 + $0x8e0] sm:$0xff]
  %v299 = vld [vmem:[%s1] sm:$0xff]
  %v300 = vld [vmem:[%s1 + $0x8] sm:$0xff]
  %v301 = vld [vmem:[%s1 + $0x10] sm:$0xff]
  %v302 = vld [vmem:[%s1 + $0x18] sm:$0xff]
  %v303 = vld [vmem:[%s1 + $0x20] sm:$0xff]
  %v304 = vld [vmem:[%s1 + $0x28] sm:$0xff]
  %v305 = vld [vmem:[%s1 + $0x30] sm:$0xff]
  %v306 = vld [vmem:[%s1 + $0x38] sm:$0xff]
  %v307 = vld [vmem:[%s1 + $0x40] sm:$0xff]
  %v308 = vld [vmem:[%s1 + $0x48] sm:$0xff]
  %v309 = vld [vmem:[%s1 + $0x50] sm:$0xff]
  %v310 = vld [vmem:[%s1 + $0x58] sm:$0xff]
  %v311 = vld [vmem:[%s1 + $0x60] sm:$0xff]
  %v312 = vld [vmem:[%s1 + $0x68] sm:$0xff]
  %v313 = vld [vmem:[%s1 + $0x70] sm:$0xff]
  %v314 = vld [vmem:[%s1 + $0x78] sm:$0xff]
  %v315 = vld [vmem:[%s1 + $0x80] sm:$0xff]
  %v316 = vld [vmem:[%s1 + $0x88] sm:$0xff]
  %v317 = vld [vmem:[%s1 + $0x90] sm:$0xff]
  %v318 = vld [vmem:[%s1 + $0x98] sm:$0xff]
  %v319 = vld [vmem:[%s1 + $0xa0] sm:$0xff]
  %v320 = vld [vmem:[%s1 + $0xa8] sm:$0xff]
  %v321 = vld [vmem:[%s1 + $0xb0] sm:$0xff]
  %v322 = vld [vmem:[%s1 + $0xb8] sm:$0xff]
  %v323 = vld [vmem:[%s1 + $0xc0] sm:$0xff]
  %v324 = vld [vmem:[%s1 + $0xc8] sm:$0xff]
  %v325 = vld [vmem:[%s1 + $0xd0] sm:$0xff]
  %v326 = vld [vmem:[%s1 + $0xd8] sm:$0xff]
  %v327 = vld [vmem:[%s1 + $0xe0] sm:$0xff]
  %v328 = vld [vmem:[%s1 + $0xe8] sm:$0xff]
  %v329 = vld [vmem:[%s1 + $0xf0] sm:$0xff]
  %v330 = vld [vmem:[%s1 + $0xf8] sm:$0xff]
  %v331 = vld [vmem:[%s1 + $0x100] sm:$0xff]
  %v332 = vld [vmem:[%s1 + $0x108] sm:$0xff]
  %v333 = vld [vmem:[%s1 + $0x110] sm:$0xff]
  %v334 = vld [vmem:[%s1 + $0x118] sm:$0xff]
  %v335 = vld [vmem:[%s1 + $0x120] sm:$0xff]
  %v336 = vld [vmem:[%s1 + $0x128] sm:$0xff]
  %v337 = vld [vmem:[%s1 + $0x130] sm:$0xff]
  %v338 = vld [vmem:[%s1 + $0x138] sm:$0xff]
  %v339 = vld [vmem:[%s1 + $0x140] sm:$0xff]
  %v340 = vld [vmem:[%s1 + $0x148] sm:$0xff]
  %v341 = vld [vmem:[%s1 + $0x150] sm:$0xff]
  %v342 = vld [vmem:[%s1 + $0x158] sm:$0xff]
  %v343 = vld [vmem:[%s1 + $0x160] sm:$0xff]
  %v344 = vld [vmem:[%s1 + $0x168] sm:$0xff]
  %v345 = vld [vmem:[%s1 + $0x170] sm:$0xff]
  %v346 = vld [vmem:[%s1 + $0x178] sm:$0xff]
  %v347 = vld [vmem:[%s1 + $0x180] sm:$0xff]
  %v348 = vld [vmem:[%s1 + $0x188] sm:$0xff]
  %v349 = vld [vmem:[%s1 + $0x190] sm:$0xff]
  %v350 = vld [vmem:[%s1 + $0x198] sm:$0xff]
  %v351 = vld [vmem:[%s1 + $0x1a0] sm:$0xff]
  %v352 = vld [vmem:[%s1 + $0x1a8] sm:$0xff]
  %v353 = vld [vmem:[%s1 + $0x1b0] sm:$0xff]
  %v354 = vld [vmem:[%s1 + $0x1b8] sm:$0xff]
  %v355 = vld [vmem:[%s1 + $0x1c0] sm:$0xff]
  %v356 = vld [vmem:[%s1 + $0x1c8] sm:$0xff]
  %v357 = vld [vmem:[%s1 + $0x1d0] sm:$0xff]
  %v358 = vld [vmem:[%s1 + $0x1d8] sm:$0xff]
  %v359 = vld [vmem:[%s1 + $0x1e0] sm:$0xff]
  %v360 = vld [vmem:[%s1 + $0x1e8] sm:$0xff]
  %v361 = vld [vmem:[%s1 + $0x1f0] sm:$0xff]
  %v362 = vld [vmem:[%s1 + $0x1f8] sm:$0xff]
  %v363 = vld [vmem:[%s1 + $0x200] sm:$0xff]
  %v364 = vld [vmem:[%s1 + $0x208] sm:$0xff]
  %v365 = vld [vmem:[%s1 + $0x210] sm:$0xff]
  %v366 = vld [vmem:[%s1 + $0x218] sm:$0xff]
  %v367 = vld [vmem:[%s1 + $0x220] sm:$0xff]
  %v368 = vld [vmem:[%s1 + $0x228] sm:$0xff]
  %v369 = vld [vmem:[%s1 + $0x230] sm:$0xff]
  %v370 = vld [vmem:[%s1 + $0x238] sm:$0xff]
  %v371 = vld [vmem:[%s1 + $0x240] sm:$0xff]
  %v372 = vld [vmem:[%s1 + $0x248] sm:$0xff]
  %v373 = vld [vmem:[%s1 + $0x250] sm:$0xff]
  %v374 = vld [vmem:[%s1 + $0x258] sm:$0xff]
  %v375 = vld [vmem:[%s1 + $0x260] sm:$0xff]
  %v376 = vld [vmem:[%s1 + $0x268] sm:$0xff]
  %v377 = vld [vmem:[%s1 + $0x270] sm:$0xff]
  %v378 = vld [vmem:[%s1 + $0x278] sm:$0xff]
  %v379 = vld [vmem:[%s2] sm:$0x1]
  %v381 = vlaneseq
  %v382 = vshrl.u32 %v381, 7
  %v383 = vsub.s32 0, %v382
  %v384 = vrot.slane %v379, %v383
  %386 = vmatprep.subr.mxu0 0.0
  %387 = vmatpush1.msra.mxu0 %v299
  %388 = vmatprep.subr.mxu0 0.0
  %389 = vmatpush1.msra.mxu0 %v300
  %390 = vmatprep.subr.mxu0 0.0
  %391 = vmatpush1.msra.mxu0 %v301
  %392 = vmatprep.subr.mxu0 0.0
  %393 = vmatpush1.msra.mxu0 %v302
  %394 = vmatprep.subr.mxu0 0.0
  %395 = vmatpush1.msra.mxu0 %v303
  %396 = vmatprep.subr.mxu0 0.0
  %397 = vmatpush1.msra.mxu0 %v304
  %398 = vmatprep.subr.mxu0 0.0
  %399 = vmatpush1.msra.mxu0 %v305
  %400 = vmatprep.subr.mxu0 0.0
  %401 = vmatpush1.msra.mxu0 %v306
  %402 = vmatprep.subr.mxu0 0.0
  %403 = vmatpush1.msra.mxu0 %v307
  %404 = vmatprep.subr.mxu0 0.0
  %405 = vmatpush1.msra.mxu0 %v308
  %406 = vmatprep.subr.mxu0 0.0
  %407 = vmatpush1.msra.mxu0 %v309
  %408 = vmatprep.subr.mxu0 0.0
  %409 = vmatpush1.msra.mxu0 %v310
  %410 = vmatprep.subr.mxu0 0.0
  %411 = vmatpush1.msra.mxu0 %v311
  %412 = vmatprep.subr.mxu0 0.0
  %413 = vmatpush1.msra.mxu0 %v312
  %414 = vmatprep.subr.mxu0 0.0
  %415 = vmatpush1.msra.mxu0 %v313
  %416 = vmatprep.subr.mxu0 0.0
  %417 = vmatpush1.msra.mxu0 %v314
  %418 = vmatprep.subr.mxu0 0.0
  %419 = vmatpush1.msra.mxu0 %v315
  %420 = vmatprep.subr.mxu0 0.0
  %421 = vmatpush1.msra.mxu0 %v316
  %422 = vmatprep.subr.mxu0 0.0
  %423 = vmatpush1.msra.mxu0 %v317
  %424 = vmatprep.subr.mxu0 0.0
  %425 = vmatpush1.msra.mxu0 %v318
  %426 = vmatprep.subr.mxu0 0.0
  %427 = vmatpush1.msra.mxu0 %v319
  %428 = vmatprep.subr.mxu0 0.0
  %429 = vmatpush1.msra.mxu0 %v320
  %430 = vmatprep.subr.mxu0 0.0
  %431 = vmatpush1.msra.mxu0 %v321
  %432 = vmatprep.subr.mxu0 0.0
  %433 = vmatpush1.msra.mxu0 %v322
  %434 = vmatprep.subr.mxu0 0.0
  %435 = vmatpush1.msra.mxu0 %v323
  %436 = vmatprep.subr.mxu0 0.0
  %437 = vmatpush1.msra.mxu0 %v324
  %438 = vmatprep.subr.mxu0 0.0
  %439 = vmatpush1.msra.mxu0 %v325
  %440 = vmatprep.subr.mxu0 0.0
  %441 = vmatpush1.msra.mxu0 %v326
  %442 = vmatprep.subr.mxu0 0.0
  %443 = vmatpush1.msra.mxu0 %v327
  %444 = vmatprep.subr.mxu0 0.0
  %445 = vmatpush1.msra.mxu0 %v328
  %446 = vmatprep.subr.mxu0 0.0
  %447 = vmatpush1.msra.mxu0 %v329
  %448 = vmatprep.subr.mxu0 0.0
  %449 = vmatpush1.msra.mxu0 %v330
  %450 = vmatprep.mubr.f32.mxu0 %v15
  %451 = vmatmul.mubr.f32.gmra.mrb[0].mxu0 %v14
  %v452 = vpop.f32.mrb[0].mxu0
  %v453 = vadd.f32 %v384, %v452
  %v454 = vpop.f32.mrb[0].mxu0
  %455 = vmatprep.mubr.f32.mxu0 %v20
  %456 = vmatmul.mubr.f32.gmra.mrb[0].mxu0 %v19
  %v457 = vpop.f32.mrb[0].mxu0
  %v458 = vadd.f32 %v384, %v457
  %v459 = vpop.f32.mrb[0].mxu0
  %460 = vmatprep.mubr.f32.mxu0 %v25
  %461 = vmatmul.mubr.f32.gmra.mrb[0].mxu0 %v24
  %v462 = vpop.f32.mrb[0].mxu0
  %v463 = vadd.f32 %v384, %v462
  %v464 = vpop.f32.mrb[0].mxu0
  %465 = vmatprep.mubr.f32.mxu0 %v30
  %466 = vmatmul.mubr.f32.gmra.mrb[0].mxu0 %v29
  %v467 = vpop.f32.mrb[0].mxu0
  %v468 = vadd.f32 %v384, %v467
  %v469 = vpop.f32.mrb[0].mxu0
  %470 = vmatprep.mubr.f32.mxu0 %v35
  %471 = vmatmul.mubr.f32.gmra.mrb[0].mxu0 %v34
  %v472 = vpop.f32.mrb[0].mxu0
  %v473 = vadd.f32 %v384, %v472
  %v474 = vpop.f32.mrb[0].mxu0
  %475 = vmatprep.mubr.f32.mxu0 %v40
  %476 = vmatmul.mubr.f32.gmra.mrb[0].mxu0 %v39
  %v477 = vpop.f32.mrb[0].mxu0
  %v478 = vadd.f32 %v384, %v477
  %v479 = vpop.f32.mrb[0].mxu0
  %480 = vmatprep.mubr.f32.mxu0 %v45
  %481 = vmatmul.mubr.f32.gmra.mrb[0].mxu0 %v44
  %v482 = vpop.f32.mrb[0].mxu0
  %v483 = vadd.f32 %v384, %v482
  %v484 = vpop.f32.mrb[0].mxu0
  %485 = vmatprep.mubr.f32.mxu0 %v50
  %486 = vmatmul.mubr.f32.gmra.mrb[0].mxu0 %v49
  %v487 = vpop.f32.mrb[0].mxu0
  %v488 = vadd.f32 %v384, %v487
  %v489 = vpop.f32.mrb[0].mxu0
  %490 = vmatprep.mubr.f32.mxu0 %v55
  %491 = vmatmul.mubr.f32.gmra.mrb[0].mxu0 %v54
  %v492 = vpop.f32.mrb[0].mxu0
  %v493 = vadd.f32 %v384, %v492
  %v494 = vpop.f32.mrb[0].mxu0
  %495 = vmatprep.mubr.f32.mxu0 %v60
  %496 = vmatmul.mubr.f32.gmra.mrb[0].mxu0 %v59
  %v497 = vpop.f32.mrb[0].mxu0
  %v498 = vadd.f32 %v384, %v497
  %v499 = vpop.f32.mrb[0].mxu0
  %500 = vmatprep.mubr.f32.mxu0 %v65
  %501 = vmatmul.mubr.f32.gmra.mrb[0].mxu0 %v64
  %v502 = vpop.f32.mrb[0].mxu0
  %v503 = vadd.f32 %v384, %v502
  %v504 = vpop.f32.mrb[0].mxu0
  %505 = vmatprep.mubr.f32.mxu0 %v70
  %506 = vmatmul.mubr.f32.gmra.mrb[0].mxu0 %v69
  %v507 = vpop.f32.mrb[0].mxu0
  %v508 = vadd.f32 %v384, %v507
  %v509 = vpop.f32.mrb[0].mxu0
  %510 = vmatprep.mubr.f32.mxu0 %v75
  %511 = vmatmul.mubr.f32.gmra.mrb[0].mxu0 %v74
  %v512 = vpop.f32.mrb[0].mxu0
  %v513 = vadd.f32 %v384, %v512
  %v514 = vpop.f32.mrb[0].mxu0
  %515 = vmatprep.mubr.f32.mxu0 %v80
  %516 = vmatmul.mubr.f32.gmra.mrb[0].mxu0 %v79
  %v517 = vpop.f32.mrb[0].mxu0
  %v518 = vadd.f32 %v384, %v517
  %v519 = vpop.f32.mrb[0].mxu0
  %520 = vmatprep.mubr.f32.mxu0 %v85
  %521 = vmatmul.mubr.f32.gmra.mrb[0].mxu0 %v84
  %v522 = vpop.f32.mrb[0].mxu0
  %v523 = vadd.f32 %v384, %v522
  %v524 = vpop.f32.mrb[0].mxu0
  %525 = vmatprep.mubr.f32.mxu0 %v90
  %526 = vmatmul.mubr.f32.gmra.mrb[0].mxu0 %v89
  %v527 = vpop.f32.mrb[0].mxu0
  %v528 = vadd.f32 %v384, %v527
  %v529 = vpop.f32.mrb[0].mxu0
  %530 = vmatprep.mubr.f32.mxu0 %v95
  %531 = vmatmul.mubr.f32.gmra.mrb[0].mxu0 %v94
  %v532 = vpop.f32.mrb[0].mxu0
  %v533 = vadd.f32 %v384, %v532
  %v534 = vpop.f32.mrb[0].mxu0
  %535 = vmatprep.mubr.f32.mxu0 %v100
  %536 = vmatmul.mubr.f32.gmra.mrb[0].mxu0 %v99
  %v537 = vpop.f32.mrb[0].mxu0
  %v538 = vadd.f32 %v384, %v537
  %v539 = vpop.f32.mrb[0].mxu0
  %540 = vmatprep.mubr.f32.mxu0 %v105
  %541 = vmatmul.mubr.f32.gmra.mrb[0].mxu0 %v104
  %v542 = vpop.f32.mrb[0].mxu0
  %v543 = vadd.f32 %v384, %v542
  %v544 = vpop.f32.mrb[0].mxu0
  %545 = vmatprep.mubr.f32.mxu0 %v110
  %546 = vmatmul.mubr.f32.gmra.mrb[0].mxu0 %v109
  %v547 = vpop.f32.mrb[0].mxu0
  %v548 = vadd.f32 %v384, %v547
  %v549 = vpop.f32.mrb[0].mxu0
  %550 = vmatprep.mubr.f32.mxu0 %v115
  %551 = vmatmul.mubr.f32.gmra.mrb[0].mxu0 %v114
  %v552 = vpop.f32.mrb[0].mxu0
  %v553 = vadd.f32 %v384, %v552
  %v554 = vpop.f32.mrb[0].mxu0
  %555 = vmatprep.mubr.f32.mxu0 %v120
  %556 = vmatmul.mubr.f32.gmra.mrb[0].mxu0 %v119
  %v557 = vpop.f32.mrb[0].mxu0
  %v558 = vadd.f32 %v384, %v557
  %v559 = vpop.f32.mrb[0].mxu0
  %560 = vmatprep.mubr.f32.mxu0 %v125
  %561 = vmatmul.mubr.f32.gmra.mrb[0].mxu0 %v124
  %v562 = vpop.f32.mrb[0].mxu0
  %v563 = vadd.f32 %v384, %v562
  %v564 = vpop.f32.mrb[0].mxu0
  %565 = vmatprep.mubr.f32.mxu0 %v130
  %566 = vmatmul.mubr.f32.gmra.mrb[0].mxu0 %v129
  %v567 = vpop.f32.mrb[0].mxu0
  %v568 = vadd.f32 %v384, %v567
  %v569 = vpop.f32.mrb[0].mxu0
  %570 = vmatprep.mubr.f32.mxu0 %v135
  %571 = vmatmul.mubr.f32.gmra.mrb[0].mxu0 %v134
  %v572 = vpop.f32.mrb[0].mxu0
  %v573 = vadd.f32 %v384, %v572
  %v574 = vpop.f32.mrb[0].mxu0
  %575 = vmatprep.mubr.f32.mxu0 %v140
  %576 = vmatmul.mubr.f32.gmra.mrb[0].mxu0 %v139
  %v577 = vpop.f32.mrb[0].mxu0
  %v578 = vadd.f32 %v384, %v577
  %v579 = vpop.f32.mrb[0].mxu0
  %580 = vmatprep.mubr.f32.mxu0 %v145
  %581 = vmatmul.mubr.f32.gmra.mrb[0].mxu0 %v144
  %v582 = vpop.f32.mrb[0].mxu0
  %v583 = vadd.f32 %v384, %v582
  %v584 = vpop.f32.mrb[0].mxu0
  %585 = vmatprep.mubr.f32.mxu0 %v150
  %586 = vmatmul.mubr.f32.gmra.mrb[0].mxu0 %v149
  %v587 = vpop.f32.mrb[0].mxu0
  %v588 = vadd.f32 %v384, %v587
  %v589 = vpop.f32.mrb[0].mxu0
  %590 = vmatprep.mubr.f32.mxu0 %v155
  %591 = vmatmul.mubr.f32.gmra.mrb[0].mxu0 %v154
  %v592 = vpop.f32.mrb[0].mxu0
  %v593 = vadd.f32 %v384, %v592
  %v594 = vpop.f32.mrb[0].mxu0
  %595 = vmatprep.mubr.f32.mxu0 %v160
  %596 = vmatmul.mubr.f32.gmra.mrb[0].mxu0 %v159
  %v597 = vpop.f32.mrb[0].mxu0
  %v598 = vadd.f32 %v384, %v597
  %v599 = vpop.f32.mrb[0].mxu0
  %600 = vmatprep.mubr.f32.mxu0 %v165
  %601 = vmatmul.mubr.f32.gmra.mrb[0].mxu0 %v164
  %v602 = vpop.f32.mrb[0].mxu0
  %v603 = vadd.f32 %v384, %v602
  %v604 = vpop.f32.mrb[0].mxu0
  %605 = vmatprep.mubr.f32.mxu0 %v170
  %606 = vmatmul.mubr.f32.gmra.mrb[0].mxu0 %v169
  %v607 = vpop.f32.mrb[0].mxu0
  %v608 = vadd.f32 %v384, %v607
  %v609 = vpop.f32.mrb[0].mxu0
  %610 = vmatprep.mubr.f32.mxu0 %v175
  %611 = vmatmul.mubr.f32.gmra.mrb[0].mxu0 %v174
  %v612 = vpop.f32.mrb[0].mxu0
  %v613 = vadd.f32 %v384, %v612
  %v614 = vpop.f32.mrb[0].mxu0
  %615 = vmatprep.mubr.f32.mxu0 %v180
  %616 = vmatmul.mubr.f32.gmra.mrb[0].mxu0 %v179
  %v617 = vpop.f32.mrb[0].mxu0
  %v618 = vadd.f32 %v384, %v617
  %v619 = vpop.f32.mrb[0].mxu0
  %620 = vmatprep.mubr.f32.mxu0 %v185
  %621 = vmatmul.mubr.f32.gmra.mrb[0].mxu0 %v184
  %v622 = vpop.f32.mrb[0].mxu0
  %v623 = vadd.f32 %v384, %v622
  %v624 = vpop.f32.mrb[0].mxu0
  %625 = vmatprep.mubr.f32.mxu0 %v190
  %626 = vmatmul.mubr.f32.gmra.mrb[0].mxu0 %v189
  %v627 = vpop.f32.mrb[0].mxu0
  %v628 = vadd.f32 %v384, %v627
  %v629 = vpop.f32.mrb[0].mxu0
  %630 = vmatprep.mubr.f32.mxu0 %v195
  %631 = vmatmul.mubr.f32.gmra.mrb[0].mxu0 %v194
  %v632 = vpop.f32.mrb[0].mxu0
  %v633 = vadd.f32 %v384, %v632
  %v634 = vpop.f32.mrb[0].mxu0
  %635 = vmatprep.mubr.f32.mxu0 %v200
  %636 = vmatmul.mubr.f32.gmra.mrb[0].mxu0 %v199
  %v637 = vpop.f32.mrb[0].mxu0
  %v638 = vadd.f32 %v384, %v637
  %v639 = vpop.f32.mrb[0].mxu0
  %640 = vmatprep.mubr.f32.mxu0 %v205
  %641 = vmatmul.mubr.f32.gmra.mrb[0].mxu0 %v204
  %v642 = vpop.f32.mrb[0].mxu0
  %v643 = vadd.f32 %v384, %v642
  %v644 = vpop.f32.mrb[0].mxu0
  %645 = vmatprep.mubr.f32.mxu0 %v210
  %646 = vmatmul.mubr.f32.gmra.mrb[0].mxu0 %v209
  %v647 = vpop.f32.mrb[0].mxu0
  %v648 = vadd.f32 %v384, %v647
  %v649 = vpop.f32.mrb[0].mxu0
  %650 = vmatprep.mubr.f32.mxu0 %v215
  %651 = vmatmul.mubr.f32.gmra.mrb[0].mxu0 %v214
  %v652 = vpop.f32.mrb[0].mxu0
  %v653 = vadd.f32 %v384, %v652
  %v654 = vpop.f32.mrb[0].mxu0
  %655 = vmatprep.mubr.f32.mxu0 %v220
  %656 = vmatmul.mubr.f32.gmra.mrb[0].mxu0 %v219
  %v657 = vpop.f32.mrb[0].mxu0
  %v658 = vadd.f32 %v384, %v657
  %v659 = vpop.f32.mrb[0].mxu0
  %660 = vmatprep.mubr.f32.mxu0 %v225
  %661 = vmatmul.mubr.f32.gmra.mrb[0].mxu0 %v224
  %v662 = vpop.f32.mrb[0].mxu0
  %v663 = vadd.f32 %v384, %v662
  %v664 = vpop.f32.mrb[0].mxu0
  %665 = vmatprep.mubr.f32.mxu0 %v230
  %666 = vmatmul.mubr.f32.gmra.mrb[0].mxu0 %v229
  %v667 = vpop.f32.mrb[0].mxu0
  %v668 = vadd.f32 %v384, %v667
  %v669 = vpop.f32.mrb[0].mxu0
  %670 = vmatprep.mubr.f32.mxu0 %v235
  %671 = vmatmul.mubr.f32.gmra.mrb[0].mxu0 %v234
  %v672 = vpop.f32.mrb[0].mxu0
  %v673 = vadd.f32 %v384, %v672
  %v674 = vpop.f32.mrb[0].mxu0
  %675 = vmatprep.mubr.f32.mxu0 %v240
  %676 = vmatmul.mubr.f32.gmra.mrb[0].mxu0 %v239
  %v677 = vpop.f32.mrb[0].mxu0
  %v678 = vadd.f32 %v384, %v677
  %v679 = vpop.f32.mrb[0].mxu0
  %680 = vmatprep.mubr.f32.mxu0 %v245
  %681 = vmatmul.mubr.f32.gmra.mrb[0].mxu0 %v244
  %v682 = vpop.f32.mrb[0].mxu0
  %v683 = vadd.f32 %v384, %v682
  %v684 = vpop.f32.mrb[0].mxu0
  %685 = vmatprep.mubr.f32.mxu0 %v250
  %686 = vmatmul.mubr.f32.gmra.mrb[0].mxu0 %v249
  %v687 = vpop.f32.mrb[0].mxu0
  %v688 = vadd.f32 %v384, %v687
  %v689 = vpop.f32.mrb[0].mxu0
  %690 = vmatprep.mubr.f32.mxu0 %v255
  %691 = vmatmul.mubr.f32.gmra.mrb[0].mxu0 %v254
  %v692 = vpop.f32.mrb[0].mxu0
  %v693 = vadd.f32 %v384, %v692
  %v694 = vpop.f32.mrb[0].mxu0
  %695 = vmatprep.mubr.f32.mxu0 %v260
  %696 = vmatmul.mubr.f32.gmra.mrb[0].mxu0 %v259
  %v697 = vpop.f32.mrb[0].mxu0
  %v698 = vadd.f32 %v384, %v697
  %v699 = vpop.f32.mrb[0].mxu0
  %700 = vmatprep.mubr.f32.mxu0 %v265
  %701 = vmatmul.mubr.f32.gmra.mrb[0].mxu0 %v264
  %v702 = vpop.f32.mrb[0].mxu0
  %v703 = vadd.f32 %v384, %v702
  %v704 = vpop.f32.mrb[0].mxu0
  %705 = vmatprep.mubr.f32.mxu0 %v270
  %706 = vmatmul.mubr.f32.gmra.mrb[0].mxu0 %v269
  %v707 = vpop.f32.mrb[0].mxu0
  %v708 = vadd.f32 %v384, %v707
  %v709 = vpop.f32.mrb[0].mxu0
  %710 = vmatprep.mubr.f32.mxu0 %v275
  %711 = vmatmul.mubr.f32.gmra.mrb[0].mxu0 %v274
  %v712 = vpop.f32.mrb[0].mxu0
  %v713 = vadd.f32 %v384, %v712
  %v714 = vpop.f32.mrb[0].mxu0
  %715 = vmatprep.mubr.f32.mxu0 %v280
  %716 = vmatmul.mubr.f32.gmra.mrb[0].mxu0 %v279
  %v717 = vpop.f32.mrb[0].mxu0
  %v718 = vadd.f32 %v384, %v717
  %v719 = vpop.f32.mrb[0].mxu0
  %720 = vmatprep.mubr.f32.mxu0 %v285
  %721 = vmatmul.mubr.f32.gmra.mrb[0].mxu0 %v284
  %v722 = vpop.f32.mrb[0].mxu0
  %v723 = vadd.f32 %v384, %v722
  %v724 = vpop.f32.mrb[0].mxu0
  %725 = vmatprep.mubr.f32.mxu0 %v290
  %726 = vmatmul.mubr.f32.gmra.mrb[0].mxu0 %v289
  %v727 = vpop.f32.mrb[0].mxu0
  %v728 = vadd.f32 %v384, %v727
  %v729 = vpop.f32.mrb[0].mxu0
  %730 = vmatprep.mubr.f32.mxu0 %v295
  %731 = vmatmul.mubr.f32.gmra.mrb[0].mxu0 %v294
  %v732 = vpop.f32.mrb[0].mxu0
  %v733 = vadd.f32 %v384, %v732
  %v734 = vpop.f32.mrb[0].mxu0
  %735 = vdwg.mxu0
  %736 = vmatprep.subr.mxu0 0.0
  %737 = vmatpush1.msra.mxu0 %v331
  %738 = vmatprep.subr.mxu0 0.0
  %739 = vmatpush1.msra.mxu0 %v332
  %740 = vmatprep.subr.mxu0 0.0
  %741 = vmatpush1.msra.mxu0 %v333
  %742 = vmatprep.subr.mxu0 0.0
  %743 = vmatpush1.msra.mxu0 %v334
  %744 = vmatprep.subr.mxu0 0.0
  %745 = vmatpush1.msra.mxu0 %v335
  %746 = vmatprep.subr.mxu0 0.0
  %747 = vmatpush1.msra.mxu0 %v336
  %748 = vmatprep.subr.mxu0 0.0
  %749 = vmatpush1.msra.mxu0 %v337
  %750 = vmatprep.subr.mxu0 0.0
  %751 = vmatpush1.msra.mxu0 %v338
  %752 = vmatprep.subr.mxu0 0.0
  %753 = vmatpush1.msra.mxu0 %v339
  %754 = vmatprep.subr.mxu0 0.0
  %755 = vmatpush1.msra.mxu0 %v340
  %756 = vmatprep.subr.mxu0 0.0
  %757 = vmatpush1.msra.mxu0 %v341
  %758 = vmatprep.subr.mxu0 0.0
  %759 = vmatpush1.msra.mxu0 %v342
  %760 = vmatprep.subr.mxu0 0.0
  %761 = vmatpush1.msra.mxu0 %v343
  %762 = vmatprep.subr.mxu0 0.0
  %763 = vmatpush1.msra.mxu0 %v344
  %764 = vmatprep.subr.mxu0 0.0
  %765 = vmatpush1.msra.mxu0 %v345
  %766 = vmatprep.subr.mxu0 0.0
  %767 = vmatpush1.msra.mxu0 %v346
  %768 = vmatprep.subr.mxu0 0.0
  %769 = vmatpush1.msra.mxu0 %v347
  %770 = vmatprep.subr.mxu0 0.0
  %771 = vmatpush1.msra.mxu0 %v348
  %772 = vmatprep.subr.mxu0 0.0
  %773 = vmatpush1.msra.mxu0 %v349
  %774 = vmatprep.subr.mxu0 0.0
  %775 = vmatpush1.msra.mxu0 %v350
  %776 = vmatprep.subr.mxu0 0.0
  %777 = vmatpush1.msra.mxu0 %v351
  %778 = vmatprep.subr.mxu0 0.0
  %779 = vmatpush1.msra.mxu0 %v352
  %780 = vmatprep.subr.mxu0 0.0
  %781 = vmatpush1.msra.mxu0 %v353
  %782 = vmatprep.subr.mxu0 0.0
  %783 = vmatpush1.msra.mxu0 %v354
  %784 = vmatprep.subr.mxu0 0.0
  %785 = vmatpush1.msra.mxu0 %v355
  %786 = vmatprep.subr.mxu0 0.0
  %787 = vmatpush1.msra.mxu0 %v356
  %788 = vmatprep.subr.mxu0 0.0
  %789 = vmatpush1.msra.mxu0 %v357
  %790 = vmatprep.subr.mxu0 0.0
  %791 = vmatpush1.msra.mxu0 %v358
  %792 = vmatprep.subr.mxu0 0.0
  %793 = vmatpush1.msra.mxu0 %v359
  %794 = vmatprep.subr.mxu0 0.0
  %795 = vmatpush1.msra.mxu0 %v360
  %796 = vmatprep.subr.mxu0 0.0
  %797 = vmatpush1.msra.mxu0 %v361
  %798 = vmatprep.subr.mxu0 0.0
  %799 = vmatpush1.msra.mxu0 %v362
  %800 = vmatprep.mubr.f32.mxu0 %v17
  %801 = vmatmul.mubr.f32.gmra.mrb[0].mxu0 %v16
  %v802 = vpop.f32.mrb[0].mxu0
  %v803 = vadd.f32 %v453, %v802
  %v804 = vpop.f32.mrb[0].mxu0
  %805 = vmatprep.mubr.f32.mxu0 %v22
  %806 = vmatmul.mubr.f32.gmra.mrb[0].mxu0 %v21
  %v807 = vpop.f32.mrb[0].mxu0
  %v808 = vadd.f32 %v458, %v807
  %v809 = vpop.f32.mrb[0].mxu0
  %810 = vmatprep.mubr.f32.mxu0 %v27
  %811 = vmatmul.mubr.f32.gmra.mrb[0].mxu0 %v26
  %v812 = vpop.f32.mrb[0].mxu0
  %v813 = vadd.f32 %v463, %v812
  %v814 = vpop.f32.mrb[0].mxu0
  %815 = vmatprep.mubr.f32.mxu0 %v32
  %816 = vmatmul.mubr.f32.gmra.mrb[0].mxu0 %v31
  %v817 = vpop.f32.mrb[0].mxu0
  %v818 = vadd.f32 %v468, %v817
  %v819 = vpop.f32.mrb[0].mxu0
  %820 = vmatprep.mubr.f32.mxu0 %v37
  %821 = vmatmul.mubr.f32.gmra.mrb[0].mxu0 %v36
  %v822 = vpop.f32.mrb[0].mxu0
  %v823 = vadd.f32 %v473, %v822
  %v824 = vpop.f32.mrb[0].mxu0
  %825 = vmatprep.mubr.f32.mxu0 %v42
  %826 = vmatmul.mubr.f32.gmra.mrb[0].mxu0 %v41
  %v827 = vpop.f32.mrb[0].mxu0
  %v828 = vadd.f32 %v478, %v827
  %v829 = vpop.f32.mrb[0].mxu0
  %830 = vmatprep.mubr.f32.mxu0 %v47
  %831 = vmatmul.mubr.f32.gmra.mrb[0].mxu0 %v46
  %v832 = vpop.f32.mrb[0].mxu0
  %v833 = vadd.f32 %v483, %v832
  %v834 = vpop.f32.mrb[0].mxu0
  %835 = vmatprep.mubr.f32.mxu0 %v52
  %836 = vmatmul.mubr.f32.gmra.mrb[0].mxu0 %v51
  %v837 = vpop.f32.mrb[0].mxu0
  %v838 = vadd.f32 %v488, %v837
  %v839 = vpop.f32.mrb[0].mxu0
  %840 = vmatprep.mubr.f32.mxu0 %v57
  %841 = vmatmul.mubr.f32.gmra.mrb[0].mxu0 %v56
  %v842 = vpop.f32.mrb[0].mxu0
  %v843 = vadd.f32 %v493, %v842
  %v844 = vpop.f32.mrb[0].mxu0
  %845 = vmatprep.mubr.f32.mxu0 %v62
  %846 = vmatmul.mubr.f32.gmra.mrb[0].mxu0 %v61
  %v847 = vpop.f32.mrb[0].mxu0
  %v848 = vadd.f32 %v498, %v847
  %v849 = vpop.f32.mrb[0].mxu0
  %850 = vmatprep.mubr.f32.mxu0 %v67
  %851 = vmatmul.mubr.f32.gmra.mrb[0].mxu0 %v66
  %v852 = vpop.f32.mrb[0].mxu0
  %v853 = vadd.f32 %v503, %v852
  %v854 = vpop.f32.mrb[0].mxu0
  %855 = vmatprep.mubr.f32.mxu0 %v72
  %856 = vmatmul.mubr.f32.gmra.mrb[0].mxu0 %v71
  %v857 = vpop.f32.mrb[0].mxu0
  %v858 = vadd.f32 %v508, %v857
  %v859 = vpop.f32.mrb[0].mxu0
  %860 = vmatprep.mubr.f32.mxu0 %v77
  %861 = vmatmul.mubr.f32.gmra.mrb[0].mxu0 %v76
  %v862 = vpop.f32.mrb[0].mxu0
  %v863 = vadd.f32 %v513, %v862
  %v864 = vpop.f32.mrb[0].mxu0
  %865 = vmatprep.mubr.f32.mxu0 %v82
  %866 = vmatmul.mubr.f32.gmra.mrb[0].mxu0 %v81
  %v867 = vpop.f32.mrb[0].mxu0
  %v868 = vadd.f32 %v518, %v867
  %v869 = vpop.f32.mrb[0].mxu0
  %870 = vmatprep.mubr.f32.mxu0 %v87
  %871 = vmatmul.mubr.f32.gmra.mrb[0].mxu0 %v86
  %v872 = vpop.f32.mrb[0].mxu0
  %v873 = vadd.f32 %v523, %v872
  %v874 = vpop.f32.mrb[0].mxu0
  %875 = vmatprep.mubr.f32.mxu0 %v92
  %876 = vmatmul.mubr.f32.gmra.mrb[0].mxu0 %v91
  %v877 = vpop.f32.mrb[0].mxu0
  %v878 = vadd.f32 %v528, %v877
  %v879 = vpop.f32.mrb[0].mxu0
  %880 = vmatprep.mubr.f32.mxu0 %v97
  %881 = vmatmul.mubr.f32.gmra.mrb[0].mxu0 %v96
  %v882 = vpop.f32.mrb[0].mxu0
  %v883 = vadd.f32 %v533, %v882
  %v884 = vpop.f32.mrb[0].mxu0
  %885 = vmatprep.mubr.f32.mxu0 %v102
  %886 = vmatmul.mubr.f32.gmra.mrb[0].mxu0 %v101
  %v887 = vpop.f32.mrb[0].mxu0
  %v888 = vadd.f32 %v538, %v887
  %v889 = vpop.f32.mrb[0].mxu0
  %890 = vmatprep.mubr.f32.mxu0 %v107
  %891 = vmatmul.mubr.f32.gmra.mrb[0].mxu0 %v106
  %v892 = vpop.f32.mrb[0].mxu0
  %v893 = vadd.f32 %v543, %v892
  %v894 = vpop.f32.mrb[0].mxu0
  %895 = vmatprep.mubr.f32.mxu0 %v112
  %896 = vmatmul.mubr.f32.gmra.mrb[0].mxu0 %v111
  %v897 = vpop.f32.mrb[0].mxu0
  %v898 = vadd.f32 %v548, %v897
  %v899 = vpop.f32.mrb[0].mxu0
  %900 = vmatprep.mubr.f32.mxu0 %v117
  %901 = vmatmul.mubr.f32.gmra.mrb[0].mxu0 %v116
  %v902 = vpop.f32.mrb[0].mxu0
  %v903 = vadd.f32 %v553, %v902
  %v904 = vpop.f32.mrb[0].mxu0
  %905 = vmatprep.mubr.f32.mxu0 %v122
  %906 = vmatmul.mubr.f32.gmra.mrb[0].mxu0 %v121
  %v907 = vpop.f32.mrb[0].mxu0
  %v908 = vadd.f32 %v558, %v907
  %v909 = vpop.f32.mrb[0].mxu0
  %910 = vmatprep.mubr.f32.mxu0 %v127
  %911 = vmatmul.mubr.f32.gmra.mrb[0].mxu0 %v126
  %v912 = vpop.f32.mrb[0].mxu0
  %v913 = vadd.f32 %v563, %v912
  %v914 = vpop.f32.mrb[0].mxu0
  %915 = vmatprep.mubr.f32.mxu0 %v132
  %916 = vmatmul.mubr.f32.gmra.mrb[0].mxu0 %v131
  %v917 = vpop.f32.mrb[0].mxu0
  %v918 = vadd.f32 %v568, %v917
  %v919 = vpop.f32.mrb[0].mxu0
  %920 = vmatprep.mubr.f32.mxu0 %v137
  %921 = vmatmul.mubr.f32.gmra.mrb[0].mxu0 %v136
  %v922 = vpop.f32.mrb[0].mxu0
  %v923 = vadd.f32 %v573, %v922
  %v924 = vpop.f32.mrb[0].mxu0
  %925 = vmatprep.mubr.f32.mxu0 %v142
  %926 = vmatmul.mubr.f32.gmra.mrb[0].mxu0 %v141
  %v927 = vpop.f32.mrb[0].mxu0
  %v928 = vadd.f32 %v578, %v927
  %v929 = vpop.f32.mrb[0].mxu0
  %930 = vmatprep.mubr.f32.mxu0 %v147
  %931 = vmatmul.mubr.f32.gmra.mrb[0].mxu0 %v146
  %v932 = vpop.f32.mrb[0].mxu0
  %v933 = vadd.f32 %v583, %v932
  %v934 = vpop.f32.mrb[0].mxu0
  %935 = vmatprep.mubr.f32.mxu0 %v152
  %936 = vmatmul.mubr.f32.gmra.mrb[0].mxu0 %v151
  %v937 = vpop.f32.mrb[0].mxu0
  %v938 = vadd.f32 %v588, %v937
  %v939 = vpop.f32.mrb[0].mxu0
  %940 = vmatprep.mubr.f32.mxu0 %v157
  %941 = vmatmul.mubr.f32.gmra.mrb[0].mxu0 %v156
  %v942 = vpop.f32.mrb[0].mxu0
  %v943 = vadd.f32 %v593, %v942
  %v944 = vpop.f32.mrb[0].mxu0
  %945 = vmatprep.mubr.f32.mxu0 %v162
  %946 = vmatmul.mubr.f32.gmra.mrb[0].mxu0 %v161
  %v947 = vpop.f32.mrb[0].mxu0
  %v948 = vadd.f32 %v598, %v947
  %v949 = vpop.f32.mrb[0].mxu0
  %950 = vmatprep.mubr.f32.mxu0 %v167
  %951 = vmatmul.mubr.f32.gmra.mrb[0].mxu0 %v166
  %v952 = vpop.f32.mrb[0].mxu0
  %v953 = vadd.f32 %v603, %v952
  %v954 = vpop.f32.mrb[0].mxu0
  %955 = vmatprep.mubr.f32.mxu0 %v172
  %956 = vmatmul.mubr.f32.gmra.mrb[0].mxu0 %v171
  %v957 = vpop.f32.mrb[0].mxu0
  %v958 = vadd.f32 %v608, %v957
  %v959 = vpop.f32.mrb[0].mxu0
  %960 = vmatprep.mubr.f32.mxu0 %v177
  %961 = vmatmul.mubr.f32.gmra.mrb[0].mxu0 %v176
  %v962 = vpop.f32.mrb[0].mxu0
  %v963 = vadd.f32 %v613, %v962
  %v964 = vpop.f32.mrb[0].mxu0
  %965 = vmatprep.mubr.f32.mxu0 %v182
  %966 = vmatmul.mubr.f32.gmra.mrb[0].mxu0 %v181
  %v967 = vpop.f32.mrb[0].mxu0
  %v968 = vadd.f32 %v618, %v967
  %v969 = vpop.f32.mrb[0].mxu0
  %970 = vmatprep.mubr.f32.mxu0 %v187
  %971 = vmatmul.mubr.f32.gmra.mrb[0].mxu0 %v186
  %v972 = vpop.f32.mrb[0].mxu0
  %v973 = vadd.f32 %v623, %v972
  %v974 = vpop.f32.mrb[0].mxu0
  %975 = vmatprep.mubr.f32.mxu0 %v192
  %976 = vmatmul.mubr.f32.gmra.mrb[0].mxu0 %v191
  %v977 = vpop.f32.mrb[0].mxu0
  %v978 = vadd.f32 %v628, %v977
  %v979 = vpop.f32.mrb[0].mxu0
  %980 = vmatprep.mubr.f32.mxu0 %v197
  %981 = vmatmul.mubr.f32.gmra.mrb[0].mxu0 %v196
  %v982 = vpop.f32.mrb[0].mxu0
  %v983 = vadd.f32 %v633, %v982
  %v984 = vpop.f32.mrb[0].mxu0
  %985 = vmatprep.mubr.f32.mxu0 %v202
  %986 = vmatmul.mubr.f32.gmra.mrb[0].mxu0 %v201
  %v987 = vpop.f32.mrb[0].mxu0
  %v988 = vadd.f32 %v638, %v987
  %v989 = vpop.f32.mrb[0].mxu0
  %990 = vmatprep.mubr.f32.mxu0 %v207
  %991 = vmatmul.mubr.f32.gmra.mrb[0].mxu0 %v206
  %v992 = vpop.f32.mrb[0].mxu0
  %v993 = vadd.f32 %v643, %v992
  %v994 = vpop.f32.mrb[0].mxu0
  %995 = vmatprep.mubr.f32.mxu0 %v212
  %996 = vmatmul.mubr.f32.gmra.mrb[0].mxu0 %v211
  %v997 = vpop.f32.mrb[0].mxu0
  %v998 = vadd.f32 %v648, %v997
  %v999 = vpop.f32.mrb[0].mxu0
  %1000 = vmatprep.mubr.f32.mxu0 %v217
  %1001 = vmatmul.mubr.f32.gmra.mrb[0].mxu0 %v216
  %v1002 = vpop.f32.mrb[0].mxu0
  %v1003 = vadd.f32 %v653, %v1002
  %v1004 = vpop.f32.mrb[0].mxu0
  %1005 = vmatprep.mubr.f32.mxu0 %v222
  %1006 = vmatmul.mubr.f32.gmra.mrb[0].mxu0 %v221
  %v1007 = vpop.f32.mrb[0].mxu0
  %v1008 = vadd.f32 %v658, %v1007
  %v1009 = vpop.f32.mrb[0].mxu0
  %1010 = vmatprep.mubr.f32.mxu0 %v227
  %1011 = vmatmul.mubr.f32.gmra.mrb[0].mxu0 %v226
  %v1012 = vpop.f32.mrb[0].mxu0
  %v1013 = vadd.f32 %v663, %v1012
  %v1014 = vpop.f32.mrb[0].mxu0
  %1015 = vmatprep.mubr.f32.mxu0 %v232
  %1016 = vmatmul.mubr.f32.gmra.mrb[0].mxu0 %v231
  %v1017 = vpop.f32.mrb[0].mxu0
  %v1018 = vadd.f32 %v668, %v1017
  %v1019 = vpop.f32.mrb[0].mxu0
  %1020 = vmatprep.mubr.f32.mxu0 %v237
  %1021 = vmatmul.mubr.f32.gmra.mrb[0].mxu0 %v236
  %v1022 = vpop.f32.mrb[0].mxu0
  %v1023 = vadd.f32 %v673, %v1022
  %v1024 = vpop.f32.mrb[0].mxu0
  %1025 = vmatprep.mubr.f32.mxu0 %v242
  %1026 = vmatmul.mubr.f32.gmra.mrb[0].mxu0 %v241
  %v1027 = vpop.f32.mrb[0].mxu0
  %v1028 = vadd.f32 %v678, %v1027
  %v1029 = vpop.f32.mrb[0].mxu0
  %1030 = vmatprep.mubr.f32.mxu0 %v247
  %1031 = vmatmul.mubr.f32.gmra.mrb[0].mxu0 %v246
  %v1032 = vpop.f32.mrb[0].mxu0
  %v1033 = vadd.f32 %v683, %v1032
  %v1034 = vpop.f32.mrb[0].mxu0
  %1035 = vmatprep.mubr.f32.mxu0 %v252
  %1036 = vmatmul.mubr.f32.gmra.mrb[0].mxu0 %v251
  %v1037 = vpop.f32.mrb[0].mxu0
  %v1038 = vadd.f32 %v688, %v1037
  %v1039 = vpop.f32.mrb[0].mxu0
  %1040 = vmatprep.mubr.f32.mxu0 %v257
  %1041 = vmatmul.mubr.f32.gmra.mrb[0].mxu0 %v256
  %v1042 = vpop.f32.mrb[0].mxu0
  %v1043 = vadd.f32 %v693, %v1042
  %v1044 = vpop.f32.mrb[0].mxu0
  %1045 = vmatprep.mubr.f32.mxu0 %v262
  %1046 = vmatmul.mubr.f32.gmra.mrb[0].mxu0 %v261
  %v1047 = vpop.f32.mrb[0].mxu0
  %v1048 = vadd.f32 %v698, %v1047
  %v1049 = vpop.f32.mrb[0].mxu0
  %1050 = vmatprep.mubr.f32.mxu0 %v267
  %1051 = vmatmul.mubr.f32.gmra.mrb[0].mxu0 %v266
  %v1052 = vpop.f32.mrb[0].mxu0
  %v1053 = vadd.f32 %v703, %v1052
  %v1054 = vpop.f32.mrb[0].mxu0
  %1055 = vmatprep.mubr.f32.mxu0 %v272
  %1056 = vmatmul.mubr.f32.gmra.mrb[0].mxu0 %v271
  %v1057 = vpop.f32.mrb[0].mxu0
  %v1058 = vadd.f32 %v708, %v1057
  %v1059 = vpop.f32.mrb[0].mxu0
  %1060 = vmatprep.mubr.f32.mxu0 %v277
  %1061 = vmatmul.mubr.f32.gmra.mrb[0].mxu0 %v276
  %v1062 = vpop.f32.mrb[0].mxu0
  %v1063 = vadd.f32 %v713, %v1062
  %v1064 = vpop.f32.mrb[0].mxu0
  %1065 = vmatprep.mubr.f32.mxu0 %v282
  %1066 = vmatmul.mubr.f32.gmra.mrb[0].mxu0 %v281
  %v1067 = vpop.f32.mrb[0].mxu0
  %v1068 = vadd.f32 %v718, %v1067
  %v1069 = vpop.f32.mrb[0].mxu0
  %1070 = vmatprep.mubr.f32.mxu0 %v287
  %1071 = vmatmul.mubr.f32.gmra.mrb[0].mxu0 %v286
  %v1072 = vpop.f32.mrb[0].mxu0
  %v1073 = vadd.f32 %v723, %v1072
  %v1074 = vpop.f32.mrb[0].mxu0
  %1075 = vmatprep.mubr.f32.mxu0 %v292
  %1076 = vmatmul.mubr.f32.gmra.mrb[0].mxu0 %v291
  %v1077 = vpop.f32.mrb[0].mxu0
  %v1078 = vadd.f32 %v728, %v1077
  %v1079 = vpop.f32.mrb[0].mxu0
  %1080 = vmatprep.mubr.f32.mxu0 %v297
  %1081 = vmatmul.mubr.f32.gmra.mrb[0].mxu0 %v296
  %v1082 = vpop.f32.mrb[0].mxu0
  %v1083 = vadd.f32 %v733, %v1082
  %v1084 = vpop.f32.mrb[0].mxu0
  %1085 = vdwg.mxu0
  %1086 = vmatprep.subr.mxu0 0.0
  %1087 = vmatpush1.msra.mxu0 %v363
  %1088 = vmatprep.subr.mxu0 0.0
  %1089 = vmatpush1.msra.mxu0 %v364
  %1090 = vmatprep.subr.mxu0 0.0
  %1091 = vmatpush1.msra.mxu0 %v365
  %1092 = vmatprep.subr.mxu0 0.0
  %1093 = vmatpush1.msra.mxu0 %v366
  %1094 = vmatprep.subr.mxu0 0.0
  %1095 = vmatpush1.msra.mxu0 %v367
  %1096 = vmatprep.subr.mxu0 0.0
  %1097 = vmatpush1.msra.mxu0 %v368
  %1098 = vmatprep.subr.mxu0 0.0
  %1099 = vmatpush1.msra.mxu0 %v369
  %1100 = vmatprep.subr.mxu0 0.0
  %1101 = vmatpush1.msra.mxu0 %v370
  %1102 = vmatprep.subr.mxu0 0.0
  %1103 = vmatpush1.msra.mxu0 %v371
  %1104 = vmatprep.subr.mxu0 0.0
  %1105 = vmatpush1.msra.mxu0 %v372
  %1106 = vmatprep.subr.mxu0 0.0
  %1107 = vmatpush1.msra.mxu0 %v373
  %1108 = vmatprep.subr.mxu0 0.0
  %1109 = vmatpush1.msra.mxu0 %v374
  %1110 = vmatprep.subr.mxu0 0.0
  %1111 = vmatpush1.msra.mxu0 %v375
  %1112 = vmatprep.subr.mxu0 0.0
  %1113 = vmatpush1.msra.mxu0 %v376
  %1114 = vmatprep.subr.mxu0 0.0
  %1115 = vmatpush1.msra.mxu0 %v377
  %1116 = vmatprep.subr.mxu0 0.0
  %1117 = vmatpush1.msra.mxu0 %v378
  %1118 = vmatprep.subr.mxu0 0.0
  %1119 = vmatpush1.msra.mxu0 0.0
  %1120 = vmatprep.subr.mxu0 0.0
  %1121 = vmatpush1.msra.mxu0 0.0
  %1122 = vmatprep.subr.mxu0 0.0
  %1123 = vmatpush1.msra.mxu0 0.0
  %1124 = vmatprep.subr.mxu0 0.0
  %1125 = vmatpush1.msra.mxu0 0.0
  %1126 = vmatprep.subr.mxu0 0.0
  %1127 = vmatpush1.msra.mxu0 0.0
  %1128 = vmatprep.subr.mxu0 0.0
  %1129 = vmatpush1.msra.mxu0 0.0
  %1130 = vmatprep.subr.mxu0 0.0
  %1131 = vmatpush1.msra.mxu0 0.0
  %1132 = vmatprep.subr.mxu0 0.0
  %1133 = vmatpush1.msra.mxu0 0.0
  %1134 = vmatprep.subr.mxu0 0.0
  %1135 = vmatpush1.msra.mxu0 0.0
  %1136 = vmatprep.subr.mxu0 0.0
  %1137 = vmatpush1.msra.mxu0 0.0
  %1138 = vmatprep.subr.mxu0 0.0
  %1139 = vmatpush1.msra.mxu0 0.0
  %1140 = vmatprep.subr.mxu0 0.0
  %1141 = vmatpush1.msra.mxu0 0.0
  %1142 = vmatprep.subr.mxu0 0.0
  %1143 = vmatpush1.msra.mxu0 0.0
  %1144 = vmatprep.subr.mxu0 0.0
  %1145 = vmatpush1.msra.mxu0 0.0
  %1146 = vmatprep.subr.mxu0 0.0
  %1147 = vmatpush1.msra.mxu0 0.0
  %1148 = vmatprep.subr.mxu0 0.0
  %1149 = vmatpush1.msra.mxu0 0.0
  %1150 = vmatprep.mubr.f32.mxu0 0.0
  %1151 = vmatmul.mubr.f32.gmra.mrb[0].mxu0 %v18
  %v1152 = vpop.f32.mrb[0].mxu0
  %v1153 = vadd.f32 %v803, %v1152
  %v1154 = vpop.f32.mrb[0].mxu0
  %1155 = vmatprep.mubr.f32.mxu0 0.0
  %1156 = vmatmul.mubr.f32.gmra.mrb[0].mxu0 %v23
  %v1157 = vpop.f32.mrb[0].mxu0
  %v1158 = vadd.f32 %v808, %v1157
  %v1159 = vpop.f32.mrb[0].mxu0
  %1160 = vmatprep.mubr.f32.mxu0 0.0
  %1161 = vmatmul.mubr.f32.gmra.mrb[0].mxu0 %v28
  %v1162 = vpop.f32.mrb[0].mxu0
  %v1163 = vadd.f32 %v813, %v1162
  %v1164 = vpop.f32.mrb[0].mxu0
  %1165 = vmatprep.mubr.f32.mxu0 0.0
  %1166 = vmatmul.mubr.f32.gmra.mrb[0].mxu0 %v33
  %v1167 = vpop.f32.mrb[0].mxu0
  %v1168 = vadd.f32 %v818, %v1167
  %v1169 = vpop.f32.mrb[0].mxu0
  %1170 = vmatprep.mubr.f32.mxu0 0.0
  %1171 = vmatmul.mubr.f32.gmra.mrb[0].mxu0 %v38
  %v1172 = vpop.f32.mrb[0].mxu0
  %v1173 = vadd.f32 %v823, %v1172
  %v1174 = vpop.f32.mrb[0].mxu0
  %1175 = vmatprep.mubr.f32.mxu0 0.0
  %1176 = vmatmul.mubr.f32.gmra.mrb[0].mxu0 %v43
  %v1177 = vpop.f32.mrb[0].mxu0
  %v1178 = vadd.f32 %v828, %v1177
  %v1179 = vpop.f32.mrb[0].mxu0
  %1180 = vmatprep.mubr.f32.mxu0 0.0
  %1181 = vmatmul.mubr.f32.gmra.mrb[0].mxu0 %v48
  %v1182 = vpop.f32.mrb[0].mxu0
  %v1183 = vadd.f32 %v833, %v1182
  %v1184 = vpop.f32.mrb[0].mxu0
  %1185 = vmatprep.mubr.f32.mxu0 0.0
  %1186 = vmatmul.mubr.f32.gmra.mrb[0].mxu0 %v53
  %v1187 = vpop.f32.mrb[0].mxu0
  %v1188 = vadd.f32 %v838, %v1187
  %v1189 = vpop.f32.mrb[0].mxu0
  %1190 = vmatprep.mubr.f32.mxu0 0.0
  %1191 = vmatmul.mubr.f32.gmra.mrb[0].mxu0 %v58
  %v1192 = vpop.f32.mrb[0].mxu0
  %v1193 = vadd.f32 %v843, %v1192
  %v1194 = vpop.f32.mrb[0].mxu0
  %1195 = vmatprep.mubr.f32.mxu0 0.0
  %1196 = vmatmul.mubr.f32.gmra.mrb[0].mxu0 %v63
  %v1197 = vpop.f32.mrb[0].mxu0
  %v1198 = vadd.f32 %v848, %v1197
  %v1199 = vpop.f32.mrb[0].mxu0
  %1200 = vmatprep.mubr.f32.mxu0 0.0
  %1201 = vmatmul.mubr.f32.gmra.mrb[0].mxu0 %v68
  %v1202 = vpop.f32.mrb[0].mxu0
  %v1203 = vadd.f32 %v853, %v1202
  %v1204 = vpop.f32.mrb[0].mxu0
  %1205 = vmatprep.mubr.f32.mxu0 0.0
  %1206 = vmatmul.mubr.f32.gmra.mrb[0].mxu0 %v73
  %v1207 = vpop.f32.mrb[0].mxu0
  %v1208 = vadd.f32 %v858, %v1207
  %v1209 = vpop.f32.mrb[0].mxu0
  %1210 = vmatprep.mubr.f32.mxu0 0.0
  %1211 = vmatmul.mubr.f32.gmra.mrb[0].mxu0 %v78
  %v1212 = vpop.f32.mrb[0].mxu0
  %v1213 = vadd.f32 %v863, %v1212
  %v1214 = vpop.f32.mrb[0].mxu0
  %1215 = vmatprep.mubr.f32.mxu0 0.0
  %1216 = vmatmul.mubr.f32.gmra.mrb[0].mxu0 %v83
  %v1217 = vpop.f32.mrb[0].mxu0
  %v1218 = vadd.f32 %v868, %v1217
  %v1219 = vpop.f32.mrb[0].mxu0
  %1220 = vmatprep.mubr.f32.mxu0 0.0
  %1221 = vmatmul.mubr.f32.gmra.mrb[0].mxu0 %v88
  %v1222 = vpop.f32.mrb[0].mxu0
  %v1223 = vadd.f32 %v873, %v1222
  %v1224 = vpop.f32.mrb[0].mxu0
  %1225 = vmatprep.mubr.f32.mxu0 0.0
  %1226 = vmatmul.mubr.f32.gmra.mrb[0].mxu0 %v93
  %v1227 = vpop.f32.mrb[0].mxu0
  %v1228 = vadd.f32 %v878, %v1227
  %v1229 = vpop.f32.mrb[0].mxu0
  %1230 = vmatprep.mubr.f32.mxu0 0.0
  %1231 = vmatmul.mubr.f32.gmra.mrb[0].mxu0 %v98
  %v1232 = vpop.f32.mrb[0].mxu0
  %v1233 = vadd.f32 %v883, %v1232
  %v1234 = vpop.f32.mrb[0].mxu0
  %1235 = vmatprep.mubr.f32.mxu0 0.0
  %1236 = vmatmul.mubr.f32.gmra.mrb[0].mxu0 %v103
  %v1237 = vpop.f32.mrb[0].mxu0
  %v1238 = vadd.f32 %v888, %v1237
  %v1239 = vpop.f32.mrb[0].mxu0
  %1240 = vmatprep.mubr.f32.mxu0 0.0
  %1241 = vmatmul.mubr.f32.gmra.mrb[0].mxu0 %v108
  %v1242 = vpop.f32.mrb[0].mxu0
  %v1243 = vadd.f32 %v893, %v1242
  %v1244 = vpop.f32.mrb[0].mxu0
  %1245 = vmatprep.mubr.f32.mxu0 0.0
  %1246 = vmatmul.mubr.f32.gmra.mrb[0].mxu0 %v113
  %v1247 = vpop.f32.mrb[0].mxu0
  %v1248 = vadd.f32 %v898, %v1247
  %v1249 = vpop.f32.mrb[0].mxu0
  %1250 = vmatprep.mubr.f32.mxu0 0.0
  %1251 = vmatmul.mubr.f32.gmra.mrb[0].mxu0 %v118
  %v1252 = vpop.f32.mrb[0].mxu0
  %v1253 = vadd.f32 %v903, %v1252
  %v1254 = vpop.f32.mrb[0].mxu0
  %1255 = vmatprep.mubr.f32.mxu0 0.0
  %1256 = vmatmul.mubr.f32.gmra.mrb[0].mxu0 %v123
  %v1257 = vpop.f32.mrb[0].mxu0
  %v1258 = vadd.f32 %v908, %v1257
  %v1259 = vpop.f32.mrb[0].mxu0
  %1260 = vmatprep.mubr.f32.mxu0 0.0
  %1261 = vmatmul.mubr.f32.gmra.mrb[0].mxu0 %v128
  %v1262 = vpop.f32.mrb[0].mxu0
  %v1263 = vadd.f32 %v913, %v1262
  %v1264 = vpop.f32.mrb[0].mxu0
  %1265 = vmatprep.mubr.f32.mxu0 0.0
  %1266 = vmatmul.mubr.f32.gmra.mrb[0].mxu0 %v133
  %v1267 = vpop.f32.mrb[0].mxu0
  %v1268 = vadd.f32 %v918, %v1267
  %v1269 = vpop.f32.mrb[0].mxu0
  %1270 = vmatprep.mubr.f32.mxu0 0.0
  %1271 = vmatmul.mubr.f32.gmra.mrb[0].mxu0 %v138
  %v1272 = vpop.f32.mrb[0].mxu0
  %v1273 = vadd.f32 %v923, %v1272
  %v1274 = vpop.f32.mrb[0].mxu0
  %1275 = vmatprep.mubr.f32.mxu0 0.0
  %1276 = vmatmul.mubr.f32.gmra.mrb[0].mxu0 %v143
  %v1277 = vpop.f32.mrb[0].mxu0
  %v1278 = vadd.f32 %v928, %v1277
  %v1279 = vpop.f32.mrb[0].mxu0
  %1280 = vmatprep.mubr.f32.mxu0 0.0
  %1281 = vmatmul.mubr.f32.gmra.mrb[0].mxu0 %v148
  %v1282 = vpop.f32.mrb[0].mxu0
  %v1283 = vadd.f32 %v933, %v1282
  %v1284 = vpop.f32.mrb[0].mxu0
  %1285 = vmatprep.mubr.f32.mxu0 0.0
  %1286 = vmatmul.mubr.f32.gmra.mrb[0].mxu0 %v153
  %v1287 = vpop.f32.mrb[0].mxu0
  %v1288 = vadd.f32 %v938, %v1287
  %v1289 = vpop.f32.mrb[0].mxu0
  %1290 = vmatprep.mubr.f32.mxu0 0.0
  %1291 = vmatmul.mubr.f32.gmra.mrb[0].mxu0 %v158
  %v1292 = vpop.f32.mrb[0].mxu0
  %v1293 = vadd.f32 %v943, %v1292
  %v1294 = vpop.f32.mrb[0].mxu0
  %1295 = vmatprep.mubr.f32.mxu0 0.0
  %1296 = vmatmul.mubr.f32.gmra.mrb[0].mxu0 %v163
  %v1297 = vpop.f32.mrb[0].mxu0
  %v1298 = vadd.f32 %v948, %v1297
  %v1299 = vpop.f32.mrb[0].mxu0
  %1300 = vmatprep.mubr.f32.mxu0 0.0
  %1301 = vmatmul.mubr.f32.gmra.mrb[0].mxu0 %v168
  %v1302 = vpop.f32.mrb[0].mxu0
  %v1303 = vadd.f32 %v953, %v1302
  %v1304 = vpop.f32.mrb[0].mxu0
  %1305 = vmatprep.mubr.f32.mxu0 0.0
  %1306 = vmatmul.mubr.f32.gmra.mrb[0].mxu0 %v173
  %v1307 = vpop.f32.mrb[0].mxu0
  %v1308 = vadd.f32 %v958, %v1307
  %v1309 = vpop.f32.mrb[0].mxu0
  %1310 = vmatprep.mubr.f32.mxu0 0.0
  %1311 = vmatmul.mubr.f32.gmra.mrb[0].mxu0 %v178
  %v1312 = vpop.f32.mrb[0].mxu0
  %v1313 = vadd.f32 %v963, %v1312
  %v1314 = vpop.f32.mrb[0].mxu0
  %1315 = vmatprep.mubr.f32.mxu0 0.0
  %1316 = vmatmul.mubr.f32.gmra.mrb[0].mxu0 %v183
  %v1317 = vpop.f32.mrb[0].mxu0
  %v1318 = vadd.f32 %v968, %v1317
  %v1319 = vpop.f32.mrb[0].mxu0
  %1320 = vmatprep.mubr.f32.mxu0 0.0
  %1321 = vmatmul.mubr.f32.gmra.mrb[0].mxu0 %v188
  %v1322 = vpop.f32.mrb[0].mxu0
  %v1323 = vadd.f32 %v973, %v1322
  %v1324 = vpop.f32.mrb[0].mxu0
  %1325 = vmatprep.mubr.f32.mxu0 0.0
  %1326 = vmatmul.mubr.f32.gmra.mrb[0].mxu0 %v193
  %v1327 = vpop.f32.mrb[0].mxu0
  %v1328 = vadd.f32 %v978, %v1327
  %v1329 = vpop.f32.mrb[0].mxu0
  %1330 = vmatprep.mubr.f32.mxu0 0.0
  %1331 = vmatmul.mubr.f32.gmra.mrb[0].mxu0 %v198
  %v1332 = vpop.f32.mrb[0].mxu0
  %v1333 = vadd.f32 %v983, %v1332
  %v1334 = vpop.f32.mrb[0].mxu0
  %1335 = vmatprep.mubr.f32.mxu0 0.0
  %1336 = vmatmul.mubr.f32.gmra.mrb[0].mxu0 %v203
  %v1337 = vpop.f32.mrb[0].mxu0
  %v1338 = vadd.f32 %v988, %v1337
  %v1339 = vpop.f32.mrb[0].mxu0
  %1340 = vmatprep.mubr.f32.mxu0 0.0
  %1341 = vmatmul.mubr.f32.gmra.mrb[0].mxu0 %v208
  %v1342 = vpop.f32.mrb[0].mxu0
  %v1343 = vadd.f32 %v993, %v1342
  %v1344 = vpop.f32.mrb[0].mxu0
  %1345 = vmatprep.mubr.f32.mxu0 0.0
  %1346 = vmatmul.mubr.f32.gmra.mrb[0].mxu0 %v213
  %v1347 = vpop.f32.mrb[0].mxu0
  %v1348 = vadd.f32 %v998, %v1347
  %v1349 = vpop.f32.mrb[0].mxu0
  %1350 = vmatprep.mubr.f32.mxu0 0.0
  %1351 = vmatmul.mubr.f32.gmra.mrb[0].mxu0 %v218
  %v1352 = vpop.f32.mrb[0].mxu0
  %v1353 = vadd.f32 %v1003, %v1352
  %v1354 = vpop.f32.mrb[0].mxu0
  %1355 = vmatprep.mubr.f32.mxu0 0.0
  %1356 = vmatmul.mubr.f32.gmra.mrb[0].mxu0 %v223
  %v1357 = vpop.f32.mrb[0].mxu0
  %v1358 = vadd.f32 %v1008, %v1357
  %v1359 = vpop.f32.mrb[0].mxu0
  %1360 = vmatprep.mubr.f32.mxu0 0.0
  %1361 = vmatmul.mubr.f32.gmra.mrb[0].mxu0 %v228
  %v1362 = vpop.f32.mrb[0].mxu0
  %v1363 = vadd.f32 %v1013, %v1362
  %v1364 = vpop.f32.mrb[0].mxu0
  %1365 = vmatprep.mubr.f32.mxu0 0.0
  %1366 = vmatmul.mubr.f32.gmra.mrb[0].mxu0 %v233
  %v1367 = vpop.f32.mrb[0].mxu0
  %v1368 = vadd.f32 %v1018, %v1367
  %v1369 = vpop.f32.mrb[0].mxu0
  %1370 = vmatprep.mubr.f32.mxu0 0.0
  %1371 = vmatmul.mubr.f32.gmra.mrb[0].mxu0 %v238
  %v1372 = vpop.f32.mrb[0].mxu0
  %v1373 = vadd.f32 %v1023, %v1372
  %v1374 = vpop.f32.mrb[0].mxu0
  %1375 = vmatprep.mubr.f32.mxu0 0.0
  %1376 = vmatmul.mubr.f32.gmra.mrb[0].mxu0 %v243
  %v1377 = vpop.f32.mrb[0].mxu0
  %v1378 = vadd.f32 %v1028, %v1377
  %v1379 = vpop.f32.mrb[0].mxu0
  %1380 = vmatprep.mubr.f32.mxu0 0.0
  %1381 = vmatmul.mubr.f32.gmra.mrb[0].mxu0 %v248
  %v1382 = vpop.f32.mrb[0].mxu0
  %v1383 = vadd.f32 %v1033, %v1382
  %v1384 = vpop.f32.mrb[0].mxu0
  %1385 = vmatprep.mubr.f32.mxu0 0.0
  %1386 = vmatmul.mubr.f32.gmra.mrb[0].mxu0 %v253
  %v1387 = vpop.f32.mrb[0].mxu0
  %v1388 = vadd.f32 %v1038, %v1387
  %v1389 = vpop.f32.mrb[0].mxu0
  %1390 = vmatprep.mubr.f32.mxu0 0.0
  %1391 = vmatmul.mubr.f32.gmra.mrb[0].mxu0 %v258
  %v1392 = vpop.f32.mrb[0].mxu0
  %v1393 = vadd.f32 %v1043, %v1392
  %v1394 = vpop.f32.mrb[0].mxu0
  %1395 = vmatprep.mubr.f32.mxu0 0.0
  %1396 = vmatmul.mubr.f32.gmra.mrb[0].mxu0 %v263
  %v1397 = vpop.f32.mrb[0].mxu0
  %v1398 = vadd.f32 %v1048, %v1397
  %v1399 = vpop.f32.mrb[0].mxu0
  %1400 = vmatprep.mubr.f32.mxu0 0.0
  %1401 = vmatmul.mubr.f32.gmra.mrb[0].mxu0 %v268
  %v1402 = vpop.f32.mrb[0].mxu0
  %v1403 = vadd.f32 %v1053, %v1402
  %v1404 = vpop.f32.mrb[0].mxu0
  %1405 = vmatprep.mubr.f32.mxu0 0.0
  %1406 = vmatmul.mubr.f32.gmra.mrb[0].mxu0 %v273
  %v1407 = vpop.f32.mrb[0].mxu0
  %v1408 = vadd.f32 %v1058, %v1407
  %v1409 = vpop.f32.mrb[0].mxu0
  %1410 = vmatprep.mubr.f32.mxu0 0.0
  %1411 = vmatmul.mubr.f32.gmra.mrb[0].mxu0 %v278
  %v1412 = vpop.f32.mrb[0].mxu0
  %v1413 = vadd.f32 %v1063, %v1412
  %v1414 = vpop.f32.mrb[0].mxu0
  %1415 = vmatprep.mubr.f32.mxu0 0.0
  %1416 = vmatmul.mubr.f32.gmra.mrb[0].mxu0 %v283
  %v1417 = vpop.f32.mrb[0].mxu0
  %v1418 = vadd.f32 %v1068, %v1417
  %v1419 = vpop.f32.mrb[0].mxu0
  %1420 = vmatprep.mubr.f32.mxu0 0.0
  %1421 = vmatmul.mubr.f32.gmra.mrb[0].mxu0 %v288
  %v1422 = vpop.f32.mrb[0].mxu0
  %v1423 = vadd.f32 %v1073, %v1422
  %v1424 = vpop.f32.mrb[0].mxu0
  %1425 = vmatprep.mubr.f32.mxu0 0.0
  %1426 = vmatmul.mubr.f32.gmra.mrb[0].mxu0 %v293
  %v1427 = vpop.f32.mrb[0].mxu0
  %v1428 = vadd.f32 %v1078, %v1427
  %v1429 = vpop.f32.mrb[0].mxu0
  %1430 = vmatprep.mubr.f32.mxu0 0.0
  %1431 = vmatmul.mubr.f32.gmra.mrb[0].mxu0 %v298
  %v1432 = vpop.f32.mrb[0].mxu0
  %v1433 = vadd.f32 %v1083, %v1432
  %v1434 = vpop.f32.mrb[0].mxu0
  %1435 = vdwg.mxu0
  %v1436 = vmax.f32 %v1153, 0.0
  %v1437 = vmax.f32 %v1158, 0.0
  %v1438 = vmax.f32 %v1163, 0.0
  %v1439 = vmax.f32 %v1168, 0.0
  %v1440 = vmax.f32 %v1173, 0.0
  %v1441 = vmax.f32 %v1178, 0.0
  %v1442 = vmax.f32 %v1183, 0.0
  %v1443 = vmax.f32 %v1188, 0.0
  %v1444 = vmax.f32 %v1193, 0.0
  %v1445 = vmax.f32 %v1198, 0.0
  %v1446 = vmax.f32 %v1203, 0.0
  %v1447 = vmax.f32 %v1208, 0.0
  %v1448 = vmax.f32 %v1213, 0.0
  %v1449 = vmax.f32 %v1218, 0.0
  %v1450 = vmax.f32 %v1223, 0.0
  %v1451 = vmax.f32 %v1228, 0.0
  %v1452 = vmax.f32 %v1233, 0.0
  %v1453 = vmax.f32 %v1238, 0.0
  %v1454 = vmax.f32 %v1243, 0.0
  %v1455 = vmax.f32 %v1248, 0.0
  %v1456 = vmax.f32 %v1253, 0.0
  %v1457 = vmax.f32 %v1258, 0.0
  %v1458 = vmax.f32 %v1263, 0.0
  %v1459 = vmax.f32 %v1268, 0.0
  %v1460 = vmax.f32 %v1273, 0.0
  %v1461 = vmax.f32 %v1278, 0.0
  %v1462 = vmax.f32 %v1283, 0.0
  %v1463 = vmax.f32 %v1288, 0.0
  %v1464 = vmax.f32 %v1293, 0.0
  %v1465 = vmax.f32 %v1298, 0.0
  %v1466 = vmax.f32 %v1303, 0.0
  %v1467 = vmax.f32 %v1308, 0.0
  %v1468 = vmax.f32 %v1313, 0.0
  %v1469 = vmax.f32 %v1318, 0.0
  %v1470 = vmax.f32 %v1323, 0.0
  %v1471 = vmax.f32 %v1328, 0.0
  %v1472 = vmax.f32 %v1333, 0.0
  %v1473 = vmax.f32 %v1338, 0.0
  %v1474 = vmax.f32 %v1343, 0.0
  %v1475 = vmax.f32 %v1348, 0.0
  %v1476 = vmax.f32 %v1353, 0.0
  %v1477 = vmax.f32 %v1358, 0.0
  %v1478 = vmax.f32 %v1363, 0.0
  %v1479 = vmax.f32 %v1368, 0.0
  %v1480 = vmax.f32 %v1373, 0.0
  %v1481 = vmax.f32 %v1378, 0.0
  %v1482 = vmax.f32 %v1383, 0.0
  %v1483 = vmax.f32 %v1388, 0.0
  %v1484 = vmax.f32 %v1393, 0.0
  %v1485 = vmax.f32 %v1398, 0.0
  %v1486 = vmax.f32 %v1403, 0.0
  %v1487 = vmax.f32 %v1408, 0.0
  %v1488 = vmax.f32 %v1413, 0.0
  %v1489 = vmax.f32 %v1418, 0.0
  %v1490 = vmax.f32 %v1423, 0.0
  %v1491 = vmax.f32 %v1428, 0.0
  %v1492 = vmax.f32 %v1433, 0.0
  %1493 = vst [vmem:[%s3] sm:$0xff] %v1436
  %1494 = vst [vmem:[%s3 + $0x8] sm:$0xff] %v1437
  %1495 = vst [vmem:[%s3 + $0x10] sm:$0xff] %v1438
  %1496 = vst [vmem:[%s3 + $0x18] sm:$0xff] %v1439
  %1497 = vst [vmem:[%s3 + $0x20] sm:$0xff] %v1440
  %1498 = vst [vmem:[%s3 + $0x28] sm:$0xff] %v1441
  %1499 = vst [vmem:[%s3 + $0x30] sm:$0xff] %v1442
  %1500 = vst [vmem:[%s3 + $0x38] sm:$0xff] %v1443
  %1501 = vst [vmem:[%s3 + $0x40] sm:$0xff] %v1444
  %1502 = vst [vmem:[%s3 + $0x48] sm:$0xff] %v1445
  %1503 = vst [vmem:[%s3 + $0x50] sm:$0xff] %v1446
  %1504 = vst [vmem:[%s3 + $0x58] sm:$0xff] %v1447
  %1505 = vst [vmem:[%s3 + $0x60] sm:$0xff] %v1448
  %1506 = vst [vmem:[%s3 + $0x68] sm:$0xff] %v1449
  %1507 = vst [vmem:[%s3 + $0x70] sm:$0xff] %v1450
  %1508 = vst [vmem:[%s3 + $0x78] sm:$0xff] %v1451
  %1509 = vst [vmem:[%s3 + $0x80] sm:$0xff] %v1452
  %1510 = vst [vmem:[%s3 + $0x88] sm:$0xff] %v1453
  %1511 = vst [vmem:[%s3 + $0x90] sm:$0xff] %v1454
  %1512 = vst [vmem:[%s3 + $0x98] sm:$0xff] %v1455
  %1513 = vst [vmem:[%s3 + $0xa0] sm:$0xff] %v1456
  %1514 = vst [vmem:[%s3 + $0xa8] sm:$0xff] %v1457
  %1515 = vst [vmem:[%s3 + $0xb0] sm:$0xff] %v1458
  %1516 = vst [vmem:[%s3 + $0xb8] sm:$0xff] %v1459
  %1517 = vst [vmem:[%s3 + $0xc0] sm:$0xff] %v1460
  %1518 = vst [vmem:[%s3 + $0xc8] sm:$0xff] %v1461
  %1519 = vst [vmem:[%s3 + $0xd0] sm:$0xff] %v1462
  %1520 = vst [vmem:[%s3 + $0xd8] sm:$0xff] %v1463
  %1521 = vst [vmem:[%s3 + $0xe0] sm:$0xff] %v1464
  %1522 = vst [vmem:[%s3 + $0xe8] sm:$0xff] %v1465
  %1523 = vst [vmem:[%s3 + $0xf0] sm:$0xff] %v1466
  %1524 = vst [vmem:[%s3 + $0xf8] sm:$0xff] %v1467
  %1525 = vst [vmem:[%s3 + $0x100] sm:$0xff] %v1468
  %1526 = vst [vmem:[%s3 + $0x108] sm:$0xff] %v1469
  %1527 = vst [vmem:[%s3 + $0x110] sm:$0xff] %v1470
  %1528 = vst [vmem:[%s3 + $0x118] sm:$0xff] %v1471
  %1529 = vst [vmem:[%s3 + $0x120] sm:$0xff] %v1472
  %1530 = vst [vmem:[%s3 + $0x128] sm:$0xff] %v1473
  %1531 = vst [vmem:[%s3 + $0x130] sm:$0xff] %v1474
  %1532 = vst [vmem:[%s3 + $0x138] sm:$0xff] %v1475
  %1533 = vst [vmem:[%s3 + $0x140] sm:$0xff] %v1476
  %1534 = vst [vmem:[%s3 + $0x148] sm:$0xff] %v1477
  %1535 = vst [vmem:[%s3 + $0x150] sm:$0xff] %v1478
  %1536 = vst [vmem:[%s3 + $0x158] sm:$0xff] %v1479
  %1537 = vst [vmem:[%s3 + $0x160] sm:$0xff] %v1480
  %1538 = vst [vmem:[%s3 + $0x168] sm:$0xff] %v1481
  %1539 = vst [vmem:[%s3 + $0x170] sm:$0xff] %v1482
  %1540 = vst [vmem:[%s3 + $0x178] sm:$0xff] %v1483
  %1541 = vst [vmem:[%s3 + $0x180] sm:$0xff] %v1484
  %1542 = vst [vmem:[%s3 + $0x188] sm:$0xff] %v1485
  %1543 = vst [vmem:[%s3 + $0x190] sm:$0xff] %v1486
  %1544 = vst [vmem:[%s3 + $0x198] sm:$0xff] %v1487
  %1545 = vst [vmem:[%s3 + $0x1a0] sm:$0xff] %v1488
  %1546 = vst [vmem:[%s3 + $0x1a8] sm:$0xff] %v1489
  %1547 = vst [vmem:[%s3 + $0x1b0] sm:$0xff] %v1490
  %1548 = vst [vmem:[%s3 + $0x1b8] sm:$0xff] %v1491
  %1549 = vst [vmem:[%s3 + $0x1c0] sm:$0xff] %v1492
  // Predicated region
  $region14: #{nvidia_model_forward.5} parent=0 // pred_check
    _
  $region15: #{nvidia_model_forward.5} parent=0 // pred_check_branch
    %1551 = sbr.rel (0) target = $region17
  $region16: #{nvidia_model_forward.5} parent=0 // pred_region
    _
  $region17: #{nvidia_model_forward.5} parent=0 // pred_fallthru
    _
  // Predicated region
  $region18: #{nvidia_model_forward.5} parent=0 // pred_check
    _
  $region19: #{nvidia_model_forward.5} parent=0 // pred_check_branch
    %1553 = sbr.rel (0) target = $region21
  $region20: #{nvidia_model_forward.5} parent=0 // pred_region
    _
  $region21: #{nvidia_model_forward.5} parent=0 // pred_fallthru
    _

// kernel: nvidia_model_forward.6
$region0: #{nvidia_model_forward.6}
  #allocation0 [shape = 'u32[]', space=smem, size = 0x4, offset = 0x4, fixed_abs, tag = 'smem constant byte address 0x4 - core index']
  #allocation1 [shape = 'u32[144,128]{1,0:T(1,128)}', space=vmem, size = 0x12000, scoped, tag = 'internal scratch']
  %s0 = inlined_call_operand.vmem [shape: f32[72,1024], index: 0, kind: input, shape index: {}]
  %s1 = inlined_call_operand.vmem [shape: f32[1024,128], index: 1, kind: input, shape index: {}]
  %s2 = inlined_call_operand.vmem [shape: f32[1,128], index: 2, kind: input, shape index: {}]
  %s3 = inlined_call_operand.vmem [shape: f32[72,128], index: 3, kind: output, shape index: {}]
  %s4 = sld [smem:[#allocation0]]
  $region22: #{nvidia_model_forward.6} parent=0
    _
  %s6 = ssub.s32 1, %s4
  %s7 = scalar_select 0, %s6, %s4
  // Predicated region
  $region2: #{nvidia_model_forward.6} parent=0 // pred_check
    _
  $region3: #{nvidia_model_forward.6} parent=0 // pred_check_branch
    %9 = sbr.rel (0) target = $region5
  $region4: #{nvidia_model_forward.6} parent=0 // pred_region
    _
  $region5: #{nvidia_model_forward.6} parent=0 // pred_fallthru
    _
  // Predicated region
  $region6: #{nvidia_model_forward.6} parent=0 // pred_check
    _
  $region7: #{nvidia_model_forward.6} parent=0 // pred_check_branch
    %11 = sbr.rel (0) target = $region9
  $region8: #{nvidia_model_forward.6} parent=0 // pred_region
    _
  $region9: #{nvidia_model_forward.6} parent=0 // pred_fallthru
    _
  // Predicated region
  $region10: #{nvidia_model_forward.6} parent=0 // pred_check
    _
  $region11: #{nvidia_model_forward.6} parent=0 // pred_check_branch
    %13 = sbr.rel (0) target = $region13
  $region12: #{nvidia_model_forward.6} parent=0 // pred_region
    _
  $region13: #{nvidia_model_forward.6} parent=0 // pred_fallthru
    _
  %v14 = vld [vmem:[%s0] sm:$0xff]
  %v15 = vld [vmem:[%s0 + $0x8] sm:$0xff]
  %v16 = vld [vmem:[%s0 + $0x10] sm:$0xff]
  %v17 = vld [vmem:[%s0 + $0x18] sm:$0xff]
  %v18 = vld [vmem:[%s0 + $0x20] sm:$0xff]
  %v19 = vld [vmem:[%s0 + $0x28] sm:$0xff]
  %v20 = vld [vmem:[%s0 + $0x30] sm:$0xff]
  %v21 = vld [vmem:[%s0 + $0x38] sm:$0xff]
  %v22 = vld [vmem:[%s0 + $0x40] sm:$0xff]
  %v23 = vld [vmem:[%s0 + $0x48] sm:$0xff]
  %v24 = vld [vmem:[%s0 + $0x50] sm:$0xff]
  %v25 = vld [vmem:[%s0 + $0x58] sm:$0xff]
  %v26 = vld [vmem:[%s0 + $0x60] sm:$0xff]
  %v27 = vld [vmem:[%s0 + $0x68] sm:$0xff]
  %v28 = vld [vmem:[%s0 + $0x70] sm:$0xff]
  %v29 = vld [vmem:[%s0 + $0x78] sm:$0xff]
  %v30 = vld [vmem:[%s0 + $0x80] sm:$0xff]
  %v31 = vld [vmem:[%s0 + $0x88] sm:$0xff]
  %v32 = vld [vmem:[%s0 + $0x90] sm:$0xff]
  %v33 = vld [vmem:[%s0 + $0x98] sm:$0xff]
  %v34 = vld [vmem:[%s0 + $0xa0] sm:$0xff]
  %v35 = vld [vmem:[%s0 + $0xa8] sm:$0xff]
  %v36 = vld [vmem:[%s0 + $0xb0] sm:$0xff]
  %v37 = vld [vmem:[%s0 + $0xb8] sm:$0xff]
  %v38 = vld [vmem:[%s0 + $0xc0] sm:$0xff]
  %v39 = vld [vmem:[%s0 + $0xc8] sm:$0xff]
  %v40 = vld [vmem:[%s0 + $0xd0] sm:$0xff]
  %v41 = vld [vmem:[%s0 + $0xd8] sm:$0xff]
  %v42 = vld [vmem:[%s0 + $0xe0] sm:$0xff]
  %v43 = vld [vmem:[%s0 + $0xe8] sm:$0xff]
  %v44 = vld [vmem:[%s0 + $0xf0] sm:$0xff]
  %v45 = vld [vmem:[%s0 + $0xf8] sm:$0xff]
  %v46 = vld [vmem:[%s0 + $0x100] sm:$0xff]
  %v47 = vld [vmem:[%s0 + $0x108] sm:$0xff]
  %v48 = vld [vmem:[%s0 + $0x110] sm:$0xff]
  %v49 = vld [vmem:[%s0 + $0x118] sm:$0xff]
  %v50 = vld [vmem:[%s0 + $0x120] sm:$0xff]
  %v51 = vld [vmem:[%s0 + $0x128] sm:$0xff]
  %v52 = vld [vmem:[%s0 + $0x130] sm:$0xff]
  %v53 = vld [vmem:[%s0 + $0x138] sm:$0xff]
  %v54 = vld [vmem:[%s0 + $0x140] sm:$0xff]
  %v55 = vld [vmem:[%s0 + $0x148] sm:$0xff]
  %v56 = vld [vmem:[%s0 + $0x150] sm:$0xff]
  %v57 = vld [vmem:[%s0 + $0x158] sm:$0xff]
  %v58 = vld [vmem:[%s0 + $0x160] sm:$0xff]
  %v59 = vld [vmem:[%s0 + $0x168] sm:$0xff]
  %v60 = vld [vmem:[%s0 + $0x170] sm:$0xff]
  %v61 = vld [vmem:[%s0 + $0x178] sm:$0xff]
  %v62 = vld [vmem:[%s0 + $0x180] sm:$0xff]
  %v63 = vld [vmem:[%s0 + $0x188] sm:$0xff]
  %v64 = vld [vmem:[%s0 + $0x190] sm:$0xff]
  %v65 = vld [vmem:[%s0 + $0x198] sm:$0xff]
  %v66 = vld [vmem:[%s0 + $0x1a0] sm:$0xff]
  %v67 = vld [vmem:[%s0 + $0x1a8] sm:$0xff]
  %v68 = vld [vmem:[%s0 + $0x1b0] sm:$0xff]
  %v69 = vld [vmem:[%s0 + $0x1b8] sm:$0xff]
  %v70 = vld [vmem:[%s0 + $0x1c0] sm:$0xff]
  %v71 = vld [vmem:[%s0 + $0x1c8] sm:$0xff]
  %v72 = vld [vmem:[%s0 + $0x1d0] sm:$0xff]
  %v73 = vld [vmem:[%s0 + $0x1d8] sm:$0xff]
  %v74 = vld [vmem:[%s0 + $0x1e0] sm:$0xff]
  %v75 = vld [vmem:[%s0 + $0x1e8] sm:$0xff]
  %v76 = vld [vmem:[%s0 + $0x1f0] sm:$0xff]
  %v77 = vld [vmem:[%s0 + $0x1f8] sm:$0xff]
  %v78 = vld [vmem:[%s0 + $0x200] sm:$0xff]
  %v79 = vld [vmem:[%s0 + $0x208] sm:$0xff]
  %v80 = vld [vmem:[%s0 + $0x210] sm:$0xff]
  %v81 = vld [vmem:[%s0 + $0x218] sm:$0xff]
  %v82 = vld [vmem:[%s0 + $0x220] sm:$0xff]
  %v83 = vld [vmem:[%s0 + $0x228] sm:$0xff]
  %v84 = vld [vmem:[%s0 + $0x230] sm:$0xff]
  %v85 = vld [vmem:[%s0 + $0x238] sm:$0xff]
  %v86 = vld [vmem:[%s1] sm:$0xff]
  %v87 = vld [vmem:[%s1 + $0x8] sm:$0xff]
  %v88 = vld [vmem:[%s1 + $0x10] sm:$0xff]
  %v89 = vld [vmem:[%s1 + $0x18] sm:$0xff]
  %v90 = vld [vmem:[%s1 + $0x20] sm:$0xff]
  %v91 = vld [vmem:[%s1 + $0x28] sm:$0xff]
  %v92 = vld [vmem:[%s1 + $0x30] sm:$0xff]
  %v93 = vld [vmem:[%s1 + $0x38] sm:$0xff]
  %v94 = vld [vmem:[%s1 + $0x40] sm:$0xff]
  %v95 = vld [vmem:[%s1 + $0x48] sm:$0xff]
  %v96 = vld [vmem:[%s1 + $0x50] sm:$0xff]
  %v97 = vld [vmem:[%s1 + $0x58] sm:$0xff]
  %v98 = vld [vmem:[%s1 + $0x60] sm:$0xff]
  %v99 = vld [vmem:[%s1 + $0x68] sm:$0xff]
  %v100 = vld [vmem:[%s1 + $0x70] sm:$0xff]
  %v101 = vld [vmem:[%s1 + $0x78] sm:$0xff]
  %v102 = vld [vmem:[%s1 + $0x80] sm:$0xff]
  %v103 = vld [vmem:[%s1 + $0x88] sm:$0xff]
  %v104 = vld [vmem:[%s1 + $0x90] sm:$0xff]
  %v105 = vld [vmem:[%s1 + $0x98] sm:$0xff]
  %v106 = vld [vmem:[%s1 + $0xa0] sm:$0xff]
  %v107 = vld [vmem:[%s1 + $0xa8] sm:$0xff]
  %v108 = vld [vmem:[%s1 + $0xb0] sm:$0xff]
  %v109 = vld [vmem:[%s1 + $0xb8] sm:$0xff]
  %v110 = vld [vmem:[%s1 + $0xc0] sm:$0xff]
  %v111 = vld [vmem:[%s1 + $0xc8] sm:$0xff]
  %v112 = vld [vmem:[%s1 + $0xd0] sm:$0xff]
  %v113 = vld [vmem:[%s1 + $0xd8] sm:$0xff]
  %v114 = vld [vmem:[%s1 + $0xe0] sm:$0xff]
  %v115 = vld [vmem:[%s1 + $0xe8] sm:$0xff]
  %v116 = vld [vmem:[%s1 + $0xf0] sm:$0xff]
  %v117 = vld [vmem:[%s1 + $0xf8] sm:$0xff]
  %v118 = vld [vmem:[%s1 + $0x100] sm:$0xff]
  %v119 = vld [vmem:[%s1 + $0x108] sm:$0xff]
  %v120 = vld [vmem:[%s1 + $0x110] sm:$0xff]
  %v121 = vld [vmem:[%s1 + $0x118] sm:$0xff]
  %v122 = vld [vmem:[%s1 + $0x120] sm:$0xff]
  %v123 = vld [vmem:[%s1 + $0x128] sm:$0xff]
  %v124 = vld [vmem:[%s1 + $0x130] sm:$0xff]
  %v125 = vld [vmem:[%s1 + $0x138] sm:$0xff]
  %v126 = vld [vmem:[%s1 + $0x140] sm:$0xff]
  %v127 = vld [vmem:[%s1 + $0x148] sm:$0xff]
  %v128 = vld [vmem:[%s1 + $0x150] sm:$0xff]
  %v129 = vld [vmem:[%s1 + $0x158] sm:$0xff]
  %v130 = vld [vmem:[%s1 + $0x160] sm:$0xff]
  %v131 = vld [vmem:[%s1 + $0x168] sm:$0xff]
  %v132 = vld [vmem:[%s1 + $0x170] sm:$0xff]
  %v133 = vld [vmem:[%s1 + $0x178] sm:$0xff]
  %v134 = vld [vmem:[%s1 + $0x180] sm:$0xff]
  %v135 = vld [vmem:[%s1 + $0x188] sm:$0xff]
  %v136 = vld [vmem:[%s1 + $0x190] sm:$0xff]
  %v137 = vld [vmem:[%s1 + $0x198] sm:$0xff]
  %v138 = vld [vmem:[%s1 + $0x1a0] sm:$0xff]
  %v139 = vld [vmem:[%s1 + $0x1a8] sm:$0xff]
  %v140 = vld [vmem:[%s1 + $0x1b0] sm:$0xff]
  %v141 = vld [vmem:[%s1 + $0x1b8] sm:$0xff]
  %v142 = vld [vmem:[%s1 + $0x1c0] sm:$0xff]
  %v143 = vld [vmem:[%s1 + $0x1c8] sm:$0xff]
  %v144 = vld [vmem:[%s1 + $0x1d0] sm:$0xff]
  %v145 = vld [vmem:[%s1 + $0x1d8] sm:$0xff]
  %v146 = vld [vmem:[%s1 + $0x1e0] sm:$0xff]
  %v147 = vld [vmem:[%s1 + $0x1e8] sm:$0xff]
  %v148 = vld [vmem:[%s1 + $0x1f0] sm:$0xff]
  %v149 = vld [vmem:[%s1 + $0x1f8] sm:$0xff]
  %v150 = vld [vmem:[%s1 + $0x200] sm:$0xff]
  %v151 = vld [vmem:[%s1 + $0x208] sm:$0xff]
  %v152 = vld [vmem:[%s1 + $0x210] sm:$0xff]
  %v153 = vld [vmem:[%s1 + $0x218] sm:$0xff]
  %v154 = vld [vmem:[%s1 + $0x220] sm:$0xff]
  %v155 = vld [vmem:[%s1 + $0x228] sm:$0xff]
  %v156 = vld [vmem:[%s1 + $0x230] sm:$0xff]
  %v157 = vld [vmem:[%s1 + $0x238] sm:$0xff]
  %v158 = vld [vmem:[%s1 + $0x240] sm:$0xff]
  %v159 = vld [vmem:[%s1 + $0x248] sm:$0xff]
  %v160 = vld [vmem:[%s1 + $0x250] sm:$0xff]
  %v161 = vld [vmem:[%s1 + $0x258] sm:$0xff]
  %v162 = vld [vmem:[%s1 + $0x260] sm:$0xff]
  %v163 = vld [vmem:[%s1 + $0x268] sm:$0xff]
  %v164 = vld [vmem:[%s1 + $0x270] sm:$0xff]
  %v165 = vld [vmem:[%s1 + $0x278] sm:$0xff]
  %v166 = vld [vmem:[%s1 + $0x280] sm:$0xff]
  %v167 = vld [vmem:[%s1 + $0x288] sm:$0xff]
  %v168 = vld [vmem:[%s1 + $0x290] sm:$0xff]
  %v169 = vld [vmem:[%s1 + $0x298] sm:$0xff]
  %v170 = vld [vmem:[%s1 + $0x2a0] sm:$0xff]
  %v171 = vld [vmem:[%s1 + $0x2a8] sm:$0xff]
  %v172 = vld [vmem:[%s1 + $0x2b0] sm:$0xff]
  %v173 = vld [vmem:[%s1 + $0x2b8] sm:$0xff]
  %v174 = vld [vmem:[%s1 + $0x2c0] sm:$0xff]
  %v175 = vld [vmem:[%s1 + $0x2c8] sm:$0xff]
  %v176 = vld [vmem:[%s1 + $0x2d0] sm:$0xff]
  %v177 = vld [vmem:[%s1 + $0x2d8] sm:$0xff]
  %v178 = vld [vmem:[%s1 + $0x2e0] sm:$0xff]
  %v179 = vld [vmem:[%s1 + $0x2e8] sm:$0xff]
  %v180 = vld [vmem:[%s1 + $0x2f0] sm:$0xff]
  %v181 = vld [vmem:[%s1 + $0x2f8] sm:$0xff]
  %v182 = vld [vmem:[%s1 + $0x300] sm:$0xff]
  %v183 = vld [vmem:[%s1 + $0x308] sm:$0xff]
  %v184 = vld [vmem:[%s1 + $0x310] sm:$0xff]
  %v185 = vld [vmem:[%s1 + $0x318] sm:$0xff]
  %v186 = vld [vmem:[%s1 + $0x320] sm:$0xff]
  %v187 = vld [vmem:[%s1 + $0x328] sm:$0xff]
  %v188 = vld [vmem:[%s1 + $0x330] sm:$0xff]
  %v189 = vld [vmem:[%s1 + $0x338] sm:$0xff]
  %v190 = vld [vmem:[%s1 + $0x340] sm:$0xff]
  %v191 = vld [vmem:[%s1 + $0x348] sm:$0xff]
  %v192 = vld [vmem:[%s1 + $0x350] sm:$0xff]
  %v193 = vld [vmem:[%s1 + $0x358] sm:$0xff]
  %v194 = vld [vmem:[%s1 + $0x360] sm:$0xff]
  %v195 = vld [vmem:[%s1 + $0x368] sm:$0xff]
  %v196 = vld [vmem:[%s1 + $0x370] sm:$0xff]
  %v197 = vld [vmem:[%s1 + $0x378] sm:$0xff]
  %v198 = vld [vmem:[%s1 + $0x380] sm:$0xff]
  %v199 = vld [vmem:[%s1 + $0x388] sm:$0xff]
  %v200 = vld [vmem:[%s1 + $0x390] sm:$0xff]
  %v201 = vld [vmem:[%s1 + $0x398] sm:$0xff]
  %v202 = vld [vmem:[%s1 + $0x3a0] sm:$0xff]
  %v203 = vld [vmem:[%s1 + $0x3a8] sm:$0xff]
  %v204 = vld [vmem:[%s1 + $0x3b0] sm:$0xff]
  %v205 = vld [vmem:[%s1 + $0x3b8] sm:$0xff]
  %v206 = vld [vmem:[%s1 + $0x3c0] sm:$0xff]
  %v207 = vld [vmem:[%s1 + $0x3c8] sm:$0xff]
  %v208 = vld [vmem:[%s1 + $0x3d0] sm:$0xff]
  %v209 = vld [vmem:[%s1 + $0x3d8] sm:$0xff]
  %v210 = vld [vmem:[%s1 + $0x3e0] sm:$0xff]
  %v211 = vld [vmem:[%s1 + $0x3e8] sm:$0xff]
  %v212 = vld [vmem:[%s1 + $0x3f0] sm:$0xff]
  %v213 = vld [vmem:[%s1 + $0x3f8] sm:$0xff]
  %v214 = vld [vmem:[%s2] sm:$0x1]
  %v216 = vlaneseq
  %v217 = vshrl.u32 %v216, 7
  %v218 = vsub.s32 0, %v217
  %v219 = vrot.slane %v214, %v218
  %221 = vmatprep.subr.mxu0 0.0
  %222 = vmatpush1.msra.mxu0 %v86
  %223 = vmatprep.subr.mxu0 0.0
  %224 = vmatpush1.msra.mxu0 %v87
  %225 = vmatprep.subr.mxu0 0.0
  %226 = vmatpush1.msra.mxu0 %v88
  %227 = vmatprep.subr.mxu0 0.0
  %228 = vmatpush1.msra.mxu0 %v89
  %229 = vmatprep.subr.mxu0 0.0
  %230 = vmatpush1.msra.mxu0 %v90
  %231 = vmatprep.subr.mxu0 0.0
  %232 = vmatpush1.msra.mxu0 %v91
  %233 = vmatprep.subr.mxu0 0.0
  %234 = vmatpush1.msra.mxu0 %v92
  %235 = vmatprep.subr.mxu0 0.0
  %236 = vmatpush1.msra.mxu0 %v93
  %237 = vmatprep.subr.mxu0 0.0
  %238 = vmatpush1.msra.mxu0 %v94
  %239 = vmatprep.subr.mxu0 0.0
  %240 = vmatpush1.msra.mxu0 %v95
  %241 = vmatprep.subr.mxu0 0.0
  %242 = vmatpush1.msra.mxu0 %v96
  %243 = vmatprep.subr.mxu0 0.0
  %244 = vmatpush1.msra.mxu0 %v97
  %245 = vmatprep.subr.mxu0 0.0
  %246 = vmatpush1.msra.mxu0 %v98
  %247 = vmatprep.subr.mxu0 0.0
  %248 = vmatpush1.msra.mxu0 %v99
  %249 = vmatprep.subr.mxu0 0.0
  %250 = vmatpush1.msra.mxu0 %v100
  %251 = vmatprep.subr.mxu0 0.0
  %252 = vmatpush1.msra.mxu0 %v101
  %253 = vmatprep.subr.mxu0 0.0
  %254 = vmatpush1.msra.mxu0 %v102
  %255 = vmatprep.subr.mxu0 0.0
  %256 = vmatpush1.msra.mxu0 %v103
  %257 = vmatprep.subr.mxu0 0.0
  %258 = vmatpush1.msra.mxu0 %v104
  %259 = vmatprep.subr.mxu0 0.0
  %260 = vmatpush1.msra.mxu0 %v105
  %261 = vmatprep.subr.mxu0 0.0
  %262 = vmatpush1.msra.mxu0 %v106
  %263 = vmatprep.subr.mxu0 0.0
  %264 = vmatpush1.msra.mxu0 %v107
  %265 = vmatprep.subr.mxu0 0.0
  %266 = vmatpush1.msra.mxu0 %v108
  %267 = vmatprep.subr.mxu0 0.0
  %268 = vmatpush1.msra.mxu0 %v109
  %269 = vmatprep.subr.mxu0 0.0
  %270 = vmatpush1.msra.mxu0 %v110
  %271 = vmatprep.subr.mxu0 0.0
  %272 = vmatpush1.msra.mxu0 %v111
  %273 = vmatprep.subr.mxu0 0.0
  %274 = vmatpush1.msra.mxu0 %v112
  %275 = vmatprep.subr.mxu0 0.0
  %276 = vmatpush1.msra.mxu0 %v113
  %277 = vmatprep.subr.mxu0 0.0
  %278 = vmatpush1.msra.mxu0 %v114
  %279 = vmatprep.subr.mxu0 0.0
  %280 = vmatpush1.msra.mxu0 %v115
  %281 = vmatprep.subr.mxu0 0.0
  %282 = vmatpush1.msra.mxu0 %v116
  %283 = vmatprep.subr.mxu0 0.0
  %284 = vmatpush1.msra.mxu0 %v117
  %285 = vmatprep.mubr.f32.mxu0 %v15
  %286 = vmatmul.mubr.f32.gmra.mrb[0].mxu0 %v14
  %v287 = vpop.f32.mrb[0].mxu0
  %v288 = vadd.f32 %v219, %v287
  %v289 = vpop.f32.mrb[0].mxu0
  %290 = vmatprep.mubr.f32.mxu0 %v23
  %291 = vmatmul.mubr.f32.gmra.mrb[0].mxu0 %v22
  %v292 = vpop.f32.mrb[0].mxu0
  %v293 = vadd.f32 %v219, %v292
  %v294 = vpop.f32.mrb[0].mxu0
  %295 = vmatprep.mubr.f32.mxu0 %v31
  %296 = vmatmul.mubr.f32.gmra.mrb[0].mxu0 %v30
  %v297 = vpop.f32.mrb[0].mxu0
  %v298 = vadd.f32 %v219, %v297
  %v299 = vpop.f32.mrb[0].mxu0
  %300 = vmatprep.mubr.f32.mxu0 %v39
  %301 = vmatmul.mubr.f32.gmra.mrb[0].mxu0 %v38
  %v302 = vpop.f32.mrb[0].mxu0
  %v303 = vadd.f32 %v219, %v302
  %v304 = vpop.f32.mrb[0].mxu0
  %305 = vmatprep.mubr.f32.mxu0 %v47
  %306 = vmatmul.mubr.f32.gmra.mrb[0].mxu0 %v46
  %v307 = vpop.f32.mrb[0].mxu0
  %v308 = vadd.f32 %v219, %v307
  %v309 = vpop.f32.mrb[0].mxu0
  %310 = vmatprep.mubr.f32.mxu0 %v55
  %311 = vmatmul.mubr.f32.gmra.mrb[0].mxu0 %v54
  %v312 = vpop.f32.mrb[0].mxu0
  %v313 = vadd.f32 %v219, %v312
  %v314 = vpop.f32.mrb[0].mxu0
  %315 = vmatprep.mubr.f32.mxu0 %v63
  %316 = vmatmul.mubr.f32.gmra.mrb[0].mxu0 %v62
  %v317 = vpop.f32.mrb[0].mxu0
  %v318 = vadd.f32 %v219, %v317
  %v319 = vpop.f32.mrb[0].mxu0
  %320 = vmatprep.mubr.f32.mxu0 %v71
  %321 = vmatmul.mubr.f32.gmra.mrb[0].mxu0 %v70
  %v322 = vpop.f32.mrb[0].mxu0
  %v323 = vadd.f32 %v219, %v322
  %v324 = vpop.f32.mrb[0].mxu0
  %325 = vmatprep.mubr.f32.mxu0 %v79
  %326 = vmatmul.mubr.f32.gmra.mrb[0].mxu0 %v78
  %v327 = vpop.f32.mrb[0].mxu0
  %v328 = vadd.f32 %v219, %v327
  %v329 = vpop.f32.mrb[0].mxu0
  %330 = vdwg.mxu0
  %331 = vmatprep.subr.mxu0 0.0
  %332 = vmatpush1.msra.mxu0 %v118
  %333 = vmatprep.subr.mxu0 0.0
  %334 = vmatpush1.msra.mxu0 %v119
  %335 = vmatprep.subr.mxu0 0.0
  %336 = vmatpush1.msra.mxu0 %v120
  %337 = vmatprep.subr.mxu0 0.0
  %338 = vmatpush1.msra.mxu0 %v121
  %339 = vmatprep.subr.mxu0 0.0
  %340 = vmatpush1.msra.mxu0 %v122
  %341 = vmatprep.subr.mxu0 0.0
  %342 = vmatpush1.msra.mxu0 %v123
  %343 = vmatprep.subr.mxu0 0.0
  %344 = vmatpush1.msra.mxu0 %v124
  %345 = vmatprep.subr.mxu0 0.0
  %346 = vmatpush1.msra.mxu0 %v125
  %347 = vmatprep.subr.mxu0 0.0
  %348 = vmatpush1.msra.mxu0 %v126
  %349 = vmatprep.subr.mxu0 0.0
  %350 = vmatpush1.msra.mxu0 %v127
  %351 = vmatprep.subr.mxu0 0.0
  %352 = vmatpush1.msra.mxu0 %v128
  %353 = vmatprep.subr.mxu0 0.0
  %354 = vmatpush1.msra.mxu0 %v129
  %355 = vmatprep.subr.mxu0 0.0
  %356 = vmatpush1.msra.mxu0 %v130
  %357 = vmatprep.subr.mxu0 0.0
  %358 = vmatpush1.msra.mxu0 %v131
  %359 = vmatprep.subr.mxu0 0.0
  %360 = vmatpush1.msra.mxu0 %v132
  %361 = vmatprep.subr.mxu0 0.0
  %362 = vmatpush1.msra.mxu0 %v133
  %363 = vmatprep.subr.mxu0 0.0
  %364 = vmatpush1.msra.mxu0 %v134
  %365 = vmatprep.subr.mxu0 0.0
  %366 = vmatpush1.msra.mxu0 %v135
  %367 = vmatprep.subr.mxu0 0.0
  %368 = vmatpush1.msra.mxu0 %v136
  %369 = vmatprep.subr.mxu0 0.0
  %370 = vmatpush1.msra.mxu0 %v137
  %371 = vmatprep.subr.mxu0 0.0
  %372 = vmatpush1.msra.mxu0 %v138
  %373 = vmatprep.subr.mxu0 0.0
  %374 = vmatpush1.msra.mxu0 %v139
  %375 = vmatprep.subr.mxu0 0.0
  %376 = vmatpush1.msra.mxu0 %v140
  %377 = vmatprep.subr.mxu0 0.0
  %378 = vmatpush1.msra.mxu0 %v141
  %379 = vmatprep.subr.mxu0 0.0
  %380 = vmatpush1.msra.mxu0 %v142
  %381 = vmatprep.subr.mxu0 0.0
  %382 = vmatpush1.msra.mxu0 %v143
  %383 = vmatprep.subr.mxu0 0.0
  %384 = vmatpush1.msra.mxu0 %v144
  %385 = vmatprep.subr.mxu0 0.0
  %386 = vmatpush1.msra.mxu0 %v145
  %387 = vmatprep.subr.mxu0 0.0
  %388 = vmatpush1.msra.mxu0 %v146
  %389 = vmatprep.subr.mxu0 0.0
  %390 = vmatpush1.msra.mxu0 %v147
  %391 = vmatprep.subr.mxu0 0.0
  %392 = vmatpush1.msra.mxu0 %v148
  %393 = vmatprep.subr.mxu0 0.0
  %394 = vmatpush1.msra.mxu0 %v149
  %395 = vmatprep.mubr.f32.mxu0 %v17
  %396 = vmatmul.mubr.f32.gmra.mrb[0].mxu0 %v16
  %v397 = vpop.f32.mrb[0].mxu0
  %v398 = vadd.f32 %v288, %v397
  %v399 = vpop.f32.mrb[0].mxu0
  %400 = vmatprep.mubr.f32.mxu0 %v25
  %401 = vmatmul.mubr.f32.gmra.mrb[0].mxu0 %v24
  %v402 = vpop.f32.mrb[0].mxu0
  %v403 = vadd.f32 %v293, %v402
  %v404 = vpop.f32.mrb[0].mxu0
  %405 = vmatprep.mubr.f32.mxu0 %v33
  %406 = vmatmul.mubr.f32.gmra.mrb[0].mxu0 %v32
  %v407 = vpop.f32.mrb[0].mxu0
  %v408 = vadd.f32 %v298, %v407
  %v409 = vpop.f32.mrb[0].mxu0
  %410 = vmatprep.mubr.f32.mxu0 %v41
  %411 = vmatmul.mubr.f32.gmra.mrb[0].mxu0 %v40
  %v412 = vpop.f32.mrb[0].mxu0
  %v413 = vadd.f32 %v303, %v412
  %v414 = vpop.f32.mrb[0].mxu0
  %415 = vmatprep.mubr.f32.mxu0 %v49
  %416 = vmatmul.mubr.f32.gmra.mrb[0].mxu0 %v48
  %v417 = vpop.f32.mrb[0].mxu0
  %v418 = vadd.f32 %v308, %v417
  %v419 = vpop.f32.mrb[0].mxu0
  %420 = vmatprep.mubr.f32.mxu0 %v57
  %421 = vmatmul.mubr.f32.gmra.mrb[0].mxu0 %v56
  %v422 = vpop.f32.mrb[0].mxu0
  %v423 = vadd.f32 %v313, %v422
  %v424 = vpop.f32.mrb[0].mxu0
  %425 = vmatprep.mubr.f32.mxu0 %v65
  %426 = vmatmul.mubr.f32.gmra.mrb[0].mxu0 %v64
  %v427 = vpop.f32.mrb[0].mxu0
  %v428 = vadd.f32 %v318, %v427
  %v429 = vpop.f32.mrb[0].mxu0
  %430 = vmatprep.mubr.f32.mxu0 %v73
  %431 = vmatmul.mubr.f32.gmra.mrb[0].mxu0 %v72
  %v432 = vpop.f32.mrb[0].mxu0
  %v433 = vadd.f32 %v323, %v432
  %v434 = vpop.f32.mrb[0].mxu0
  %435 = vmatprep.mubr.f32.mxu0 %v81
  %436 = vmatmul.mubr.f32.gmra.mrb[0].mxu0 %v80
  %v437 = vpop.f32.mrb[0].mxu0
  %v438 = vadd.f32 %v328, %v437
  %v439 = vpop.f32.mrb[0].mxu0
  %440 = vdwg.mxu0
  %441 = vmatprep.subr.mxu0 0.0
  %442 = vmatpush1.msra.mxu0 %v150
  %443 = vmatprep.subr.mxu0 0.0
  %444 = vmatpush1.msra.mxu0 %v151
  %445 = vmatprep.subr.mxu0 0.0
  %446 = vmatpush1.msra.mxu0 %v152
  %447 = vmatprep.subr.mxu0 0.0
  %448 = vmatpush1.msra.mxu0 %v153
  %449 = vmatprep.subr.mxu0 0.0
  %450 = vmatpush1.msra.mxu0 %v154
  %451 = vmatprep.subr.mxu0 0.0
  %452 = vmatpush1.msra.mxu0 %v155
  %453 = vmatprep.subr.mxu0 0.0
  %454 = vmatpush1.msra.mxu0 %v156
  %455 = vmatprep.subr.mxu0 0.0
  %456 = vmatpush1.msra.mxu0 %v157
  %457 = vmatprep.subr.mxu0 0.0
  %458 = vmatpush1.msra.mxu0 %v158
  %459 = vmatprep.subr.mxu0 0.0
  %460 = vmatpush1.msra.mxu0 %v159
  %461 = vmatprep.subr.mxu0 0.0
  %462 = vmatpush1.msra.mxu0 %v160
  %463 = vmatprep.subr.mxu0 0.0
  %464 = vmatpush1.msra.mxu0 %v161
  %465 = vmatprep.subr.mxu0 0.0
  %466 = vmatpush1.msra.mxu0 %v162
  %467 = vmatprep.subr.mxu0 0.0
  %468 = vmatpush1.msra.mxu0 %v163
  %469 = vmatprep.subr.mxu0 0.0
  %470 = vmatpush1.msra.mxu0 %v164
  %471 = vmatprep.subr.mxu0 0.0
  %472 = vmatpush1.msra.mxu0 %v165
  %473 = vmatprep.subr.mxu0 0.0
  %474 = vmatpush1.msra.mxu0 %v166
  %475 = vmatprep.subr.mxu0 0.0
  %476 = vmatpush1.msra.mxu0 %v167
  %477 = vmatprep.subr.mxu0 0.0
  %478 = vmatpush1.msra.mxu0 %v168
  %479 = vmatprep.subr.mxu0 0.0
  %480 = vmatpush1.msra.mxu0 %v169
  %481 = vmatprep.subr.mxu0 0.0
  %482 = vmatpush1.msra.mxu0 %v170
  %483 = vmatprep.subr.mxu0 0.0
  %484 = vmatpush1.msra.mxu0 %v171
  %485 = vmatprep.subr.mxu0 0.0
  %486 = vmatpush1.msra.mxu0 %v172
  %487 = vmatprep.subr.mxu0 0.0
  %488 = vmatpush1.msra.mxu0 %v173
  %489 = vmatprep.subr.mxu0 0.0
  %490 = vmatpush1.msra.mxu0 %v174
  %491 = vmatprep.subr.mxu0 0.0
  %492 = vmatpush1.msra.mxu0 %v175
  %493 = vmatprep.subr.mxu0 0.0
  %494 = vmatpush1.msra.mxu0 %v176
  %495 = vmatprep.subr.mxu0 0.0
  %496 = vmatpush1.msra.mxu0 %v177
  %497 = vmatprep.subr.mxu0 0.0
  %498 = vmatpush1.msra.mxu0 %v178
  %499 = vmatprep.subr.mxu0 0.0
  %500 = vmatpush1.msra.mxu0 %v179
  %501 = vmatprep.subr.mxu0 0.0
  %502 = vmatpush1.msra.mxu0 %v180
  %503 = vmatprep.subr.mxu0 0.0
  %504 = vmatpush1.msra.mxu0 %v181
  %505 = vmatprep.mubr.f32.mxu0 %v19
  %506 = vmatmul.mubr.f32.gmra.mrb[0].mxu0 %v18
  %v507 = vpop.f32.mrb[0].mxu0
  %v508 = vadd.f32 %v398, %v507
  %v509 = vpop.f32.mrb[0].mxu0
  %510 = vmatprep.mubr.f32.mxu0 %v27
  %511 = vmatmul.mubr.f32.gmra.mrb[0].mxu0 %v26
  %v512 = vpop.f32.mrb[0].mxu0
  %v513 = vadd.f32 %v403, %v512
  %v514 = vpop.f32.mrb[0].mxu0
  %515 = vmatprep.mubr.f32.mxu0 %v35
  %516 = vmatmul.mubr.f32.gmra.mrb[0].mxu0 %v34
  %v517 = vpop.f32.mrb[0].mxu0
  %v518 = vadd.f32 %v408, %v517
  %v519 = vpop.f32.mrb[0].mxu0
  %520 = vmatprep.mubr.f32.mxu0 %v43
  %521 = vmatmul.mubr.f32.gmra.mrb[0].mxu0 %v42
  %v522 = vpop.f32.mrb[0].mxu0
  %v523 = vadd.f32 %v413, %v522
  %v524 = vpop.f32.mrb[0].mxu0
  %525 = vmatprep.mubr.f32.mxu0 %v51
  %526 = vmatmul.mubr.f32.gmra.mrb[0].mxu0 %v50
  %v527 = vpop.f32.mrb[0].mxu0
  %v528 = vadd.f32 %v418, %v527
  %v529 = vpop.f32.mrb[0].mxu0
  %530 = vmatprep.mubr.f32.mxu0 %v59
  %531 = vmatmul.mubr.f32.gmra.mrb[0].mxu0 %v58
  %v532 = vpop.f32.mrb[0].mxu0
  %v533 = vadd.f32 %v423, %v532
  %v534 = vpop.f32.mrb[0].mxu0
  %535 = vmatprep.mubr.f32.mxu0 %v67
  %536 = vmatmul.mubr.f32.gmra.mrb[0].mxu0 %v66
  %v537 = vpop.f32.mrb[0].mxu0
  %v538 = vadd.f32 %v428, %v537
  %v539 = vpop.f32.mrb[0].mxu0
  %540 = vmatprep.mubr.f32.mxu0 %v75
  %541 = vmatmul.mubr.f32.gmra.mrb[0].mxu0 %v74
  %v542 = vpop.f32.mrb[0].mxu0
  %v543 = vadd.f32 %v433, %v542
  %v544 = vpop.f32.mrb[0].mxu0
  %545 = vmatprep.mubr.f32.mxu0 %v83
  %546 = vmatmul.mubr.f32.gmra.mrb[0].mxu0 %v82
  %v547 = vpop.f32.mrb[0].mxu0
  %v548 = vadd.f32 %v438, %v547
  %v549 = vpop.f32.mrb[0].mxu0
  %550 = vdwg.mxu0
  %551 = vmatprep.subr.mxu0 0.0
  %552 = vmatpush1.msra.mxu0 %v182
  %553 = vmatprep.subr.mxu0 0.0
  %554 = vmatpush1.msra.mxu0 %v183
  %555 = vmatprep.subr.mxu0 0.0
  %556 = vmatpush1.msra.mxu0 %v184
  %557 = vmatprep.subr.mxu0 0.0
  %558 = vmatpush1.msra.mxu0 %v185
  %559 = vmatprep.subr.mxu0 0.0
  %560 = vmatpush1.msra.mxu0 %v186
  %561 = vmatprep.subr.mxu0 0.0
  %562 = vmatpush1.msra.mxu0 %v187
  %563 = vmatprep.subr.mxu0 0.0
  %564 = vmatpush1.msra.mxu0 %v188
  %565 = vmatprep.subr.mxu0 0.0
  %566 = vmatpush1.msra.mxu0 %v189
  %567 = vmatprep.subr.mxu0 0.0
  %568 = vmatpush1.msra.mxu0 %v190
  %569 = vmatprep.subr.mxu0 0.0
  %570 = vmatpush1.msra.mxu0 %v191
  %571 = vmatprep.subr.mxu0 0.0
  %572 = vmatpush1.msra.mxu0 %v192
  %573 = vmatprep.subr.mxu0 0.0
  %574 = vmatpush1.msra.mxu0 %v193
  %575 = vmatprep.subr.mxu0 0.0
  %576 = vmatpush1.msra.mxu0 %v194
  %577 = vmatprep.subr.mxu0 0.0
  %578 = vmatpush1.msra.mxu0 %v195
  %579 = vmatprep.subr.mxu0 0.0
  %580 = vmatpush1.msra.mxu0 %v196
  %581 = vmatprep.subr.mxu0 0.0
  %582 = vmatpush1.msra.mxu0 %v197
  %583 = vmatprep.subr.mxu0 0.0
  %584 = vmatpush1.msra.mxu0 %v198
  %585 = vmatprep.subr.mxu0 0.0
  %586 = vmatpush1.msra.mxu0 %v199
  %587 = vmatprep.subr.mxu0 0.0
  %588 = vmatpush1.msra.mxu0 %v200
  %589 = vmatprep.subr.mxu0 0.0
  %590 = vmatpush1.msra.mxu0 %v201
  %591 = vmatprep.subr.mxu0 0.0
  %592 = vmatpush1.msra.mxu0 %v202
  %593 = vmatprep.subr.mxu0 0.0
  %594 = vmatpush1.msra.mxu0 %v203
  %595 = vmatprep.subr.mxu0 0.0
  %596 = vmatpush1.msra.mxu0 %v204
  %597 = vmatprep.subr.mxu0 0.0
  %598 = vmatpush1.msra.mxu0 %v205
  %599 = vmatprep.subr.mxu0 0.0
  %600 = vmatpush1.msra.mxu0 %v206
  %601 = vmatprep.subr.mxu0 0.0
  %602 = vmatpush1.msra.mxu0 %v207
  %603 = vmatprep.subr.mxu0 0.0
  %604 = vmatpush1.msra.mxu0 %v208
  %605 = vmatprep.subr.mxu0 0.0
  %606 = vmatpush1.msra.mxu0 %v209
  %607 = vmatprep.subr.mxu0 0.0
  %608 = vmatpush1.msra.mxu0 %v210
  %609 = vmatprep.subr.mxu0 0.0
  %610 = vmatpush1.msra.mxu0 %v211
  %611 = vmatprep.subr.mxu0 0.0
  %612 = vmatpush1.msra.mxu0 %v212
  %613 = vmatprep.subr.mxu0 0.0
  %614 = vmatpush1.msra.mxu0 %v213
  %615 = vmatprep.mubr.f32.mxu0 %v21
  %616 = vmatmul.mubr.f32.gmra.mrb[0].mxu0 %v20
  %v617 = vpop.f32.mrb[0].mxu0
  %v618 = vadd.f32 %v508, %v617
  %v619 = vpop.f32.mrb[0].mxu0
  %620 = vmatprep.mubr.f32.mxu0 %v29
  %621 = vmatmul.mubr.f32.gmra.mrb[0].mxu0 %v28
  %v622 = vpop.f32.mrb[0].mxu0
  %v623 = vadd.f32 %v513, %v622
  %v624 = vpop.f32.mrb[0].mxu0
  %625 = vmatprep.mubr.f32.mxu0 %v37
  %626 = vmatmul.mubr.f32.gmra.mrb[0].mxu0 %v36
  %v627 = vpop.f32.mrb[0].mxu0
  %v628 = vadd.f32 %v518, %v627
  %v629 = vpop.f32.mrb[0].mxu0
  %630 = vmatprep.mubr.f32.mxu0 %v45
  %631 = vmatmul.mubr.f32.gmra.mrb[0].mxu0 %v44
  %v632 = vpop.f32.mrb[0].mxu0
  %v633 = vadd.f32 %v523, %v632
  %v634 = vpop.f32.mrb[0].mxu0
  %635 = vmatprep.mubr.f32.mxu0 %v53
  %636 = vmatmul.mubr.f32.gmra.mrb[0].mxu0 %v52
  %v637 = vpop.f32.mrb[0].mxu0
  %v638 = vadd.f32 %v528, %v637
  %v639 = vpop.f32.mrb[0].mxu0
  %640 = vmatprep.mubr.f32.mxu0 %v61
  %641 = vmatmul.mubr.f32.gmra.mrb[0].mxu0 %v60
  %v642 = vpop.f32.mrb[0].mxu0
  %v643 = vadd.f32 %v533, %v642
  %v644 = vpop.f32.mrb[0].mxu0
  %645 = vmatprep.mubr.f32.mxu0 %v69
  %646 = vmatmul.mubr.f32.gmra.mrb[0].mxu0 %v68
  %v647 = vpop.f32.mrb[0].mxu0
  %v648 = vadd.f32 %v538, %v647
  %v649 = vpop.f32.mrb[0].mxu0
  %650 = vmatprep.mubr.f32.mxu0 %v77
  %651 = vmatmul.mubr.f32.gmra.mrb[0].mxu0 %v76
  %v652 = vpop.f32.mrb[0].mxu0
  %v653 = vadd.f32 %v543, %v652
  %v654 = vpop.f32.mrb[0].mxu0
  %655 = vmatprep.mubr.f32.mxu0 %v85
  %656 = vmatmul.mubr.f32.gmra.mrb[0].mxu0 %v84
  %v657 = vpop.f32.mrb[0].mxu0
  %v658 = vadd.f32 %v548, %v657
  %v659 = vpop.f32.mrb[0].mxu0
  %660 = vdwg.mxu0
  %v661 = vmax.f32 %v618, 0.0
  %v662 = vmax.f32 %v623, 0.0
  %v663 = vmax.f32 %v628, 0.0
  %v664 = vmax.f32 %v633, 0.0
  %v665 = vmax.f32 %v638, 0.0
  %v666 = vmax.f32 %v643, 0.0
  %v667 = vmax.f32 %v648, 0.0
  %v668 = vmax.f32 %v653, 0.0
  %v669 = vmax.f32 %v658, 0.0
  %670 = vst [vmem:[%s3] sm:$0xff] %v661
  %671 = vst [vmem:[%s3 + $0x8] sm:$0xff] %v662
  %672 = vst [vmem:[%s3 + $0x10] sm:$0xff] %v663
  %673 = vst [vmem:[%s3 + $0x18] sm:$0xff] %v664
  %674 = vst [vmem:[%s3 + $0x20] sm:$0xff] %v665
  %675 = vst [vmem:[%s3 + $0x28] sm:$0xff] %v666
  %676 = vst [vmem:[%s3 + $0x30] sm:$0xff] %v667
  %677 = vst [vmem:[%s3 + $0x38] sm:$0xff] %v668
  %678 = vst [vmem:[%s3 + $0x40] sm:$0xff] %v669
  // Predicated region
  $region14: #{nvidia_model_forward.6} parent=0 // pred_check
    _
  $region15: #{nvidia_model_forward.6} parent=0 // pred_check_branch
    %680 = sbr.rel (0) target = $region17
  $region16: #{nvidia_model_forward.6} parent=0 // pred_region
    _
  $region17: #{nvidia_model_forward.6} parent=0 // pred_fallthru
    _
  // Predicated region
  $region18: #{nvidia_model_forward.6} parent=0 // pred_check
    _
  $region19: #{nvidia_model_forward.6} parent=0 // pred_check_branch
    %682 = sbr.rel (0) target = $region21
  $region20: #{nvidia_model_forward.6} parent=0 // pred_region
    _
  $region21: #{nvidia_model_forward.6} parent=0 // pred_fallthru
    _

// kernel: nvidia_model_forward.7
$region0: #{nvidia_model_forward.7}
  #allocation0 [shape = 'u32[]', space=smem, size = 0x4, offset = 0x4, fixed_abs, tag = 'smem constant byte address 0x4 - core index']
  #allocation1 [shape = 'u32[144,128]{1,0:T(1,128)}', space=vmem, size = 0x12000, scoped, tag = 'internal scratch']
  %s0 = inlined_call_operand.vmem [shape: f32[72,128], index: 0, kind: input, shape index: {}]
  %s1 = inlined_call_operand.vmem [shape: f32[9,128,64], index: 1, kind: input, shape index: {}]
  %s2 = inlined_call_operand.vmem [shape: f32[1,64], index: 2, kind: input, shape index: {}]
  %s3 = inlined_call_operand.vmem [shape: f32[9,64,64], index: 3, kind: input, shape index: {}]
  %s4 = inlined_call_operand.vmem [shape: f32[1,64], index: 4, kind: input, shape index: {}]
  %s5 = inlined_call_operand.vmem [shape: f32[4,64,128], index: 5, kind: input, shape index: {}]
  %s6 = inlined_call_operand.vmem [shape: f32[1,128], index: 6, kind: input, shape index: {}]
  %s7 = inlined_call_operand.vmem [shape: f32[128,128], index: 7, kind: input, shape index: {}]
  %s8 = inlined_call_operand.vmem [shape: f32[1,128], index: 8, kind: input, shape index: {}]
  %s9 = inlined_call_operand.vmem [shape: f32[128,128], index: 9, kind: input, shape index: {}]
  %s10 = inlined_call_operand.vmem [shape: f32[1,128], index: 10, kind: input, shape index: {}]
  %s11 = inlined_call_operand.vmem [shape: f32[128,128], index: 11, kind: input, shape index: {}]
  %s12 = inlined_call_operand.vmem [shape: f32[1,128], index: 12, kind: input, shape index: {}]
  %s13 = inlined_call_operand.vmem [shape: f32[8,128], index: 13, kind: output, shape index: {}]
  %s14 = sld [smem:[#allocation0]]
  $region62: #{nvidia_model_forward.7} parent=0
    _
  %s16 = ssub.s32 1, %s14
  %s17 = scalar_select 0, %s16, %s14
  // Predicated region
  $region2: #{nvidia_model_forward.7} parent=0 // pred_check
    _
  $region3: #{nvidia_model_forward.7} parent=0 // pred_check_branch
    %19 = sbr.rel (0) target = $region5
  $region4: #{nvidia_model_forward.7} parent=0 // pred_region
    _
  $region5: #{nvidia_model_forward.7} parent=0 // pred_fallthru
    _
  // Predicated region
  $region6: #{nvidia_model_forward.7} parent=0 // pred_check
    _
  $region7: #{nvidia_model_forward.7} parent=0 // pred_check_branch
    %21 = sbr.rel (0) target = $region9
  $region8: #{nvidia_model_forward.7} parent=0 // pred_region
    _
  $region9: #{nvidia_model_forward.7} parent=0 // pred_fallthru
    _
  // Predicated region
  $region10: #{nvidia_model_forward.7} parent=0 // pred_check
    _
  $region11: #{nvidia_model_forward.7} parent=0 // pred_check_branch
    %23 = sbr.rel (0) target = $region13
  $region12: #{nvidia_model_forward.7} parent=0 // pred_region
    _
  $region13: #{nvidia_model_forward.7} parent=0 // pred_fallthru
    _
  // Predicated region
  $region14: #{nvidia_model_forward.7} parent=0 // pred_check
    _
  $region15: #{nvidia_model_forward.7} parent=0 // pred_check_branch
    %25 = sbr.rel (0) target = $region17
  $region16: #{nvidia_model_forward.7} parent=0 // pred_region
    _
  $region17: #{nvidia_model_forward.7} parent=0 // pred_fallthru
    _
  // Predicated region
  $region18: #{nvidia_model_forward.7} parent=0 // pred_check
    _
  $region19: #{nvidia_model_forward.7} parent=0 // pred_check_branch
    %27 = sbr.rel (0) target = $region21
  $region20: #{nvidia_model_forward.7} parent=0 // pred_region
    _
  $region21: #{nvidia_model_forward.7} parent=0 // pred_fallthru
    _
  // Predicated region
  $region22: #{nvidia_model_forward.7} parent=0 // pred_check
    _
  $region23: #{nvidia_model_forward.7} parent=0 // pred_check_branch
    %29 = sbr.rel (0) target = $region25
  $region24: #{nvidia_model_forward.7} parent=0 // pred_region
    _
  $region25: #{nvidia_model_forward.7} parent=0 // pred_fallthru
    _
  // Predicated region
  $region26: #{nvidia_model_forward.7} parent=0 // pred_check
    _
  $region27: #{nvidia_model_forward.7} parent=0 // pred_check_branch
    %31 = sbr.rel (0) target = $region29
  $region28: #{nvidia_model_forward.7} parent=0 // pred_region
    _
  $region29: #{nvidia_model_forward.7} parent=0 // pred_fallthru
    _
  // Predicated region
  $region30: #{nvidia_model_forward.7} parent=0 // pred_check
    _
  $region31: #{nvidia_model_forward.7} parent=0 // pred_check_branch
    %33 = sbr.rel (0) target = $region33
  $region32: #{nvidia_model_forward.7} parent=0 // pred_region
    _
  $region33: #{nvidia_model_forward.7} parent=0 // pred_fallthru
    _
  // Predicated region
  $region34: #{nvidia_model_forward.7} parent=0 // pred_check
    _
  $region35: #{nvidia_model_forward.7} parent=0 // pred_check_branch
    %35 = sbr.rel (0) target = $region37
  $region36: #{nvidia_model_forward.7} parent=0 // pred_region
    _
  $region37: #{nvidia_model_forward.7} parent=0 // pred_fallthru
    _
  // Predicated region
  $region38: #{nvidia_model_forward.7} parent=0 // pred_check
    _
  $region39: #{nvidia_model_forward.7} parent=0 // pred_check_branch
    %37 = sbr.rel (0) target = $region41
  $region40: #{nvidia_model_forward.7} parent=0 // pred_region
    _
  $region41: #{nvidia_model_forward.7} parent=0 // pred_fallthru
    _
  // Predicated region
  $region42: #{nvidia_model_forward.7} parent=0 // pred_check
    _
  $region43: #{nvidia_model_forward.7} parent=0 // pred_check_branch
    %39 = sbr.rel (0) target = $region45
  $region44: #{nvidia_model_forward.7} parent=0 // pred_region
    _
  $region45: #{nvidia_model_forward.7} parent=0 // pred_fallthru
    _
  // Predicated region
  $region46: #{nvidia_model_forward.7} parent=0 // pred_check
    _
  $region47: #{nvidia_model_forward.7} parent=0 // pred_check_branch
    %41 = sbr.rel (0) target = $region49
  $region48: #{nvidia_model_forward.7} parent=0 // pred_region
    _
  $region49: #{nvidia_model_forward.7} parent=0 // pred_fallthru
    _
  // Predicated region
  $region50: #{nvidia_model_forward.7} parent=0 // pred_check
    _
  $region51: #{nvidia_model_forward.7} parent=0 // pred_check_branch
    %43 = sbr.rel (0) target = $region53
  $region52: #{nvidia_model_forward.7} parent=0 // pred_region
    _
  $region53: #{nvidia_model_forward.7} parent=0 // pred_fallthru
    _
  %v44 = vld [vmem:[%s0] sm:$0xff]
  %v45 = vld [vmem:[%s1] sm:$0xff]
  %v46 = vld [vmem:[%s1 + $0x8] sm:$0xff]
  %v47 = vld [vmem:[%s1 + $0x10] sm:$0xff]
  %v48 = vld [vmem:[%s1 + $0x18] sm:$0xff]
  %v49 = vld [vmem:[%s1 + $0x20] sm:$0xff]
  %v50 = vld [vmem:[%s1 + $0x28] sm:$0xff]
  %v51 = vld [vmem:[%s1 + $0x30] sm:$0xff]
  %v52 = vld [vmem:[%s1 + $0x38] sm:$0xff]
  %v53 = vld [vmem:[%s1 + $0x40] sm:$0xff]
  %v54 = vld [vmem:[%s1 + $0x48] sm:$0xff]
  %v55 = vld [vmem:[%s1 + $0x50] sm:$0xff]
  %v56 = vld [vmem:[%s1 + $0x58] sm:$0xff]
  %v57 = vld [vmem:[%s1 + $0x60] sm:$0xff]
  %v58 = vld [vmem:[%s1 + $0x68] sm:$0xff]
  %v59 = vld [vmem:[%s1 + $0x70] sm:$0xff]
  %v60 = vld [vmem:[%s1 + $0x78] sm:$0xff]
  %v61 = vld [vmem:[%s0 + $0x2] sm:$0xff]
  %s62 = scalar_lea.vmem %s1, 128
  %v63 = vld [vmem:[%s62] sm:$0xff]
  %v64 = vld [vmem:[%s62 + $0x8] sm:$0xff]
  %v65 = vld [vmem:[%s62 + $0x10] sm:$0xff]
  %v66 = vld [vmem:[%s62 + $0x18] sm:$0xff]
  %v67 = vld [vmem:[%s62 + $0x20] sm:$0xff]
  %v68 = vld [vmem:[%s62 + $0x28] sm:$0xff]
  %v69 = vld [vmem:[%s62 + $0x30] sm:$0xff]
  %v70 = vld [vmem:[%s62 + $0x38] sm:$0xff]
  %v71 = vld [vmem:[%s62 + $0x40] sm:$0xff]
  %v72 = vld [vmem:[%s62 + $0x48] sm:$0xff]
  %v73 = vld [vmem:[%s62 + $0x50] sm:$0xff]
  %v74 = vld [vmem:[%s62 + $0x58] sm:$0xff]
  %v75 = vld [vmem:[%s62 + $0x60] sm:$0xff]
  %v76 = vld [vmem:[%s62 + $0x68] sm:$0xff]
  %v77 = vld [vmem:[%s62 + $0x70] sm:$0xff]
  %v78 = vld [vmem:[%s62 + $0x78] sm:$0xff]
  %79 = vmatprep.subr.mxu0 0.0
  %80 = vmatpush1.msra.mxu0 %v63
  %81 = vmatprep.subr.mxu0 0.0
  %82 = vmatpush1.msra.mxu0 %v64
  %83 = vmatprep.subr.mxu0 0.0
  %84 = vmatpush1.msra.mxu0 %v65
  %85 = vmatprep.subr.mxu0 0.0
  %86 = vmatpush1.msra.mxu0 %v66
  %87 = vmatprep.subr.mxu0 0.0
  %88 = vmatpush1.msra.mxu0 %v67
  %89 = vmatprep.subr.mxu0 0.0
  %90 = vmatpush1.msra.mxu0 %v68
  %91 = vmatprep.subr.mxu0 0.0
  %92 = vmatpush1.msra.mxu0 %v69
  %93 = vmatprep.subr.mxu0 0.0
  %94 = vmatpush1.msra.mxu0 %v70
  %95 = vmatprep.subr.mxu0 0.0
  %96 = vmatpush1.msra.mxu0 %v71
  %97 = vmatprep.subr.mxu0 0.0
  %98 = vmatpush1.msra.mxu0 %v72
  %99 = vmatprep.subr.mxu0 0.0
  %100 = vmatpush1.msra.mxu0 %v73
  %101 = vmatprep.subr.mxu0 0.0
  %102 = vmatpush1.msra.mxu0 %v74
  %103 = vmatprep.subr.mxu0 0.0
  %104 = vmatpush1.msra.mxu0 %v75
  %105 = vmatprep.subr.mxu0 0.0
  %106 = vmatpush1.msra.mxu0 %v76
  %107 = vmatprep.subr.mxu0 0.0
  %108 = vmatpush1.msra.mxu0 %v77
  %109 = vmatprep.subr.mxu0 0.0
  %110 = vmatpush1.msra.mxu0 %v78
  %111 = vmatprep.subr.mxu0 0.0
  %112 = vmatpush1.msra.mxu0 0.0
  %113 = vmatprep.subr.mxu0 0.0
  %114 = vmatpush1.msra.mxu0 0.0
  %115 = vmatprep.subr.mxu0 0.0
  %116 = vmatpush1.msra.mxu0 0.0
  %117 = vmatprep.subr.mxu0 0.0
  %118 = vmatpush1.msra.mxu0 0.0
  %119 = vmatprep.subr.mxu0 0.0
  %120 = vmatpush1.msra.mxu0 0.0
  %121 = vmatprep.subr.mxu0 0.0
  %122 = vmatpush1.msra.mxu0 0.0
  %123 = vmatprep.subr.mxu0 0.0
  %124 = vmatpush1.msra.mxu0 0.0
  %125 = vmatprep.subr.mxu0 0.0
  %126 = vmatpush1.msra.mxu0 0.0
  %127 = vmatprep.subr.mxu0 0.0
  %128 = vmatpush1.msra.mxu0 0.0
  %129 = vmatprep.subr.mxu0 0.0
  %130 = vmatpush1.msra.mxu0 0.0
  %131 = vmatprep.subr.mxu0 0.0
  %132 = vmatpush1.msra.mxu0 0.0
  %133 = vmatprep.subr.mxu0 0.0
  %134 = vmatpush1.msra.mxu0 0.0
  %135 = vmatprep.subr.mxu0 0.0
  %136 = vmatpush1.msra.mxu0 0.0
  %137 = vmatprep.subr.mxu0 0.0
  %138 = vmatpush1.msra.mxu0 0.0
  %139 = vmatprep.subr.mxu0 0.0
  %140 = vmatpush1.msra.mxu0 0.0
  %141 = vmatprep.subr.mxu0 0.0
  %142 = vmatpush1.msra.mxu0 0.0
  %143 = vmatprep.mubr.f32.mxu0 0.0
  %144 = vmatmul.mubr.f32.gmra.mrb[0].mxu0 %v61
  %v145 = vpop.f32.mrb[0].mxu0
  %v146 = vadd.f32 0.0, %v145
  %v147 = vpop.f32.mrb[0].mxu0
  %148 = vdwg.mxu0
  %149 = vmatprep.subr.mxu0 0.0
  %150 = vmatpush1.msra.mxu0 %v45
  %151 = vmatprep.subr.mxu0 0.0
  %152 = vmatpush1.msra.mxu0 %v46
  %153 = vmatprep.subr.mxu0 0.0
  %154 = vmatpush1.msra.mxu0 %v47
  %155 = vmatprep.subr.mxu0 0.0
  %156 = vmatpush1.msra.mxu0 %v48
  %157 = vmatprep.subr.mxu0 0.0
  %158 = vmatpush1.msra.mxu0 %v49
  %159 = vmatprep.subr.mxu0 0.0
  %160 = vmatpush1.msra.mxu0 %v50
  %161 = vmatprep.subr.mxu0 0.0
  %162 = vmatpush1.msra.mxu0 %v51
  %163 = vmatprep.subr.mxu0 0.0
  %164 = vmatpush1.msra.mxu0 %v52
  %165 = vmatprep.subr.mxu0 0.0
  %166 = vmatpush1.msra.mxu0 %v53
  %167 = vmatprep.subr.mxu0 0.0
  %168 = vmatpush1.msra.mxu0 %v54
  %169 = vmatprep.subr.mxu0 0.0
  %170 = vmatpush1.msra.mxu0 %v55
  %171 = vmatprep.subr.mxu0 0.0
  %172 = vmatpush1.msra.mxu0 %v56
  %173 = vmatprep.subr.mxu0 0.0
  %174 = vmatpush1.msra.mxu0 %v57
  %175 = vmatprep.subr.mxu0 0.0
  %176 = vmatpush1.msra.mxu0 %v58
  %177 = vmatprep.subr.mxu0 0.0
  %178 = vmatpush1.msra.mxu0 %v59
  %179 = vmatprep.subr.mxu0 0.0
  %180 = vmatpush1.msra.mxu0 %v60
  %181 = vmatprep.subr.mxu0 0.0
  %182 = vmatpush1.msra.mxu0 0.0
  %183 = vmatprep.subr.mxu0 0.0
  %184 = vmatpush1.msra.mxu0 0.0
  %185 = vmatprep.subr.mxu0 0.0
  %186 = vmatpush1.msra.mxu0 0.0
  %187 = vmatprep.subr.mxu0 0.0
  %188 = vmatpush1.msra.mxu0 0.0
  %189 = vmatprep.subr.mxu0 0.0
  %190 = vmatpush1.msra.mxu0 0.0
  %191 = vmatprep.subr.mxu0 0.0
  %192 = vmatpush1.msra.mxu0 0.0
  %193 = vmatprep.subr.mxu0 0.0
  %194 = vmatpush1.msra.mxu0 0.0
  %195 = vmatprep.subr.mxu0 0.0
  %196 = vmatpush1.msra.mxu0 0.0
  %197 = vmatprep.subr.mxu0 0.0
  %198 = vmatpush1.msra.mxu0 0.0
  %199 = vmatprep.subr.mxu0 0.0
  %200 = vmatpush1.msra.mxu0 0.0
  %201 = vmatprep.subr.mxu0 0.0
  %202 = vmatpush1.msra.mxu0 0.0
  %203 = vmatprep.subr.mxu0 0.0
  %204 = vmatpush1.msra.mxu0 0.0
  %205 = vmatprep.subr.mxu0 0.0
  %206 = vmatpush1.msra.mxu0 0.0
  %207 = vmatprep.subr.mxu0 0.0
  %208 = vmatpush1.msra.mxu0 0.0
  %209 = vmatprep.subr.mxu0 0.0
  %210 = vmatpush1.msra.mxu0 0.0
  %211 = vmatprep.subr.mxu0 0.0
  %212 = vmatpush1.msra.mxu0 0.0
  %213 = vmatprep.mubr.f32.mxu0 0.0
  %214 = vmatmul.mubr.f32.gmra.mrb[0].mxu0 %v44
  %v215 = vpop.f32.mrb[0].mxu0
  %v216 = vadd.f32 %v146, %v215
  %v217 = vpop.f32.mrb[0].mxu0
  %218 = vdwg.mxu0
  %v219 = vld [vmem:[%s0 + $0x4] sm:$0xff]
  %s220 = scalar_lea.vmem %s1, 256
  %v221 = vld [vmem:[%s220] sm:$0xff]
  %v222 = vld [vmem:[%s220 + $0x8] sm:$0xff]
  %v223 = vld [vmem:[%s220 + $0x10] sm:$0xff]
  %v224 = vld [vmem:[%s220 + $0x18] sm:$0xff]
  %v225 = vld [vmem:[%s220 + $0x20] sm:$0xff]
  %v226 = vld [vmem:[%s220 + $0x28] sm:$0xff]
  %v227 = vld [vmem:[%s220 + $0x30] sm:$0xff]
  %v228 = vld [vmem:[%s220 + $0x38] sm:$0xff]
  %v229 = vld [vmem:[%s220 + $0x40] sm:$0xff]
  %v230 = vld [vmem:[%s220 + $0x48] sm:$0xff]
  %v231 = vld [vmem:[%s220 + $0x50] sm:$0xff]
  %v232 = vld [vmem:[%s220 + $0x58] sm:$0xff]
  %v233 = vld [vmem:[%s220 + $0x60] sm:$0xff]
  %v234 = vld [vmem:[%s220 + $0x68] sm:$0xff]
  %v235 = vld [vmem:[%s220 + $0x70] sm:$0xff]
  %v236 = vld [vmem:[%s220 + $0x78] sm:$0xff]
  %237 = vmatprep.subr.mxu0 0.0
  %238 = vmatpush1.msra.mxu0 %v221
  %239 = vmatprep.subr.mxu0 0.0
  %240 = vmatpush1.msra.mxu0 %v222
  %241 = vmatprep.subr.mxu0 0.0
  %242 = vmatpush1.msra.mxu0 %v223
  %243 = vmatprep.subr.mxu0 0.0
  %244 = vmatpush1.msra.mxu0 %v224
  %245 = vmatprep.subr.mxu0 0.0
  %246 = vmatpush1.msra.mxu0 %v225
  %247 = vmatprep.subr.mxu0 0.0
  %248 = vmatpush1.msra.mxu0 %v226
  %249 = vmatprep.subr.mxu0 0.0
  %250 = vmatpush1.msra.mxu0 %v227
  %251 = vmatprep.subr.mxu0 0.0
  %252 = vmatpush1.msra.mxu0 %v228
  %253 = vmatprep.subr.mxu0 0.0
  %254 = vmatpush1.msra.mxu0 %v229
  %255 = vmatprep.subr.mxu0 0.0
  %256 = vmatpush1.msra.mxu0 %v230
  %257 = vmatprep.subr.mxu0 0.0
  %258 = vmatpush1.msra.mxu0 %v231
  %259 = vmatprep.subr.mxu0 0.0
  %260 = vmatpush1.msra.mxu0 %v232
  %261 = vmatprep.subr.mxu0 0.0
  %262 = vmatpush1.msra.mxu0 %v233
  %263 = vmatprep.subr.mxu0 0.0
  %264 = vmatpush1.msra.mxu0 %v234
  %265 = vmatprep.subr.mxu0 0.0
  %266 = vmatpush1.msra.mxu0 %v235
  %267 = vmatprep.subr.mxu0 0.0
  %268 = vmatpush1.msra.mxu0 %v236
  %269 = vmatprep.subr.mxu0 0.0
  %270 = vmatpush1.msra.mxu0 0.0
  %271 = vmatprep.subr.mxu0 0.0
  %272 = vmatpush1.msra.mxu0 0.0
  %273 = vmatprep.subr.mxu0 0.0
  %274 = vmatpush1.msra.mxu0 0.0
  %275 = vmatprep.subr.mxu0 0.0
  %276 = vmatpush1.msra.mxu0 0.0
  %277 = vmatprep.subr.mxu0 0.0
  %278 = vmatpush1.msra.mxu0 0.0
  %279 = vmatprep.subr.mxu0 0.0
  %280 = vmatpush1.msra.mxu0 0.0
  %281 = vmatprep.subr.mxu0 0.0
  %282 = vmatpush1.msra.mxu0 0.0
  %283 = vmatprep.subr.mxu0 0.0
  %284 = vmatpush1.msra.mxu0 0.0
  %285 = vmatprep.subr.mxu0 0.0
  %286 = vmatpush1.msra.mxu0 0.0
  %287 = vmatprep.subr.mxu0 0.0
  %288 = vmatpush1.msra.mxu0 0.0
  %289 = vmatprep.subr.mxu0 0.0
  %290 = vmatpush1.msra.mxu0 0.0
  %291 = vmatprep.subr.mxu0 0.0
  %292 = vmatpush1.msra.mxu0 0.0
  %293 = vmatprep.subr.mxu0 0.0
  %294 = vmatpush1.msra.mxu0 0.0
  %295 = vmatprep.subr.mxu0 0.0
  %296 = vmatpush1.msra.mxu0 0.0
  %297 = vmatprep.subr.mxu0 0.0
  %298 = vmatpush1.msra.mxu0 0.0
  %299 = vmatprep.subr.mxu0 0.0
  %300 = vmatpush1.msra.mxu0 0.0
  %301 = vmatprep.mubr.f32.mxu0 0.0
  %302 = vmatmul.mubr.f32.gmra.mrb[0].mxu0 %v219
  %v303 = vpop.f32.mrb[0].mxu0
  %v304 = vadd.f32 0.0, %v303
  %v305 = vpop.f32.mrb[0].mxu0
  %306 = vdwg.mxu0
  %v307 = vadd.f32 %v216, %v304
  %v308 = vld [vmem:[%s0 + $0xc] sm:$0xff]
  %s309 = scalar_lea.vmem %s1, 384
  %v310 = vld [vmem:[%s309] sm:$0xff]
  %v311 = vld [vmem:[%s309 + $0x8] sm:$0xff]
  %v312 = vld [vmem:[%s309 + $0x10] sm:$0xff]
  %v313 = vld [vmem:[%s309 + $0x18] sm:$0xff]
  %v314 = vld [vmem:[%s309 + $0x20] sm:$0xff]
  %v315 = vld [vmem:[%s309 + $0x28] sm:$0xff]
  %v316 = vld [vmem:[%s309 + $0x30] sm:$0xff]
  %v317 = vld [vmem:[%s309 + $0x38] sm:$0xff]
  %v318 = vld [vmem:[%s309 + $0x40] sm:$0xff]
  %v319 = vld [vmem:[%s309 + $0x48] sm:$0xff]
  %v320 = vld [vmem:[%s309 + $0x50] sm:$0xff]
  %v321 = vld [vmem:[%s309 + $0x58] sm:$0xff]
  %v322 = vld [vmem:[%s309 + $0x60] sm:$0xff]
  %v323 = vld [vmem:[%s309 + $0x68] sm:$0xff]
  %v324 = vld [vmem:[%s309 + $0x70] sm:$0xff]
  %v325 = vld [vmem:[%s309 + $0x78] sm:$0xff]
  %326 = vmatprep.subr.mxu0 0.0
  %327 = vmatpush1.msra.mxu0 %v310
  %328 = vmatprep.subr.mxu0 0.0
  %329 = vmatpush1.msra.mxu0 %v311
  %330 = vmatprep.subr.mxu0 0.0
  %331 = vmatpush1.msra.mxu0 %v312
  %332 = vmatprep.subr.mxu0 0.0
  %333 = vmatpush1.msra.mxu0 %v313
  %334 = vmatprep.subr.mxu0 0.0
  %335 = vmatpush1.msra.mxu0 %v314
  %336 = vmatprep.subr.mxu0 0.0
  %337 = vmatpush1.msra.mxu0 %v315
  %338 = vmatprep.subr.mxu0 0.0
  %339 = vmatpush1.msra.mxu0 %v316
  %340 = vmatprep.subr.mxu0 0.0
  %341 = vmatpush1.msra.mxu0 %v317
  %342 = vmatprep.subr.mxu0 0.0
  %343 = vmatpush1.msra.mxu0 %v318
  %344 = vmatprep.subr.mxu0 0.0
  %345 = vmatpush1.msra.mxu0 %v319
  %346 = vmatprep.subr.mxu0 0.0
  %347 = vmatpush1.msra.mxu0 %v320
  %348 = vmatprep.subr.mxu0 0.0
  %349 = vmatpush1.msra.mxu0 %v321
  %350 = vmatprep.subr.mxu0 0.0
  %351 = vmatpush1.msra.mxu0 %v322
  %352 = vmatprep.subr.mxu0 0.0
  %353 = vmatpush1.msra.mxu0 %v323
  %354 = vmatprep.subr.mxu0 0.0
  %355 = vmatpush1.msra.mxu0 %v324
  %356 = vmatprep.subr.mxu0 0.0
  %357 = vmatpush1.msra.mxu0 %v325
  %358 = vmatprep.subr.mxu0 0.0
  %359 = vmatpush1.msra.mxu0 0.0
  %360 = vmatprep.subr.mxu0 0.0
  %361 = vmatpush1.msra.mxu0 0.0
  %362 = vmatprep.subr.mxu0 0.0
  %363 = vmatpush1.msra.mxu0 0.0
  %364 = vmatprep.subr.mxu0 0.0
  %365 = vmatpush1.msra.mxu0 0.0
  %366 = vmatprep.subr.mxu0 0.0
  %367 = vmatpush1.msra.mxu0 0.0
  %368 = vmatprep.subr.mxu0 0.0
  %369 = vmatpush1.msra.mxu0 0.0
  %370 = vmatprep.subr.mxu0 0.0
  %371 = vmatpush1.msra.mxu0 0.0
  %372 = vmatprep.subr.mxu0 0.0
  %373 = vmatpush1.msra.mxu0 0.0
  %374 = vmatprep.subr.mxu0 0.0
  %375 = vmatpush1.msra.mxu0 0.0
  %376 = vmatprep.subr.mxu0 0.0
  %377 = vmatpush1.msra.mxu0 0.0
  %378 = vmatprep.subr.mxu0 0.0
  %379 = vmatpush1.msra.mxu0 0.0
  %380 = vmatprep.subr.mxu0 0.0
  %381 = vmatpush1.msra.mxu0 0.0
  %382 = vmatprep.subr.mxu0 0.0
  %383 = vmatpush1.msra.mxu0 0.0
  %384 = vmatprep.subr.mxu0 0.0
  %385 = vmatpush1.msra.mxu0 0.0
  %386 = vmatprep.subr.mxu0 0.0
  %387 = vmatpush1.msra.mxu0 0.0
  %388 = vmatprep.subr.mxu0 0.0
  %389 = vmatpush1.msra.mxu0 0.0
  %390 = vmatprep.mubr.f32.mxu0 0.0
  %391 = vmatmul.mubr.f32.gmra.mrb[0].mxu0 %v308
  %v392 = vpop.f32.mrb[0].mxu0
  %v393 = vadd.f32 0.0, %v392
  %v394 = vpop.f32.mrb[0].mxu0
  %395 = vdwg.mxu0
  %v396 = vadd.f32 %v307, %v393
  %v397 = vld [vmem:[%s0 + $0xe] sm:$0xff]
  %s398 = scalar_lea.vmem %s1, 512
  %v399 = vld [vmem:[%s398] sm:$0xff]
  %v400 = vld [vmem:[%s398 + $0x8] sm:$0xff]
  %v401 = vld [vmem:[%s398 + $0x10] sm:$0xff]
  %v402 = vld [vmem:[%s398 + $0x18] sm:$0xff]
  %v403 = vld [vmem:[%s398 + $0x20] sm:$0xff]
  %v404 = vld [vmem:[%s398 + $0x28] sm:$0xff]
  %v405 = vld [vmem:[%s398 + $0x30] sm:$0xff]
  %v406 = vld [vmem:[%s398 + $0x38] sm:$0xff]
  %v407 = vld [vmem:[%s398 + $0x40] sm:$0xff]
  %v408 = vld [vmem:[%s398 + $0x48] sm:$0xff]
  %v409 = vld [vmem:[%s398 + $0x50] sm:$0xff]
  %v410 = vld [vmem:[%s398 + $0x58] sm:$0xff]
  %v411 = vld [vmem:[%s398 + $0x60] sm:$0xff]
  %v412 = vld [vmem:[%s398 + $0x68] sm:$0xff]
  %v413 = vld [vmem:[%s398 + $0x70] sm:$0xff]
  %v414 = vld [vmem:[%s398 + $0x78] sm:$0xff]
  %415 = vmatprep.subr.mxu0 0.0
  %416 = vmatpush1.msra.mxu0 %v399
  %417 = vmatprep.subr.mxu0 0.0
  %418 = vmatpush1.msra.mxu0 %v400
  %419 = vmatprep.subr.mxu0 0.0
  %420 = vmatpush1.msra.mxu0 %v401
  %421 = vmatprep.subr.mxu0 0.0
  %422 = vmatpush1.msra.mxu0 %v402
  %423 = vmatprep.subr.mxu0 0.0
  %424 = vmatpush1.msra.mxu0 %v403
  %425 = vmatprep.subr.mxu0 0.0
  %426 = vmatpush1.msra.mxu0 %v404
  %427 = vmatprep.subr.mxu0 0.0
  %428 = vmatpush1.msra.mxu0 %v405
  %429 = vmatprep.subr.mxu0 0.0
  %430 = vmatpush1.msra.mxu0 %v406
  %431 = vmatprep.subr.mxu0 0.0
  %432 = vmatpush1.msra.mxu0 %v407
  %433 = vmatprep.subr.mxu0 0.0
  %434 = vmatpush1.msra.mxu0 %v408
  %435 = vmatprep.subr.mxu0 0.0
  %436 = vmatpush1.msra.mxu0 %v409
  %437 = vmatprep.subr.mxu0 0.0
  %438 = vmatpush1.msra.mxu0 %v410
  %439 = vmatprep.subr.mxu0 0.0
  %440 = vmatpush1.msra.mxu0 %v411
  %441 = vmatprep.subr.mxu0 0.0
  %442 = vmatpush1.msra.mxu0 %v412
  %443 = vmatprep.subr.mxu0 0.0
  %444 = vmatpush1.msra.mxu0 %v413
  %445 = vmatprep.subr.mxu0 0.0
  %446 = vmatpush1.msra.mxu0 %v414
  %447 = vmatprep.subr.mxu0 0.0
  %448 = vmatpush1.msra.mxu0 0.0
  %449 = vmatprep.subr.mxu0 0.0
  %450 = vmatpush1.msra.mxu0 0.0
  %451 = vmatprep.subr.mxu0 0.0
  %452 = vmatpush1.msra.mxu0 0.0
  %453 = vmatprep.subr.mxu0 0.0
  %454 = vmatpush1.msra.mxu0 0.0
  %455 = vmatprep.subr.mxu0 0.0
  %456 = vmatpush1.msra.mxu0 0.0
  %457 = vmatprep.subr.mxu0 0.0
  %458 = vmatpush1.msra.mxu0 0.0
  %459 = vmatprep.subr.mxu0 0.0
  %460 = vmatpush1.msra.mxu0 0.0
  %461 = vmatprep.subr.mxu0 0.0
  %462 = vmatpush1.msra.mxu0 0.0
  %463 = vmatprep.subr.mxu0 0.0
  %464 = vmatpush1.msra.mxu0 0.0
  %465 = vmatprep.subr.mxu0 0.0
  %466 = vmatpush1.msra.mxu0 0.0
  %467 = vmatprep.subr.mxu0 0.0
  %468 = vmatpush1.msra.mxu0 0.0
  %469 = vmatprep.subr.mxu0 0.0
  %470 = vmatpush1.msra.mxu0 0.0
  %471 = vmatprep.subr.mxu0 0.0
  %472 = vmatpush1.msra.mxu0 0.0
  %473 = vmatprep.subr.mxu0 0.0
  %474 = vmatpush1.msra.mxu0 0.0
  %475 = vmatprep.subr.mxu0 0.0
  %476 = vmatpush1.msra.mxu0 0.0
  %477 = vmatprep.subr.mxu0 0.0
  %478 = vmatpush1.msra.mxu0 0.0
  %479 = vmatprep.mubr.f32.mxu0 0.0
  %480 = vmatmul.mubr.f32.gmra.mrb[0].mxu0 %v397
  %v481 = vpop.f32.mrb[0].mxu0
  %v482 = vadd.f32 0.0, %v481
  %v483 = vpop.f32.mrb[0].mxu0
  %484 = vdwg.mxu0
  %v485 = vadd.f32 %v396, %v482
  %v486 = vld [vmem:[%s0 + $0x10] sm:$0xff]
  %s487 = scalar_lea.vmem %s1, 640
  %v488 = vld [vmem:[%s487] sm:$0xff]
  %v489 = vld [vmem:[%s487 + $0x8] sm:$0xff]
  %v490 = vld [vmem:[%s487 + $0x10] sm:$0xff]
  %v491 = vld [vmem:[%s487 + $0x18] sm:$0xff]
  %v492 = vld [vmem:[%s487 + $0x20] sm:$0xff]
  %v493 = vld [vmem:[%s487 + $0x28] sm:$0xff]
  %v494 = vld [vmem:[%s487 + $0x30] sm:$0xff]
  %v495 = vld [vmem:[%s487 + $0x38] sm:$0xff]
  %v496 = vld [vmem:[%s487 + $0x40] sm:$0xff]
  %v497 = vld [vmem:[%s487 + $0x48] sm:$0xff]
  %v498 = vld [vmem:[%s487 + $0x50] sm:$0xff]
  %v499 = vld [vmem:[%s487 + $0x58] sm:$0xff]
  %v500 = vld [vmem:[%s487 + $0x60] sm:$0xff]
  %v501 = vld [vmem:[%s487 + $0x68] sm:$0xff]
  %v502 = vld [vmem:[%s487 + $0x70] sm:$0xff]
  %v503 = vld [vmem:[%s487 + $0x78] sm:$0xff]
  %504 = vmatprep.subr.mxu0 0.0
  %505 = vmatpush1.msra.mxu0 %v488
  %506 = vmatprep.subr.mxu0 0.0
  %507 = vmatpush1.msra.mxu0 %v489
  %508 = vmatprep.subr.mxu0 0.0
  %509 = vmatpush1.msra.mxu0 %v490
  %510 = vmatprep.subr.mxu0 0.0
  %511 = vmatpush1.msra.mxu0 %v491
  %512 = vmatprep.subr.mxu0 0.0
  %513 = vmatpush1.msra.mxu0 %v492
  %514 = vmatprep.subr.mxu0 0.0
  %515 = vmatpush1.msra.mxu0 %v493
  %516 = vmatprep.subr.mxu0 0.0
  %517 = vmatpush1.msra.mxu0 %v494
  %518 = vmatprep.subr.mxu0 0.0
  %519 = vmatpush1.msra.mxu0 %v495
  %520 = vmatprep.subr.mxu0 0.0
  %521 = vmatpush1.msra.mxu0 %v496
  %522 = vmatprep.subr.mxu0 0.0
  %523 = vmatpush1.msra.mxu0 %v497
  %524 = vmatprep.subr.mxu0 0.0
  %525 = vmatpush1.msra.mxu0 %v498
  %526 = vmatprep.subr.mxu0 0.0
  %527 = vmatpush1.msra.mxu0 %v499
  %528 = vmatprep.subr.mxu0 0.0
  %529 = vmatpush1.msra.mxu0 %v500
  %530 = vmatprep.subr.mxu0 0.0
  %531 = vmatpush1.msra.mxu0 %v501
  %532 = vmatprep.subr.mxu0 0.0
  %533 = vmatpush1.msra.mxu0 %v502
  %534 = vmatprep.subr.mxu0 0.0
  %535 = vmatpush1.msra.mxu0 %v503
  %536 = vmatprep.subr.mxu0 0.0
  %537 = vmatpush1.msra.mxu0 0.0
  %538 = vmatprep.subr.mxu0 0.0
  %539 = vmatpush1.msra.mxu0 0.0
  %540 = vmatprep.subr.mxu0 0.0
  %541 = vmatpush1.msra.mxu0 0.0
  %542 = vmatprep.subr.mxu0 0.0
  %543 = vmatpush1.msra.mxu0 0.0
  %544 = vmatprep.subr.mxu0 0.0
  %545 = vmatpush1.msra.mxu0 0.0
  %546 = vmatprep.subr.mxu0 0.0
  %547 = vmatpush1.msra.mxu0 0.0
  %548 = vmatprep.subr.mxu0 0.0
  %549 = vmatpush1.msra.mxu0 0.0
  %550 = vmatprep.subr.mxu0 0.0
  %551 = vmatpush1.msra.mxu0 0.0
  %552 = vmatprep.subr.mxu0 0.0
  %553 = vmatpush1.msra.mxu0 0.0
  %554 = vmatprep.subr.mxu0 0.0
  %555 = vmatpush1.msra.mxu0 0.0
  %556 = vmatprep.subr.mxu0 0.0
  %557 = vmatpush1.msra.mxu0 0.0
  %558 = vmatprep.subr.mxu0 0.0
  %559 = vmatpush1.msra.mxu0 0.0
  %560 = vmatprep.subr.mxu0 0.0
  %561 = vmatpush1.msra.mxu0 0.0
  %562 = vmatprep.subr.mxu0 0.0
  %563 = vmatpush1.msra.mxu0 0.0
  %564 = vmatprep.subr.mxu0 0.0
  %565 = vmatpush1.msra.mxu0 0.0
  %566 = vmatprep.subr.mxu0 0.0
  %567 = vmatpush1.msra.mxu0 0.0
  %568 = vmatprep.mubr.f32.mxu0 0.0
  %569 = vmatmul.mubr.f32.gmra.mrb[0].mxu0 %v486
  %v570 = vpop.f32.mrb[0].mxu0
  %v571 = vadd.f32 0.0, %v570
  %v572 = vpop.f32.mrb[0].mxu0
  %573 = vdwg.mxu0
  %v574 = vadd.f32 %v485, %v571
  %v575 = vld [vmem:[%s0 + $0x18] sm:$0xff]
  %s576 = scalar_lea.vmem %s1, 768
  %v577 = vld [vmem:[%s576] sm:$0xff]
  %v578 = vld [vmem:[%s576 + $0x8] sm:$0xff]
  %v579 = vld [vmem:[%s576 + $0x10] sm:$0xff]
  %v580 = vld [vmem:[%s576 + $0x18] sm:$0xff]
  %v581 = vld [vmem:[%s576 + $0x20] sm:$0xff]
  %v582 = vld [vmem:[%s576 + $0x28] sm:$0xff]
  %v583 = vld [vmem:[%s576 + $0x30] sm:$0xff]
  %v584 = vld [vmem:[%s576 + $0x38] sm:$0xff]
  %v585 = vld [vmem:[%s576 + $0x40] sm:$0xff]
  %v586 = vld [vmem:[%s576 + $0x48] sm:$0xff]
  %v587 = vld [vmem:[%s576 + $0x50] sm:$0xff]
  %v588 = vld [vmem:[%s576 + $0x58] sm:$0xff]
  %v589 = vld [vmem:[%s576 + $0x60] sm:$0xff]
  %v590 = vld [vmem:[%s576 + $0x68] sm:$0xff]
  %v591 = vld [vmem:[%s576 + $0x70] sm:$0xff]
  %v592 = vld [vmem:[%s576 + $0x78] sm:$0xff]
  %593 = vmatprep.subr.mxu0 0.0
  %594 = vmatpush1.msra.mxu0 %v577
  %595 = vmatprep.subr.mxu0 0.0
  %596 = vmatpush1.msra.mxu0 %v578
  %597 = vmatprep.subr.mxu0 0.0
  %598 = vmatpush1.msra.mxu0 %v579
  %599 = vmatprep.subr.mxu0 0.0
  %600 = vmatpush1.msra.mxu0 %v580
  %601 = vmatprep.subr.mxu0 0.0
  %602 = vmatpush1.msra.mxu0 %v581
  %603 = vmatprep.subr.mxu0 0.0
  %604 = vmatpush1.msra.mxu0 %v582
  %605 = vmatprep.subr.mxu0 0.0
  %606 = vmatpush1.msra.mxu0 %v583
  %607 = vmatprep.subr.mxu0 0.0
  %608 = vmatpush1.msra.mxu0 %v584
  %609 = vmatprep.subr.mxu0 0.0
  %610 = vmatpush1.msra.mxu0 %v585
  %611 = vmatprep.subr.mxu0 0.0
  %612 = vmatpush1.msra.mxu0 %v586
  %613 = vmatprep.subr.mxu0 0.0
  %614 = vmatpush1.msra.mxu0 %v587
  %615 = vmatprep.subr.mxu0 0.0
  %616 = vmatpush1.msra.mxu0 %v588
  %617 = vmatprep.subr.mxu0 0.0
  %618 = vmatpush1.msra.mxu0 %v589
  %619 = vmatprep.subr.mxu0 0.0
  %620 = vmatpush1.msra.mxu0 %v590
  %621 = vmatprep.subr.mxu0 0.0
  %622 = vmatpush1.msra.mxu0 %v591
  %623 = vmatprep.subr.mxu0 0.0
  %624 = vmatpush1.msra.mxu0 %v592
  %625 = vmatprep.subr.mxu0 0.0
  %626 = vmatpush1.msra.mxu0 0.0
  %627 = vmatprep.subr.mxu0 0.0
  %628 = vmatpush1.msra.mxu0 0.0
  %629 = vmatprep.subr.mxu0 0.0
  %630 = vmatpush1.msra.mxu0 0.0
  %631 = vmatprep.subr.mxu0 0.0
  %632 = vmatpush1.msra.mxu0 0.0
  %633 = vmatprep.subr.mxu0 0.0
  %634 = vmatpush1.msra.mxu0 0.0
  %635 = vmatprep.subr.mxu0 0.0
  %636 = vmatpush1.msra.mxu0 0.0
  %637 = vmatprep.subr.mxu0 0.0
  %638 = vmatpush1.msra.mxu0 0.0
  %639 = vmatprep.subr.mxu0 0.0
  %640 = vmatpush1.msra.mxu0 0.0
  %641 = vmatprep.subr.mxu0 0.0
  %642 = vmatpush1.msra.mxu0 0.0
  %643 = vmatprep.subr.mxu0 0.0
  %644 = vmatpush1.msra.mxu0 0.0
  %645 = vmatprep.subr.mxu0 0.0
  %646 = vmatpush1.msra.mxu0 0.0
  %647 = vmatprep.subr.mxu0 0.0
  %648 = vmatpush1.msra.mxu0 0.0
  %649 = vmatprep.subr.mxu0 0.0
  %650 = vmatpush1.msra.mxu0 0.0
  %651 = vmatprep.subr.mxu0 0.0
  %652 = vmatpush1.msra.mxu0 0.0
  %653 = vmatprep.subr.mxu0 0.0
  %654 = vmatpush1.msra.mxu0 0.0
  %655 = vmatprep.subr.mxu0 0.0
  %656 = vmatpush1.msra.mxu0 0.0
  %657 = vmatprep.mubr.f32.mxu0 0.0
  %658 = vmatmul.mubr.f32.gmra.mrb[0].mxu0 %v575
  %v659 = vpop.f32.mrb[0].mxu0
  %v660 = vadd.f32 0.0, %v659
  %v661 = vpop.f32.mrb[0].mxu0
  %662 = vdwg.mxu0
  %v663 = vadd.f32 %v574, %v660
  %v664 = vld [vmem:[%s0 + $0x1a] sm:$0xff]
  %s665 = scalar_lea.vmem %s1, 896
  %v666 = vld [vmem:[%s665] sm:$0xff]
  %v667 = vld [vmem:[%s665 + $0x8] sm:$0xff]
  %v668 = vld [vmem:[%s665 + $0x10] sm:$0xff]
  %v669 = vld [vmem:[%s665 + $0x18] sm:$0xff]
  %v670 = vld [vmem:[%s665 + $0x20] sm:$0xff]
  %v671 = vld [vmem:[%s665 + $0x28] sm:$0xff]
  %v672 = vld [vmem:[%s665 + $0x30] sm:$0xff]
  %v673 = vld [vmem:[%s665 + $0x38] sm:$0xff]
  %v674 = vld [vmem:[%s665 + $0x40] sm:$0xff]
  %v675 = vld [vmem:[%s665 + $0x48] sm:$0xff]
  %v676 = vld [vmem:[%s665 + $0x50] sm:$0xff]
  %v677 = vld [vmem:[%s665 + $0x58] sm:$0xff]
  %v678 = vld [vmem:[%s665 + $0x60] sm:$0xff]
  %v679 = vld [vmem:[%s665 + $0x68] sm:$0xff]
  %v680 = vld [vmem:[%s665 + $0x70] sm:$0xff]
  %v681 = vld [vmem:[%s665 + $0x78] sm:$0xff]
  %682 = vmatprep.subr.mxu0 0.0
  %683 = vmatpush1.msra.mxu0 %v666
  %684 = vmatprep.subr.mxu0 0.0
  %685 = vmatpush1.msra.mxu0 %v667
  %686 = vmatprep.subr.mxu0 0.0
  %687 = vmatpush1.msra.mxu0 %v668
  %688 = vmatprep.subr.mxu0 0.0
  %689 = vmatpush1.msra.mxu0 %v669
  %690 = vmatprep.subr.mxu0 0.0
  %691 = vmatpush1.msra.mxu0 %v670
  %692 = vmatprep.subr.mxu0 0.0
  %693 = vmatpush1.msra.mxu0 %v671
  %694 = vmatprep.subr.mxu0 0.0
  %695 = vmatpush1.msra.mxu0 %v672
  %696 = vmatprep.subr.mxu0 0.0
  %697 = vmatpush1.msra.mxu0 %v673
  %698 = vmatprep.subr.mxu0 0.0
  %699 = vmatpush1.msra.mxu0 %v674
  %700 = vmatprep.subr.mxu0 0.0
  %701 = vmatpush1.msra.mxu0 %v675
  %702 = vmatprep.subr.mxu0 0.0
  %703 = vmatpush1.msra.mxu0 %v676
  %704 = vmatprep.subr.mxu0 0.0
  %705 = vmatpush1.msra.mxu0 %v677
  %706 = vmatprep.subr.mxu0 0.0
  %707 = vmatpush1.msra.mxu0 %v678
  %708 = vmatprep.subr.mxu0 0.0
  %709 = vmatpush1.msra.mxu0 %v679
  %710 = vmatprep.subr.mxu0 0.0
  %711 = vmatpush1.msra.mxu0 %v680
  %712 = vmatprep.subr.mxu0 0.0
  %713 = vmatpush1.msra.mxu0 %v681
  %714 = vmatprep.subr.mxu0 0.0
  %715 = vmatpush1.msra.mxu0 0.0
  %716 = vmatprep.subr.mxu0 0.0
  %717 = vmatpush1.msra.mxu0 0.0
  %718 = vmatprep.subr.mxu0 0.0
  %719 = vmatpush1.msra.mxu0 0.0
  %720 = vmatprep.subr.mxu0 0.0
  %721 = vmatpush1.msra.mxu0 0.0
  %722 = vmatprep.subr.mxu0 0.0
  %723 = vmatpush1.msra.mxu0 0.0
  %724 = vmatprep.subr.mxu0 0.0
  %725 = vmatpush1.msra.mxu0 0.0
  %726 = vmatprep.subr.mxu0 0.0
  %727 = vmatpush1.msra.mxu0 0.0
  %728 = vmatprep.subr.mxu0 0.0
  %729 = vmatpush1.msra.mxu0 0.0
  %730 = vmatprep.subr.mxu0 0.0
  %731 = vmatpush1.msra.mxu0 0.0
  %732 = vmatprep.subr.mxu0 0.0
  %733 = vmatpush1.msra.mxu0 0.0
  %734 = vmatprep.subr.mxu0 0.0
  %735 = vmatpush1.msra.mxu0 0.0
  %736 = vmatprep.subr.mxu0 0.0
  %737 = vmatpush1.msra.mxu0 0.0
  %738 = vmatprep.subr.mxu0 0.0
  %739 = vmatpush1.msra.mxu0 0.0
  %740 = vmatprep.subr.mxu0 0.0
  %741 = vmatpush1.msra.mxu0 0.0
  %742 = vmatprep.subr.mxu0 0.0
  %743 = vmatpush1.msra.mxu0 0.0
  %744 = vmatprep.subr.mxu0 0.0
  %745 = vmatpush1.msra.mxu0 0.0
  %746 = vmatprep.mubr.f32.mxu0 0.0
  %747 = vmatmul.mubr.f32.gmra.mrb[0].mxu0 %v664
  %v748 = vpop.f32.mrb[0].mxu0
  %v749 = vadd.f32 0.0, %v748
  %v750 = vpop.f32.mrb[0].mxu0
  %751 = vdwg.mxu0
  %v752 = vadd.f32 %v663, %v749
  %v753 = vld [vmem:[%s0 + $0x1c] sm:$0xff]
  %s754 = scalar_lea.vmem %s1, 1024
  %v755 = vld [vmem:[%s754] sm:$0xff]
  %v756 = vld [vmem:[%s754 + $0x8] sm:$0xff]
  %v757 = vld [vmem:[%s754 + $0x10] sm:$0xff]
  %v758 = vld [vmem:[%s754 + $0x18] sm:$0xff]
  %v759 = vld [vmem:[%s754 + $0x20] sm:$0xff]
  %v760 = vld [vmem:[%s754 + $0x28] sm:$0xff]
  %v761 = vld [vmem:[%s754 + $0x30] sm:$0xff]
  %v762 = vld [vmem:[%s754 + $0x38] sm:$0xff]
  %v763 = vld [vmem:[%s754 + $0x40] sm:$0xff]
  %v764 = vld [vmem:[%s754 + $0x48] sm:$0xff]
  %v765 = vld [vmem:[%s754 + $0x50] sm:$0xff]
  %v766 = vld [vmem:[%s754 + $0x58] sm:$0xff]
  %v767 = vld [vmem:[%s754 + $0x60] sm:$0xff]
  %v768 = vld [vmem:[%s754 + $0x68] sm:$0xff]
  %v769 = vld [vmem:[%s754 + $0x70] sm:$0xff]
  %v770 = vld [vmem:[%s754 + $0x78] sm:$0xff]
  %771 = vmatprep.subr.mxu0 0.0
  %772 = vmatpush1.msra.mxu0 %v755
  %773 = vmatprep.subr.mxu0 0.0
  %774 = vmatpush1.msra.mxu0 %v756
  %775 = vmatprep.subr.mxu0 0.0
  %776 = vmatpush1.msra.mxu0 %v757
  %777 = vmatprep.subr.mxu0 0.0
  %778 = vmatpush1.msra.mxu0 %v758
  %779 = vmatprep.subr.mxu0 0.0
  %780 = vmatpush1.msra.mxu0 %v759
  %781 = vmatprep.subr.mxu0 0.0
  %782 = vmatpush1.msra.mxu0 %v760
  %783 = vmatprep.subr.mxu0 0.0
  %784 = vmatpush1.msra.mxu0 %v761
  %785 = vmatprep.subr.mxu0 0.0
  %786 = vmatpush1.msra.mxu0 %v762
  %787 = vmatprep.subr.mxu0 0.0
  %788 = vmatpush1.msra.mxu0 %v763
  %789 = vmatprep.subr.mxu0 0.0
  %790 = vmatpush1.msra.mxu0 %v764
  %791 = vmatprep.subr.mxu0 0.0
  %792 = vmatpush1.msra.mxu0 %v765
  %793 = vmatprep.subr.mxu0 0.0
  %794 = vmatpush1.msra.mxu0 %v766
  %795 = vmatprep.subr.mxu0 0.0
  %796 = vmatpush1.msra.mxu0 %v767
  %797 = vmatprep.subr.mxu0 0.0
  %798 = vmatpush1.msra.mxu0 %v768
  %799 = vmatprep.subr.mxu0 0.0
  %800 = vmatpush1.msra.mxu0 %v769
  %801 = vmatprep.subr.mxu0 0.0
  %802 = vmatpush1.msra.mxu0 %v770
  %803 = vmatprep.subr.mxu0 0.0
  %804 = vmatpush1.msra.mxu0 0.0
  %805 = vmatprep.subr.mxu0 0.0
  %806 = vmatpush1.msra.mxu0 0.0
  %807 = vmatprep.subr.mxu0 0.0
  %808 = vmatpush1.msra.mxu0 0.0
  %809 = vmatprep.subr.mxu0 0.0
  %810 = vmatpush1.msra.mxu0 0.0
  %811 = vmatprep.subr.mxu0 0.0
  %812 = vmatpush1.msra.mxu0 0.0
  %813 = vmatprep.subr.mxu0 0.0
  %814 = vmatpush1.msra.mxu0 0.0
  %815 = vmatprep.subr.mxu0 0.0
  %816 = vmatpush1.msra.mxu0 0.0
  %817 = vmatprep.subr.mxu0 0.0
  %818 = vmatpush1.msra.mxu0 0.0
  %819 = vmatprep.subr.mxu0 0.0
  %820 = vmatpush1.msra.mxu0 0.0
  %821 = vmatprep.subr.mxu0 0.0
  %822 = vmatpush1.msra.mxu0 0.0
  %823 = vmatprep.subr.mxu0 0.0
  %824 = vmatpush1.msra.mxu0 0.0
  %825 = vmatprep.subr.mxu0 0.0
  %826 = vmatpush1.msra.mxu0 0.0
  %827 = vmatprep.subr.mxu0 0.0
  %828 = vmatpush1.msra.mxu0 0.0
  %829 = vmatprep.subr.mxu0 0.0
  %830 = vmatpush1.msra.mxu0 0.0
  %831 = vmatprep.subr.mxu0 0.0
  %832 = vmatpush1.msra.mxu0 0.0
  %833 = vmatprep.subr.mxu0 0.0
  %834 = vmatpush1.msra.mxu0 0.0
  %835 = vmatprep.mubr.f32.mxu0 0.0
  %836 = vmatmul.mubr.f32.gmra.mrb[0].mxu0 %v753
  %v837 = vpop.f32.mrb[0].mxu0
  %v838 = vadd.f32 0.0, %v837
  %v839 = vpop.f32.mrb[0].mxu0
  %840 = vdwg.mxu0
  %v841 = vadd.f32 %v752, %v838
  %v842 = vld [vmem:[%s2] sm:$0x1]
  %v844 = vlaneseq
  %v845 = vshrl.u32 %v844, 7
  %v846 = vsub.s32 0, %v845
  %v847 = vrot.slane %v842, %v846
  %v849 = vadd.f32 %v841, %v847
  %v850 = vmax.f32 %v849, 0.0
  %851 = vmatprep.subr.mxu0 0.0
  %852 = vmatpush1.msra.mxu0 %v63
  %853 = vmatprep.subr.mxu0 0.0
  %854 = vmatpush1.msra.mxu0 %v64
  %855 = vmatprep.subr.mxu0 0.0
  %856 = vmatpush1.msra.mxu0 %v65
  %857 = vmatprep.subr.mxu0 0.0
  %858 = vmatpush1.msra.mxu0 %v66
  %859 = vmatprep.subr.mxu0 0.0
  %860 = vmatpush1.msra.mxu0 %v67
  %861 = vmatprep.subr.mxu0 0.0
  %862 = vmatpush1.msra.mxu0 %v68
  %863 = vmatprep.subr.mxu0 0.0
  %864 = vmatpush1.msra.mxu0 %v69
  %865 = vmatprep.subr.mxu0 0.0
  %866 = vmatpush1.msra.mxu0 %v70
  %867 = vmatprep.subr.mxu0 0.0
  %868 = vmatpush1.msra.mxu0 %v71
  %869 = vmatprep.subr.mxu0 0.0
  %870 = vmatpush1.msra.mxu0 %v72
  %871 = vmatprep.subr.mxu0 0.0
  %872 = vmatpush1.msra.mxu0 %v73
  %873 = vmatprep.subr.mxu0 0.0
  %874 = vmatpush1.msra.mxu0 %v74
  %875 = vmatprep.subr.mxu0 0.0
  %876 = vmatpush1.msra.mxu0 %v75
  %877 = vmatprep.subr.mxu0 0.0
  %878 = vmatpush1.msra.mxu0 %v76
  %879 = vmatprep.subr.mxu0 0.0
  %880 = vmatpush1.msra.mxu0 %v77
  %881 = vmatprep.subr.mxu0 0.0
  %882 = vmatpush1.msra.mxu0 %v78
  %883 = vmatprep.subr.mxu0 0.0
  %884 = vmatpush1.msra.mxu0 0.0
  %885 = vmatprep.subr.mxu0 0.0
  %886 = vmatpush1.msra.mxu0 0.0
  %887 = vmatprep.subr.mxu0 0.0
  %888 = vmatpush1.msra.mxu0 0.0
  %889 = vmatprep.subr.mxu0 0.0
  %890 = vmatpush1.msra.mxu0 0.0
  %891 = vmatprep.subr.mxu0 0.0
  %892 = vmatpush1.msra.mxu0 0.0
  %893 = vmatprep.subr.mxu0 0.0
  %894 = vmatpush1.msra.mxu0 0.0
  %895 = vmatprep.subr.mxu0 0.0
  %896 = vmatpush1.msra.mxu0 0.0
  %897 = vmatprep.subr.mxu0 0.0
  %898 = vmatpush1.msra.mxu0 0.0
  %899 = vmatprep.subr.mxu0 0.0
  %900 = vmatpush1.msra.mxu0 0.0
  %901 = vmatprep.subr.mxu0 0.0
  %902 = vmatpush1.msra.mxu0 0.0
  %903 = vmatprep.subr.mxu0 0.0
  %904 = vmatpush1.msra.mxu0 0.0
  %905 = vmatprep.subr.mxu0 0.0
  %906 = vmatpush1.msra.mxu0 0.0
  %907 = vmatprep.subr.mxu0 0.0
  %908 = vmatpush1.msra.mxu0 0.0
  %909 = vmatprep.subr.mxu0 0.0
  %910 = vmatpush1.msra.mxu0 0.0
  %911 = vmatprep.subr.mxu0 0.0
  %912 = vmatpush1.msra.mxu0 0.0
  %913 = vmatprep.subr.mxu0 0.0
  %914 = vmatpush1.msra.mxu0 0.0
  %915 = vmatprep.mubr.f32.mxu0 0.0
  %916 = vmatmul.mubr.f32.gmra.mrb[0].mxu0 %v397
  %v917 = vpop.f32.mrb[0].mxu0
  %v918 = vadd.f32 0.0, %v917
  %v919 = vpop.f32.mrb[0].mxu0
  %920 = vdwg.mxu0
  %921 = vmatprep.subr.mxu0 0.0
  %922 = vmatpush1.msra.mxu0 %v45
  %923 = vmatprep.subr.mxu0 0.0
  %924 = vmatpush1.msra.mxu0 %v46
  %925 = vmatprep.subr.mxu0 0.0
  %926 = vmatpush1.msra.mxu0 %v47
  %927 = vmatprep.subr.mxu0 0.0
  %928 = vmatpush1.msra.mxu0 %v48
  %929 = vmatprep.subr.mxu0 0.0
  %930 = vmatpush1.msra.mxu0 %v49
  %931 = vmatprep.subr.mxu0 0.0
  %932 = vmatpush1.msra.mxu0 %v50
  %933 = vmatprep.subr.mxu0 0.0
  %934 = vmatpush1.msra.mxu0 %v51
  %935 = vmatprep.subr.mxu0 0.0
  %936 = vmatpush1.msra.mxu0 %v52
  %937 = vmatprep.subr.mxu0 0.0
  %938 = vmatpush1.msra.mxu0 %v53
  %939 = vmatprep.subr.mxu0 0.0
  %940 = vmatpush1.msra.mxu0 %v54
  %941 = vmatprep.subr.mxu0 0.0
  %942 = vmatpush1.msra.mxu0 %v55
  %943 = vmatprep.subr.mxu0 0.0
  %944 = vmatpush1.msra.mxu0 %v56
  %945 = vmatprep.subr.mxu0 0.0
  %946 = vmatpush1.msra.mxu0 %v57
  %947 = vmatprep.subr.mxu0 0.0
  %948 = vmatpush1.msra.mxu0 %v58
  %949 = vmatprep.subr.mxu0 0.0
  %950 = vmatpush1.msra.mxu0 %v59
  %951 = vmatprep.subr.mxu0 0.0
  %952 = vmatpush1.msra.mxu0 %v60
  %953 = vmatprep.subr.mxu0 0.0
  %954 = vmatpush1.msra.mxu0 0.0
  %955 = vmatprep.subr.mxu0 0.0
  %956 = vmatpush1.msra.mxu0 0.0
  %957 = vmatprep.subr.mxu0 0.0
  %958 = vmatpush1.msra.mxu0 0.0
  %959 = vmatprep.subr.mxu0 0.0
  %960 = vmatpush1.msra.mxu0 0.0
  %961 = vmatprep.subr.mxu0 0.0
  %962 = vmatpush1.msra.mxu0 0.0
  %963 = vmatprep.subr.mxu0 0.0
  %964 = vmatpush1.msra.mxu0 0.0
  %965 = vmatprep.subr.mxu0 0.0
  %966 = vmatpush1.msra.mxu0 0.0
  %967 = vmatprep.subr.mxu0 0.0
  %968 = vmatpush1.msra.mxu0 0.0
  %969 = vmatprep.subr.mxu0 0.0
  %970 = vmatpush1.msra.mxu0 0.0
  %971 = vmatprep.subr.mxu0 0.0
  %972 = vmatpush1.msra.mxu0 0.0
  %973 = vmatprep.subr.mxu0 0.0
  %974 = vmatpush1.msra.mxu0 0.0
  %975 = vmatprep.subr.mxu0 0.0
  %976 = vmatpush1.msra.mxu0 0.0
  %977 = vmatprep.subr.mxu0 0.0
  %978 = vmatpush1.msra.mxu0 0.0
  %979 = vmatprep.subr.mxu0 0.0
  %980 = vmatpush1.msra.mxu0 0.0
  %981 = vmatprep.subr.mxu0 0.0
  %982 = vmatpush1.msra.mxu0 0.0
  %983 = vmatprep.subr.mxu0 0.0
  %984 = vmatpush1.msra.mxu0 0.0
  %985 = vmatprep.mubr.f32.mxu0 0.0
  %986 = vmatmul.mubr.f32.gmra.mrb[0].mxu0 %v308
  %v987 = vpop.f32.mrb[0].mxu0
  %v988 = vadd.f32 %v918, %v987
  %v989 = vpop.f32.mrb[0].mxu0
  %990 = vdwg.mxu0
  %991 = vmatprep.subr.mxu0 0.0
  %992 = vmatpush1.msra.mxu0 %v221
  %993 = vmatprep.subr.mxu0 0.0
  %994 = vmatpush1.msra.mxu0 %v222
  %995 = vmatprep.subr.mxu0 0.0
  %996 = vmatpush1.msra.mxu0 %v223
  %997 = vmatprep.subr.mxu0 0.0
  %998 = vmatpush1.msra.mxu0 %v224
  %999 = vmatprep.subr.mxu0 0.0
  %1000 = vmatpush1.msra.mxu0 %v225
  %1001 = vmatprep.subr.mxu0 0.0
  %1002 = vmatpush1.msra.mxu0 %v226
  %1003 = vmatprep.subr.mxu0 0.0
  %1004 = vmatpush1.msra.mxu0 %v227
  %1005 = vmatprep.subr.mxu0 0.0
  %1006 = vmatpush1.msra.mxu0 %v228
  %1007 = vmatprep.subr.mxu0 0.0
  %1008 = vmatpush1.msra.mxu0 %v229
  %1009 = vmatprep.subr.mxu0 0.0
  %1010 = vmatpush1.msra.mxu0 %v230
  %1011 = vmatprep.subr.mxu0 0.0
  %1012 = vmatpush1.msra.mxu0 %v231
  %1013 = vmatprep.subr.mxu0 0.0
  %1014 = vmatpush1.msra.mxu0 %v232
  %1015 = vmatprep.subr.mxu0 0.0
  %1016 = vmatpush1.msra.mxu0 %v233
  %1017 = vmatprep.subr.mxu0 0.0
  %1018 = vmatpush1.msra.mxu0 %v234
  %1019 = vmatprep.subr.mxu0 0.0
  %1020 = vmatpush1.msra.mxu0 %v235
  %1021 = vmatprep.subr.mxu0 0.0
  %1022 = vmatpush1.msra.mxu0 %v236
  %1023 = vmatprep.subr.mxu0 0.0
  %1024 = vmatpush1.msra.mxu0 0.0
  %1025 = vmatprep.subr.mxu0 0.0
  %1026 = vmatpush1.msra.mxu0 0.0
  %1027 = vmatprep.subr.mxu0 0.0
  %1028 = vmatpush1.msra.mxu0 0.0
  %1029 = vmatprep.subr.mxu0 0.0
  %1030 = vmatpush1.msra.mxu0 0.0
  %1031 = vmatprep.subr.mxu0 0.0
  %1032 = vmatpush1.msra.mxu0 0.0
  %1033 = vmatprep.subr.mxu0 0.0
  %1034 = vmatpush1.msra.mxu0 0.0
  %1035 = vmatprep.subr.mxu0 0.0
  %1036 = vmatpush1.msra.mxu0 0.0
  %1037 = vmatprep.subr.mxu0 0.0
  %1038 = vmatpush1.msra.mxu0 0.0
  %1039 = vmatprep.subr.mxu0 0.0
  %1040 = vmatpush1.msra.mxu0 0.0
  %1041 = vmatprep.subr.mxu0 0.0
  %1042 = vmatpush1.msra.mxu0 0.0
  %1043 = vmatprep.subr.mxu0 0.0
  %1044 = vmatpush1.msra.mxu0 0.0
  %1045 = vmatprep.subr.mxu0 0.0
  %1046 = vmatpush1.msra.mxu0 0.0
  %1047 = vmatprep.subr.mxu0 0.0
  %1048 = vmatpush1.msra.mxu0 0.0
  %1049 = vmatprep.subr.mxu0 0.0
  %1050 = vmatpush1.msra.mxu0 0.0
  %1051 = vmatprep.subr.mxu0 0.0
  %1052 = vmatpush1.msra.mxu0 0.0
  %1053 = vmatprep.subr.mxu0 0.0
  %1054 = vmatpush1.msra.mxu0 0.0
  %1055 = vmatprep.mubr.f32.mxu0 0.0
  %1056 = vmatmul.mubr.f32.gmra.mrb[0].mxu0 %v486
  %v1057 = vpop.f32.mrb[0].mxu0
  %v1058 = vadd.f32 0.0, %v1057
  %v1059 = vpop.f32.mrb[0].mxu0
  %1060 = vdwg.mxu0
  %v1061 = vadd.f32 %v988, %v1058
  %1062 = vmatprep.subr.mxu0 0.0
  %1063 = vmatpush1.msra.mxu0 %v310
  %1064 = vmatprep.subr.mxu0 0.0
  %1065 = vmatpush1.msra.mxu0 %v311
  %1066 = vmatprep.subr.mxu0 0.0
  %1067 = vmatpush1.msra.mxu0 %v312
  %1068 = vmatprep.subr.mxu0 0.0
  %1069 = vmatpush1.msra.mxu0 %v313
  %1070 = vmatprep.subr.mxu0 0.0
  %1071 = vmatpush1.msra.mxu0 %v314
  %1072 = vmatprep.subr.mxu0 0.0
  %1073 = vmatpush1.msra.mxu0 %v315
  %1074 = vmatprep.subr.mxu0 0.0
  %1075 = vmatpush1.msra.mxu0 %v316
  %1076 = vmatprep.subr.mxu0 0.0
  %1077 = vmatpush1.msra.mxu0 %v317
  %1078 = vmatprep.subr.mxu0 0.0
  %1079 = vmatpush1.msra.mxu0 %v318
  %1080 = vmatprep.subr.mxu0 0.0
  %1081 = vmatpush1.msra.mxu0 %v319
  %1082 = vmatprep.subr.mxu0 0.0
  %1083 = vmatpush1.msra.mxu0 %v320
  %1084 = vmatprep.subr.mxu0 0.0
  %1085 = vmatpush1.msra.mxu0 %v321
  %1086 = vmatprep.subr.mxu0 0.0
  %1087 = vmatpush1.msra.mxu0 %v322
  %1088 = vmatprep.subr.mxu0 0.0
  %1089 = vmatpush1.msra.mxu0 %v323
  %1090 = vmatprep.subr.mxu0 0.0
  %1091 = vmatpush1.msra.mxu0 %v324
  %1092 = vmatprep.subr.mxu0 0.0
  %1093 = vmatpush1.msra.mxu0 %v325
  %1094 = vmatprep.subr.mxu0 0.0
  %1095 = vmatpush1.msra.mxu0 0.0
  %1096 = vmatprep.subr.mxu0 0.0
  %1097 = vmatpush1.msra.mxu0 0.0
  %1098 = vmatprep.subr.mxu0 0.0
  %1099 = vmatpush1.msra.mxu0 0.0
  %1100 = vmatprep.subr.mxu0 0.0
  %1101 = vmatpush1.msra.mxu0 0.0
  %1102 = vmatprep.subr.mxu0 0.0
  %1103 = vmatpush1.msra.mxu0 0.0
  %1104 = vmatprep.subr.mxu0 0.0
  %1105 = vmatpush1.msra.mxu0 0.0
  %1106 = vmatprep.subr.mxu0 0.0
  %1107 = vmatpush1.msra.mxu0 0.0
  %1108 = vmatprep.subr.mxu0 0.0
  %1109 = vmatpush1.msra.mxu0 0.0
  %1110 = vmatprep.subr.mxu0 0.0
  %1111 = vmatpush1.msra.mxu0 0.0
  %1112 = vmatprep.subr.mxu0 0.0
  %1113 = vmatpush1.msra.mxu0 0.0
  %1114 = vmatprep.subr.mxu0 0.0
  %1115 = vmatpush1.msra.mxu0 0.0
  %1116 = vmatprep.subr.mxu0 0.0
  %1117 = vmatpush1.msra.mxu0 0.0
  %1118 = vmatprep.subr.mxu0 0.0
  %1119 = vmatpush1.msra.mxu0 0.0
  %1120 = vmatprep.subr.mxu0 0.0
  %1121 = vmatpush1.msra.mxu0 0.0
  %1122 = vmatprep.subr.mxu0 0.0
  %1123 = vmatpush1.msra.mxu0 0.0
  %1124 = vmatprep.subr.mxu0 0.0
  %1125 = vmatpush1.msra.mxu0 0.0
  %1126 = vmatprep.mubr.f32.mxu0 0.0
  %1127 = vmatmul.mubr.f32.gmra.mrb[0].mxu0 %v575
  %v1128 = vpop.f32.mrb[0].mxu0
  %v1129 = vadd.f32 0.0, %v1128
  %v1130 = vpop.f32.mrb[0].mxu0
  %1131 = vdwg.mxu0
  %v1132 = vadd.f32 %v1061, %v1129
  %1133 = vmatprep.subr.mxu0 0.0
  %1134 = vmatpush1.msra.mxu0 %v399
  %1135 = vmatprep.subr.mxu0 0.0
  %1136 = vmatpush1.msra.mxu0 %v400
  %1137 = vmatprep.subr.mxu0 0.0
  %1138 = vmatpush1.msra.mxu0 %v401
  %1139 = vmatprep.subr.mxu0 0.0
  %1140 = vmatpush1.msra.mxu0 %v402
  %1141 = vmatprep.subr.mxu0 0.0
  %1142 = vmatpush1.msra.mxu0 %v403
  %1143 = vmatprep.subr.mxu0 0.0
  %1144 = vmatpush1.msra.mxu0 %v404
  %1145 = vmatprep.subr.mxu0 0.0
  %1146 = vmatpush1.msra.mxu0 %v405
  %1147 = vmatprep.subr.mxu0 0.0
  %1148 = vmatpush1.msra.mxu0 %v406
  %1149 = vmatprep.subr.mxu0 0.0
  %1150 = vmatpush1.msra.mxu0 %v407
  %1151 = vmatprep.subr.mxu0 0.0
  %1152 = vmatpush1.msra.mxu0 %v408
  %1153 = vmatprep.subr.mxu0 0.0
  %1154 = vmatpush1.msra.mxu0 %v409
  %1155 = vmatprep.subr.mxu0 0.0
  %1156 = vmatpush1.msra.mxu0 %v410
  %1157 = vmatprep.subr.mxu0 0.0
  %1158 = vmatpush1.msra.mxu0 %v411
  %1159 = vmatprep.subr.mxu0 0.0
  %1160 = vmatpush1.msra.mxu0 %v412
  %1161 = vmatprep.subr.mxu0 0.0
  %1162 = vmatpush1.msra.mxu0 %v413
  %1163 = vmatprep.subr.mxu0 0.0
  %1164 = vmatpush1.msra.mxu0 %v414
  %1165 = vmatprep.subr.mxu0 0.0
  %1166 = vmatpush1.msra.mxu0 0.0
  %1167 = vmatprep.subr.mxu0 0.0
  %1168 = vmatpush1.msra.mxu0 0.0
  %1169 = vmatprep.subr.mxu0 0.0
  %1170 = vmatpush1.msra.mxu0 0.0
  %1171 = vmatprep.subr.mxu0 0.0
  %1172 = vmatpush1.msra.mxu0 0.0
  %1173 = vmatprep.subr.mxu0 0.0
  %1174 = vmatpush1.msra.mxu0 0.0
  %1175 = vmatprep.subr.mxu0 0.0
  %1176 = vmatpush1.msra.mxu0 0.0
  %1177 = vmatprep.subr.mxu0 0.0
  %1178 = vmatpush1.msra.mxu0 0.0
  %1179 = vmatprep.subr.mxu0 0.0
  %1180 = vmatpush1.msra.mxu0 0.0
  %1181 = vmatprep.subr.mxu0 0.0
  %1182 = vmatpush1.msra.mxu0 0.0
  %1183 = vmatprep.subr.mxu0 0.0
  %1184 = vmatpush1.msra.mxu0 0.0
  %1185 = vmatprep.subr.mxu0 0.0
  %1186 = vmatpush1.msra.mxu0 0.0
  %1187 = vmatprep.subr.mxu0 0.0
  %1188 = vmatpush1.msra.mxu0 0.0
  %1189 = vmatprep.subr.mxu0 0.0
  %1190 = vmatpush1.msra.mxu0 0.0
  %1191 = vmatprep.subr.mxu0 0.0
  %1192 = vmatpush1.msra.mxu0 0.0
  %1193 = vmatprep.subr.mxu0 0.0
  %1194 = vmatpush1.msra.mxu0 0.0
  %1195 = vmatprep.subr.mxu0 0.0
  %1196 = vmatpush1.msra.mxu0 0.0
  %1197 = vmatprep.mubr.f32.mxu0 0.0
  %1198 = vmatmul.mubr.f32.gmra.mrb[0].mxu0 %v664
  %v1199 = vpop.f32.mrb[0].mxu0
  %v1200 = vadd.f32 0.0, %v1199
  %v1201 = vpop.f32.mrb[0].mxu0
  %1202 = vdwg.mxu0
  %v1203 = vadd.f32 %v1132, %v1200
  %1204 = vmatprep.subr.mxu0 0.0
  %1205 = vmatpush1.msra.mxu0 %v488
  %1206 = vmatprep.subr.mxu0 0.0
  %1207 = vmatpush1.msra.mxu0 %v489
  %1208 = vmatprep.subr.mxu0 0.0
  %1209 = vmatpush1.msra.mxu0 %v490
  %1210 = vmatprep.subr.mxu0 0.0
  %1211 = vmatpush1.msra.mxu0 %v491
  %1212 = vmatprep.subr.mxu0 0.0
  %1213 = vmatpush1.msra.mxu0 %v492
  %1214 = vmatprep.subr.mxu0 0.0
  %1215 = vmatpush1.msra.mxu0 %v493
  %1216 = vmatprep.subr.mxu0 0.0
  %1217 = vmatpush1.msra.mxu0 %v494
  %1218 = vmatprep.subr.mxu0 0.0
  %1219 = vmatpush1.msra.mxu0 %v495
  %1220 = vmatprep.subr.mxu0 0.0
  %1221 = vmatpush1.msra.mxu0 %v496
  %1222 = vmatprep.subr.mxu0 0.0
  %1223 = vmatpush1.msra.mxu0 %v497
  %1224 = vmatprep.subr.mxu0 0.0
  %1225 = vmatpush1.msra.mxu0 %v498
  %1226 = vmatprep.subr.mxu0 0.0
  %1227 = vmatpush1.msra.mxu0 %v499
  %1228 = vmatprep.subr.mxu0 0.0
  %1229 = vmatpush1.msra.mxu0 %v500
  %1230 = vmatprep.subr.mxu0 0.0
  %1231 = vmatpush1.msra.mxu0 %v501
  %1232 = vmatprep.subr.mxu0 0.0
  %1233 = vmatpush1.msra.mxu0 %v502
  %1234 = vmatprep.subr.mxu0 0.0
  %1235 = vmatpush1.msra.mxu0 %v503
  %1236 = vmatprep.subr.mxu0 0.0
  %1237 = vmatpush1.msra.mxu0 0.0
  %1238 = vmatprep.subr.mxu0 0.0
  %1239 = vmatpush1.msra.mxu0 0.0
  %1240 = vmatprep.subr.mxu0 0.0
  %1241 = vmatpush1.msra.mxu0 0.0
  %1242 = vmatprep.subr.mxu0 0.0
  %1243 = vmatpush1.msra.mxu0 0.0
  %1244 = vmatprep.subr.mxu0 0.0
  %1245 = vmatpush1.msra.mxu0 0.0
  %1246 = vmatprep.subr.mxu0 0.0
  %1247 = vmatpush1.msra.mxu0 0.0
  %1248 = vmatprep.subr.mxu0 0.0
  %1249 = vmatpush1.msra.mxu0 0.0
  %1250 = vmatprep.subr.mxu0 0.0
  %1251 = vmatpush1.msra.mxu0 0.0
  %1252 = vmatprep.subr.mxu0 0.0
  %1253 = vmatpush1.msra.mxu0 0.0
  %1254 = vmatprep.subr.mxu0 0.0
  %1255 = vmatpush1.msra.mxu0 0.0
  %1256 = vmatprep.subr.mxu0 0.0
  %1257 = vmatpush1.msra.mxu0 0.0
  %1258 = vmatprep.subr.mxu0 0.0
  %1259 = vmatpush1.msra.mxu0 0.0
  %1260 = vmatprep.subr.mxu0 0.0
  %1261 = vmatpush1.msra.mxu0 0.0
  %1262 = vmatprep.subr.mxu0 0.0
  %1263 = vmatpush1.msra.mxu0 0.0
  %1264 = vmatprep.subr.mxu0 0.0
  %1265 = vmatpush1.msra.mxu0 0.0
  %1266 = vmatprep.subr.mxu0 0.0
  %1267 = vmatpush1.msra.mxu0 0.0
  %1268 = vmatprep.mubr.f32.mxu0 0.0
  %1269 = vmatmul.mubr.f32.gmra.mrb[0].mxu0 %v753
  %v1270 = vpop.f32.mrb[0].mxu0
  %v1271 = vadd.f32 0.0, %v1270
  %v1272 = vpop.f32.mrb[0].mxu0
  %1273 = vdwg.mxu0
  %v1274 = vadd.f32 %v1203, %v1271
  %v1275 = vld [vmem:[%s0 + $0x24] sm:$0xff]
  %1276 = vmatprep.subr.mxu0 0.0
  %1277 = vmatpush1.msra.mxu0 %v577
  %1278 = vmatprep.subr.mxu0 0.0
  %1279 = vmatpush1.msra.mxu0 %v578
  %1280 = vmatprep.subr.mxu0 0.0
  %1281 = vmatpush1.msra.mxu0 %v579
  %1282 = vmatprep.subr.mxu0 0.0
  %1283 = vmatpush1.msra.mxu0 %v580
  %1284 = vmatprep.subr.mxu0 0.0
  %1285 = vmatpush1.msra.mxu0 %v581
  %1286 = vmatprep.subr.mxu0 0.0
  %1287 = vmatpush1.msra.mxu0 %v582
  %1288 = vmatprep.subr.mxu0 0.0
  %1289 = vmatpush1.msra.mxu0 %v583
  %1290 = vmatprep.subr.mxu0 0.0
  %1291 = vmatpush1.msra.mxu0 %v584
  %1292 = vmatprep.subr.mxu0 0.0
  %1293 = vmatpush1.msra.mxu0 %v585
  %1294 = vmatprep.subr.mxu0 0.0
  %1295 = vmatpush1.msra.mxu0 %v586
  %1296 = vmatprep.subr.mxu0 0.0
  %1297 = vmatpush1.msra.mxu0 %v587
  %1298 = vmatprep.subr.mxu0 0.0
  %1299 = vmatpush1.msra.mxu0 %v588
  %1300 = vmatprep.subr.mxu0 0.0
  %1301 = vmatpush1.msra.mxu0 %v589
  %1302 = vmatprep.subr.mxu0 0.0
  %1303 = vmatpush1.msra.mxu0 %v590
  %1304 = vmatprep.subr.mxu0 0.0
  %1305 = vmatpush1.msra.mxu0 %v591
  %1306 = vmatprep.subr.mxu0 0.0
  %1307 = vmatpush1.msra.mxu0 %v592
  %1308 = vmatprep.subr.mxu0 0.0
  %1309 = vmatpush1.msra.mxu0 0.0
  %1310 = vmatprep.subr.mxu0 0.0
  %1311 = vmatpush1.msra.mxu0 0.0
  %1312 = vmatprep.subr.mxu0 0.0
  %1313 = vmatpush1.msra.mxu0 0.0
  %1314 = vmatprep.subr.mxu0 0.0
  %1315 = vmatpush1.msra.mxu0 0.0
  %1316 = vmatprep.subr.mxu0 0.0
  %1317 = vmatpush1.msra.mxu0 0.0
  %1318 = vmatprep.subr.mxu0 0.0
  %1319 = vmatpush1.msra.mxu0 0.0
  %1320 = vmatprep.subr.mxu0 0.0
  %1321 = vmatpush1.msra.mxu0 0.0
  %1322 = vmatprep.subr.mxu0 0.0
  %1323 = vmatpush1.msra.mxu0 0.0
  %1324 = vmatprep.subr.mxu0 0.0
  %1325 = vmatpush1.msra.mxu0 0.0
  %1326 = vmatprep.subr.mxu0 0.0
  %1327 = vmatpush1.msra.mxu0 0.0
  %1328 = vmatprep.subr.mxu0 0.0
  %1329 = vmatpush1.msra.mxu0 0.0
  %1330 = vmatprep.subr.mxu0 0.0
  %1331 = vmatpush1.msra.mxu0 0.0
  %1332 = vmatprep.subr.mxu0 0.0
  %1333 = vmatpush1.msra.mxu0 0.0
  %1334 = vmatprep.subr.mxu0 0.0
  %1335 = vmatpush1.msra.mxu0 0.0
  %1336 = vmatprep.subr.mxu0 0.0
  %1337 = vmatpush1.msra.mxu0 0.0
  %1338 = vmatprep.subr.mxu0 0.0
  %1339 = vmatpush1.msra.mxu0 0.0
  %1340 = vmatprep.mubr.f32.mxu0 0.0
  %1341 = vmatmul.mubr.f32.gmra.mrb[0].mxu0 %v1275
  %v1342 = vpop.f32.mrb[0].mxu0
  %v1343 = vadd.f32 0.0, %v1342
  %v1344 = vpop.f32.mrb[0].mxu0
  %1345 = vdwg.mxu0
  %v1346 = vadd.f32 %v1274, %v1343
  %v1347 = vld [vmem:[%s0 + $0x26] sm:$0xff]
  %1348 = vmatprep.subr.mxu0 0.0
  %1349 = vmatpush1.msra.mxu0 %v666
  %1350 = vmatprep.subr.mxu0 0.0
  %1351 = vmatpush1.msra.mxu0 %v667
  %1352 = vmatprep.subr.mxu0 0.0
  %1353 = vmatpush1.msra.mxu0 %v668
  %1354 = vmatprep.subr.mxu0 0.0
  %1355 = vmatpush1.msra.mxu0 %v669
  %1356 = vmatprep.subr.mxu0 0.0
  %1357 = vmatpush1.msra.mxu0 %v670
  %1358 = vmatprep.subr.mxu0 0.0
  %1359 = vmatpush1.msra.mxu0 %v671
  %1360 = vmatprep.subr.mxu0 0.0
  %1361 = vmatpush1.msra.mxu0 %v672
  %1362 = vmatprep.subr.mxu0 0.0
  %1363 = vmatpush1.msra.mxu0 %v673
  %1364 = vmatprep.subr.mxu0 0.0
  %1365 = vmatpush1.msra.mxu0 %v674
  %1366 = vmatprep.subr.mxu0 0.0
  %1367 = vmatpush1.msra.mxu0 %v675
  %1368 = vmatprep.subr.mxu0 0.0
  %1369 = vmatpush1.msra.mxu0 %v676
  %1370 = vmatprep.subr.mxu0 0.0
  %1371 = vmatpush1.msra.mxu0 %v677
  %1372 = vmatprep.subr.mxu0 0.0
  %1373 = vmatpush1.msra.mxu0 %v678
  %1374 = vmatprep.subr.mxu0 0.0
  %1375 = vmatpush1.msra.mxu0 %v679
  %1376 = vmatprep.subr.mxu0 0.0
  %1377 = vmatpush1.msra.mxu0 %v680
  %1378 = vmatprep.subr.mxu0 0.0
  %1379 = vmatpush1.msra.mxu0 %v681
  %1380 = vmatprep.subr.mxu0 0.0
  %1381 = vmatpush1.msra.mxu0 0.0
  %1382 = vmatprep.subr.mxu0 0.0
  %1383 = vmatpush1.msra.mxu0 0.0
  %1384 = vmatprep.subr.mxu0 0.0
  %1385 = vmatpush1.msra.mxu0 0.0
  %1386 = vmatprep.subr.mxu0 0.0
  %1387 = vmatpush1.msra.mxu0 0.0
  %1388 = vmatprep.subr.mxu0 0.0
  %1389 = vmatpush1.msra.mxu0 0.0
  %1390 = vmatprep.subr.mxu0 0.0
  %1391 = vmatpush1.msra.mxu0 0.0
  %1392 = vmatprep.subr.mxu0 0.0
  %1393 = vmatpush1.msra.mxu0 0.0
  %1394 = vmatprep.subr.mxu0 0.0
  %1395 = vmatpush1.msra.mxu0 0.0
  %1396 = vmatprep.subr.mxu0 0.0
  %1397 = vmatpush1.msra.mxu0 0.0
  %1398 = vmatprep.subr.mxu0 0.0
  %1399 = vmatpush1.msra.mxu0 0.0
  %1400 = vmatprep.subr.mxu0 0.0
  %1401 = vmatpush1.msra.mxu0 0.0
  %1402 = vmatprep.subr.mxu0 0.0
  %1403 = vmatpush1.msra.mxu0 0.0
  %1404 = vmatprep.subr.mxu0 0.0
  %1405 = vmatpush1.msra.mxu0 0.0
  %1406 = vmatprep.subr.mxu0 0.0
  %1407 = vmatpush1.msra.mxu0 0.0
  %1408 = vmatprep.subr.mxu0 0.0
  %1409 = vmatpush1.msra.mxu0 0.0
  %1410 = vmatprep.subr.mxu0 0.0
  %1411 = vmatpush1.msra.mxu0 0.0
  %1412 = vmatprep.mubr.f32.mxu0 0.0
  %1413 = vmatmul.mubr.f32.gmra.mrb[0].mxu0 %v1347
  %v1414 = vpop.f32.mrb[0].mxu0
  %v1415 = vadd.f32 0.0, %v1414
  %v1416 = vpop.f32.mrb[0].mxu0
  %1417 = vdwg.mxu0
  %v1418 = vadd.f32 %v1346, %v1415
  %v1419 = vld [vmem:[%s0 + $0x28] sm:$0xff]
  %1420 = vmatprep.subr.mxu0 0.0
  %1421 = vmatpush1.msra.mxu0 %v755
  %1422 = vmatprep.subr.mxu0 0.0
  %1423 = vmatpush1.msra.mxu0 %v756
  %1424 = vmatprep.subr.mxu0 0.0
  %1425 = vmatpush1.msra.mxu0 %v757
  %1426 = vmatprep.subr.mxu0 0.0
  %1427 = vmatpush1.msra.mxu0 %v758
  %1428 = vmatprep.subr.mxu0 0.0
  %1429 = vmatpush1.msra.mxu0 %v759
  %1430 = vmatprep.subr.mxu0 0.0
  %1431 = vmatpush1.msra.mxu0 %v760
  %1432 = vmatprep.subr.mxu0 0.0
  %1433 = vmatpush1.msra.mxu0 %v761
  %1434 = vmatprep.subr.mxu0 0.0
  %1435 = vmatpush1.msra.mxu0 %v762
  %1436 = vmatprep.subr.mxu0 0.0
  %1437 = vmatpush1.msra.mxu0 %v763
  %1438 = vmatprep.subr.mxu0 0.0
  %1439 = vmatpush1.msra.mxu0 %v764
  %1440 = vmatprep.subr.mxu0 0.0
  %1441 = vmatpush1.msra.mxu0 %v765
  %1442 = vmatprep.subr.mxu0 0.0
  %1443 = vmatpush1.msra.mxu0 %v766
  %1444 = vmatprep.subr.mxu0 0.0
  %1445 = vmatpush1.msra.mxu0 %v767
  %1446 = vmatprep.subr.mxu0 0.0
  %1447 = vmatpush1.msra.mxu0 %v768
  %1448 = vmatprep.subr.mxu0 0.0
  %1449 = vmatpush1.msra.mxu0 %v769
  %1450 = vmatprep.subr.mxu0 0.0
  %1451 = vmatpush1.msra.mxu0 %v770
  %1452 = vmatprep.subr.mxu0 0.0
  %1453 = vmatpush1.msra.mxu0 0.0
  %1454 = vmatprep.subr.mxu0 0.0
  %1455 = vmatpush1.msra.mxu0 0.0
  %1456 = vmatprep.subr.mxu0 0.0
  %1457 = vmatpush1.msra.mxu0 0.0
  %1458 = vmatprep.subr.mxu0 0.0
  %1459 = vmatpush1.msra.mxu0 0.0
  %1460 = vmatprep.subr.mxu0 0.0
  %1461 = vmatpush1.msra.mxu0 0.0
  %1462 = vmatprep.subr.mxu0 0.0
  %1463 = vmatpush1.msra.mxu0 0.0
  %1464 = vmatprep.subr.mxu0 0.0
  %1465 = vmatpush1.msra.mxu0 0.0
  %1466 = vmatprep.subr.mxu0 0.0
  %1467 = vmatpush1.msra.mxu0 0.0
  %1468 = vmatprep.subr.mxu0 0.0
  %1469 = vmatpush1.msra.mxu0 0.0
  %1470 = vmatprep.subr.mxu0 0.0
  %1471 = vmatpush1.msra.mxu0 0.0
  %1472 = vmatprep.subr.mxu0 0.0
  %1473 = vmatpush1.msra.mxu0 0.0
  %1474 = vmatprep.subr.mxu0 0.0
  %1475 = vmatpush1.msra.mxu0 0.0
  %1476 = vmatprep.subr.mxu0 0.0
  %1477 = vmatpush1.msra.mxu0 0.0
  %1478 = vmatprep.subr.mxu0 0.0
  %1479 = vmatpush1.msra.mxu0 0.0
  %1480 = vmatprep.subr.mxu0 0.0
  %1481 = vmatpush1.msra.mxu0 0.0
  %1482 = vmatprep.subr.mxu0 0.0
  %1483 = vmatpush1.msra.mxu0 0.0
  %1484 = vmatprep.mubr.f32.mxu0 0.0
  %1485 = vmatmul.mubr.f32.gmra.mrb[0].mxu0 %v1419
  %v1486 = vpop.f32.mrb[0].mxu0
  %v1487 = vadd.f32 0.0, %v1486
  %v1488 = vpop.f32.mrb[0].mxu0
  %1489 = vdwg.mxu0
  %v1490 = vadd.f32 %v1418, %v1487
  %v1491 = vadd.f32 %v1490, %v847
  %v1492 = vmax.f32 %v1491, 0.0
  %1493 = vmatprep.subr.mxu0 0.0
  %1494 = vmatpush1.msra.mxu0 %v63
  %1495 = vmatprep.subr.mxu0 0.0
  %1496 = vmatpush1.msra.mxu0 %v64
  %1497 = vmatprep.subr.mxu0 0.0
  %1498 = vmatpush1.msra.mxu0 %v65
  %1499 = vmatprep.subr.mxu0 0.0
  %1500 = vmatpush1.msra.mxu0 %v66
  %1501 = vmatprep.subr.mxu0 0.0
  %1502 = vmatpush1.msra.mxu0 %v67
  %1503 = vmatprep.subr.mxu0 0.0
  %1504 = vmatpush1.msra.mxu0 %v68
  %1505 = vmatprep.subr.mxu0 0.0
  %1506 = vmatpush1.msra.mxu0 %v69
  %1507 = vmatprep.subr.mxu0 0.0
  %1508 = vmatpush1.msra.mxu0 %v70
  %1509 = vmatprep.subr.mxu0 0.0
  %1510 = vmatpush1.msra.mxu0 %v71
  %1511 = vmatprep.subr.mxu0 0.0
  %1512 = vmatpush1.msra.mxu0 %v72
  %1513 = vmatprep.subr.mxu0 0.0
  %1514 = vmatpush1.msra.mxu0 %v73
  %1515 = vmatprep.subr.mxu0 0.0
  %1516 = vmatpush1.msra.mxu0 %v74
  %1517 = vmatprep.subr.mxu0 0.0
  %1518 = vmatpush1.msra.mxu0 %v75
  %1519 = vmatprep.subr.mxu0 0.0
  %1520 = vmatpush1.msra.mxu0 %v76
  %1521 = vmatprep.subr.mxu0 0.0
  %1522 = vmatpush1.msra.mxu0 %v77
  %1523 = vmatprep.subr.mxu0 0.0
  %1524 = vmatpush1.msra.mxu0 %v78
  %1525 = vmatprep.subr.mxu0 0.0
  %1526 = vmatpush1.msra.mxu0 0.0
  %1527 = vmatprep.subr.mxu0 0.0
  %1528 = vmatpush1.msra.mxu0 0.0
  %1529 = vmatprep.subr.mxu0 0.0
  %1530 = vmatpush1.msra.mxu0 0.0
  %1531 = vmatprep.subr.mxu0 0.0
  %1532 = vmatpush1.msra.mxu0 0.0
  %1533 = vmatprep.subr.mxu0 0.0
  %1534 = vmatpush1.msra.mxu0 0.0
  %1535 = vmatprep.subr.mxu0 0.0
  %1536 = vmatpush1.msra.mxu0 0.0
  %1537 = vmatprep.subr.mxu0 0.0
  %1538 = vmatpush1.msra.mxu0 0.0
  %1539 = vmatprep.subr.mxu0 0.0
  %1540 = vmatpush1.msra.mxu0 0.0
  %1541 = vmatprep.subr.mxu0 0.0
  %1542 = vmatpush1.msra.mxu0 0.0
  %1543 = vmatprep.subr.mxu0 0.0
  %1544 = vmatpush1.msra.mxu0 0.0
  %1545 = vmatprep.subr.mxu0 0.0
  %1546 = vmatpush1.msra.mxu0 0.0
  %1547 = vmatprep.subr.mxu0 0.0
  %1548 = vmatpush1.msra.mxu0 0.0
  %1549 = vmatprep.subr.mxu0 0.0
  %1550 = vmatpush1.msra.mxu0 0.0
  %1551 = vmatprep.subr.mxu0 0.0
  %1552 = vmatpush1.msra.mxu0 0.0
  %1553 = vmatprep.subr.mxu0 0.0
  %1554 = vmatpush1.msra.mxu0 0.0
  %1555 = vmatprep.subr.mxu0 0.0
  %1556 = vmatpush1.msra.mxu0 0.0
  %1557 = vmatprep.mubr.f32.mxu0 0.0
  %1558 = vmatmul.mubr.f32.gmra.mrb[0].mxu0 %v664
  %v1559 = vpop.f32.mrb[0].mxu0
  %v1560 = vadd.f32 0.0, %v1559
  %v1561 = vpop.f32.mrb[0].mxu0
  %1562 = vdwg.mxu0
  %1563 = vmatprep.subr.mxu0 0.0
  %1564 = vmatpush1.msra.mxu0 %v45
  %1565 = vmatprep.subr.mxu0 0.0
  %1566 = vmatpush1.msra.mxu0 %v46
  %1567 = vmatprep.subr.mxu0 0.0
  %1568 = vmatpush1.msra.mxu0 %v47
  %1569 = vmatprep.subr.mxu0 0.0
  %1570 = vmatpush1.msra.mxu0 %v48
  %1571 = vmatprep.subr.mxu0 0.0
  %1572 = vmatpush1.msra.mxu0 %v49
  %1573 = vmatprep.subr.mxu0 0.0
  %1574 = vmatpush1.msra.mxu0 %v50
  %1575 = vmatprep.subr.mxu0 0.0
  %1576 = vmatpush1.msra.mxu0 %v51
  %1577 = vmatprep.subr.mxu0 0.0
  %1578 = vmatpush1.msra.mxu0 %v52
  %1579 = vmatprep.subr.mxu0 0.0
  %1580 = vmatpush1.msra.mxu0 %v53
  %1581 = vmatprep.subr.mxu0 0.0
  %1582 = vmatpush1.msra.mxu0 %v54
  %1583 = vmatprep.subr.mxu0 0.0
  %1584 = vmatpush1.msra.mxu0 %v55
  %1585 = vmatprep.subr.mxu0 0.0
  %1586 = vmatpush1.msra.mxu0 %v56
  %1587 = vmatprep.subr.mxu0 0.0
  %1588 = vmatpush1.msra.mxu0 %v57
  %1589 = vmatprep.subr.mxu0 0.0
  %1590 = vmatpush1.msra.mxu0 %v58
  %1591 = vmatprep.subr.mxu0 0.0
  %1592 = vmatpush1.msra.mxu0 %v59
  %1593 = vmatprep.subr.mxu0 0.0
  %1594 = vmatpush1.msra.mxu0 %v60
  %1595 = vmatprep.subr.mxu0 0.0
  %1596 = vmatpush1.msra.mxu0 0.0
  %1597 = vmatprep.subr.mxu0 0.0
  %1598 = vmatpush1.msra.mxu0 0.0
  %1599 = vmatprep.subr.mxu0 0.0
  %1600 = vmatpush1.msra.mxu0 0.0
  %1601 = vmatprep.subr.mxu0 0.0
  %1602 = vmatpush1.msra.mxu0 0.0
  %1603 = vmatprep.subr.mxu0 0.0
  %1604 = vmatpush1.msra.mxu0 0.0
  %1605 = vmatprep.subr.mxu0 0.0
  %1606 = vmatpush1.msra.mxu0 0.0
  %1607 = vmatprep.subr.mxu0 0.0
  %1608 = vmatpush1.msra.mxu0 0.0
  %1609 = vmatprep.subr.mxu0 0.0
  %1610 = vmatpush1.msra.mxu0 0.0
  %1611 = vmatprep.subr.mxu0 0.0
  %1612 = vmatpush1.msra.mxu0 0.0
  %1613 = vmatprep.subr.mxu0 0.0
  %1614 = vmatpush1.msra.mxu0 0.0
  %1615 = vmatprep.subr.mxu0 0.0
  %1616 = vmatpush1.msra.mxu0 0.0
  %1617 = vmatprep.subr.mxu0 0.0
  %1618 = vmatpush1.msra.mxu0 0.0
  %1619 = vmatprep.subr.mxu0 0.0
  %1620 = vmatpush1.msra.mxu0 0.0
  %1621 = vmatprep.subr.mxu0 0.0
  %1622 = vmatpush1.msra.mxu0 0.0
  %1623 = vmatprep.subr.mxu0 0.0
  %1624 = vmatpush1.msra.mxu0 0.0
  %1625 = vmatprep.subr.mxu0 0.0
  %1626 = vmatpush1.msra.mxu0 0.0
  %1627 = vmatprep.mubr.f32.mxu0 0.0
  %1628 = vmatmul.mubr.f32.gmra.mrb[0].mxu0 %v575
  %v1629 = vpop.f32.mrb[0].mxu0
  %v1630 = vadd.f32 %v1560, %v1629
  %v1631 = vpop.f32.mrb[0].mxu0
  %1632 = vdwg.mxu0
  %1633 = vmatprep.subr.mxu0 0.0
  %1634 = vmatpush1.msra.mxu0 %v221
  %1635 = vmatprep.subr.mxu0 0.0
  %1636 = vmatpush1.msra.mxu0 %v222
  %1637 = vmatprep.subr.mxu0 0.0
  %1638 = vmatpush1.msra.mxu0 %v223
  %1639 = vmatprep.subr.mxu0 0.0
  %1640 = vmatpush1.msra.mxu0 %v224
  %1641 = vmatprep.subr.mxu0 0.0
  %1642 = vmatpush1.msra.mxu0 %v225
  %1643 = vmatprep.subr.mxu0 0.0
  %1644 = vmatpush1.msra.mxu0 %v226
  %1645 = vmatprep.subr.mxu0 0.0
  %1646 = vmatpush1.msra.mxu0 %v227
  %1647 = vmatprep.subr.mxu0 0.0
  %1648 = vmatpush1.msra.mxu0 %v228
  %1649 = vmatprep.subr.mxu0 0.0
  %1650 = vmatpush1.msra.mxu0 %v229
  %1651 = vmatprep.subr.mxu0 0.0
  %1652 = vmatpush1.msra.mxu0 %v230
  %1653 = vmatprep.subr.mxu0 0.0
  %1654 = vmatpush1.msra.mxu0 %v231
  %1655 = vmatprep.subr.mxu0 0.0
  %1656 = vmatpush1.msra.mxu0 %v232
  %1657 = vmatprep.subr.mxu0 0.0
  %1658 = vmatpush1.msra.mxu0 %v233
  %1659 = vmatprep.subr.mxu0 0.0
  %1660 = vmatpush1.msra.mxu0 %v234
  %1661 = vmatprep.subr.mxu0 0.0
  %1662 = vmatpush1.msra.mxu0 %v235
  %1663 = vmatprep.subr.mxu0 0.0
  %1664 = vmatpush1.msra.mxu0 %v236
  %1665 = vmatprep.subr.mxu0 0.0
  %1666 = vmatpush1.msra.mxu0 0.0
  %1667 = vmatprep.subr.mxu0 0.0
  %1668 = vmatpush1.msra.mxu0 0.0
  %1669 = vmatprep.subr.mxu0 0.0
  %1670 = vmatpush1.msra.mxu0 0.0
  %1671 = vmatprep.subr.mxu0 0.0
  %1672 = vmatpush1.msra.mxu0 0.0
  %1673 = vmatprep.subr.mxu0 0.0
  %1674 = vmatpush1.msra.mxu0 0.0
  %1675 = vmatprep.subr.mxu0 0.0
  %1676 = vmatpush1.msra.mxu0 0.0
  %1677 = vmatprep.subr.mxu0 0.0
  %1678 = vmatpush1.msra.mxu0 0.0
  %1679 = vmatprep.subr.mxu0 0.0
  %1680 = vmatpush1.msra.mxu0 0.0
  %1681 = vmatprep.subr.mxu0 0.0
  %1682 = vmatpush1.msra.mxu0 0.0
  %1683 = vmatprep.subr.mxu0 0.0
  %1684 = vmatpush1.msra.mxu0 0.0
  %1685 = vmatprep.subr.mxu0 0.0
  %1686 = vmatpush1.msra.mxu0 0.0
  %1687 = vmatprep.subr.mxu0 0.0
  %1688 = vmatpush1.msra.mxu0 0.0
  %1689 = vmatprep.subr.mxu0 0.0
  %1690 = vmatpush1.msra.mxu0 0.0
  %1691 = vmatprep.subr.mxu0 0.0
  %1692 = vmatpush1.msra.mxu0 0.0
  %1693 = vmatprep.subr.mxu0 0.0
  %1694 = vmatpush1.msra.mxu0 0.0
  %1695 = vmatprep.subr.mxu0 0.0
  %1696 = vmatpush1.msra.mxu0 0.0
  %1697 = vmatprep.mubr.f32.mxu0 0.0
  %1698 = vmatmul.mubr.f32.gmra.mrb[0].mxu0 %v753
  %v1699 = vpop.f32.mrb[0].mxu0
  %v1700 = vadd.f32 0.0, %v1699
  %v1701 = vpop.f32.mrb[0].mxu0
  %1702 = vdwg.mxu0
  %v1703 = vadd.f32 %v1630, %v1700
  %1704 = vmatprep.subr.mxu0 0.0
  %1705 = vmatpush1.msra.mxu0 %v310
  %1706 = vmatprep.subr.mxu0 0.0
  %1707 = vmatpush1.msra.mxu0 %v311
  %1708 = vmatprep.subr.mxu0 0.0
  %1709 = vmatpush1.msra.mxu0 %v312
  %1710 = vmatprep.subr.mxu0 0.0
  %1711 = vmatpush1.msra.mxu0 %v313
  %1712 = vmatprep.subr.mxu0 0.0
  %1713 = vmatpush1.msra.mxu0 %v314
  %1714 = vmatprep.subr.mxu0 0.0
  %1715 = vmatpush1.msra.mxu0 %v315
  %1716 = vmatprep.subr.mxu0 0.0
  %1717 = vmatpush1.msra.mxu0 %v316
  %1718 = vmatprep.subr.mxu0 0.0
  %1719 = vmatpush1.msra.mxu0 %v317
  %1720 = vmatprep.subr.mxu0 0.0
  %1721 = vmatpush1.msra.mxu0 %v318
  %1722 = vmatprep.subr.mxu0 0.0
  %1723 = vmatpush1.msra.mxu0 %v319
  %1724 = vmatprep.subr.mxu0 0.0
  %1725 = vmatpush1.msra.mxu0 %v320
  %1726 = vmatprep.subr.mxu0 0.0
  %1727 = vmatpush1.msra.mxu0 %v321
  %1728 = vmatprep.subr.mxu0 0.0
  %1729 = vmatpush1.msra.mxu0 %v322
  %1730 = vmatprep.subr.mxu0 0.0
  %1731 = vmatpush1.msra.mxu0 %v323
  %1732 = vmatprep.subr.mxu0 0.0
  %1733 = vmatpush1.msra.mxu0 %v324
  %1734 = vmatprep.subr.mxu0 0.0
  %1735 = vmatpush1.msra.mxu0 %v325
  %1736 = vmatprep.subr.mxu0 0.0
  %1737 = vmatpush1.msra.mxu0 0.0
  %1738 = vmatprep.subr.mxu0 0.0
  %1739 = vmatpush1.msra.mxu0 0.0
  %1740 = vmatprep.subr.mxu0 0.0
  %1741 = vmatpush1.msra.mxu0 0.0
  %1742 = vmatprep.subr.mxu0 0.0
  %1743 = vmatpush1.msra.mxu0 0.0
  %1744 = vmatprep.subr.mxu0 0.0
  %1745 = vmatpush1.msra.mxu0 0.0
  %1746 = vmatprep.subr.mxu0 0.0
  %1747 = vmatpush1.msra.mxu0 0.0
  %1748 = vmatprep.subr.mxu0 0.0
  %1749 = vmatpush1.msra.mxu0 0.0
  %1750 = vmatprep.subr.mxu0 0.0
  %1751 = vmatpush1.msra.mxu0 0.0
  %1752 = vmatprep.subr.mxu0 0.0
  %1753 = vmatpush1.msra.mxu0 0.0
  %1754 = vmatprep.subr.mxu0 0.0
  %1755 = vmatpush1.msra.mxu0 0.0
  %1756 = vmatprep.subr.mxu0 0.0
  %1757 = vmatpush1.msra.mxu0 0.0
  %1758 = vmatprep.subr.mxu0 0.0
  %1759 = vmatpush1.msra.mxu0 0.0
  %1760 = vmatprep.subr.mxu0 0.0
  %1761 = vmatpush1.msra.mxu0 0.0
  %1762 = vmatprep.subr.mxu0 0.0
  %1763 = vmatpush1.msra.mxu0 0.0
  %1764 = vmatprep.subr.mxu0 0.0
  %1765 = vmatpush1.msra.mxu0 0.0
  %1766 = vmatprep.subr.mxu0 0.0
  %1767 = vmatpush1.msra.mxu0 0.0
  %1768 = vmatprep.mubr.f32.mxu0 0.0
  %1769 = vmatmul.mubr.f32.gmra.mrb[0].mxu0 %v1275
  %v1770 = vpop.f32.mrb[0].mxu0
  %v1771 = vadd.f32 0.0, %v1770
  %v1772 = vpop.f32.mrb[0].mxu0
  %1773 = vdwg.mxu0
  %v1774 = vadd.f32 %v1703, %v1771
  %1775 = vmatprep.subr.mxu0 0.0
  %1776 = vmatpush1.msra.mxu0 %v399
  %1777 = vmatprep.subr.mxu0 0.0
  %1778 = vmatpush1.msra.mxu0 %v400
  %1779 = vmatprep.subr.mxu0 0.0
  %1780 = vmatpush1.msra.mxu0 %v401
  %1781 = vmatprep.subr.mxu0 0.0
  %1782 = vmatpush1.msra.mxu0 %v402
  %1783 = vmatprep.subr.mxu0 0.0
  %1784 = vmatpush1.msra.mxu0 %v403
  %1785 = vmatprep.subr.mxu0 0.0
  %1786 = vmatpush1.msra.mxu0 %v404
  %1787 = vmatprep.subr.mxu0 0.0
  %1788 = vmatpush1.msra.mxu0 %v405
  %1789 = vmatprep.subr.mxu0 0.0
  %1790 = vmatpush1.msra.mxu0 %v406
  %1791 = vmatprep.subr.mxu0 0.0
  %1792 = vmatpush1.msra.mxu0 %v407
  %1793 = vmatprep.subr.mxu0 0.0
  %1794 = vmatpush1.msra.mxu0 %v408
  %1795 = vmatprep.subr.mxu0 0.0
  %1796 = vmatpush1.msra.mxu0 %v409
  %1797 = vmatprep.subr.mxu0 0.0
  %1798 = vmatpush1.msra.mxu0 %v410
  %1799 = vmatprep.subr.mxu0 0.0
  %1800 = vmatpush1.msra.mxu0 %v411
  %1801 = vmatprep.subr.mxu0 0.0
  %1802 = vmatpush1.msra.mxu0 %v412
  %1803 = vmatprep.subr.mxu0 0.0
  %1804 = vmatpush1.msra.mxu0 %v413
  %1805 = vmatprep.subr.mxu0 0.0
  %1806 = vmatpush1.msra.mxu0 %v414
  %1807 = vmatprep.subr.mxu0 0.0
  %1808 = vmatpush1.msra.mxu0 0.0
  %1809 = vmatprep.subr.mxu0 0.0
  %1810 = vmatpush1.msra.mxu0 0.0
  %1811 = vmatprep.subr.mxu0 0.0
  %1812 = vmatpush1.msra.mxu0 0.0
  %1813 = vmatprep.subr.mxu0 0.0
  %1814 = vmatpush1.msra.mxu0 0.0
  %1815 = vmatprep.subr.mxu0 0.0
  %1816 = vmatpush1.msra.mxu0 0.0
  %1817 = vmatprep.subr.mxu0 0.0
  %1818 = vmatpush1.msra.mxu0 0.0
  %1819 = vmatprep.subr.mxu0 0.0
  %1820 = vmatpush1.msra.mxu0 0.0
  %1821 = vmatprep.subr.mxu0 0.0
  %1822 = vmatpush1.msra.mxu0 0.0
  %1823 = vmatprep.subr.mxu0 0.0
  %1824 = vmatpush1.msra.mxu0 0.0
  %1825 = vmatprep.subr.mxu0 0.0
  %1826 = vmatpush1.msra.mxu0 0.0
  %1827 = vmatprep.subr.mxu0 0.0
  %1828 = vmatpush1.msra.mxu0 0.0
  %1829 = vmatprep.subr.mxu0 0.0
  %1830 = vmatpush1.msra.mxu0 0.0
  %1831 = vmatprep.subr.mxu0 0.0
  %1832 = vmatpush1.msra.mxu0 0.0
  %1833 = vmatprep.subr.mxu0 0.0
  %1834 = vmatpush1.msra.mxu0 0.0
  %1835 = vmatprep.subr.mxu0 0.0
  %1836 = vmatpush1.msra.mxu0 0.0
  %1837 = vmatprep.subr.mxu0 0.0
  %1838 = vmatpush1.msra.mxu0 0.0
  %1839 = vmatprep.mubr.f32.mxu0 0.0
  %1840 = vmatmul.mubr.f32.gmra.mrb[0].mxu0 %v1347
  %v1841 = vpop.f32.mrb[0].mxu0
  %v1842 = vadd.f32 0.0, %v1841
  %v1843 = vpop.f32.mrb[0].mxu0
  %1844 = vdwg.mxu0
  %v1845 = vadd.f32 %v1774, %v1842
  %1846 = vmatprep.subr.mxu0 0.0
  %1847 = vmatpush1.msra.mxu0 %v488
  %1848 = vmatprep.subr.mxu0 0.0
  %1849 = vmatpush1.msra.mxu0 %v489
  %1850 = vmatprep.subr.mxu0 0.0
  %1851 = vmatpush1.msra.mxu0 %v490
  %1852 = vmatprep.subr.mxu0 0.0
  %1853 = vmatpush1.msra.mxu0 %v491
  %1854 = vmatprep.subr.mxu0 0.0
  %1855 = vmatpush1.msra.mxu0 %v492
  %1856 = vmatprep.subr.mxu0 0.0
  %1857 = vmatpush1.msra.mxu0 %v493
  %1858 = vmatprep.subr.mxu0 0.0
  %1859 = vmatpush1.msra.mxu0 %v494
  %1860 = vmatprep.subr.mxu0 0.0
  %1861 = vmatpush1.msra.mxu0 %v495
  %1862 = vmatprep.subr.mxu0 0.0
  %1863 = vmatpush1.msra.mxu0 %v496
  %1864 = vmatprep.subr.mxu0 0.0
  %1865 = vmatpush1.msra.mxu0 %v497
  %1866 = vmatprep.subr.mxu0 0.0
  %1867 = vmatpush1.msra.mxu0 %v498
  %1868 = vmatprep.subr.mxu0 0.0
  %1869 = vmatpush1.msra.mxu0 %v499
  %1870 = vmatprep.subr.mxu0 0.0
  %1871 = vmatpush1.msra.mxu0 %v500
  %1872 = vmatprep.subr.mxu0 0.0
  %1873 = vmatpush1.msra.mxu0 %v501
  %1874 = vmatprep.subr.mxu0 0.0
  %1875 = vmatpush1.msra.mxu0 %v502
  %1876 = vmatprep.subr.mxu0 0.0
  %1877 = vmatpush1.msra.mxu0 %v503
  %1878 = vmatprep.subr.mxu0 0.0
  %1879 = vmatpush1.msra.mxu0 0.0
  %1880 = vmatprep.subr.mxu0 0.0
  %1881 = vmatpush1.msra.mxu0 0.0
  %1882 = vmatprep.subr.mxu0 0.0
  %1883 = vmatpush1.msra.mxu0 0.0
  %1884 = vmatprep.subr.mxu0 0.0
  %1885 = vmatpush1.msra.mxu0 0.0
  %1886 = vmatprep.subr.mxu0 0.0
  %1887 = vmatpush1.msra.mxu0 0.0
  %1888 = vmatprep.subr.mxu0 0.0
  %1889 = vmatpush1.msra.mxu0 0.0
  %1890 = vmatprep.subr.mxu0 0.0
  %1891 = vmatpush1.msra.mxu0 0.0
  %1892 = vmatprep.subr.mxu0 0.0
  %1893 = vmatpush1.msra.mxu0 0.0
  %1894 = vmatprep.subr.mxu0 0.0
  %1895 = vmatpush1.msra.mxu0 0.0
  %1896 = vmatprep.subr.mxu0 0.0
  %1897 = vmatpush1.msra.mxu0 0.0
  %1898 = vmatprep.subr.mxu0 0.0
  %1899 = vmatpush1.msra.mxu0 0.0
  %1900 = vmatprep.subr.mxu0 0.0
  %1901 = vmatpush1.msra.mxu0 0.0
  %1902 = vmatprep.subr.mxu0 0.0
  %1903 = vmatpush1.msra.mxu0 0.0
  %1904 = vmatprep.subr.mxu0 0.0
  %1905 = vmatpush1.msra.mxu0 0.0
  %1906 = vmatprep.subr.mxu0 0.0
  %1907 = vmatpush1.msra.mxu0 0.0
  %1908 = vmatprep.subr.mxu0 0.0
  %1909 = vmatpush1.msra.mxu0 0.0
  %1910 = vmatprep.mubr.f32.mxu0 0.0
  %1911 = vmatmul.mubr.f32.gmra.mrb[0].mxu0 %v1419
  %v1912 = vpop.f32.mrb[0].mxu0
  %v1913 = vadd.f32 0.0, %v1912
  %v1914 = vpop.f32.mrb[0].mxu0
  %1915 = vdwg.mxu0
  %v1916 = vadd.f32 %v1845, %v1913
  %v1917 = vld [vmem:[%s0 + $0x30] sm:$0xff]
  %1918 = vmatprep.subr.mxu0 0.0
  %1919 = vmatpush1.msra.mxu0 %v577
  %1920 = vmatprep.subr.mxu0 0.0
  %1921 = vmatpush1.msra.mxu0 %v578
  %1922 = vmatprep.subr.mxu0 0.0
  %1923 = vmatpush1.msra.mxu0 %v579
  %1924 = vmatprep.subr.mxu0 0.0
  %1925 = vmatpush1.msra.mxu0 %v580
  %1926 = vmatprep.subr.mxu0 0.0
  %1927 = vmatpush1.msra.mxu0 %v581
  %1928 = vmatprep.subr.mxu0 0.0
  %1929 = vmatpush1.msra.mxu0 %v582
  %1930 = vmatprep.subr.mxu0 0.0
  %1931 = vmatpush1.msra.mxu0 %v583
  %1932 = vmatprep.subr.mxu0 0.0
  %1933 = vmatpush1.msra.mxu0 %v584
  %1934 = vmatprep.subr.mxu0 0.0
  %1935 = vmatpush1.msra.mxu0 %v585
  %1936 = vmatprep.subr.mxu0 0.0
  %1937 = vmatpush1.msra.mxu0 %v586
  %1938 = vmatprep.subr.mxu0 0.0
  %1939 = vmatpush1.msra.mxu0 %v587
  %1940 = vmatprep.subr.mxu0 0.0
  %1941 = vmatpush1.msra.mxu0 %v588
  %1942 = vmatprep.subr.mxu0 0.0
  %1943 = vmatpush1.msra.mxu0 %v589
  %1944 = vmatprep.subr.mxu0 0.0
  %1945 = vmatpush1.msra.mxu0 %v590
  %1946 = vmatprep.subr.mxu0 0.0
  %1947 = vmatpush1.msra.mxu0 %v591
  %1948 = vmatprep.subr.mxu0 0.0
  %1949 = vmatpush1.msra.mxu0 %v592
  %1950 = vmatprep.subr.mxu0 0.0
  %1951 = vmatpush1.msra.mxu0 0.0
  %1952 = vmatprep.subr.mxu0 0.0
  %1953 = vmatpush1.msra.mxu0 0.0
  %1954 = vmatprep.subr.mxu0 0.0
  %1955 = vmatpush1.msra.mxu0 0.0
  %1956 = vmatprep.subr.mxu0 0.0
  %1957 = vmatpush1.msra.mxu0 0.0
  %1958 = vmatprep.subr.mxu0 0.0
  %1959 = vmatpush1.msra.mxu0 0.0
  %1960 = vmatprep.subr.mxu0 0.0
  %1961 = vmatpush1.msra.mxu0 0.0
  %1962 = vmatprep.subr.mxu0 0.0
  %1963 = vmatpush1.msra.mxu0 0.0
  %1964 = vmatprep.subr.mxu0 0.0
  %1965 = vmatpush1.msra.mxu0 0.0
  %1966 = vmatprep.subr.mxu0 0.0
  %1967 = vmatpush1.msra.mxu0 0.0
  %1968 = vmatprep.subr.mxu0 0.0
  %1969 = vmatpush1.msra.mxu0 0.0
  %1970 = vmatprep.subr.mxu0 0.0
  %1971 = vmatpush1.msra.mxu0 0.0
  %1972 = vmatprep.subr.mxu0 0.0
  %1973 = vmatpush1.msra.mxu0 0.0
  %1974 = vmatprep.subr.mxu0 0.0
  %1975 = vmatpush1.msra.mxu0 0.0
  %1976 = vmatprep.subr.mxu0 0.0
  %1977 = vmatpush1.msra.mxu0 0.0
  %1978 = vmatprep.subr.mxu0 0.0
  %1979 = vmatpush1.msra.mxu0 0.0
  %1980 = vmatprep.subr.mxu0 0.0
  %1981 = vmatpush1.msra.mxu0 0.0
  %1982 = vmatprep.mubr.f32.mxu0 0.0
  %1983 = vmatmul.mubr.f32.gmra.mrb[0].mxu0 %v1917
  %v1984 = vpop.f32.mrb[0].mxu0
  %v1985 = vadd.f32 0.0, %v1984
  %v1986 = vpop.f32.mrb[0].mxu0
  %1987 = vdwg.mxu0
  %v1988 = vadd.f32 %v1916, %v1985
  %v1989 = vld [vmem:[%s0 + $0x32] sm:$0xff]
  %1990 = vmatprep.subr.mxu0 0.0
  %1991 = vmatpush1.msra.mxu0 %v666
  %1992 = vmatprep.subr.mxu0 0.0
  %1993 = vmatpush1.msra.mxu0 %v667
  %1994 = vmatprep.subr.mxu0 0.0
  %1995 = vmatpush1.msra.mxu0 %v668
  %1996 = vmatprep.subr.mxu0 0.0
  %1997 = vmatpush1.msra.mxu0 %v669
  %1998 = vmatprep.subr.mxu0 0.0
  %1999 = vmatpush1.msra.mxu0 %v670
  %2000 = vmatprep.subr.mxu0 0.0
  %2001 = vmatpush1.msra.mxu0 %v671
  %2002 = vmatprep.subr.mxu0 0.0
  %2003 = vmatpush1.msra.mxu0 %v672
  %2004 = vmatprep.subr.mxu0 0.0
  %2005 = vmatpush1.msra.mxu0 %v673
  %2006 = vmatprep.subr.mxu0 0.0
  %2007 = vmatpush1.msra.mxu0 %v674
  %2008 = vmatprep.subr.mxu0 0.0
  %2009 = vmatpush1.msra.mxu0 %v675
  %2010 = vmatprep.subr.mxu0 0.0
  %2011 = vmatpush1.msra.mxu0 %v676
  %2012 = vmatprep.subr.mxu0 0.0
  %2013 = vmatpush1.msra.mxu0 %v677
  %2014 = vmatprep.subr.mxu0 0.0
  %2015 = vmatpush1.msra.mxu0 %v678
  %2016 = vmatprep.subr.mxu0 0.0
  %2017 = vmatpush1.msra.mxu0 %v679
  %2018 = vmatprep.subr.mxu0 0.0
  %2019 = vmatpush1.msra.mxu0 %v680
  %2020 = vmatprep.subr.mxu0 0.0
  %2021 = vmatpush1.msra.mxu0 %v681
  %2022 = vmatprep.subr.mxu0 0.0
  %2023 = vmatpush1.msra.mxu0 0.0
  %2024 = vmatprep.subr.mxu0 0.0
  %2025 = vmatpush1.msra.mxu0 0.0
  %2026 = vmatprep.subr.mxu0 0.0
  %2027 = vmatpush1.msra.mxu0 0.0
  %2028 = vmatprep.subr.mxu0 0.0
  %2029 = vmatpush1.msra.mxu0 0.0
  %2030 = vmatprep.subr.mxu0 0.0
  %2031 = vmatpush1.msra.mxu0 0.0
  %2032 = vmatprep.subr.mxu0 0.0
  %2033 = vmatpush1.msra.mxu0 0.0
  %2034 = vmatprep.subr.mxu0 0.0
  %2035 = vmatpush1.msra.mxu0 0.0
  %2036 = vmatprep.subr.mxu0 0.0
  %2037 = vmatpush1.msra.mxu0 0.0
  %2038 = vmatprep.subr.mxu0 0.0
  %2039 = vmatpush1.msra.mxu0 0.0
  %2040 = vmatprep.subr.mxu0 0.0
  %2041 = vmatpush1.msra.mxu0 0.0
  %2042 = vmatprep.subr.mxu0 0.0
  %2043 = vmatpush1.msra.mxu0 0.0
  %2044 = vmatprep.subr.mxu0 0.0
  %2045 = vmatpush1.msra.mxu0 0.0
  %2046 = vmatprep.subr.mxu0 0.0
  %2047 = vmatpush1.msra.mxu0 0.0
  %2048 = vmatprep.subr.mxu0 0.0
  %2049 = vmatpush1.msra.mxu0 0.0
  %2050 = vmatprep.subr.mxu0 0.0
  %2051 = vmatpush1.msra.mxu0 0.0
  %2052 = vmatprep.subr.mxu0 0.0
  %2053 = vmatpush1.msra.mxu0 0.0
  %2054 = vmatprep.mubr.f32.mxu0 0.0
  %2055 = vmatmul.mubr.f32.gmra.mrb[0].mxu0 %v1989
  %v2056 = vpop.f32.mrb[0].mxu0
  %v2057 = vadd.f32 0.0, %v2056
  %v2058 = vpop.f32.mrb[0].mxu0
  %2059 = vdwg.mxu0
  %v2060 = vadd.f32 %v1988, %v2057
  %v2061 = vld [vmem:[%s0 + $0x34] sm:$0xff]
  %2062 = vmatprep.subr.mxu0 0.0
  %2063 = vmatpush1.msra.mxu0 %v755
  %2064 = vmatprep.subr.mxu0 0.0
  %2065 = vmatpush1.msra.mxu0 %v756
  %2066 = vmatprep.subr.mxu0 0.0
  %2067 = vmatpush1.msra.mxu0 %v757
  %2068 = vmatprep.subr.mxu0 0.0
  %2069 = vmatpush1.msra.mxu0 %v758
  %2070 = vmatprep.subr.mxu0 0.0
  %2071 = vmatpush1.msra.mxu0 %v759
  %2072 = vmatprep.subr.mxu0 0.0
  %2073 = vmatpush1.msra.mxu0 %v760
  %2074 = vmatprep.subr.mxu0 0.0
  %2075 = vmatpush1.msra.mxu0 %v761
  %2076 = vmatprep.subr.mxu0 0.0
  %2077 = vmatpush1.msra.mxu0 %v762
  %2078 = vmatprep.subr.mxu0 0.0
  %2079 = vmatpush1.msra.mxu0 %v763
  %2080 = vmatprep.subr.mxu0 0.0
  %2081 = vmatpush1.msra.mxu0 %v764
  %2082 = vmatprep.subr.mxu0 0.0
  %2083 = vmatpush1.msra.mxu0 %v765
  %2084 = vmatprep.subr.mxu0 0.0
  %2085 = vmatpush1.msra.mxu0 %v766
  %2086 = vmatprep.subr.mxu0 0.0
  %2087 = vmatpush1.msra.mxu0 %v767
  %2088 = vmatprep.subr.mxu0 0.0
  %2089 = vmatpush1.msra.mxu0 %v768
  %2090 = vmatprep.subr.mxu0 0.0
  %2091 = vmatpush1.msra.mxu0 %v769
  %2092 = vmatprep.subr.mxu0 0.0
  %2093 = vmatpush1.msra.mxu0 %v770
  %2094 = vmatprep.subr.mxu0 0.0
  %2095 = vmatpush1.msra.mxu0 0.0
  %2096 = vmatprep.subr.mxu0 0.0
  %2097 = vmatpush1.msra.mxu0 0.0
  %2098 = vmatprep.subr.mxu0 0.0
  %2099 = vmatpush1.msra.mxu0 0.0
  %2100 = vmatprep.subr.mxu0 0.0
  %2101 = vmatpush1.msra.mxu0 0.0
  %2102 = vmatprep.subr.mxu0 0.0
  %2103 = vmatpush1.msra.mxu0 0.0
  %2104 = vmatprep.subr.mxu0 0.0
  %2105 = vmatpush1.msra.mxu0 0.0
  %2106 = vmatprep.subr.mxu0 0.0
  %2107 = vmatpush1.msra.mxu0 0.0
  %2108 = vmatprep.subr.mxu0 0.0
  %2109 = vmatpush1.msra.mxu0 0.0
  %2110 = vmatprep.subr.mxu0 0.0
  %2111 = vmatpush1.msra.mxu0 0.0
  %2112 = vmatprep.subr.mxu0 0.0
  %2113 = vmatpush1.msra.mxu0 0.0
  %2114 = vmatprep.subr.mxu0 0.0
  %2115 = vmatpush1.msra.mxu0 0.0
  %2116 = vmatprep.subr.mxu0 0.0
  %2117 = vmatpush1.msra.mxu0 0.0
  %2118 = vmatprep.subr.mxu0 0.0
  %2119 = vmatpush1.msra.mxu0 0.0
  %2120 = vmatprep.subr.mxu0 0.0
  %2121 = vmatpush1.msra.mxu0 0.0
  %2122 = vmatprep.subr.mxu0 0.0
  %2123 = vmatpush1.msra.mxu0 0.0
  %2124 = vmatprep.subr.mxu0 0.0
  %2125 = vmatpush1.msra.mxu0 0.0
  %2126 = vmatprep.mubr.f32.mxu0 0.0
  %2127 = vmatmul.mubr.f32.gmra.mrb[0].mxu0 %v2061
  %v2128 = vpop.f32.mrb[0].mxu0
  %v2129 = vadd.f32 0.0, %v2128
  %v2130 = vpop.f32.mrb[0].mxu0
  %2131 = vdwg.mxu0
  %v2132 = vadd.f32 %v2060, %v2129
  %v2133 = vadd.f32 %v2132, %v847
  %v2134 = vmax.f32 %v2133, 0.0
  %2135 = vmatprep.subr.mxu0 0.0
  %2136 = vmatpush1.msra.mxu0 %v63
  %2137 = vmatprep.subr.mxu0 0.0
  %2138 = vmatpush1.msra.mxu0 %v64
  %2139 = vmatprep.subr.mxu0 0.0
  %2140 = vmatpush1.msra.mxu0 %v65
  %2141 = vmatprep.subr.mxu0 0.0
  %2142 = vmatpush1.msra.mxu0 %v66
  %2143 = vmatprep.subr.mxu0 0.0
  %2144 = vmatpush1.msra.mxu0 %v67
  %2145 = vmatprep.subr.mxu0 0.0
  %2146 = vmatpush1.msra.mxu0 %v68
  %2147 = vmatprep.subr.mxu0 0.0
  %2148 = vmatpush1.msra.mxu0 %v69
  %2149 = vmatprep.subr.mxu0 0.0
  %2150 = vmatpush1.msra.mxu0 %v70
  %2151 = vmatprep.subr.mxu0 0.0
  %2152 = vmatpush1.msra.mxu0 %v71
  %2153 = vmatprep.subr.mxu0 0.0
  %2154 = vmatpush1.msra.mxu0 %v72
  %2155 = vmatprep.subr.mxu0 0.0
  %2156 = vmatpush1.msra.mxu0 %v73
  %2157 = vmatprep.subr.mxu0 0.0
  %2158 = vmatpush1.msra.mxu0 %v74
  %2159 = vmatprep.subr.mxu0 0.0
  %2160 = vmatpush1.msra.mxu0 %v75
  %2161 = vmatprep.subr.mxu0 0.0
  %2162 = vmatpush1.msra.mxu0 %v76
  %2163 = vmatprep.subr.mxu0 0.0
  %2164 = vmatpush1.msra.mxu0 %v77
  %2165 = vmatprep.subr.mxu0 0.0
  %2166 = vmatpush1.msra.mxu0 %v78
  %2167 = vmatprep.subr.mxu0 0.0
  %2168 = vmatpush1.msra.mxu0 0.0
  %2169 = vmatprep.subr.mxu0 0.0
  %2170 = vmatpush1.msra.mxu0 0.0
  %2171 = vmatprep.subr.mxu0 0.0
  %2172 = vmatpush1.msra.mxu0 0.0
  %2173 = vmatprep.subr.mxu0 0.0
  %2174 = vmatpush1.msra.mxu0 0.0
  %2175 = vmatprep.subr.mxu0 0.0
  %2176 = vmatpush1.msra.mxu0 0.0
  %2177 = vmatprep.subr.mxu0 0.0
  %2178 = vmatpush1.msra.mxu0 0.0
  %2179 = vmatprep.subr.mxu0 0.0
  %2180 = vmatpush1.msra.mxu0 0.0
  %2181 = vmatprep.subr.mxu0 0.0
  %2182 = vmatpush1.msra.mxu0 0.0
  %2183 = vmatprep.subr.mxu0 0.0
  %2184 = vmatpush1.msra.mxu0 0.0
  %2185 = vmatprep.subr.mxu0 0.0
  %2186 = vmatpush1.msra.mxu0 0.0
  %2187 = vmatprep.subr.mxu0 0.0
  %2188 = vmatpush1.msra.mxu0 0.0
  %2189 = vmatprep.subr.mxu0 0.0
  %2190 = vmatpush1.msra.mxu0 0.0
  %2191 = vmatprep.subr.mxu0 0.0
  %2192 = vmatpush1.msra.mxu0 0.0
  %2193 = vmatprep.subr.mxu0 0.0
  %2194 = vmatpush1.msra.mxu0 0.0
  %2195 = vmatprep.subr.mxu0 0.0
  %2196 = vmatpush1.msra.mxu0 0.0
  %2197 = vmatprep.subr.mxu0 0.0
  %2198 = vmatpush1.msra.mxu0 0.0
  %2199 = vmatprep.mubr.f32.mxu0 0.0
  %2200 = vmatmul.mubr.f32.gmra.mrb[0].mxu0 %v1347
  %v2201 = vpop.f32.mrb[0].mxu0
  %v2202 = vadd.f32 0.0, %v2201
  %v2203 = vpop.f32.mrb[0].mxu0
  %2204 = vdwg.mxu0
  %2205 = vmatprep.subr.mxu0 0.0
  %2206 = vmatpush1.msra.mxu0 %v45
  %2207 = vmatprep.subr.mxu0 0.0
  %2208 = vmatpush1.msra.mxu0 %v46
  %2209 = vmatprep.subr.mxu0 0.0
  %2210 = vmatpush1.msra.mxu0 %v47
  %2211 = vmatprep.subr.mxu0 0.0
  %2212 = vmatpush1.msra.mxu0 %v48
  %2213 = vmatprep.subr.mxu0 0.0
  %2214 = vmatpush1.msra.mxu0 %v49
  %2215 = vmatprep.subr.mxu0 0.0
  %2216 = vmatpush1.msra.mxu0 %v50
  %2217 = vmatprep.subr.mxu0 0.0
  %2218 = vmatpush1.msra.mxu0 %v51
  %2219 = vmatprep.subr.mxu0 0.0
  %2220 = vmatpush1.msra.mxu0 %v52
  %2221 = vmatprep.subr.mxu0 0.0
  %2222 = vmatpush1.msra.mxu0 %v53
  %2223 = vmatprep.subr.mxu0 0.0
  %2224 = vmatpush1.msra.mxu0 %v54
  %2225 = vmatprep.subr.mxu0 0.0
  %2226 = vmatpush1.msra.mxu0 %v55
  %2227 = vmatprep.subr.mxu0 0.0
  %2228 = vmatpush1.msra.mxu0 %v56
  %2229 = vmatprep.subr.mxu0 0.0
  %2230 = vmatpush1.msra.mxu0 %v57
  %2231 = vmatprep.subr.mxu0 0.0
  %2232 = vmatpush1.msra.mxu0 %v58
  %2233 = vmatprep.subr.mxu0 0.0
  %2234 = vmatpush1.msra.mxu0 %v59
  %2235 = vmatprep.subr.mxu0 0.0
  %2236 = vmatpush1.msra.mxu0 %v60
  %2237 = vmatprep.subr.mxu0 0.0
  %2238 = vmatpush1.msra.mxu0 0.0
  %2239 = vmatprep.subr.mxu0 0.0
  %2240 = vmatpush1.msra.mxu0 0.0
  %2241 = vmatprep.subr.mxu0 0.0
  %2242 = vmatpush1.msra.mxu0 0.0
  %2243 = vmatprep.subr.mxu0 0.0
  %2244 = vmatpush1.msra.mxu0 0.0
  %2245 = vmatprep.subr.mxu0 0.0
  %2246 = vmatpush1.msra.mxu0 0.0
  %2247 = vmatprep.subr.mxu0 0.0
  %2248 = vmatpush1.msra.mxu0 0.0
  %2249 = vmatprep.subr.mxu0 0.0
  %2250 = vmatpush1.msra.mxu0 0.0
  %2251 = vmatprep.subr.mxu0 0.0
  %2252 = vmatpush1.msra.mxu0 0.0
  %2253 = vmatprep.subr.mxu0 0.0
  %2254 = vmatpush1.msra.mxu0 0.0
  %2255 = vmatprep.subr.mxu0 0.0
  %2256 = vmatpush1.msra.mxu0 0.0
  %2257 = vmatprep.subr.mxu0 0.0
  %2258 = vmatpush1.msra.mxu0 0.0
  %2259 = vmatprep.subr.mxu0 0.0
  %2260 = vmatpush1.msra.mxu0 0.0
  %2261 = vmatprep.subr.mxu0 0.0
  %2262 = vmatpush1.msra.mxu0 0.0
  %2263 = vmatprep.subr.mxu0 0.0
  %2264 = vmatpush1.msra.mxu0 0.0
  %2265 = vmatprep.subr.mxu0 0.0
  %2266 = vmatpush1.msra.mxu0 0.0
  %2267 = vmatprep.subr.mxu0 0.0
  %2268 = vmatpush1.msra.mxu0 0.0
  %2269 = vmatprep.mubr.f32.mxu0 0.0
  %2270 = vmatmul.mubr.f32.gmra.mrb[0].mxu0 %v1275
  %v2271 = vpop.f32.mrb[0].mxu0
  %v2272 = vadd.f32 %v2202, %v2271
  %v2273 = vpop.f32.mrb[0].mxu0
  %2274 = vdwg.mxu0
  %2275 = vmatprep.subr.mxu0 0.0
  %2276 = vmatpush1.msra.mxu0 %v221
  %2277 = vmatprep.subr.mxu0 0.0
  %2278 = vmatpush1.msra.mxu0 %v222
  %2279 = vmatprep.subr.mxu0 0.0
  %2280 = vmatpush1.msra.mxu0 %v223
  %2281 = vmatprep.subr.mxu0 0.0
  %2282 = vmatpush1.msra.mxu0 %v224
  %2283 = vmatprep.subr.mxu0 0.0
  %2284 = vmatpush1.msra.mxu0 %v225
  %2285 = vmatprep.subr.mxu0 0.0
  %2286 = vmatpush1.msra.mxu0 %v226
  %2287 = vmatprep.subr.mxu0 0.0
  %2288 = vmatpush1.msra.mxu0 %v227
  %2289 = vmatprep.subr.mxu0 0.0
  %2290 = vmatpush1.msra.mxu0 %v228
  %2291 = vmatprep.subr.mxu0 0.0
  %2292 = vmatpush1.msra.mxu0 %v229
  %2293 = vmatprep.subr.mxu0 0.0
  %2294 = vmatpush1.msra.mxu0 %v230
  %2295 = vmatprep.subr.mxu0 0.0
  %2296 = vmatpush1.msra.mxu0 %v231
  %2297 = vmatprep.subr.mxu0 0.0
  %2298 = vmatpush1.msra.mxu0 %v232
  %2299 = vmatprep.subr.mxu0 0.0
  %2300 = vmatpush1.msra.mxu0 %v233
  %2301 = vmatprep.subr.mxu0 0.0
  %2302 = vmatpush1.msra.mxu0 %v234
  %2303 = vmatprep.subr.mxu0 0.0
  %2304 = vmatpush1.msra.mxu0 %v235
  %2305 = vmatprep.subr.mxu0 0.0
  %2306 = vmatpush1.msra.mxu0 %v236
  %2307 = vmatprep.subr.mxu0 0.0
  %2308 = vmatpush1.msra.mxu0 0.0
  %2309 = vmatprep.subr.mxu0 0.0
  %2310 = vmatpush1.msra.mxu0 0.0
  %2311 = vmatprep.subr.mxu0 0.0
  %2312 = vmatpush1.msra.mxu0 0.0
  %2313 = vmatprep.subr.mxu0 0.0
  %2314 = vmatpush1.msra.mxu0 0.0
  %2315 = vmatprep.subr.mxu0 0.0
  %2316 = vmatpush1.msra.mxu0 0.0
  %2317 = vmatprep.subr.mxu0 0.0
  %2318 = vmatpush1.msra.mxu0 0.0
  %2319 = vmatprep.subr.mxu0 0.0
  %2320 = vmatpush1.msra.mxu0 0.0
  %2321 = vmatprep.subr.mxu0 0.0
  %2322 = vmatpush1.msra.mxu0 0.0
  %2323 = vmatprep.subr.mxu0 0.0
  %2324 = vmatpush1.msra.mxu0 0.0
  %2325 = vmatprep.subr.mxu0 0.0
  %2326 = vmatpush1.msra.mxu0 0.0
  %2327 = vmatprep.subr.mxu0 0.0
  %2328 = vmatpush1.msra.mxu0 0.0
  %2329 = vmatprep.subr.mxu0 0.0
  %2330 = vmatpush1.msra.mxu0 0.0
  %2331 = vmatprep.subr.mxu0 0.0
  %2332 = vmatpush1.msra.mxu0 0.0
  %2333 = vmatprep.subr.mxu0 0.0
  %2334 = vmatpush1.msra.mxu0 0.0
  %2335 = vmatprep.subr.mxu0 0.0
  %2336 = vmatpush1.msra.mxu0 0.0
  %2337 = vmatprep.subr.mxu0 0.0
  %2338 = vmatpush1.msra.mxu0 0.0
  %2339 = vmatprep.mubr.f32.mxu0 0.0
  %2340 = vmatmul.mubr.f32.gmra.mrb[0].mxu0 %v1419
  %v2341 = vpop.f32.mrb[0].mxu0
  %v2342 = vadd.f32 0.0, %v2341
  %v2343 = vpop.f32.mrb[0].mxu0
  %2344 = vdwg.mxu0
  %v2345 = vadd.f32 %v2272, %v2342
  %2346 = vmatprep.subr.mxu0 0.0
  %2347 = vmatpush1.msra.mxu0 %v310
  %2348 = vmatprep.subr.mxu0 0.0
  %2349 = vmatpush1.msra.mxu0 %v311
  %2350 = vmatprep.subr.mxu0 0.0
  %2351 = vmatpush1.msra.mxu0 %v312
  %2352 = vmatprep.subr.mxu0 0.0
  %2353 = vmatpush1.msra.mxu0 %v313
  %2354 = vmatprep.subr.mxu0 0.0
  %2355 = vmatpush1.msra.mxu0 %v314
  %2356 = vmatprep.subr.mxu0 0.0
  %2357 = vmatpush1.msra.mxu0 %v315
  %2358 = vmatprep.subr.mxu0 0.0
  %2359 = vmatpush1.msra.mxu0 %v316
  %2360 = vmatprep.subr.mxu0 0.0
  %2361 = vmatpush1.msra.mxu0 %v317
  %2362 = vmatprep.subr.mxu0 0.0
  %2363 = vmatpush1.msra.mxu0 %v318
  %2364 = vmatprep.subr.mxu0 0.0
  %2365 = vmatpush1.msra.mxu0 %v319
  %2366 = vmatprep.subr.mxu0 0.0
  %2367 = vmatpush1.msra.mxu0 %v320
  %2368 = vmatprep.subr.mxu0 0.0
  %2369 = vmatpush1.msra.mxu0 %v321
  %2370 = vmatprep.subr.mxu0 0.0
  %2371 = vmatpush1.msra.mxu0 %v322
  %2372 = vmatprep.subr.mxu0 0.0
  %2373 = vmatpush1.msra.mxu0 %v323
  %2374 = vmatprep.subr.mxu0 0.0
  %2375 = vmatpush1.msra.mxu0 %v324
  %2376 = vmatprep.subr.mxu0 0.0
  %2377 = vmatpush1.msra.mxu0 %v325
  %2378 = vmatprep.subr.mxu0 0.0
  %2379 = vmatpush1.msra.mxu0 0.0
  %2380 = vmatprep.subr.mxu0 0.0
  %2381 = vmatpush1.msra.mxu0 0.0
  %2382 = vmatprep.subr.mxu0 0.0
  %2383 = vmatpush1.msra.mxu0 0.0
  %2384 = vmatprep.subr.mxu0 0.0
  %2385 = vmatpush1.msra.mxu0 0.0
  %2386 = vmatprep.subr.mxu0 0.0
  %2387 = vmatpush1.msra.mxu0 0.0
  %2388 = vmatprep.subr.mxu0 0.0
  %2389 = vmatpush1.msra.mxu0 0.0
  %2390 = vmatprep.subr.mxu0 0.0
  %2391 = vmatpush1.msra.mxu0 0.0
  %2392 = vmatprep.subr.mxu0 0.0
  %2393 = vmatpush1.msra.mxu0 0.0
  %2394 = vmatprep.subr.mxu0 0.0
  %2395 = vmatpush1.msra.mxu0 0.0
  %2396 = vmatprep.subr.mxu0 0.0
  %2397 = vmatpush1.msra.mxu0 0.0
  %2398 = vmatprep.subr.mxu0 0.0
  %2399 = vmatpush1.msra.mxu0 0.0
  %2400 = vmatprep.subr.mxu0 0.0
  %2401 = vmatpush1.msra.mxu0 0.0
  %2402 = vmatprep.subr.mxu0 0.0
  %2403 = vmatpush1.msra.mxu0 0.0
  %2404 = vmatprep.subr.mxu0 0.0
  %2405 = vmatpush1.msra.mxu0 0.0
  %2406 = vmatprep.subr.mxu0 0.0
  %2407 = vmatpush1.msra.mxu0 0.0
  %2408 = vmatprep.subr.mxu0 0.0
  %2409 = vmatpush1.msra.mxu0 0.0
  %2410 = vmatprep.mubr.f32.mxu0 0.0
  %2411 = vmatmul.mubr.f32.gmra.mrb[0].mxu0 %v1917
  %v2412 = vpop.f32.mrb[0].mxu0
  %v2413 = vadd.f32 0.0, %v2412
  %v2414 = vpop.f32.mrb[0].mxu0
  %2415 = vdwg.mxu0
  %v2416 = vadd.f32 %v2345, %v2413
  %2417 = vmatprep.subr.mxu0 0.0
  %2418 = vmatpush1.msra.mxu0 %v399
  %2419 = vmatprep.subr.mxu0 0.0
  %2420 = vmatpush1.msra.mxu0 %v400
  %2421 = vmatprep.subr.mxu0 0.0
  %2422 = vmatpush1.msra.mxu0 %v401
  %2423 = vmatprep.subr.mxu0 0.0
  %2424 = vmatpush1.msra.mxu0 %v402
  %2425 = vmatprep.subr.mxu0 0.0
  %2426 = vmatpush1.msra.mxu0 %v403
  %2427 = vmatprep.subr.mxu0 0.0
  %2428 = vmatpush1.msra.mxu0 %v404
  %2429 = vmatprep.subr.mxu0 0.0
  %2430 = vmatpush1.msra.mxu0 %v405
  %2431 = vmatprep.subr.mxu0 0.0
  %2432 = vmatpush1.msra.mxu0 %v406
  %2433 = vmatprep.subr.mxu0 0.0
  %2434 = vmatpush1.msra.mxu0 %v407
  %2435 = vmatprep.subr.mxu0 0.0
  %2436 = vmatpush1.msra.mxu0 %v408
  %2437 = vmatprep.subr.mxu0 0.0
  %2438 = vmatpush1.msra.mxu0 %v409
  %2439 = vmatprep.subr.mxu0 0.0
  %2440 = vmatpush1.msra.mxu0 %v410
  %2441 = vmatprep.subr.mxu0 0.0
  %2442 = vmatpush1.msra.mxu0 %v411
  %2443 = vmatprep.subr.mxu0 0.0
  %2444 = vmatpush1.msra.mxu0 %v412
  %2445 = vmatprep.subr.mxu0 0.0
  %2446 = vmatpush1.msra.mxu0 %v413
  %2447 = vmatprep.subr.mxu0 0.0
  %2448 = vmatpush1.msra.mxu0 %v414
  %2449 = vmatprep.subr.mxu0 0.0
  %2450 = vmatpush1.msra.mxu0 0.0
  %2451 = vmatprep.subr.mxu0 0.0
  %2452 = vmatpush1.msra.mxu0 0.0
  %2453 = vmatprep.subr.mxu0 0.0
  %2454 = vmatpush1.msra.mxu0 0.0
  %2455 = vmatprep.subr.mxu0 0.0
  %2456 = vmatpush1.msra.mxu0 0.0
  %2457 = vmatprep.subr.mxu0 0.0
  %2458 = vmatpush1.msra.mxu0 0.0
  %2459 = vmatprep.subr.mxu0 0.0
  %2460 = vmatpush1.msra.mxu0 0.0
  %2461 = vmatprep.subr.mxu0 0.0
  %2462 = vmatpush1.msra.mxu0 0.0
  %2463 = vmatprep.subr.mxu0 0.0
  %2464 = vmatpush1.msra.mxu0 0.0
  %2465 = vmatprep.subr.mxu0 0.0
  %2466 = vmatpush1.msra.mxu0 0.0
  %2467 = vmatprep.subr.mxu0 0.0
  %2468 = vmatpush1.msra.mxu0 0.0
  %2469 = vmatprep.subr.mxu0 0.0
  %2470 = vmatpush1.msra.mxu0 0.0
  %2471 = vmatprep.subr.mxu0 0.0
  %2472 = vmatpush1.msra.mxu0 0.0
  %2473 = vmatprep.subr.mxu0 0.0
  %2474 = vmatpush1.msra.mxu0 0.0
  %2475 = vmatprep.subr.mxu0 0.0
  %2476 = vmatpush1.msra.mxu0 0.0
  %2477 = vmatprep.subr.mxu0 0.0
  %2478 = vmatpush1.msra.mxu0 0.0
  %2479 = vmatprep.subr.mxu0 0.0
  %2480 = vmatpush1.msra.mxu0 0.0
  %2481 = vmatprep.mubr.f32.mxu0 0.0
  %2482 = vmatmul.mubr.f32.gmra.mrb[0].mxu0 %v1989
  %v2483 = vpop.f32.mrb[0].mxu0
  %v2484 = vadd.f32 0.0, %v2483
  %v2485 = vpop.f32.mrb[0].mxu0
  %2486 = vdwg.mxu0
  %v2487 = vadd.f32 %v2416, %v2484
  %2488 = vmatprep.subr.mxu0 0.0
  %2489 = vmatpush1.msra.mxu0 %v488
  %2490 = vmatprep.subr.mxu0 0.0
  %2491 = vmatpush1.msra.mxu0 %v489
  %2492 = vmatprep.subr.mxu0 0.0
  %2493 = vmatpush1.msra.mxu0 %v490
  %2494 = vmatprep.subr.mxu0 0.0
  %2495 = vmatpush1.msra.mxu0 %v491
  %2496 = vmatprep.subr.mxu0 0.0
  %2497 = vmatpush1.msra.mxu0 %v492
  %2498 = vmatprep.subr.mxu0 0.0
  %2499 = vmatpush1.msra.mxu0 %v493
  %2500 = vmatprep.subr.mxu0 0.0
  %2501 = vmatpush1.msra.mxu0 %v494
  %2502 = vmatprep.subr.mxu0 0.0
  %2503 = vmatpush1.msra.mxu0 %v495
  %2504 = vmatprep.subr.mxu0 0.0
  %2505 = vmatpush1.msra.mxu0 %v496
  %2506 = vmatprep.subr.mxu0 0.0
  %2507 = vmatpush1.msra.mxu0 %v497
  %2508 = vmatprep.subr.mxu0 0.0
  %2509 = vmatpush1.msra.mxu0 %v498
  %2510 = vmatprep.subr.mxu0 0.0
  %2511 = vmatpush1.msra.mxu0 %v499
  %2512 = vmatprep.subr.mxu0 0.0
  %2513 = vmatpush1.msra.mxu0 %v500
  %2514 = vmatprep.subr.mxu0 0.0
  %2515 = vmatpush1.msra.mxu0 %v501
  %2516 = vmatprep.subr.mxu0 0.0
  %2517 = vmatpush1.msra.mxu0 %v502
  %2518 = vmatprep.subr.mxu0 0.0
  %2519 = vmatpush1.msra.mxu0 %v503
  %2520 = vmatprep.subr.mxu0 0.0
  %2521 = vmatpush1.msra.mxu0 0.0
  %2522 = vmatprep.subr.mxu0 0.0
  %2523 = vmatpush1.msra.mxu0 0.0
  %2524 = vmatprep.subr.mxu0 0.0
  %2525 = vmatpush1.msra.mxu0 0.0
  %2526 = vmatprep.subr.mxu0 0.0
  %2527 = vmatpush1.msra.mxu0 0.0
  %2528 = vmatprep.subr.mxu0 0.0
  %2529 = vmatpush1.msra.mxu0 0.0
  %2530 = vmatprep.subr.mxu0 0.0
  %2531 = vmatpush1.msra.mxu0 0.0
  %2532 = vmatprep.subr.mxu0 0.0
  %2533 = vmatpush1.msra.mxu0 0.0
  %2534 = vmatprep.subr.mxu0 0.0
  %2535 = vmatpush1.msra.mxu0 0.0
  %2536 = vmatprep.subr.mxu0 0.0
  %2537 = vmatpush1.msra.mxu0 0.0
  %2538 = vmatprep.subr.mxu0 0.0
  %2539 = vmatpush1.msra.mxu0 0.0
  %2540 = vmatprep.subr.mxu0 0.0
  %2541 = vmatpush1.msra.mxu0 0.0
  %2542 = vmatprep.subr.mxu0 0.0
  %2543 = vmatpush1.msra.mxu0 0.0
  %2544 = vmatprep.subr.mxu0 0.0
  %2545 = vmatpush1.msra.mxu0 0.0
  %2546 = vmatprep.subr.mxu0 0.0
  %2547 = vmatpush1.msra.mxu0 0.0
  %2548 = vmatprep.subr.mxu0 0.0
  %2549 = vmatpush1.msra.mxu0 0.0
  %2550 = vmatprep.subr.mxu0 0.0
  %2551 = vmatpush1.msra.mxu0 0.0
  %2552 = vmatprep.mubr.f32.mxu0 0.0
  %2553 = vmatmul.mubr.f32.gmra.mrb[0].mxu0 %v2061
  %v2554 = vpop.f32.mrb[0].mxu0
  %v2555 = vadd.f32 0.0, %v2554
  %v2556 = vpop.f32.mrb[0].mxu0
  %2557 = vdwg.mxu0
  %v2558 = vadd.f32 %v2487, %v2555
  %v2559 = vld [vmem:[%s0 + $0x3c] sm:$0xff]
  %2560 = vmatprep.subr.mxu0 0.0
  %2561 = vmatpush1.msra.mxu0 %v577
  %2562 = vmatprep.subr.mxu0 0.0
  %2563 = vmatpush1.msra.mxu0 %v578
  %2564 = vmatprep.subr.mxu0 0.0
  %2565 = vmatpush1.msra.mxu0 %v579
  %2566 = vmatprep.subr.mxu0 0.0
  %2567 = vmatpush1.msra.mxu0 %v580
  %2568 = vmatprep.subr.mxu0 0.0
  %2569 = vmatpush1.msra.mxu0 %v581
  %2570 = vmatprep.subr.mxu0 0.0
  %2571 = vmatpush1.msra.mxu0 %v582
  %2572 = vmatprep.subr.mxu0 0.0
  %2573 = vmatpush1.msra.mxu0 %v583
  %2574 = vmatprep.subr.mxu0 0.0
  %2575 = vmatpush1.msra.mxu0 %v584
  %2576 = vmatprep.subr.mxu0 0.0
  %2577 = vmatpush1.msra.mxu0 %v585
  %2578 = vmatprep.subr.mxu0 0.0
  %2579 = vmatpush1.msra.mxu0 %v586
  %2580 = vmatprep.subr.mxu0 0.0
  %2581 = vmatpush1.msra.mxu0 %v587
  %2582 = vmatprep.subr.mxu0 0.0
  %2583 = vmatpush1.msra.mxu0 %v588
  %2584 = vmatprep.subr.mxu0 0.0
  %2585 = vmatpush1.msra.mxu0 %v589
  %2586 = vmatprep.subr.mxu0 0.0
  %2587 = vmatpush1.msra.mxu0 %v590
  %2588 = vmatprep.subr.mxu0 0.0
  %2589 = vmatpush1.msra.mxu0 %v591
  %2590 = vmatprep.subr.mxu0 0.0
  %2591 = vmatpush1.msra.mxu0 %v592
  %2592 = vmatprep.subr.mxu0 0.0
  %2593 = vmatpush1.msra.mxu0 0.0
  %2594 = vmatprep.subr.mxu0 0.0
  %2595 = vmatpush1.msra.mxu0 0.0
  %2596 = vmatprep.subr.mxu0 0.0
  %2597 = vmatpush1.msra.mxu0 0.0
  %2598 = vmatprep.subr.mxu0 0.0
  %2599 = vmatpush1.msra.mxu0 0.0
  %2600 = vmatprep.subr.mxu0 0.0
  %2601 = vmatpush1.msra.mxu0 0.0
  %2602 = vmatprep.subr.mxu0 0.0
  %2603 = vmatpush1.msra.mxu0 0.0
  %2604 = vmatprep.subr.mxu0 0.0
  %2605 = vmatpush1.msra.mxu0 0.0
  %2606 = vmatprep.subr.mxu0 0.0
  %2607 = vmatpush1.msra.mxu0 0.0
  %2608 = vmatprep.subr.mxu0 0.0
  %2609 = vmatpush1.msra.mxu0 0.0
  %2610 = vmatprep.subr.mxu0 0.0
  %2611 = vmatpush1.msra.mxu0 0.0
  %2612 = vmatprep.subr.mxu0 0.0
  %2613 = vmatpush1.msra.mxu0 0.0
  %2614 = vmatprep.subr.mxu0 0.0
  %2615 = vmatpush1.msra.mxu0 0.0
  %2616 = vmatprep.subr.mxu0 0.0
  %2617 = vmatpush1.msra.mxu0 0.0
  %2618 = vmatprep.subr.mxu0 0.0
  %2619 = vmatpush1.msra.mxu0 0.0
  %2620 = vmatprep.subr.mxu0 0.0
  %2621 = vmatpush1.msra.mxu0 0.0
  %2622 = vmatprep.subr.mxu0 0.0
  %2623 = vmatpush1.msra.mxu0 0.0
  %2624 = vmatprep.mubr.f32.mxu0 0.0
  %2625 = vmatmul.mubr.f32.gmra.mrb[0].mxu0 %v2559
  %v2626 = vpop.f32.mrb[0].mxu0
  %v2627 = vadd.f32 0.0, %v2626
  %v2628 = vpop.f32.mrb[0].mxu0
  %2629 = vdwg.mxu0
  %v2630 = vadd.f32 %v2558, %v2627
  %v2631 = vld [vmem:[%s0 + $0x3e] sm:$0xff]
  %2632 = vmatprep.subr.mxu0 0.0
  %2633 = vmatpush1.msra.mxu0 %v666
  %2634 = vmatprep.subr.mxu0 0.0
  %2635 = vmatpush1.msra.mxu0 %v667
  %2636 = vmatprep.subr.mxu0 0.0
  %2637 = vmatpush1.msra.mxu0 %v668
  %2638 = vmatprep.subr.mxu0 0.0
  %2639 = vmatpush1.msra.mxu0 %v669
  %2640 = vmatprep.subr.mxu0 0.0
  %2641 = vmatpush1.msra.mxu0 %v670
  %2642 = vmatprep.subr.mxu0 0.0
  %2643 = vmatpush1.msra.mxu0 %v671
  %2644 = vmatprep.subr.mxu0 0.0
  %2645 = vmatpush1.msra.mxu0 %v672
  %2646 = vmatprep.subr.mxu0 0.0
  %2647 = vmatpush1.msra.mxu0 %v673
  %2648 = vmatprep.subr.mxu0 0.0
  %2649 = vmatpush1.msra.mxu0 %v674
  %2650 = vmatprep.subr.mxu0 0.0
  %2651 = vmatpush1.msra.mxu0 %v675
  %2652 = vmatprep.subr.mxu0 0.0
  %2653 = vmatpush1.msra.mxu0 %v676
  %2654 = vmatprep.subr.mxu0 0.0
  %2655 = vmatpush1.msra.mxu0 %v677
  %2656 = vmatprep.subr.mxu0 0.0
  %2657 = vmatpush1.msra.mxu0 %v678
  %2658 = vmatprep.subr.mxu0 0.0
  %2659 = vmatpush1.msra.mxu0 %v679
  %2660 = vmatprep.subr.mxu0 0.0
  %2661 = vmatpush1.msra.mxu0 %v680
  %2662 = vmatprep.subr.mxu0 0.0
  %2663 = vmatpush1.msra.mxu0 %v681
  %2664 = vmatprep.subr.mxu0 0.0
  %2665 = vmatpush1.msra.mxu0 0.0
  %2666 = vmatprep.subr.mxu0 0.0
  %2667 = vmatpush1.msra.mxu0 0.0
  %2668 = vmatprep.subr.mxu0 0.0
  %2669 = vmatpush1.msra.mxu0 0.0
  %2670 = vmatprep.subr.mxu0 0.0
  %2671 = vmatpush1.msra.mxu0 0.0
  %2672 = vmatprep.subr.mxu0 0.0
  %2673 = vmatpush1.msra.mxu0 0.0
  %2674 = vmatprep.subr.mxu0 0.0
  %2675 = vmatpush1.msra.mxu0 0.0
  %2676 = vmatprep.subr.mxu0 0.0
  %2677 = vmatpush1.msra.mxu0 0.0
  %2678 = vmatprep.subr.mxu0 0.0
  %2679 = vmatpush1.msra.mxu0 0.0
  %2680 = vmatprep.subr.mxu0 0.0
  %2681 = vmatpush1.msra.mxu0 0.0
  %2682 = vmatprep.subr.mxu0 0.0
  %2683 = vmatpush1.msra.mxu0 0.0
  %2684 = vmatprep.subr.mxu0 0.0
  %2685 = vmatpush1.msra.mxu0 0.0
  %2686 = vmatprep.subr.mxu0 0.0
  %2687 = vmatpush1.msra.mxu0 0.0
  %2688 = vmatprep.subr.mxu0 0.0
  %2689 = vmatpush1.msra.mxu0 0.0
  %2690 = vmatprep.subr.mxu0 0.0
  %2691 = vmatpush1.msra.mxu0 0.0
  %2692 = vmatprep.subr.mxu0 0.0
  %2693 = vmatpush1.msra.mxu0 0.0
  %2694 = vmatprep.subr.mxu0 0.0
  %2695 = vmatpush1.msra.mxu0 0.0
  %2696 = vmatprep.mubr.f32.mxu0 0.0
  %2697 = vmatmul.mubr.f32.gmra.mrb[0].mxu0 %v2631
  %v2698 = vpop.f32.mrb[0].mxu0
  %v2699 = vadd.f32 0.0, %v2698
  %v2700 = vpop.f32.mrb[0].mxu0
  %2701 = vdwg.mxu0
  %v2702 = vadd.f32 %v2630, %v2699
  %v2703 = vld [vmem:[%s0 + $0x40] sm:$0xff]
  %2704 = vmatprep.subr.mxu0 0.0
  %2705 = vmatpush1.msra.mxu0 %v755
  %2706 = vmatprep.subr.mxu0 0.0
  %2707 = vmatpush1.msra.mxu0 %v756
  %2708 = vmatprep.subr.mxu0 0.0
  %2709 = vmatpush1.msra.mxu0 %v757
  %2710 = vmatprep.subr.mxu0 0.0
  %2711 = vmatpush1.msra.mxu0 %v758
  %2712 = vmatprep.subr.mxu0 0.0
  %2713 = vmatpush1.msra.mxu0 %v759
  %2714 = vmatprep.subr.mxu0 0.0
  %2715 = vmatpush1.msra.mxu0 %v760
  %2716 = vmatprep.subr.mxu0 0.0
  %2717 = vmatpush1.msra.mxu0 %v761
  %2718 = vmatprep.subr.mxu0 0.0
  %2719 = vmatpush1.msra.mxu0 %v762
  %2720 = vmatprep.subr.mxu0 0.0
  %2721 = vmatpush1.msra.mxu0 %v763
  %2722 = vmatprep.subr.mxu0 0.0
  %2723 = vmatpush1.msra.mxu0 %v764
  %2724 = vmatprep.subr.mxu0 0.0
  %2725 = vmatpush1.msra.mxu0 %v765
  %2726 = vmatprep.subr.mxu0 0.0
  %2727 = vmatpush1.msra.mxu0 %v766
  %2728 = vmatprep.subr.mxu0 0.0
  %2729 = vmatpush1.msra.mxu0 %v767
  %2730 = vmatprep.subr.mxu0 0.0
  %2731 = vmatpush1.msra.mxu0 %v768
  %2732 = vmatprep.subr.mxu0 0.0
  %2733 = vmatpush1.msra.mxu0 %v769
  %2734 = vmatprep.subr.mxu0 0.0
  %2735 = vmatpush1.msra.mxu0 %v770
  %2736 = vmatprep.subr.mxu0 0.0
  %2737 = vmatpush1.msra.mxu0 0.0
  %2738 = vmatprep.subr.mxu0 0.0
  %2739 = vmatpush1.msra.mxu0 0.0
  %2740 = vmatprep.subr.mxu0 0.0
  %2741 = vmatpush1.msra.mxu0 0.0
  %2742 = vmatprep.subr.mxu0 0.0
  %2743 = vmatpush1.msra.mxu0 0.0
  %2744 = vmatprep.subr.mxu0 0.0
  %2745 = vmatpush1.msra.mxu0 0.0
  %2746 = vmatprep.subr.mxu0 0.0
  %2747 = vmatpush1.msra.mxu0 0.0
  %2748 = vmatprep.subr.mxu0 0.0
  %2749 = vmatpush1.msra.mxu0 0.0
  %2750 = vmatprep.subr.mxu0 0.0
  %2751 = vmatpush1.msra.mxu0 0.0
  %2752 = vmatprep.subr.mxu0 0.0
  %2753 = vmatpush1.msra.mxu0 0.0
  %2754 = vmatprep.subr.mxu0 0.0
  %2755 = vmatpush1.msra.mxu0 0.0
  %2756 = vmatprep.subr.mxu0 0.0
  %2757 = vmatpush1.msra.mxu0 0.0
  %2758 = vmatprep.subr.mxu0 0.0
  %2759 = vmatpush1.msra.mxu0 0.0
  %2760 = vmatprep.subr.mxu0 0.0
  %2761 = vmatpush1.msra.mxu0 0.0
  %2762 = vmatprep.subr.mxu0 0.0
  %2763 = vmatpush1.msra.mxu0 0.0
  %2764 = vmatprep.subr.mxu0 0.0
  %2765 = vmatpush1.msra.mxu0 0.0
  %2766 = vmatprep.subr.mxu0 0.0
  %2767 = vmatpush1.msra.mxu0 0.0
  %2768 = vmatprep.mubr.f32.mxu0 0.0
  %2769 = vmatmul.mubr.f32.gmra.mrb[0].mxu0 %v2703
  %v2770 = vpop.f32.mrb[0].mxu0
  %v2771 = vadd.f32 0.0, %v2770
  %v2772 = vpop.f32.mrb[0].mxu0
  %2773 = vdwg.mxu0
  %v2774 = vadd.f32 %v2702, %v2771
  %v2775 = vadd.f32 %v2774, %v847
  %v2776 = vmax.f32 %v2775, 0.0
  %v2777 = vld [vmem:[%s3] sm:$0xff]
  %v2778 = vld [vmem:[%s3 + $0x8] sm:$0xff]
  %v2779 = vld [vmem:[%s3 + $0x10] sm:$0xff]
  %v2780 = vld [vmem:[%s3 + $0x18] sm:$0xff]
  %v2781 = vld [vmem:[%s3 + $0x20] sm:$0xff]
  %v2782 = vld [vmem:[%s3 + $0x28] sm:$0xff]
  %v2783 = vld [vmem:[%s3 + $0x30] sm:$0xff]
  %v2784 = vld [vmem:[%s3 + $0x38] sm:$0xff]
  %s2785 = scalar_lea.vmem %s3, 64
  %v2786 = vld [vmem:[%s2785] sm:$0xff]
  %v2787 = vld [vmem:[%s2785 + $0x8] sm:$0xff]
  %v2788 = vld [vmem:[%s2785 + $0x10] sm:$0xff]
  %v2789 = vld [vmem:[%s2785 + $0x18] sm:$0xff]
  %v2790 = vld [vmem:[%s2785 + $0x20] sm:$0xff]
  %v2791 = vld [vmem:[%s2785 + $0x28] sm:$0xff]
  %v2792 = vld [vmem:[%s2785 + $0x30] sm:$0xff]
  %v2793 = vld [vmem:[%s2785 + $0x38] sm:$0xff]
  %v2795 = vrot.slane %v850, 2
  %vm2796 = vcmask 523264
  %v2797 = vsel %vm2796, %v2795, 0
  %2799 = vmatprep.subr.mxu0 0.0
  %2800 = vmatpush1.msra.mxu0 %v2786
  %2801 = vmatprep.subr.mxu0 0.0
  %2802 = vmatpush1.msra.mxu0 %v2787
  %2803 = vmatprep.subr.mxu0 0.0
  %2804 = vmatpush1.msra.mxu0 %v2788
  %2805 = vmatprep.subr.mxu0 0.0
  %2806 = vmatpush1.msra.mxu0 %v2789
  %2807 = vmatprep.subr.mxu0 0.0
  %2808 = vmatpush1.msra.mxu0 %v2790
  %2809 = vmatprep.subr.mxu0 0.0
  %2810 = vmatpush1.msra.mxu0 %v2791
  %2811 = vmatprep.subr.mxu0 0.0
  %2812 = vmatpush1.msra.mxu0 %v2792
  %2813 = vmatprep.subr.mxu0 0.0
  %2814 = vmatpush1.msra.mxu0 %v2793
  %2815 = vmatprep.subr.mxu0 0.0
  %2816 = vmatpush1.msra.mxu0 0.0
  %2817 = vmatprep.subr.mxu0 0.0
  %2818 = vmatpush1.msra.mxu0 0.0
  %2819 = vmatprep.subr.mxu0 0.0
  %2820 = vmatpush1.msra.mxu0 0.0
  %2821 = vmatprep.subr.mxu0 0.0
  %2822 = vmatpush1.msra.mxu0 0.0
  %2823 = vmatprep.subr.mxu0 0.0
  %2824 = vmatpush1.msra.mxu0 0.0
  %2825 = vmatprep.subr.mxu0 0.0
  %2826 = vmatpush1.msra.mxu0 0.0
  %2827 = vmatprep.subr.mxu0 0.0
  %2828 = vmatpush1.msra.mxu0 0.0
  %2829 = vmatprep.subr.mxu0 0.0
  %2830 = vmatpush1.msra.mxu0 0.0
  %2831 = vmatprep.subr.mxu0 0.0
  %2832 = vmatpush1.msra.mxu0 0.0
  %2833 = vmatprep.subr.mxu0 0.0
  %2834 = vmatpush1.msra.mxu0 0.0
  %2835 = vmatprep.subr.mxu0 0.0
  %2836 = vmatpush1.msra.mxu0 0.0
  %2837 = vmatprep.subr.mxu0 0.0
  %2838 = vmatpush1.msra.mxu0 0.0
  %2839 = vmatprep.subr.mxu0 0.0
  %2840 = vmatpush1.msra.mxu0 0.0
  %2841 = vmatprep.subr.mxu0 0.0
  %2842 = vmatpush1.msra.mxu0 0.0
  %2843 = vmatprep.subr.mxu0 0.0
  %2844 = vmatpush1.msra.mxu0 0.0
  %2845 = vmatprep.subr.mxu0 0.0
  %2846 = vmatpush1.msra.mxu0 0.0
  %2847 = vmatprep.subr.mxu0 0.0
  %2848 = vmatpush1.msra.mxu0 0.0
  %2849 = vmatprep.subr.mxu0 0.0
  %2850 = vmatpush1.msra.mxu0 0.0
  %2851 = vmatprep.subr.mxu0 0.0
  %2852 = vmatpush1.msra.mxu0 0.0
  %2853 = vmatprep.subr.mxu0 0.0
  %2854 = vmatpush1.msra.mxu0 0.0
  %2855 = vmatprep.subr.mxu0 0.0
  %2856 = vmatpush1.msra.mxu0 0.0
  %2857 = vmatprep.subr.mxu0 0.0
  %2858 = vmatpush1.msra.mxu0 0.0
  %2859 = vmatprep.subr.mxu0 0.0
  %2860 = vmatpush1.msra.mxu0 0.0
  %2861 = vmatprep.subr.mxu0 0.0
  %2862 = vmatpush1.msra.mxu0 0.0
  %2863 = vmatprep.mubr.f32.mxu0 0.0
  %2864 = vmatmul.mubr.f32.gmra.mrb[0].mxu0 %v2797
  %v2865 = vpop.f32.mrb[0].mxu0
  %v2866 = vadd.f32 0.0, %v2865
  %v2867 = vpop.f32.mrb[0].mxu0
  %2868 = vdwg.mxu0
  %v2869 = vsel %vm2796, %v850, 0
  %2871 = vmatprep.subr.mxu0 0.0
  %2872 = vmatpush1.msra.mxu0 %v2777
  %2873 = vmatprep.subr.mxu0 0.0
  %2874 = vmatpush1.msra.mxu0 %v2778
  %2875 = vmatprep.subr.mxu0 0.0
  %2876 = vmatpush1.msra.mxu0 %v2779
  %2877 = vmatprep.subr.mxu0 0.0
  %2878 = vmatpush1.msra.mxu0 %v2780
  %2879 = vmatprep.subr.mxu0 0.0
  %2880 = vmatpush1.msra.mxu0 %v2781
  %2881 = vmatprep.subr.mxu0 0.0
  %2882 = vmatpush1.msra.mxu0 %v2782
  %2883 = vmatprep.subr.mxu0 0.0
  %2884 = vmatpush1.msra.mxu0 %v2783
  %2885 = vmatprep.subr.mxu0 0.0
  %2886 = vmatpush1.msra.mxu0 %v2784
  %2887 = vmatprep.subr.mxu0 0.0
  %2888 = vmatpush1.msra.mxu0 0.0
  %2889 = vmatprep.subr.mxu0 0.0
  %2890 = vmatpush1.msra.mxu0 0.0
  %2891 = vmatprep.subr.mxu0 0.0
  %2892 = vmatpush1.msra.mxu0 0.0
  %2893 = vmatprep.subr.mxu0 0.0
  %2894 = vmatpush1.msra.mxu0 0.0
  %2895 = vmatprep.subr.mxu0 0.0
  %2896 = vmatpush1.msra.mxu0 0.0
  %2897 = vmatprep.subr.mxu0 0.0
  %2898 = vmatpush1.msra.mxu0 0.0
  %2899 = vmatprep.subr.mxu0 0.0
  %2900 = vmatpush1.msra.mxu0 0.0
  %2901 = vmatprep.subr.mxu0 0.0
  %2902 = vmatpush1.msra.mxu0 0.0
  %2903 = vmatprep.subr.mxu0 0.0
  %2904 = vmatpush1.msra.mxu0 0.0
  %2905 = vmatprep.subr.mxu0 0.0
  %2906 = vmatpush1.msra.mxu0 0.0
  %2907 = vmatprep.subr.mxu0 0.0
  %2908 = vmatpush1.msra.mxu0 0.0
  %2909 = vmatprep.subr.mxu0 0.0
  %2910 = vmatpush1.msra.mxu0 0.0
  %2911 = vmatprep.subr.mxu0 0.0
  %2912 = vmatpush1.msra.mxu0 0.0
  %2913 = vmatprep.subr.mxu0 0.0
  %2914 = vmatpush1.msra.mxu0 0.0
  %2915 = vmatprep.subr.mxu0 0.0
  %2916 = vmatpush1.msra.mxu0 0.0
  %2917 = vmatprep.subr.mxu0 0.0
  %2918 = vmatpush1.msra.mxu0 0.0
  %2919 = vmatprep.subr.mxu0 0.0
  %2920 = vmatpush1.msra.mxu0 0.0
  %2921 = vmatprep.subr.mxu0 0.0
  %2922 = vmatpush1.msra.mxu0 0.0
  %2923 = vmatprep.subr.mxu0 0.0
  %2924 = vmatpush1.msra.mxu0 0.0
  %2925 = vmatprep.subr.mxu0 0.0
  %2926 = vmatpush1.msra.mxu0 0.0
  %2927 = vmatprep.subr.mxu0 0.0
  %2928 = vmatpush1.msra.mxu0 0.0
  %2929 = vmatprep.subr.mxu0 0.0
  %2930 = vmatpush1.msra.mxu0 0.0
  %2931 = vmatprep.subr.mxu0 0.0
  %2932 = vmatpush1.msra.mxu0 0.0
  %2933 = vmatprep.subr.mxu0 0.0
  %2934 = vmatpush1.msra.mxu0 0.0
  %2935 = vmatprep.mubr.f32.mxu0 0.0
  %2936 = vmatmul.mubr.f32.gmra.mrb[0].mxu0 %v2869
  %v2937 = vpop.f32.mrb[0].mxu0
  %v2938 = vadd.f32 %v2866, %v2937
  %v2939 = vpop.f32.mrb[0].mxu0
  %2940 = vdwg.mxu0
  %v2942 = vrot.slane %v1492, 2
  %v2943 = vsel %vm2796, %v2942, 0
  %2945 = vmatprep.subr.mxu0 0.0
  %2946 = vmatpush1.msra.mxu0 %v2786
  %2947 = vmatprep.subr.mxu0 0.0
  %2948 = vmatpush1.msra.mxu0 %v2787
  %2949 = vmatprep.subr.mxu0 0.0
  %2950 = vmatpush1.msra.mxu0 %v2788
  %2951 = vmatprep.subr.mxu0 0.0
  %2952 = vmatpush1.msra.mxu0 %v2789
  %2953 = vmatprep.subr.mxu0 0.0
  %2954 = vmatpush1.msra.mxu0 %v2790
  %2955 = vmatprep.subr.mxu0 0.0
  %2956 = vmatpush1.msra.mxu0 %v2791
  %2957 = vmatprep.subr.mxu0 0.0
  %2958 = vmatpush1.msra.mxu0 %v2792
  %2959 = vmatprep.subr.mxu0 0.0
  %2960 = vmatpush1.msra.mxu0 %v2793
  %2961 = vmatprep.subr.mxu0 0.0
  %2962 = vmatpush1.msra.mxu0 0.0
  %2963 = vmatprep.subr.mxu0 0.0
  %2964 = vmatpush1.msra.mxu0 0.0
  %2965 = vmatprep.subr.mxu0 0.0
  %2966 = vmatpush1.msra.mxu0 0.0
  %2967 = vmatprep.subr.mxu0 0.0
  %2968 = vmatpush1.msra.mxu0 0.0
  %2969 = vmatprep.subr.mxu0 0.0
  %2970 = vmatpush1.msra.mxu0 0.0
  %2971 = vmatprep.subr.mxu0 0.0
  %2972 = vmatpush1.msra.mxu0 0.0
  %2973 = vmatprep.subr.mxu0 0.0
  %2974 = vmatpush1.msra.mxu0 0.0
  %2975 = vmatprep.subr.mxu0 0.0
  %2976 = vmatpush1.msra.mxu0 0.0
  %2977 = vmatprep.subr.mxu0 0.0
  %2978 = vmatpush1.msra.mxu0 0.0
  %2979 = vmatprep.subr.mxu0 0.0
  %2980 = vmatpush1.msra.mxu0 0.0
  %2981 = vmatprep.subr.mxu0 0.0
  %2982 = vmatpush1.msra.mxu0 0.0
  %2983 = vmatprep.subr.mxu0 0.0
  %2984 = vmatpush1.msra.mxu0 0.0
  %2985 = vmatprep.subr.mxu0 0.0
  %2986 = vmatpush1.msra.mxu0 0.0
  %2987 = vmatprep.subr.mxu0 0.0
  %2988 = vmatpush1.msra.mxu0 0.0
  %2989 = vmatprep.subr.mxu0 0.0
  %2990 = vmatpush1.msra.mxu0 0.0
  %2991 = vmatprep.subr.mxu0 0.0
  %2992 = vmatpush1.msra.mxu0 0.0
  %2993 = vmatprep.subr.mxu0 0.0
  %2994 = vmatpush1.msra.mxu0 0.0
  %2995 = vmatprep.subr.mxu0 0.0
  %2996 = vmatpush1.msra.mxu0 0.0
  %2997 = vmatprep.subr.mxu0 0.0
  %2998 = vmatpush1.msra.mxu0 0.0
  %2999 = vmatprep.subr.mxu0 0.0
  %3000 = vmatpush1.msra.mxu0 0.0
  %3001 = vmatprep.subr.mxu0 0.0
  %3002 = vmatpush1.msra.mxu0 0.0
  %3003 = vmatprep.subr.mxu0 0.0
  %3004 = vmatpush1.msra.mxu0 0.0
  %3005 = vmatprep.subr.mxu0 0.0
  %3006 = vmatpush1.msra.mxu0 0.0
  %3007 = vmatprep.subr.mxu0 0.0
  %3008 = vmatpush1.msra.mxu0 0.0
  %3009 = vmatprep.mubr.f32.mxu0 0.0
  %3010 = vmatmul.mubr.f32.gmra.mrb[0].mxu0 %v2943
  %v3011 = vpop.f32.mrb[0].mxu0
  %v3012 = vadd.f32 0.0, %v3011
  %v3013 = vpop.f32.mrb[0].mxu0
  %3014 = vdwg.mxu0
  %v3015 = vsel %vm2796, %v1492, 0
  %3017 = vmatprep.subr.mxu0 0.0
  %3018 = vmatpush1.msra.mxu0 %v2777
  %3019 = vmatprep.subr.mxu0 0.0
  %3020 = vmatpush1.msra.mxu0 %v2778
  %3021 = vmatprep.subr.mxu0 0.0
  %3022 = vmatpush1.msra.mxu0 %v2779
  %3023 = vmatprep.subr.mxu0 0.0
  %3024 = vmatpush1.msra.mxu0 %v2780
  %3025 = vmatprep.subr.mxu0 0.0
  %3026 = vmatpush1.msra.mxu0 %v2781
  %3027 = vmatprep.subr.mxu0 0.0
  %3028 = vmatpush1.msra.mxu0 %v2782
  %3029 = vmatprep.subr.mxu0 0.0
  %3030 = vmatpush1.msra.mxu0 %v2783
  %3031 = vmatprep.subr.mxu0 0.0
  %3032 = vmatpush1.msra.mxu0 %v2784
  %3033 = vmatprep.subr.mxu0 0.0
  %3034 = vmatpush1.msra.mxu0 0.0
  %3035 = vmatprep.subr.mxu0 0.0
  %3036 = vmatpush1.msra.mxu0 0.0
  %3037 = vmatprep.subr.mxu0 0.0
  %3038 = vmatpush1.msra.mxu0 0.0
  %3039 = vmatprep.subr.mxu0 0.0
  %3040 = vmatpush1.msra.mxu0 0.0
  %3041 = vmatprep.subr.mxu0 0.0
  %3042 = vmatpush1.msra.mxu0 0.0
  %3043 = vmatprep.subr.mxu0 0.0
  %3044 = vmatpush1.msra.mxu0 0.0
  %3045 = vmatprep.subr.mxu0 0.0
  %3046 = vmatpush1.msra.mxu0 0.0
  %3047 = vmatprep.subr.mxu0 0.0
  %3048 = vmatpush1.msra.mxu0 0.0
  %3049 = vmatprep.subr.mxu0 0.0
  %3050 = vmatpush1.msra.mxu0 0.0
  %3051 = vmatprep.subr.mxu0 0.0
  %3052 = vmatpush1.msra.mxu0 0.0
  %3053 = vmatprep.subr.mxu0 0.0
  %3054 = vmatpush1.msra.mxu0 0.0
  %3055 = vmatprep.subr.mxu0 0.0
  %3056 = vmatpush1.msra.mxu0 0.0
  %3057 = vmatprep.subr.mxu0 0.0
  %3058 = vmatpush1.msra.mxu0 0.0
  %3059 = vmatprep.subr.mxu0 0.0
  %3060 = vmatpush1.msra.mxu0 0.0
  %3061 = vmatprep.subr.mxu0 0.0
  %3062 = vmatpush1.msra.mxu0 0.0
  %3063 = vmatprep.subr.mxu0 0.0
  %3064 = vmatpush1.msra.mxu0 0.0
  %3065 = vmatprep.subr.mxu0 0.0
  %3066 = vmatpush1.msra.mxu0 0.0
  %3067 = vmatprep.subr.mxu0 0.0
  %3068 = vmatpush1.msra.mxu0 0.0
  %3069 = vmatprep.subr.mxu0 0.0
  %3070 = vmatpush1.msra.mxu0 0.0
  %3071 = vmatprep.subr.mxu0 0.0
  %3072 = vmatpush1.msra.mxu0 0.0
  %3073 = vmatprep.subr.mxu0 0.0
  %3074 = vmatpush1.msra.mxu0 0.0
  %3075 = vmatprep.subr.mxu0 0.0
  %3076 = vmatpush1.msra.mxu0 0.0
  %3077 = vmatprep.subr.mxu0 0.0
  %3078 = vmatpush1.msra.mxu0 0.0
  %3079 = vmatprep.subr.mxu0 0.0
  %3080 = vmatpush1.msra.mxu0 0.0
  %3081 = vmatprep.mubr.f32.mxu0 0.0
  %3082 = vmatmul.mubr.f32.gmra.mrb[0].mxu0 %v3015
  %v3083 = vpop.f32.mrb[0].mxu0
  %v3084 = vadd.f32 %v3012, %v3083
  %v3085 = vpop.f32.mrb[0].mxu0
  %3086 = vdwg.mxu0
  %s3087 = scalar_lea.vmem %s3, 128
  %v3088 = vld [vmem:[%s3087] sm:$0xff]
  %v3089 = vld [vmem:[%s3087 + $0x8] sm:$0xff]
  %v3090 = vld [vmem:[%s3087 + $0x10] sm:$0xff]
  %v3091 = vld [vmem:[%s3087 + $0x18] sm:$0xff]
  %v3092 = vld [vmem:[%s3087 + $0x20] sm:$0xff]
  %v3093 = vld [vmem:[%s3087 + $0x28] sm:$0xff]
  %v3094 = vld [vmem:[%s3087 + $0x30] sm:$0xff]
  %v3095 = vld [vmem:[%s3087 + $0x38] sm:$0xff]
  %v3096 = vrot.slane %v850, 4
  %v3097 = vsel %vm2796, %v3096, 0
  %3099 = vmatprep.subr.mxu0 0.0
  %3100 = vmatpush1.msra.mxu0 %v3088
  %3101 = vmatprep.subr.mxu0 0.0
  %3102 = vmatpush1.msra.mxu0 %v3089
  %3103 = vmatprep.subr.mxu0 0.0
  %3104 = vmatpush1.msra.mxu0 %v3090
  %3105 = vmatprep.subr.mxu0 0.0
  %3106 = vmatpush1.msra.mxu0 %v3091
  %3107 = vmatprep.subr.mxu0 0.0
  %3108 = vmatpush1.msra.mxu0 %v3092
  %3109 = vmatprep.subr.mxu0 0.0
  %3110 = vmatpush1.msra.mxu0 %v3093
  %3111 = vmatprep.subr.mxu0 0.0
  %3112 = vmatpush1.msra.mxu0 %v3094
  %3113 = vmatprep.subr.mxu0 0.0
  %3114 = vmatpush1.msra.mxu0 %v3095
  %3115 = vmatprep.subr.mxu0 0.0
  %3116 = vmatpush1.msra.mxu0 0.0
  %3117 = vmatprep.subr.mxu0 0.0
  %3118 = vmatpush1.msra.mxu0 0.0
  %3119 = vmatprep.subr.mxu0 0.0
  %3120 = vmatpush1.msra.mxu0 0.0
  %3121 = vmatprep.subr.mxu0 0.0
  %3122 = vmatpush1.msra.mxu0 0.0
  %3123 = vmatprep.subr.mxu0 0.0
  %3124 = vmatpush1.msra.mxu0 0.0
  %3125 = vmatprep.subr.mxu0 0.0
  %3126 = vmatpush1.msra.mxu0 0.0
  %3127 = vmatprep.subr.mxu0 0.0
  %3128 = vmatpush1.msra.mxu0 0.0
  %3129 = vmatprep.subr.mxu0 0.0
  %3130 = vmatpush1.msra.mxu0 0.0
  %3131 = vmatprep.subr.mxu0 0.0
  %3132 = vmatpush1.msra.mxu0 0.0
  %3133 = vmatprep.subr.mxu0 0.0
  %3134 = vmatpush1.msra.mxu0 0.0
  %3135 = vmatprep.subr.mxu0 0.0
  %3136 = vmatpush1.msra.mxu0 0.0
  %3137 = vmatprep.subr.mxu0 0.0
  %3138 = vmatpush1.msra.mxu0 0.0
  %3139 = vmatprep.subr.mxu0 0.0
  %3140 = vmatpush1.msra.mxu0 0.0
  %3141 = vmatprep.subr.mxu0 0.0
  %3142 = vmatpush1.msra.mxu0 0.0
  %3143 = vmatprep.subr.mxu0 0.0
  %3144 = vmatpush1.msra.mxu0 0.0
  %3145 = vmatprep.subr.mxu0 0.0
  %3146 = vmatpush1.msra.mxu0 0.0
  %3147 = vmatprep.subr.mxu0 0.0
  %3148 = vmatpush1.msra.mxu0 0.0
  %3149 = vmatprep.subr.mxu0 0.0
  %3150 = vmatpush1.msra.mxu0 0.0
  %3151 = vmatprep.subr.mxu0 0.0
  %3152 = vmatpush1.msra.mxu0 0.0
  %3153 = vmatprep.subr.mxu0 0.0
  %3154 = vmatpush1.msra.mxu0 0.0
  %3155 = vmatprep.subr.mxu0 0.0
  %3156 = vmatpush1.msra.mxu0 0.0
  %3157 = vmatprep.subr.mxu0 0.0
  %3158 = vmatpush1.msra.mxu0 0.0
  %3159 = vmatprep.subr.mxu0 0.0
  %3160 = vmatpush1.msra.mxu0 0.0
  %3161 = vmatprep.subr.mxu0 0.0
  %3162 = vmatpush1.msra.mxu0 0.0
  %3163 = vmatprep.mubr.f32.mxu0 0.0
  %3164 = vmatmul.mubr.f32.gmra.mrb[0].mxu0 %v3097
  %v3165 = vpop.f32.mrb[0].mxu0
  %v3166 = vadd.f32 0.0, %v3165
  %v3167 = vpop.f32.mrb[0].mxu0
  %3168 = vdwg.mxu0
  %v3169 = vadd.f32 %v2938, %v3166
  %v3170 = vrot.slane %v1492, 4
  %v3171 = vsel %vm2796, %v3170, 0
  %3173 = vmatprep.subr.mxu0 0.0
  %3174 = vmatpush1.msra.mxu0 %v3088
  %3175 = vmatprep.subr.mxu0 0.0
  %3176 = vmatpush1.msra.mxu0 %v3089
  %3177 = vmatprep.subr.mxu0 0.0
  %3178 = vmatpush1.msra.mxu0 %v3090
  %3179 = vmatprep.subr.mxu0 0.0
  %3180 = vmatpush1.msra.mxu0 %v3091
  %3181 = vmatprep.subr.mxu0 0.0
  %3182 = vmatpush1.msra.mxu0 %v3092
  %3183 = vmatprep.subr.mxu0 0.0
  %3184 = vmatpush1.msra.mxu0 %v3093
  %3185 = vmatprep.subr.mxu0 0.0
  %3186 = vmatpush1.msra.mxu0 %v3094
  %3187 = vmatprep.subr.mxu0 0.0
  %3188 = vmatpush1.msra.mxu0 %v3095
  %3189 = vmatprep.subr.mxu0 0.0
  %3190 = vmatpush1.msra.mxu0 0.0
  %3191 = vmatprep.subr.mxu0 0.0
  %3192 = vmatpush1.msra.mxu0 0.0
  %3193 = vmatprep.subr.mxu0 0.0
  %3194 = vmatpush1.msra.mxu0 0.0
  %3195 = vmatprep.subr.mxu0 0.0
  %3196 = vmatpush1.msra.mxu0 0.0
  %3197 = vmatprep.subr.mxu0 0.0
  %3198 = vmatpush1.msra.mxu0 0.0
  %3199 = vmatprep.subr.mxu0 0.0
  %3200 = vmatpush1.msra.mxu0 0.0
  %3201 = vmatprep.subr.mxu0 0.0
  %3202 = vmatpush1.msra.mxu0 0.0
  %3203 = vmatprep.subr.mxu0 0.0
  %3204 = vmatpush1.msra.mxu0 0.0
  %3205 = vmatprep.subr.mxu0 0.0
  %3206 = vmatpush1.msra.mxu0 0.0
  %3207 = vmatprep.subr.mxu0 0.0
  %3208 = vmatpush1.msra.mxu0 0.0
  %3209 = vmatprep.subr.mxu0 0.0
  %3210 = vmatpush1.msra.mxu0 0.0
  %3211 = vmatprep.subr.mxu0 0.0
  %3212 = vmatpush1.msra.mxu0 0.0
  %3213 = vmatprep.subr.mxu0 0.0
  %3214 = vmatpush1.msra.mxu0 0.0
  %3215 = vmatprep.subr.mxu0 0.0
  %3216 = vmatpush1.msra.mxu0 0.0
  %3217 = vmatprep.subr.mxu0 0.0
  %3218 = vmatpush1.msra.mxu0 0.0
  %3219 = vmatprep.subr.mxu0 0.0
  %3220 = vmatpush1.msra.mxu0 0.0
  %3221 = vmatprep.subr.mxu0 0.0
  %3222 = vmatpush1.msra.mxu0 0.0
  %3223 = vmatprep.subr.mxu0 0.0
  %3224 = vmatpush1.msra.mxu0 0.0
  %3225 = vmatprep.subr.mxu0 0.0
  %3226 = vmatpush1.msra.mxu0 0.0
  %3227 = vmatprep.subr.mxu0 0.0
  %3228 = vmatpush1.msra.mxu0 0.0
  %3229 = vmatprep.subr.mxu0 0.0
  %3230 = vmatpush1.msra.mxu0 0.0
  %3231 = vmatprep.subr.mxu0 0.0
  %3232 = vmatpush1.msra.mxu0 0.0
  %3233 = vmatprep.subr.mxu0 0.0
  %3234 = vmatpush1.msra.mxu0 0.0
  %3235 = vmatprep.subr.mxu0 0.0
  %3236 = vmatpush1.msra.mxu0 0.0
  %3237 = vmatprep.mubr.f32.mxu0 0.0
  %3238 = vmatmul.mubr.f32.gmra.mrb[0].mxu0 %v3171
  %v3239 = vpop.f32.mrb[0].mxu0
  %v3240 = vadd.f32 0.0, %v3239
  %v3241 = vpop.f32.mrb[0].mxu0
  %3242 = vdwg.mxu0
  %v3243 = vadd.f32 %v3084, %v3240
  %s3244 = scalar_lea.vmem %s3, 192
  %v3245 = vld [vmem:[%s3244] sm:$0xff]
  %v3246 = vld [vmem:[%s3244 + $0x8] sm:$0xff]
  %v3247 = vld [vmem:[%s3244 + $0x10] sm:$0xff]
  %v3248 = vld [vmem:[%s3244 + $0x18] sm:$0xff]
  %v3249 = vld [vmem:[%s3244 + $0x20] sm:$0xff]
  %v3250 = vld [vmem:[%s3244 + $0x28] sm:$0xff]
  %v3251 = vld [vmem:[%s3244 + $0x30] sm:$0xff]
  %v3252 = vld [vmem:[%s3244 + $0x38] sm:$0xff]
  %3253 = vmatprep.subr.mxu0 0.0
  %3254 = vmatpush1.msra.mxu0 %v3245
  %3255 = vmatprep.subr.mxu0 0.0
  %3256 = vmatpush1.msra.mxu0 %v3246
  %3257 = vmatprep.subr.mxu0 0.0
  %3258 = vmatpush1.msra.mxu0 %v3247
  %3259 = vmatprep.subr.mxu0 0.0
  %3260 = vmatpush1.msra.mxu0 %v3248
  %3261 = vmatprep.subr.mxu0 0.0
  %3262 = vmatpush1.msra.mxu0 %v3249
  %3263 = vmatprep.subr.mxu0 0.0
  %3264 = vmatpush1.msra.mxu0 %v3250
  %3265 = vmatprep.subr.mxu0 0.0
  %3266 = vmatpush1.msra.mxu0 %v3251
  %3267 = vmatprep.subr.mxu0 0.0
  %3268 = vmatpush1.msra.mxu0 %v3252
  %3269 = vmatprep.subr.mxu0 0.0
  %3270 = vmatpush1.msra.mxu0 0.0
  %3271 = vmatprep.subr.mxu0 0.0
  %3272 = vmatpush1.msra.mxu0 0.0
  %3273 = vmatprep.subr.mxu0 0.0
  %3274 = vmatpush1.msra.mxu0 0.0
  %3275 = vmatprep.subr.mxu0 0.0
  %3276 = vmatpush1.msra.mxu0 0.0
  %3277 = vmatprep.subr.mxu0 0.0
  %3278 = vmatpush1.msra.mxu0 0.0
  %3279 = vmatprep.subr.mxu0 0.0
  %3280 = vmatpush1.msra.mxu0 0.0
  %3281 = vmatprep.subr.mxu0 0.0
  %3282 = vmatpush1.msra.mxu0 0.0
  %3283 = vmatprep.subr.mxu0 0.0
  %3284 = vmatpush1.msra.mxu0 0.0
  %3285 = vmatprep.subr.mxu0 0.0
  %3286 = vmatpush1.msra.mxu0 0.0
  %3287 = vmatprep.subr.mxu0 0.0
  %3288 = vmatpush1.msra.mxu0 0.0
  %3289 = vmatprep.subr.mxu0 0.0
  %3290 = vmatpush1.msra.mxu0 0.0
  %3291 = vmatprep.subr.mxu0 0.0
  %3292 = vmatpush1.msra.mxu0 0.0
  %3293 = vmatprep.subr.mxu0 0.0
  %3294 = vmatpush1.msra.mxu0 0.0
  %3295 = vmatprep.subr.mxu0 0.0
  %3296 = vmatpush1.msra.mxu0 0.0
  %3297 = vmatprep.subr.mxu0 0.0
  %3298 = vmatpush1.msra.mxu0 0.0
  %3299 = vmatprep.subr.mxu0 0.0
  %3300 = vmatpush1.msra.mxu0 0.0
  %3301 = vmatprep.subr.mxu0 0.0
  %3302 = vmatpush1.msra.mxu0 0.0
  %3303 = vmatprep.subr.mxu0 0.0
  %3304 = vmatpush1.msra.mxu0 0.0
  %3305 = vmatprep.subr.mxu0 0.0
  %3306 = vmatpush1.msra.mxu0 0.0
  %3307 = vmatprep.subr.mxu0 0.0
  %3308 = vmatpush1.msra.mxu0 0.0
  %3309 = vmatprep.subr.mxu0 0.0
  %3310 = vmatpush1.msra.mxu0 0.0
  %3311 = vmatprep.subr.mxu0 0.0
  %3312 = vmatpush1.msra.mxu0 0.0
  %3313 = vmatprep.subr.mxu0 0.0
  %3314 = vmatpush1.msra.mxu0 0.0
  %3315 = vmatprep.subr.mxu0 0.0
  %3316 = vmatpush1.msra.mxu0 0.0
  %3317 = vmatprep.mubr.f32.mxu0 0.0
  %3318 = vmatmul.mubr.f32.gmra.mrb[0].mxu0 %v3015
  %v3319 = vpop.f32.mrb[0].mxu0
  %v3320 = vadd.f32 0.0, %v3319
  %v3321 = vpop.f32.mrb[0].mxu0
  %3322 = vdwg.mxu0
  %v3323 = vadd.f32 %v3169, %v3320
  %v3325 = vsel %vm2796, %v2134, 0
  %3327 = vmatprep.subr.mxu0 0.0
  %3328 = vmatpush1.msra.mxu0 %v3245
  %3329 = vmatprep.subr.mxu0 0.0
  %3330 = vmatpush1.msra.mxu0 %v3246
  %3331 = vmatprep.subr.mxu0 0.0
  %3332 = vmatpush1.msra.mxu0 %v3247
  %3333 = vmatprep.subr.mxu0 0.0
  %3334 = vmatpush1.msra.mxu0 %v3248
  %3335 = vmatprep.subr.mxu0 0.0
  %3336 = vmatpush1.msra.mxu0 %v3249
  %3337 = vmatprep.subr.mxu0 0.0
  %3338 = vmatpush1.msra.mxu0 %v3250
  %3339 = vmatprep.subr.mxu0 0.0
  %3340 = vmatpush1.msra.mxu0 %v3251
  %3341 = vmatprep.subr.mxu0 0.0
  %3342 = vmatpush1.msra.mxu0 %v3252
  %3343 = vmatprep.subr.mxu0 0.0
  %3344 = vmatpush1.msra.mxu0 0.0
  %3345 = vmatprep.subr.mxu0 0.0
  %3346 = vmatpush1.msra.mxu0 0.0
  %3347 = vmatprep.subr.mxu0 0.0
  %3348 = vmatpush1.msra.mxu0 0.0
  %3349 = vmatprep.subr.mxu0 0.0
  %3350 = vmatpush1.msra.mxu0 0.0
  %3351 = vmatprep.subr.mxu0 0.0
  %3352 = vmatpush1.msra.mxu0 0.0
  %3353 = vmatprep.subr.mxu0 0.0
  %3354 = vmatpush1.msra.mxu0 0.0
  %3355 = vmatprep.subr.mxu0 0.0
  %3356 = vmatpush1.msra.mxu0 0.0
  %3357 = vmatprep.subr.mxu0 0.0
  %3358 = vmatpush1.msra.mxu0 0.0
  %3359 = vmatprep.subr.mxu0 0.0
  %3360 = vmatpush1.msra.mxu0 0.0
  %3361 = vmatprep.subr.mxu0 0.0
  %3362 = vmatpush1.msra.mxu0 0.0
  %3363 = vmatprep.subr.mxu0 0.0
  %3364 = vmatpush1.msra.mxu0 0.0
  %3365 = vmatprep.subr.mxu0 0.0
  %3366 = vmatpush1.msra.mxu0 0.0
  %3367 = vmatprep.subr.mxu0 0.0
  %3368 = vmatpush1.msra.mxu0 0.0
  %3369 = vmatprep.subr.mxu0 0.0
  %3370 = vmatpush1.msra.mxu0 0.0
  %3371 = vmatprep.subr.mxu0 0.0
  %3372 = vmatpush1.msra.mxu0 0.0
  %3373 = vmatprep.subr.mxu0 0.0
  %3374 = vmatpush1.msra.mxu0 0.0
  %3375 = vmatprep.subr.mxu0 0.0
  %3376 = vmatpush1.msra.mxu0 0.0
  %3377 = vmatprep.subr.mxu0 0.0
  %3378 = vmatpush1.msra.mxu0 0.0
  %3379 = vmatprep.subr.mxu0 0.0
  %3380 = vmatpush1.msra.mxu0 0.0
  %3381 = vmatprep.subr.mxu0 0.0
  %3382 = vmatpush1.msra.mxu0 0.0
  %3383 = vmatprep.subr.mxu0 0.0
  %3384 = vmatpush1.msra.mxu0 0.0
  %3385 = vmatprep.subr.mxu0 0.0
  %3386 = vmatpush1.msra.mxu0 0.0
  %3387 = vmatprep.subr.mxu0 0.0
  %3388 = vmatpush1.msra.mxu0 0.0
  %3389 = vmatprep.subr.mxu0 0.0
  %3390 = vmatpush1.msra.mxu0 0.0
  %3391 = vmatprep.mubr.f32.mxu0 0.0
  %3392 = vmatmul.mubr.f32.gmra.mrb[0].mxu0 %v3325
  %v3393 = vpop.f32.mrb[0].mxu0
  %v3394 = vadd.f32 0.0, %v3393
  %v3395 = vpop.f32.mrb[0].mxu0
  %3396 = vdwg.mxu0
  %v3397 = vadd.f32 %v3243, %v3394
  %s3398 = scalar_lea.vmem %s3, 256
  %v3399 = vld [vmem:[%s3398] sm:$0xff]
  %v3400 = vld [vmem:[%s3398 + $0x8] sm:$0xff]
  %v3401 = vld [vmem:[%s3398 + $0x10] sm:$0xff]
  %v3402 = vld [vmem:[%s3398 + $0x18] sm:$0xff]
  %v3403 = vld [vmem:[%s3398 + $0x20] sm:$0xff]
  %v3404 = vld [vmem:[%s3398 + $0x28] sm:$0xff]
  %v3405 = vld [vmem:[%s3398 + $0x30] sm:$0xff]
  %v3406 = vld [vmem:[%s3398 + $0x38] sm:$0xff]
  %3407 = vmatprep.subr.mxu0 0.0
  %3408 = vmatpush1.msra.mxu0 %v3399
  %3409 = vmatprep.subr.mxu0 0.0
  %3410 = vmatpush1.msra.mxu0 %v3400
  %3411 = vmatprep.subr.mxu0 0.0
  %3412 = vmatpush1.msra.mxu0 %v3401
  %3413 = vmatprep.subr.mxu0 0.0
  %3414 = vmatpush1.msra.mxu0 %v3402
  %3415 = vmatprep.subr.mxu0 0.0
  %3416 = vmatpush1.msra.mxu0 %v3403
  %3417 = vmatprep.subr.mxu0 0.0
  %3418 = vmatpush1.msra.mxu0 %v3404
  %3419 = vmatprep.subr.mxu0 0.0
  %3420 = vmatpush1.msra.mxu0 %v3405
  %3421 = vmatprep.subr.mxu0 0.0
  %3422 = vmatpush1.msra.mxu0 %v3406
  %3423 = vmatprep.subr.mxu0 0.0
  %3424 = vmatpush1.msra.mxu0 0.0
  %3425 = vmatprep.subr.mxu0 0.0
  %3426 = vmatpush1.msra.mxu0 0.0
  %3427 = vmatprep.subr.mxu0 0.0
  %3428 = vmatpush1.msra.mxu0 0.0
  %3429 = vmatprep.subr.mxu0 0.0
  %3430 = vmatpush1.msra.mxu0 0.0
  %3431 = vmatprep.subr.mxu0 0.0
  %3432 = vmatpush1.msra.mxu0 0.0
  %3433 = vmatprep.subr.mxu0 0.0
  %3434 = vmatpush1.msra.mxu0 0.0
  %3435 = vmatprep.subr.mxu0 0.0
  %3436 = vmatpush1.msra.mxu0 0.0
  %3437 = vmatprep.subr.mxu0 0.0
  %3438 = vmatpush1.msra.mxu0 0.0
  %3439 = vmatprep.subr.mxu0 0.0
  %3440 = vmatpush1.msra.mxu0 0.0
  %3441 = vmatprep.subr.mxu0 0.0
  %3442 = vmatpush1.msra.mxu0 0.0
  %3443 = vmatprep.subr.mxu0 0.0
  %3444 = vmatpush1.msra.mxu0 0.0
  %3445 = vmatprep.subr.mxu0 0.0
  %3446 = vmatpush1.msra.mxu0 0.0
  %3447 = vmatprep.subr.mxu0 0.0
  %3448 = vmatpush1.msra.mxu0 0.0
  %3449 = vmatprep.subr.mxu0 0.0
  %3450 = vmatpush1.msra.mxu0 0.0
  %3451 = vmatprep.subr.mxu0 0.0
  %3452 = vmatpush1.msra.mxu0 0.0
  %3453 = vmatprep.subr.mxu0 0.0
  %3454 = vmatpush1.msra.mxu0 0.0
  %3455 = vmatprep.subr.mxu0 0.0
  %3456 = vmatpush1.msra.mxu0 0.0
  %3457 = vmatprep.subr.mxu0 0.0
  %3458 = vmatpush1.msra.mxu0 0.0
  %3459 = vmatprep.subr.mxu0 0.0
  %3460 = vmatpush1.msra.mxu0 0.0
  %3461 = vmatprep.subr.mxu0 0.0
  %3462 = vmatpush1.msra.mxu0 0.0
  %3463 = vmatprep.subr.mxu0 0.0
  %3464 = vmatpush1.msra.mxu0 0.0
  %3465 = vmatprep.subr.mxu0 0.0
  %3466 = vmatpush1.msra.mxu0 0.0
  %3467 = vmatprep.subr.mxu0 0.0
  %3468 = vmatpush1.msra.mxu0 0.0
  %3469 = vmatprep.subr.mxu0 0.0
  %3470 = vmatpush1.msra.mxu0 0.0
  %3471 = vmatprep.mubr.f32.mxu0 0.0
  %3472 = vmatmul.mubr.f32.gmra.mrb[0].mxu0 %v2943
  %v3473 = vpop.f32.mrb[0].mxu0
  %v3474 = vadd.f32 0.0, %v3473
  %v3475 = vpop.f32.mrb[0].mxu0
  %3476 = vdwg.mxu0
  %v3477 = vadd.f32 %v3323, %v3474
  %v3478 = vrot.slane %v2134, 2
  %v3479 = vsel %vm2796, %v3478, 0
  %3481 = vmatprep.subr.mxu0 0.0
  %3482 = vmatpush1.msra.mxu0 %v3399
  %3483 = vmatprep.subr.mxu0 0.0
  %3484 = vmatpush1.msra.mxu0 %v3400
  %3485 = vmatprep.subr.mxu0 0.0
  %3486 = vmatpush1.msra.mxu0 %v3401
  %3487 = vmatprep.subr.mxu0 0.0
  %3488 = vmatpush1.msra.mxu0 %v3402
  %3489 = vmatprep.subr.mxu0 0.0
  %3490 = vmatpush1.msra.mxu0 %v3403
  %3491 = vmatprep.subr.mxu0 0.0
  %3492 = vmatpush1.msra.mxu0 %v3404
  %3493 = vmatprep.subr.mxu0 0.0
  %3494 = vmatpush1.msra.mxu0 %v3405
  %3495 = vmatprep.subr.mxu0 0.0
  %3496 = vmatpush1.msra.mxu0 %v3406
  %3497 = vmatprep.subr.mxu0 0.0
  %3498 = vmatpush1.msra.mxu0 0.0
  %3499 = vmatprep.subr.mxu0 0.0
  %3500 = vmatpush1.msra.mxu0 0.0
  %3501 = vmatprep.subr.mxu0 0.0
  %3502 = vmatpush1.msra.mxu0 0.0
  %3503 = vmatprep.subr.mxu0 0.0
  %3504 = vmatpush1.msra.mxu0 0.0
  %3505 = vmatprep.subr.mxu0 0.0
  %3506 = vmatpush1.msra.mxu0 0.0
  %3507 = vmatprep.subr.mxu0 0.0
  %3508 = vmatpush1.msra.mxu0 0.0
  %3509 = vmatprep.subr.mxu0 0.0
  %3510 = vmatpush1.msra.mxu0 0.0
  %3511 = vmatprep.subr.mxu0 0.0
  %3512 = vmatpush1.msra.mxu0 0.0
  %3513 = vmatprep.subr.mxu0 0.0
  %3514 = vmatpush1.msra.mxu0 0.0
  %3515 = vmatprep.subr.mxu0 0.0
  %3516 = vmatpush1.msra.mxu0 0.0
  %3517 = vmatprep.subr.mxu0 0.0
  %3518 = vmatpush1.msra.mxu0 0.0
  %3519 = vmatprep.subr.mxu0 0.0
  %3520 = vmatpush1.msra.mxu0 0.0
  %3521 = vmatprep.subr.mxu0 0.0
  %3522 = vmatpush1.msra.mxu0 0.0
  %3523 = vmatprep.subr.mxu0 0.0
  %3524 = vmatpush1.msra.mxu0 0.0
  %3525 = vmatprep.subr.mxu0 0.0
  %3526 = vmatpush1.msra.mxu0 0.0
  %3527 = vmatprep.subr.mxu0 0.0
  %3528 = vmatpush1.msra.mxu0 0.0
  %3529 = vmatprep.subr.mxu0 0.0
  %3530 = vmatpush1.msra.mxu0 0.0
  %3531 = vmatprep.subr.mxu0 0.0
  %3532 = vmatpush1.msra.mxu0 0.0
  %3533 = vmatprep.subr.mxu0 0.0
  %3534 = vmatpush1.msra.mxu0 0.0
  %3535 = vmatprep.subr.mxu0 0.0
  %3536 = vmatpush1.msra.mxu0 0.0
  %3537 = vmatprep.subr.mxu0 0.0
  %3538 = vmatpush1.msra.mxu0 0.0
  %3539 = vmatprep.subr.mxu0 0.0
  %3540 = vmatpush1.msra.mxu0 0.0
  %3541 = vmatprep.subr.mxu0 0.0
  %3542 = vmatpush1.msra.mxu0 0.0
  %3543 = vmatprep.subr.mxu0 0.0
  %3544 = vmatpush1.msra.mxu0 0.0
  %3545 = vmatprep.mubr.f32.mxu0 0.0
  %3546 = vmatmul.mubr.f32.gmra.mrb[0].mxu0 %v3479
  %v3547 = vpop.f32.mrb[0].mxu0
  %v3548 = vadd.f32 0.0, %v3547
  %v3549 = vpop.f32.mrb[0].mxu0
  %3550 = vdwg.mxu0
  %v3551 = vadd.f32 %v3397, %v3548
  %s3552 = scalar_lea.vmem %s3, 320
  %v3553 = vld [vmem:[%s3552] sm:$0xff]
  %v3554 = vld [vmem:[%s3552 + $0x8] sm:$0xff]
  %v3555 = vld [vmem:[%s3552 + $0x10] sm:$0xff]
  %v3556 = vld [vmem:[%s3552 + $0x18] sm:$0xff]
  %v3557 = vld [vmem:[%s3552 + $0x20] sm:$0xff]
  %v3558 = vld [vmem:[%s3552 + $0x28] sm:$0xff]
  %v3559 = vld [vmem:[%s3552 + $0x30] sm:$0xff]
  %v3560 = vld [vmem:[%s3552 + $0x38] sm:$0xff]
  %3561 = vmatprep.subr.mxu0 0.0
  %3562 = vmatpush1.msra.mxu0 %v3553
  %3563 = vmatprep.subr.mxu0 0.0
  %3564 = vmatpush1.msra.mxu0 %v3554
  %3565 = vmatprep.subr.mxu0 0.0
  %3566 = vmatpush1.msra.mxu0 %v3555
  %3567 = vmatprep.subr.mxu0 0.0
  %3568 = vmatpush1.msra.mxu0 %v3556
  %3569 = vmatprep.subr.mxu0 0.0
  %3570 = vmatpush1.msra.mxu0 %v3557
  %3571 = vmatprep.subr.mxu0 0.0
  %3572 = vmatpush1.msra.mxu0 %v3558
  %3573 = vmatprep.subr.mxu0 0.0
  %3574 = vmatpush1.msra.mxu0 %v3559
  %3575 = vmatprep.subr.mxu0 0.0
  %3576 = vmatpush1.msra.mxu0 %v3560
  %3577 = vmatprep.subr.mxu0 0.0
  %3578 = vmatpush1.msra.mxu0 0.0
  %3579 = vmatprep.subr.mxu0 0.0
  %3580 = vmatpush1.msra.mxu0 0.0
  %3581 = vmatprep.subr.mxu0 0.0
  %3582 = vmatpush1.msra.mxu0 0.0
  %3583 = vmatprep.subr.mxu0 0.0
  %3584 = vmatpush1.msra.mxu0 0.0
  %3585 = vmatprep.subr.mxu0 0.0
  %3586 = vmatpush1.msra.mxu0 0.0
  %3587 = vmatprep.subr.mxu0 0.0
  %3588 = vmatpush1.msra.mxu0 0.0
  %3589 = vmatprep.subr.mxu0 0.0
  %3590 = vmatpush1.msra.mxu0 0.0
  %3591 = vmatprep.subr.mxu0 0.0
  %3592 = vmatpush1.msra.mxu0 0.0
  %3593 = vmatprep.subr.mxu0 0.0
  %3594 = vmatpush1.msra.mxu0 0.0
  %3595 = vmatprep.subr.mxu0 0.0
  %3596 = vmatpush1.msra.mxu0 0.0
  %3597 = vmatprep.subr.mxu0 0.0
  %3598 = vmatpush1.msra.mxu0 0.0
  %3599 = vmatprep.subr.mxu0 0.0
  %3600 = vmatpush1.msra.mxu0 0.0
  %3601 = vmatprep.subr.mxu0 0.0
  %3602 = vmatpush1.msra.mxu0 0.0
  %3603 = vmatprep.subr.mxu0 0.0
  %3604 = vmatpush1.msra.mxu0 0.0
  %3605 = vmatprep.subr.mxu0 0.0
  %3606 = vmatpush1.msra.mxu0 0.0
  %3607 = vmatprep.subr.mxu0 0.0
  %3608 = vmatpush1.msra.mxu0 0.0
  %3609 = vmatprep.subr.mxu0 0.0
  %3610 = vmatpush1.msra.mxu0 0.0
  %3611 = vmatprep.subr.mxu0 0.0
  %3612 = vmatpush1.msra.mxu0 0.0
  %3613 = vmatprep.subr.mxu0 0.0
  %3614 = vmatpush1.msra.mxu0 0.0
  %3615 = vmatprep.subr.mxu0 0.0
  %3616 = vmatpush1.msra.mxu0 0.0
  %3617 = vmatprep.subr.mxu0 0.0
  %3618 = vmatpush1.msra.mxu0 0.0
  %3619 = vmatprep.subr.mxu0 0.0
  %3620 = vmatpush1.msra.mxu0 0.0
  %3621 = vmatprep.subr.mxu0 0.0
  %3622 = vmatpush1.msra.mxu0 0.0
  %3623 = vmatprep.subr.mxu0 0.0
  %3624 = vmatpush1.msra.mxu0 0.0
  %3625 = vmatprep.mubr.f32.mxu0 0.0
  %3626 = vmatmul.mubr.f32.gmra.mrb[0].mxu0 %v3171
  %v3627 = vpop.f32.mrb[0].mxu0
  %v3628 = vadd.f32 0.0, %v3627
  %v3629 = vpop.f32.mrb[0].mxu0
  %3630 = vdwg.mxu0
  %v3631 = vadd.f32 %v3477, %v3628
  %v3632 = vrot.slane %v2134, 4
  %v3633 = vsel %vm2796, %v3632, 0
  %3635 = vmatprep.subr.mxu0 0.0
  %3636 = vmatpush1.msra.mxu0 %v3553
  %3637 = vmatprep.subr.mxu0 0.0
  %3638 = vmatpush1.msra.mxu0 %v3554
  %3639 = vmatprep.subr.mxu0 0.0
  %3640 = vmatpush1.msra.mxu0 %v3555
  %3641 = vmatprep.subr.mxu0 0.0
  %3642 = vmatpush1.msra.mxu0 %v3556
  %3643 = vmatprep.subr.mxu0 0.0
  %3644 = vmatpush1.msra.mxu0 %v3557
  %3645 = vmatprep.subr.mxu0 0.0
  %3646 = vmatpush1.msra.mxu0 %v3558
  %3647 = vmatprep.subr.mxu0 0.0
  %3648 = vmatpush1.msra.mxu0 %v3559
  %3649 = vmatprep.subr.mxu0 0.0
  %3650 = vmatpush1.msra.mxu0 %v3560
  %3651 = vmatprep.subr.mxu0 0.0
  %3652 = vmatpush1.msra.mxu0 0.0
  %3653 = vmatprep.subr.mxu0 0.0
  %3654 = vmatpush1.msra.mxu0 0.0
  %3655 = vmatprep.subr.mxu0 0.0
  %3656 = vmatpush1.msra.mxu0 0.0
  %3657 = vmatprep.subr.mxu0 0.0
  %3658 = vmatpush1.msra.mxu0 0.0
  %3659 = vmatprep.subr.mxu0 0.0
  %3660 = vmatpush1.msra.mxu0 0.0
  %3661 = vmatprep.subr.mxu0 0.0
  %3662 = vmatpush1.msra.mxu0 0.0
  %3663 = vmatprep.subr.mxu0 0.0
  %3664 = vmatpush1.msra.mxu0 0.0
  %3665 = vmatprep.subr.mxu0 0.0
  %3666 = vmatpush1.msra.mxu0 0.0
  %3667 = vmatprep.subr.mxu0 0.0
  %3668 = vmatpush1.msra.mxu0 0.0
  %3669 = vmatprep.subr.mxu0 0.0
  %3670 = vmatpush1.msra.mxu0 0.0
  %3671 = vmatprep.subr.mxu0 0.0
  %3672 = vmatpush1.msra.mxu0 0.0
  %3673 = vmatprep.subr.mxu0 0.0
  %3674 = vmatpush1.msra.mxu0 0.0
  %3675 = vmatprep.subr.mxu0 0.0
  %3676 = vmatpush1.msra.mxu0 0.0
  %3677 = vmatprep.subr.mxu0 0.0
  %3678 = vmatpush1.msra.mxu0 0.0
  %3679 = vmatprep.subr.mxu0 0.0
  %3680 = vmatpush1.msra.mxu0 0.0
  %3681 = vmatprep.subr.mxu0 0.0
  %3682 = vmatpush1.msra.mxu0 0.0
  %3683 = vmatprep.subr.mxu0 0.0
  %3684 = vmatpush1.msra.mxu0 0.0
  %3685 = vmatprep.subr.mxu0 0.0
  %3686 = vmatpush1.msra.mxu0 0.0
  %3687 = vmatprep.subr.mxu0 0.0
  %3688 = vmatpush1.msra.mxu0 0.0
  %3689 = vmatprep.subr.mxu0 0.0
  %3690 = vmatpush1.msra.mxu0 0.0
  %3691 = vmatprep.subr.mxu0 0.0
  %3692 = vmatpush1.msra.mxu0 0.0
  %3693 = vmatprep.subr.mxu0 0.0
  %3694 = vmatpush1.msra.mxu0 0.0
  %3695 = vmatprep.subr.mxu0 0.0
  %3696 = vmatpush1.msra.mxu0 0.0
  %3697 = vmatprep.subr.mxu0 0.0
  %3698 = vmatpush1.msra.mxu0 0.0
  %3699 = vmatprep.mubr.f32.mxu0 0.0
  %3700 = vmatmul.mubr.f32.gmra.mrb[0].mxu0 %v3633
  %v3701 = vpop.f32.mrb[0].mxu0
  %v3702 = vadd.f32 0.0, %v3701
  %v3703 = vpop.f32.mrb[0].mxu0
  %3704 = vdwg.mxu0
  %v3705 = vadd.f32 %v3551, %v3702
  %s3706 = scalar_lea.vmem %s3, 384
  %v3707 = vld [vmem:[%s3706] sm:$0xff]
  %v3708 = vld [vmem:[%s3706 + $0x8] sm:$0xff]
  %v3709 = vld [vmem:[%s3706 + $0x10] sm:$0xff]
  %v3710 = vld [vmem:[%s3706 + $0x18] sm:$0xff]
  %v3711 = vld [vmem:[%s3706 + $0x20] sm:$0xff]
  %v3712 = vld [vmem:[%s3706 + $0x28] sm:$0xff]
  %v3713 = vld [vmem:[%s3706 + $0x30] sm:$0xff]
  %v3714 = vld [vmem:[%s3706 + $0x38] sm:$0xff]
  %3715 = vmatprep.subr.mxu0 0.0
  %3716 = vmatpush1.msra.mxu0 %v3707
  %3717 = vmatprep.subr.mxu0 0.0
  %3718 = vmatpush1.msra.mxu0 %v3708
  %3719 = vmatprep.subr.mxu0 0.0
  %3720 = vmatpush1.msra.mxu0 %v3709
  %3721 = vmatprep.subr.mxu0 0.0
  %3722 = vmatpush1.msra.mxu0 %v3710
  %3723 = vmatprep.subr.mxu0 0.0
  %3724 = vmatpush1.msra.mxu0 %v3711
  %3725 = vmatprep.subr.mxu0 0.0
  %3726 = vmatpush1.msra.mxu0 %v3712
  %3727 = vmatprep.subr.mxu0 0.0
  %3728 = vmatpush1.msra.mxu0 %v3713
  %3729 = vmatprep.subr.mxu0 0.0
  %3730 = vmatpush1.msra.mxu0 %v3714
  %3731 = vmatprep.subr.mxu0 0.0
  %3732 = vmatpush1.msra.mxu0 0.0
  %3733 = vmatprep.subr.mxu0 0.0
  %3734 = vmatpush1.msra.mxu0 0.0
  %3735 = vmatprep.subr.mxu0 0.0
  %3736 = vmatpush1.msra.mxu0 0.0
  %3737 = vmatprep.subr.mxu0 0.0
  %3738 = vmatpush1.msra.mxu0 0.0
  %3739 = vmatprep.subr.mxu0 0.0
  %3740 = vmatpush1.msra.mxu0 0.0
  %3741 = vmatprep.subr.mxu0 0.0
  %3742 = vmatpush1.msra.mxu0 0.0
  %3743 = vmatprep.subr.mxu0 0.0
  %3744 = vmatpush1.msra.mxu0 0.0
  %3745 = vmatprep.subr.mxu0 0.0
  %3746 = vmatpush1.msra.mxu0 0.0
  %3747 = vmatprep.subr.mxu0 0.0
  %3748 = vmatpush1.msra.mxu0 0.0
  %3749 = vmatprep.subr.mxu0 0.0
  %3750 = vmatpush1.msra.mxu0 0.0
  %3751 = vmatprep.subr.mxu0 0.0
  %3752 = vmatpush1.msra.mxu0 0.0
  %3753 = vmatprep.subr.mxu0 0.0
  %3754 = vmatpush1.msra.mxu0 0.0
  %3755 = vmatprep.subr.mxu0 0.0
  %3756 = vmatpush1.msra.mxu0 0.0
  %3757 = vmatprep.subr.mxu0 0.0
  %3758 = vmatpush1.msra.mxu0 0.0
  %3759 = vmatprep.subr.mxu0 0.0
  %3760 = vmatpush1.msra.mxu0 0.0
  %3761 = vmatprep.subr.mxu0 0.0
  %3762 = vmatpush1.msra.mxu0 0.0
  %3763 = vmatprep.subr.mxu0 0.0
  %3764 = vmatpush1.msra.mxu0 0.0
  %3765 = vmatprep.subr.mxu0 0.0
  %3766 = vmatpush1.msra.mxu0 0.0
  %3767 = vmatprep.subr.mxu0 0.0
  %3768 = vmatpush1.msra.mxu0 0.0
  %3769 = vmatprep.subr.mxu0 0.0
  %3770 = vmatpush1.msra.mxu0 0.0
  %3771 = vmatprep.subr.mxu0 0.0
  %3772 = vmatpush1.msra.mxu0 0.0
  %3773 = vmatprep.subr.mxu0 0.0
  %3774 = vmatpush1.msra.mxu0 0.0
  %3775 = vmatprep.subr.mxu0 0.0
  %3776 = vmatpush1.msra.mxu0 0.0
  %3777 = vmatprep.subr.mxu0 0.0
  %3778 = vmatpush1.msra.mxu0 0.0
  %3779 = vmatprep.mubr.f32.mxu0 0.0
  %3780 = vmatmul.mubr.f32.gmra.mrb[0].mxu0 %v3325
  %v3781 = vpop.f32.mrb[0].mxu0
  %v3782 = vadd.f32 0.0, %v3781
  %v3783 = vpop.f32.mrb[0].mxu0
  %3784 = vdwg.mxu0
  %v3785 = vadd.f32 %v3631, %v3782
  %v3787 = vsel %vm2796, %v2776, 0
  %3789 = vmatprep.subr.mxu0 0.0
  %3790 = vmatpush1.msra.mxu0 %v3707
  %3791 = vmatprep.subr.mxu0 0.0
  %3792 = vmatpush1.msra.mxu0 %v3708
  %3793 = vmatprep.subr.mxu0 0.0
  %3794 = vmatpush1.msra.mxu0 %v3709
  %3795 = vmatprep.subr.mxu0 0.0
  %3796 = vmatpush1.msra.mxu0 %v3710
  %3797 = vmatprep.subr.mxu0 0.0
  %3798 = vmatpush1.msra.mxu0 %v3711
  %3799 = vmatprep.subr.mxu0 0.0
  %3800 = vmatpush1.msra.mxu0 %v3712
  %3801 = vmatprep.subr.mxu0 0.0
  %3802 = vmatpush1.msra.mxu0 %v3713
  %3803 = vmatprep.subr.mxu0 0.0
  %3804 = vmatpush1.msra.mxu0 %v3714
  %3805 = vmatprep.subr.mxu0 0.0
  %3806 = vmatpush1.msra.mxu0 0.0
  %3807 = vmatprep.subr.mxu0 0.0
  %3808 = vmatpush1.msra.mxu0 0.0
  %3809 = vmatprep.subr.mxu0 0.0
  %3810 = vmatpush1.msra.mxu0 0.0
  %3811 = vmatprep.subr.mxu0 0.0
  %3812 = vmatpush1.msra.mxu0 0.0
  %3813 = vmatprep.subr.mxu0 0.0
  %3814 = vmatpush1.msra.mxu0 0.0
  %3815 = vmatprep.subr.mxu0 0.0
  %3816 = vmatpush1.msra.mxu0 0.0
  %3817 = vmatprep.subr.mxu0 0.0
  %3818 = vmatpush1.msra.mxu0 0.0
  %3819 = vmatprep.subr.mxu0 0.0
  %3820 = vmatpush1.msra.mxu0 0.0
  %3821 = vmatprep.subr.mxu0 0.0
  %3822 = vmatpush1.msra.mxu0 0.0
  %3823 = vmatprep.subr.mxu0 0.0
  %3824 = vmatpush1.msra.mxu0 0.0
  %3825 = vmatprep.subr.mxu0 0.0
  %3826 = vmatpush1.msra.mxu0 0.0
  %3827 = vmatprep.subr.mxu0 0.0
  %3828 = vmatpush1.msra.mxu0 0.0
  %3829 = vmatprep.subr.mxu0 0.0
  %3830 = vmatpush1.msra.mxu0 0.0
  %3831 = vmatprep.subr.mxu0 0.0
  %3832 = vmatpush1.msra.mxu0 0.0
  %3833 = vmatprep.subr.mxu0 0.0
  %3834 = vmatpush1.msra.mxu0 0.0
  %3835 = vmatprep.subr.mxu0 0.0
  %3836 = vmatpush1.msra.mxu0 0.0
  %3837 = vmatprep.subr.mxu0 0.0
  %3838 = vmatpush1.msra.mxu0 0.0
  %3839 = vmatprep.subr.mxu0 0.0
  %3840 = vmatpush1.msra.mxu0 0.0
  %3841 = vmatprep.subr.mxu0 0.0
  %3842 = vmatpush1.msra.mxu0 0.0
  %3843 = vmatprep.subr.mxu0 0.0
  %3844 = vmatpush1.msra.mxu0 0.0
  %3845 = vmatprep.subr.mxu0 0.0
  %3846 = vmatpush1.msra.mxu0 0.0
  %3847 = vmatprep.subr.mxu0 0.0
  %3848 = vmatpush1.msra.mxu0 0.0
  %3849 = vmatprep.subr.mxu0 0.0
  %3850 = vmatpush1.msra.mxu0 0.0
  %3851 = vmatprep.subr.mxu0 0.0
  %3852 = vmatpush1.msra.mxu0 0.0
  %3853 = vmatprep.mubr.f32.mxu0 0.0
  %3854 = vmatmul.mubr.f32.gmra.mrb[0].mxu0 %v3787
  %v3855 = vpop.f32.mrb[0].mxu0
  %v3856 = vadd.f32 0.0, %v3855
  %v3857 = vpop.f32.mrb[0].mxu0
  %3858 = vdwg.mxu0
  %v3859 = vadd.f32 %v3705, %v3856
  %s3860 = scalar_lea.vmem %s3, 448
  %v3861 = vld [vmem:[%s3860] sm:$0xff]
  %v3862 = vld [vmem:[%s3860 + $0x8] sm:$0xff]
  %v3863 = vld [vmem:[%s3860 + $0x10] sm:$0xff]
  %v3864 = vld [vmem:[%s3860 + $0x18] sm:$0xff]
  %v3865 = vld [vmem:[%s3860 + $0x20] sm:$0xff]
  %v3866 = vld [vmem:[%s3860 + $0x28] sm:$0xff]
  %v3867 = vld [vmem:[%s3860 + $0x30] sm:$0xff]
  %v3868 = vld [vmem:[%s3860 + $0x38] sm:$0xff]
  %3869 = vmatprep.subr.mxu0 0.0
  %3870 = vmatpush1.msra.mxu0 %v3861
  %3871 = vmatprep.subr.mxu0 0.0
  %3872 = vmatpush1.msra.mxu0 %v3862
  %3873 = vmatprep.subr.mxu0 0.0
  %3874 = vmatpush1.msra.mxu0 %v3863
  %3875 = vmatprep.subr.mxu0 0.0
  %3876 = vmatpush1.msra.mxu0 %v3864
  %3877 = vmatprep.subr.mxu0 0.0
  %3878 = vmatpush1.msra.mxu0 %v3865
  %3879 = vmatprep.subr.mxu0 0.0
  %3880 = vmatpush1.msra.mxu0 %v3866
  %3881 = vmatprep.subr.mxu0 0.0
  %3882 = vmatpush1.msra.mxu0 %v3867
  %3883 = vmatprep.subr.mxu0 0.0
  %3884 = vmatpush1.msra.mxu0 %v3868
  %3885 = vmatprep.subr.mxu0 0.0
  %3886 = vmatpush1.msra.mxu0 0.0
  %3887 = vmatprep.subr.mxu0 0.0
  %3888 = vmatpush1.msra.mxu0 0.0
  %3889 = vmatprep.subr.mxu0 0.0
  %3890 = vmatpush1.msra.mxu0 0.0
  %3891 = vmatprep.subr.mxu0 0.0
  %3892 = vmatpush1.msra.mxu0 0.0
  %3893 = vmatprep.subr.mxu0 0.0
  %3894 = vmatpush1.msra.mxu0 0.0
  %3895 = vmatprep.subr.mxu0 0.0
  %3896 = vmatpush1.msra.mxu0 0.0
  %3897 = vmatprep.subr.mxu0 0.0
  %3898 = vmatpush1.msra.mxu0 0.0
  %3899 = vmatprep.subr.mxu0 0.0
  %3900 = vmatpush1.msra.mxu0 0.0
  %3901 = vmatprep.subr.mxu0 0.0
  %3902 = vmatpush1.msra.mxu0 0.0
  %3903 = vmatprep.subr.mxu0 0.0
  %3904 = vmatpush1.msra.mxu0 0.0
  %3905 = vmatprep.subr.mxu0 0.0
  %3906 = vmatpush1.msra.mxu0 0.0
  %3907 = vmatprep.subr.mxu0 0.0
  %3908 = vmatpush1.msra.mxu0 0.0
  %3909 = vmatprep.subr.mxu0 0.0
  %3910 = vmatpush1.msra.mxu0 0.0
  %3911 = vmatprep.subr.mxu0 0.0
  %3912 = vmatpush1.msra.mxu0 0.0
  %3913 = vmatprep.subr.mxu0 0.0
  %3914 = vmatpush1.msra.mxu0 0.0
  %3915 = vmatprep.subr.mxu0 0.0
  %3916 = vmatpush1.msra.mxu0 0.0
  %3917 = vmatprep.subr.mxu0 0.0
  %3918 = vmatpush1.msra.mxu0 0.0
  %3919 = vmatprep.subr.mxu0 0.0
  %3920 = vmatpush1.msra.mxu0 0.0
  %3921 = vmatprep.subr.mxu0 0.0
  %3922 = vmatpush1.msra.mxu0 0.0
  %3923 = vmatprep.subr.mxu0 0.0
  %3924 = vmatpush1.msra.mxu0 0.0
  %3925 = vmatprep.subr.mxu0 0.0
  %3926 = vmatpush1.msra.mxu0 0.0
  %3927 = vmatprep.subr.mxu0 0.0
  %3928 = vmatpush1.msra.mxu0 0.0
  %3929 = vmatprep.subr.mxu0 0.0
  %3930 = vmatpush1.msra.mxu0 0.0
  %3931 = vmatprep.subr.mxu0 0.0
  %3932 = vmatpush1.msra.mxu0 0.0
  %3933 = vmatprep.mubr.f32.mxu0 0.0
  %3934 = vmatmul.mubr.f32.gmra.mrb[0].mxu0 %v3479
  %v3935 = vpop.f32.mrb[0].mxu0
  %v3936 = vadd.f32 0.0, %v3935
  %v3937 = vpop.f32.mrb[0].mxu0
  %3938 = vdwg.mxu0
  %v3939 = vadd.f32 %v3785, %v3936
  %v3940 = vrot.slane %v2776, 2
  %v3941 = vsel %vm2796, %v3940, 0
  %3943 = vmatprep.subr.mxu0 0.0
  %3944 = vmatpush1.msra.mxu0 %v3861
  %3945 = vmatprep.subr.mxu0 0.0
  %3946 = vmatpush1.msra.mxu0 %v3862
  %3947 = vmatprep.subr.mxu0 0.0
  %3948 = vmatpush1.msra.mxu0 %v3863
  %3949 = vmatprep.subr.mxu0 0.0
  %3950 = vmatpush1.msra.mxu0 %v3864
  %3951 = vmatprep.subr.mxu0 0.0
  %3952 = vmatpush1.msra.mxu0 %v3865
  %3953 = vmatprep.subr.mxu0 0.0
  %3954 = vmatpush1.msra.mxu0 %v3866
  %3955 = vmatprep.subr.mxu0 0.0
  %3956 = vmatpush1.msra.mxu0 %v3867
  %3957 = vmatprep.subr.mxu0 0.0
  %3958 = vmatpush1.msra.mxu0 %v3868
  %3959 = vmatprep.subr.mxu0 0.0
  %3960 = vmatpush1.msra.mxu0 0.0
  %3961 = vmatprep.subr.mxu0 0.0
  %3962 = vmatpush1.msra.mxu0 0.0
  %3963 = vmatprep.subr.mxu0 0.0
  %3964 = vmatpush1.msra.mxu0 0.0
  %3965 = vmatprep.subr.mxu0 0.0
  %3966 = vmatpush1.msra.mxu0 0.0
  %3967 = vmatprep.subr.mxu0 0.0
  %3968 = vmatpush1.msra.mxu0 0.0
  %3969 = vmatprep.subr.mxu0 0.0
  %3970 = vmatpush1.msra.mxu0 0.0
  %3971 = vmatprep.subr.mxu0 0.0
  %3972 = vmatpush1.msra.mxu0 0.0
  %3973 = vmatprep.subr.mxu0 0.0
  %3974 = vmatpush1.msra.mxu0 0.0
  %3975 = vmatprep.subr.mxu0 0.0
  %3976 = vmatpush1.msra.mxu0 0.0
  %3977 = vmatprep.subr.mxu0 0.0
  %3978 = vmatpush1.msra.mxu0 0.0
  %3979 = vmatprep.subr.mxu0 0.0
  %3980 = vmatpush1.msra.mxu0 0.0
  %3981 = vmatprep.subr.mxu0 0.0
  %3982 = vmatpush1.msra.mxu0 0.0
  %3983 = vmatprep.subr.mxu0 0.0
  %3984 = vmatpush1.msra.mxu0 0.0
  %3985 = vmatprep.subr.mxu0 0.0
  %3986 = vmatpush1.msra.mxu0 0.0
  %3987 = vmatprep.subr.mxu0 0.0
  %3988 = vmatpush1.msra.mxu0 0.0
  %3989 = vmatprep.subr.mxu0 0.0
  %3990 = vmatpush1.msra.mxu0 0.0
  %3991 = vmatprep.subr.mxu0 0.0
  %3992 = vmatpush1.msra.mxu0 0.0
  %3993 = vmatprep.subr.mxu0 0.0
  %3994 = vmatpush1.msra.mxu0 0.0
  %3995 = vmatprep.subr.mxu0 0.0
  %3996 = vmatpush1.msra.mxu0 0.0
  %3997 = vmatprep.subr.mxu0 0.0
  %3998 = vmatpush1.msra.mxu0 0.0
  %3999 = vmatprep.subr.mxu0 0.0
  %4000 = vmatpush1.msra.mxu0 0.0
  %4001 = vmatprep.subr.mxu0 0.0
  %4002 = vmatpush1.msra.mxu0 0.0
  %4003 = vmatprep.subr.mxu0 0.0
  %4004 = vmatpush1.msra.mxu0 0.0
  %4005 = vmatprep.subr.mxu0 0.0
  %4006 = vmatpush1.msra.mxu0 0.0
  %4007 = vmatprep.mubr.f32.mxu0 0.0
  %4008 = vmatmul.mubr.f32.gmra.mrb[0].mxu0 %v3941
  %v4009 = vpop.f32.mrb[0].mxu0
  %v4010 = vadd.f32 0.0, %v4009
  %v4011 = vpop.f32.mrb[0].mxu0
  %4012 = vdwg.mxu0
  %v4013 = vadd.f32 %v3859, %v4010
  %s4014 = scalar_lea.vmem %s3, 512
  %v4015 = vld [vmem:[%s4014] sm:$0xff]
  %v4016 = vld [vmem:[%s4014 + $0x8] sm:$0xff]
  %v4017 = vld [vmem:[%s4014 + $0x10] sm:$0xff]
  %v4018 = vld [vmem:[%s4014 + $0x18] sm:$0xff]
  %v4019 = vld [vmem:[%s4014 + $0x20] sm:$0xff]
  %v4020 = vld [vmem:[%s4014 + $0x28] sm:$0xff]
  %v4021 = vld [vmem:[%s4014 + $0x30] sm:$0xff]
  %v4022 = vld [vmem:[%s4014 + $0x38] sm:$0xff]
  %4023 = vmatprep.subr.mxu0 0.0
  %4024 = vmatpush1.msra.mxu0 %v4015
  %4025 = vmatprep.subr.mxu0 0.0
  %4026 = vmatpush1.msra.mxu0 %v4016
  %4027 = vmatprep.subr.mxu0 0.0
  %4028 = vmatpush1.msra.mxu0 %v4017
  %4029 = vmatprep.subr.mxu0 0.0
  %4030 = vmatpush1.msra.mxu0 %v4018
  %4031 = vmatprep.subr.mxu0 0.0
  %4032 = vmatpush1.msra.mxu0 %v4019
  %4033 = vmatprep.subr.mxu0 0.0
  %4034 = vmatpush1.msra.mxu0 %v4020
  %4035 = vmatprep.subr.mxu0 0.0
  %4036 = vmatpush1.msra.mxu0 %v4021
  %4037 = vmatprep.subr.mxu0 0.0
  %4038 = vmatpush1.msra.mxu0 %v4022
  %4039 = vmatprep.subr.mxu0 0.0
  %4040 = vmatpush1.msra.mxu0 0.0
  %4041 = vmatprep.subr.mxu0 0.0
  %4042 = vmatpush1.msra.mxu0 0.0
  %4043 = vmatprep.subr.mxu0 0.0
  %4044 = vmatpush1.msra.mxu0 0.0
  %4045 = vmatprep.subr.mxu0 0.0
  %4046 = vmatpush1.msra.mxu0 0.0
  %4047 = vmatprep.subr.mxu0 0.0
  %4048 = vmatpush1.msra.mxu0 0.0
  %4049 = vmatprep.subr.mxu0 0.0
  %4050 = vmatpush1.msra.mxu0 0.0
  %4051 = vmatprep.subr.mxu0 0.0
  %4052 = vmatpush1.msra.mxu0 0.0
  %4053 = vmatprep.subr.mxu0 0.0
  %4054 = vmatpush1.msra.mxu0 0.0
  %4055 = vmatprep.subr.mxu0 0.0
  %4056 = vmatpush1.msra.mxu0 0.0
  %4057 = vmatprep.subr.mxu0 0.0
  %4058 = vmatpush1.msra.mxu0 0.0
  %4059 = vmatprep.subr.mxu0 0.0
  %4060 = vmatpush1.msra.mxu0 0.0
  %4061 = vmatprep.subr.mxu0 0.0
  %4062 = vmatpush1.msra.mxu0 0.0
  %4063 = vmatprep.subr.mxu0 0.0
  %4064 = vmatpush1.msra.mxu0 0.0
  %4065 = vmatprep.subr.mxu0 0.0
  %4066 = vmatpush1.msra.mxu0 0.0
  %4067 = vmatprep.subr.mxu0 0.0
  %4068 = vmatpush1.msra.mxu0 0.0
  %4069 = vmatprep.subr.mxu0 0.0
  %4070 = vmatpush1.msra.mxu0 0.0
  %4071 = vmatprep.subr.mxu0 0.0
  %4072 = vmatpush1.msra.mxu0 0.0
  %4073 = vmatprep.subr.mxu0 0.0
  %4074 = vmatpush1.msra.mxu0 0.0
  %4075 = vmatprep.subr.mxu0 0.0
  %4076 = vmatpush1.msra.mxu0 0.0
  %4077 = vmatprep.subr.mxu0 0.0
  %4078 = vmatpush1.msra.mxu0 0.0
  %4079 = vmatprep.subr.mxu0 0.0
  %4080 = vmatpush1.msra.mxu0 0.0
  %4081 = vmatprep.subr.mxu0 0.0
  %4082 = vmatpush1.msra.mxu0 0.0
  %4083 = vmatprep.subr.mxu0 0.0
  %4084 = vmatpush1.msra.mxu0 0.0
  %4085 = vmatprep.subr.mxu0 0.0
  %4086 = vmatpush1.msra.mxu0 0.0
  %4087 = vmatprep.mubr.f32.mxu0 0.0
  %4088 = vmatmul.mubr.f32.gmra.mrb[0].mxu0 %v3633
  %v4089 = vpop.f32.mrb[0].mxu0
  %v4090 = vadd.f32 0.0, %v4089
  %v4091 = vpop.f32.mrb[0].mxu0
  %4092 = vdwg.mxu0
  %v4093 = vadd.f32 %v3939, %v4090
  %v4094 = vrot.slane %v2776, 4
  %v4095 = vsel %vm2796, %v4094, 0
  %4097 = vmatprep.subr.mxu0 0.0
  %4098 = vmatpush1.msra.mxu0 %v4015
  %4099 = vmatprep.subr.mxu0 0.0
  %4100 = vmatpush1.msra.mxu0 %v4016
  %4101 = vmatprep.subr.mxu0 0.0
  %4102 = vmatpush1.msra.mxu0 %v4017
  %4103 = vmatprep.subr.mxu0 0.0
  %4104 = vmatpush1.msra.mxu0 %v4018
  %4105 = vmatprep.subr.mxu0 0.0
  %4106 = vmatpush1.msra.mxu0 %v4019
  %4107 = vmatprep.subr.mxu0 0.0
  %4108 = vmatpush1.msra.mxu0 %v4020
  %4109 = vmatprep.subr.mxu0 0.0
  %4110 = vmatpush1.msra.mxu0 %v4021
  %4111 = vmatprep.subr.mxu0 0.0
  %4112 = vmatpush1.msra.mxu0 %v4022
  %4113 = vmatprep.subr.mxu0 0.0
  %4114 = vmatpush1.msra.mxu0 0.0
  %4115 = vmatprep.subr.mxu0 0.0
  %4116 = vmatpush1.msra.mxu0 0.0
  %4117 = vmatprep.subr.mxu0 0.0
  %4118 = vmatpush1.msra.mxu0 0.0
  %4119 = vmatprep.subr.mxu0 0.0
  %4120 = vmatpush1.msra.mxu0 0.0
  %4121 = vmatprep.subr.mxu0 0.0
  %4122 = vmatpush1.msra.mxu0 0.0
  %4123 = vmatprep.subr.mxu0 0.0
  %4124 = vmatpush1.msra.mxu0 0.0
  %4125 = vmatprep.subr.mxu0 0.0
  %4126 = vmatpush1.msra.mxu0 0.0
  %4127 = vmatprep.subr.mxu0 0.0
  %4128 = vmatpush1.msra.mxu0 0.0
  %4129 = vmatprep.subr.mxu0 0.0
  %4130 = vmatpush1.msra.mxu0 0.0
  %4131 = vmatprep.subr.mxu0 0.0
  %4132 = vmatpush1.msra.mxu0 0.0
  %4133 = vmatprep.subr.mxu0 0.0
  %4134 = vmatpush1.msra.mxu0 0.0
  %4135 = vmatprep.subr.mxu0 0.0
  %4136 = vmatpush1.msra.mxu0 0.0
  %4137 = vmatprep.subr.mxu0 0.0
  %4138 = vmatpush1.msra.mxu0 0.0
  %4139 = vmatprep.subr.mxu0 0.0
  %4140 = vmatpush1.msra.mxu0 0.0
  %4141 = vmatprep.subr.mxu0 0.0
  %4142 = vmatpush1.msra.mxu0 0.0
  %4143 = vmatprep.subr.mxu0 0.0
  %4144 = vmatpush1.msra.mxu0 0.0
  %4145 = vmatprep.subr.mxu0 0.0
  %4146 = vmatpush1.msra.mxu0 0.0
  %4147 = vmatprep.subr.mxu0 0.0
  %4148 = vmatpush1.msra.mxu0 0.0
  %4149 = vmatprep.subr.mxu0 0.0
  %4150 = vmatpush1.msra.mxu0 0.0
  %4151 = vmatprep.subr.mxu0 0.0
  %4152 = vmatpush1.msra.mxu0 0.0
  %4153 = vmatprep.subr.mxu0 0.0
  %4154 = vmatpush1.msra.mxu0 0.0
  %4155 = vmatprep.subr.mxu0 0.0
  %4156 = vmatpush1.msra.mxu0 0.0
  %4157 = vmatprep.subr.mxu0 0.0
  %4158 = vmatpush1.msra.mxu0 0.0
  %4159 = vmatprep.subr.mxu0 0.0
  %4160 = vmatpush1.msra.mxu0 0.0
  %4161 = vmatprep.mubr.f32.mxu0 0.0
  %4162 = vmatmul.mubr.f32.gmra.mrb[0].mxu0 %v4095
  %v4163 = vpop.f32.mrb[0].mxu0
  %v4164 = vadd.f32 0.0, %v4163
  %v4165 = vpop.f32.mrb[0].mxu0
  %4166 = vdwg.mxu0
  %v4167 = vadd.f32 %v4013, %v4164
  %v4168 = vld [vmem:[%s4] sm:$0x1]
  %v4170 = vlaneseq
  %v4171 = vshrl.u32 %v4170, 7
  %v4172 = vsub.s32 0, %v4171
  %v4173 = vrot.slane %v4168, %v4172
  %v4175 = vadd.f32 %v4093, %v4173
  %v4176 = vmax.f32 %v4175, 0.0
  %v4177 = vadd.f32 %v4167, %v4173
  %v4178 = vmax.f32 %v4177, 0.0
  %v4179 = vld [vmem:[%s5] sm:$0xff]
  %v4180 = vld [vmem:[%s5 + $0x8] sm:$0xff]
  %v4181 = vld [vmem:[%s5 + $0x10] sm:$0xff]
  %v4182 = vld [vmem:[%s5 + $0x18] sm:$0xff]
  %v4183 = vld [vmem:[%s5 + $0x20] sm:$0xff]
  %v4184 = vld [vmem:[%s5 + $0x28] sm:$0xff]
  %v4185 = vld [vmem:[%s5 + $0x30] sm:$0xff]
  %v4186 = vld [vmem:[%s5 + $0x38] sm:$0xff]
  %s4187 = scalar_lea.vmem %s5, 64
  %v4188 = vld [vmem:[%s4187] sm:$0xff]
  %v4189 = vld [vmem:[%s4187 + $0x8] sm:$0xff]
  %v4190 = vld [vmem:[%s4187 + $0x10] sm:$0xff]
  %v4191 = vld [vmem:[%s4187 + $0x18] sm:$0xff]
  %v4192 = vld [vmem:[%s4187 + $0x20] sm:$0xff]
  %v4193 = vld [vmem:[%s4187 + $0x28] sm:$0xff]
  %v4194 = vld [vmem:[%s4187 + $0x30] sm:$0xff]
  %v4195 = vld [vmem:[%s4187 + $0x38] sm:$0xff]
  %v4197 = vrot.slane %v4176, 2
  %v4198 = vsel %vm2796, %v4197, 0
  %4200 = vmatprep.subr.mxu0 0.0
  %4201 = vmatpush1.msra.mxu0 %v4188
  %4202 = vmatprep.subr.mxu0 0.0
  %4203 = vmatpush1.msra.mxu0 %v4189
  %4204 = vmatprep.subr.mxu0 0.0
  %4205 = vmatpush1.msra.mxu0 %v4190
  %4206 = vmatprep.subr.mxu0 0.0
  %4207 = vmatpush1.msra.mxu0 %v4191
  %4208 = vmatprep.subr.mxu0 0.0
  %4209 = vmatpush1.msra.mxu0 %v4192
  %4210 = vmatprep.subr.mxu0 0.0
  %4211 = vmatpush1.msra.mxu0 %v4193
  %4212 = vmatprep.subr.mxu0 0.0
  %4213 = vmatpush1.msra.mxu0 %v4194
  %4214 = vmatprep.subr.mxu0 0.0
  %4215 = vmatpush1.msra.mxu0 %v4195
  %4216 = vmatprep.subr.mxu0 0.0
  %4217 = vmatpush1.msra.mxu0 0.0
  %4218 = vmatprep.subr.mxu0 0.0
  %4219 = vmatpush1.msra.mxu0 0.0
  %4220 = vmatprep.subr.mxu0 0.0
  %4221 = vmatpush1.msra.mxu0 0.0
  %4222 = vmatprep.subr.mxu0 0.0
  %4223 = vmatpush1.msra.mxu0 0.0
  %4224 = vmatprep.subr.mxu0 0.0
  %4225 = vmatpush1.msra.mxu0 0.0
  %4226 = vmatprep.subr.mxu0 0.0
  %4227 = vmatpush1.msra.mxu0 0.0
  %4228 = vmatprep.subr.mxu0 0.0
  %4229 = vmatpush1.msra.mxu0 0.0
  %4230 = vmatprep.subr.mxu0 0.0
  %4231 = vmatpush1.msra.mxu0 0.0
  %4232 = vmatprep.subr.mxu0 0.0
  %4233 = vmatpush1.msra.mxu0 0.0
  %4234 = vmatprep.subr.mxu0 0.0
  %4235 = vmatpush1.msra.mxu0 0.0
  %4236 = vmatprep.subr.mxu0 0.0
  %4237 = vmatpush1.msra.mxu0 0.0
  %4238 = vmatprep.subr.mxu0 0.0
  %4239 = vmatpush1.msra.mxu0 0.0
  %4240 = vmatprep.subr.mxu0 0.0
  %4241 = vmatpush1.msra.mxu0 0.0
  %4242 = vmatprep.subr.mxu0 0.0
  %4243 = vmatpush1.msra.mxu0 0.0
  %4244 = vmatprep.subr.mxu0 0.0
  %4245 = vmatpush1.msra.mxu0 0.0
  %4246 = vmatprep.subr.mxu0 0.0
  %4247 = vmatpush1.msra.mxu0 0.0
  %4248 = vmatprep.subr.mxu0 0.0
  %4249 = vmatpush1.msra.mxu0 0.0
  %4250 = vmatprep.subr.mxu0 0.0
  %4251 = vmatpush1.msra.mxu0 0.0
  %4252 = vmatprep.subr.mxu0 0.0
  %4253 = vmatpush1.msra.mxu0 0.0
  %4254 = vmatprep.subr.mxu0 0.0
  %4255 = vmatpush1.msra.mxu0 0.0
  %4256 = vmatprep.subr.mxu0 0.0
  %4257 = vmatpush1.msra.mxu0 0.0
  %4258 = vmatprep.subr.mxu0 0.0
  %4259 = vmatpush1.msra.mxu0 0.0
  %4260 = vmatprep.subr.mxu0 0.0
  %4261 = vmatpush1.msra.mxu0 0.0
  %4262 = vmatprep.subr.mxu0 0.0
  %4263 = vmatpush1.msra.mxu0 0.0
  %4264 = vmatprep.mubr.f32.mxu0 0.0
  %4265 = vmatmul.mubr.f32.gmra.mrb[0].mxu0 %v4198
  %v4266 = vpop.f32.mrb[0].mxu0
  %v4267 = vadd.f32 0.0, %v4266
  %v4268 = vpop.f32.mrb[0].mxu0
  %4269 = vdwg.mxu0
  %v4270 = vsel %vm2796, %v4176, 0
  %4272 = vmatprep.subr.mxu0 0.0
  %4273 = vmatpush1.msra.mxu0 %v4179
  %4274 = vmatprep.subr.mxu0 0.0
  %4275 = vmatpush1.msra.mxu0 %v4180
  %4276 = vmatprep.subr.mxu0 0.0
  %4277 = vmatpush1.msra.mxu0 %v4181
  %4278 = vmatprep.subr.mxu0 0.0
  %4279 = vmatpush1.msra.mxu0 %v4182
  %4280 = vmatprep.subr.mxu0 0.0
  %4281 = vmatpush1.msra.mxu0 %v4183
  %4282 = vmatprep.subr.mxu0 0.0
  %4283 = vmatpush1.msra.mxu0 %v4184
  %4284 = vmatprep.subr.mxu0 0.0
  %4285 = vmatpush1.msra.mxu0 %v4185
  %4286 = vmatprep.subr.mxu0 0.0
  %4287 = vmatpush1.msra.mxu0 %v4186
  %4288 = vmatprep.subr.mxu0 0.0
  %4289 = vmatpush1.msra.mxu0 0.0
  %4290 = vmatprep.subr.mxu0 0.0
  %4291 = vmatpush1.msra.mxu0 0.0
  %4292 = vmatprep.subr.mxu0 0.0
  %4293 = vmatpush1.msra.mxu0 0.0
  %4294 = vmatprep.subr.mxu0 0.0
  %4295 = vmatpush1.msra.mxu0 0.0
  %4296 = vmatprep.subr.mxu0 0.0
  %4297 = vmatpush1.msra.mxu0 0.0
  %4298 = vmatprep.subr.mxu0 0.0
  %4299 = vmatpush1.msra.mxu0 0.0
  %4300 = vmatprep.subr.mxu0 0.0
  %4301 = vmatpush1.msra.mxu0 0.0
  %4302 = vmatprep.subr.mxu0 0.0
  %4303 = vmatpush1.msra.mxu0 0.0
  %4304 = vmatprep.subr.mxu0 0.0
  %4305 = vmatpush1.msra.mxu0 0.0
  %4306 = vmatprep.subr.mxu0 0.0
  %4307 = vmatpush1.msra.mxu0 0.0
  %4308 = vmatprep.subr.mxu0 0.0
  %4309 = vmatpush1.msra.mxu0 0.0
  %4310 = vmatprep.subr.mxu0 0.0
  %4311 = vmatpush1.msra.mxu0 0.0
  %4312 = vmatprep.subr.mxu0 0.0
  %4313 = vmatpush1.msra.mxu0 0.0
  %4314 = vmatprep.subr.mxu0 0.0
  %4315 = vmatpush1.msra.mxu0 0.0
  %4316 = vmatprep.subr.mxu0 0.0
  %4317 = vmatpush1.msra.mxu0 0.0
  %4318 = vmatprep.subr.mxu0 0.0
  %4319 = vmatpush1.msra.mxu0 0.0
  %4320 = vmatprep.subr.mxu0 0.0
  %4321 = vmatpush1.msra.mxu0 0.0
  %4322 = vmatprep.subr.mxu0 0.0
  %4323 = vmatpush1.msra.mxu0 0.0
  %4324 = vmatprep.subr.mxu0 0.0
  %4325 = vmatpush1.msra.mxu0 0.0
  %4326 = vmatprep.subr.mxu0 0.0
  %4327 = vmatpush1.msra.mxu0 0.0
  %4328 = vmatprep.subr.mxu0 0.0
  %4329 = vmatpush1.msra.mxu0 0.0
  %4330 = vmatprep.subr.mxu0 0.0
  %4331 = vmatpush1.msra.mxu0 0.0
  %4332 = vmatprep.subr.mxu0 0.0
  %4333 = vmatpush1.msra.mxu0 0.0
  %4334 = vmatprep.subr.mxu0 0.0
  %4335 = vmatpush1.msra.mxu0 0.0
  %4336 = vmatprep.mubr.f32.mxu0 0.0
  %4337 = vmatmul.mubr.f32.gmra.mrb[0].mxu0 %v4270
  %v4338 = vpop.f32.mrb[0].mxu0
  %v4339 = vadd.f32 %v4267, %v4338
  %v4340 = vpop.f32.mrb[0].mxu0
  %4341 = vdwg.mxu0
  %s4342 = scalar_lea.vmem %s5, 128
  %v4343 = vld [vmem:[%s4342] sm:$0xff]
  %v4344 = vld [vmem:[%s4342 + $0x8] sm:$0xff]
  %v4345 = vld [vmem:[%s4342 + $0x10] sm:$0xff]
  %v4346 = vld [vmem:[%s4342 + $0x18] sm:$0xff]
  %v4347 = vld [vmem:[%s4342 + $0x20] sm:$0xff]
  %v4348 = vld [vmem:[%s4342 + $0x28] sm:$0xff]
  %v4349 = vld [vmem:[%s4342 + $0x30] sm:$0xff]
  %v4350 = vld [vmem:[%s4342 + $0x38] sm:$0xff]
  %v4352 = vsel %vm2796, %v4178, 0
  %4354 = vmatprep.subr.mxu0 0.0
  %4355 = vmatpush1.msra.mxu0 %v4343
  %4356 = vmatprep.subr.mxu0 0.0
  %4357 = vmatpush1.msra.mxu0 %v4344
  %4358 = vmatprep.subr.mxu0 0.0
  %4359 = vmatpush1.msra.mxu0 %v4345
  %4360 = vmatprep.subr.mxu0 0.0
  %4361 = vmatpush1.msra.mxu0 %v4346
  %4362 = vmatprep.subr.mxu0 0.0
  %4363 = vmatpush1.msra.mxu0 %v4347
  %4364 = vmatprep.subr.mxu0 0.0
  %4365 = vmatpush1.msra.mxu0 %v4348
  %4366 = vmatprep.subr.mxu0 0.0
  %4367 = vmatpush1.msra.mxu0 %v4349
  %4368 = vmatprep.subr.mxu0 0.0
  %4369 = vmatpush1.msra.mxu0 %v4350
  %4370 = vmatprep.subr.mxu0 0.0
  %4371 = vmatpush1.msra.mxu0 0.0
  %4372 = vmatprep.subr.mxu0 0.0
  %4373 = vmatpush1.msra.mxu0 0.0
  %4374 = vmatprep.subr.mxu0 0.0
  %4375 = vmatpush1.msra.mxu0 0.0
  %4376 = vmatprep.subr.mxu0 0.0
  %4377 = vmatpush1.msra.mxu0 0.0
  %4378 = vmatprep.subr.mxu0 0.0
  %4379 = vmatpush1.msra.mxu0 0.0
  %4380 = vmatprep.subr.mxu0 0.0
  %4381 = vmatpush1.msra.mxu0 0.0
  %4382 = vmatprep.subr.mxu0 0.0
  %4383 = vmatpush1.msra.mxu0 0.0
  %4384 = vmatprep.subr.mxu0 0.0
  %4385 = vmatpush1.msra.mxu0 0.0
  %4386 = vmatprep.subr.mxu0 0.0
  %4387 = vmatpush1.msra.mxu0 0.0
  %4388 = vmatprep.subr.mxu0 0.0
  %4389 = vmatpush1.msra.mxu0 0.0
  %4390 = vmatprep.subr.mxu0 0.0
  %4391 = vmatpush1.msra.mxu0 0.0
  %4392 = vmatprep.subr.mxu0 0.0
  %4393 = vmatpush1.msra.mxu0 0.0
  %4394 = vmatprep.subr.mxu0 0.0
  %4395 = vmatpush1.msra.mxu0 0.0
  %4396 = vmatprep.subr.mxu0 0.0
  %4397 = vmatpush1.msra.mxu0 0.0
  %4398 = vmatprep.subr.mxu0 0.0
  %4399 = vmatpush1.msra.mxu0 0.0
  %4400 = vmatprep.subr.mxu0 0.0
  %4401 = vmatpush1.msra.mxu0 0.0
  %4402 = vmatprep.subr.mxu0 0.0
  %4403 = vmatpush1.msra.mxu0 0.0
  %4404 = vmatprep.subr.mxu0 0.0
  %4405 = vmatpush1.msra.mxu0 0.0
  %4406 = vmatprep.subr.mxu0 0.0
  %4407 = vmatpush1.msra.mxu0 0.0
  %4408 = vmatprep.subr.mxu0 0.0
  %4409 = vmatpush1.msra.mxu0 0.0
  %4410 = vmatprep.subr.mxu0 0.0
  %4411 = vmatpush1.msra.mxu0 0.0
  %4412 = vmatprep.subr.mxu0 0.0
  %4413 = vmatpush1.msra.mxu0 0.0
  %4414 = vmatprep.subr.mxu0 0.0
  %4415 = vmatpush1.msra.mxu0 0.0
  %4416 = vmatprep.subr.mxu0 0.0
  %4417 = vmatpush1.msra.mxu0 0.0
  %4418 = vmatprep.mubr.f32.mxu0 0.0
  %4419 = vmatmul.mubr.f32.gmra.mrb[0].mxu0 %v4352
  %v4420 = vpop.f32.mrb[0].mxu0
  %v4421 = vadd.f32 0.0, %v4420
  %v4422 = vpop.f32.mrb[0].mxu0
  %4423 = vdwg.mxu0
  %v4424 = vadd.f32 %v4339, %v4421
  %s4425 = scalar_lea.vmem %s5, 192
  %v4426 = vld [vmem:[%s4425] sm:$0xff]
  %v4427 = vld [vmem:[%s4425 + $0x8] sm:$0xff]
  %v4428 = vld [vmem:[%s4425 + $0x10] sm:$0xff]
  %v4429 = vld [vmem:[%s4425 + $0x18] sm:$0xff]
  %v4430 = vld [vmem:[%s4425 + $0x20] sm:$0xff]
  %v4431 = vld [vmem:[%s4425 + $0x28] sm:$0xff]
  %v4432 = vld [vmem:[%s4425 + $0x30] sm:$0xff]
  %v4433 = vld [vmem:[%s4425 + $0x38] sm:$0xff]
  %v4434 = vrot.slane %v4178, 2
  %v4435 = vsel %vm2796, %v4434, 0
  %4437 = vmatprep.subr.mxu0 0.0
  %4438 = vmatpush1.msra.mxu0 %v4426
  %4439 = vmatprep.subr.mxu0 0.0
  %4440 = vmatpush1.msra.mxu0 %v4427
  %4441 = vmatprep.subr.mxu0 0.0
  %4442 = vmatpush1.msra.mxu0 %v4428
  %4443 = vmatprep.subr.mxu0 0.0
  %4444 = vmatpush1.msra.mxu0 %v4429
  %4445 = vmatprep.subr.mxu0 0.0
  %4446 = vmatpush1.msra.mxu0 %v4430
  %4447 = vmatprep.subr.mxu0 0.0
  %4448 = vmatpush1.msra.mxu0 %v4431
  %4449 = vmatprep.subr.mxu0 0.0
  %4450 = vmatpush1.msra.mxu0 %v4432
  %4451 = vmatprep.subr.mxu0 0.0
  %4452 = vmatpush1.msra.mxu0 %v4433
  %4453 = vmatprep.subr.mxu0 0.0
  %4454 = vmatpush1.msra.mxu0 0.0
  %4455 = vmatprep.subr.mxu0 0.0
  %4456 = vmatpush1.msra.mxu0 0.0
  %4457 = vmatprep.subr.mxu0 0.0
  %4458 = vmatpush1.msra.mxu0 0.0
  %4459 = vmatprep.subr.mxu0 0.0
  %4460 = vmatpush1.msra.mxu0 0.0
  %4461 = vmatprep.subr.mxu0 0.0
  %4462 = vmatpush1.msra.mxu0 0.0
  %4463 = vmatprep.subr.mxu0 0.0
  %4464 = vmatpush1.msra.mxu0 0.0
  %4465 = vmatprep.subr.mxu0 0.0
  %4466 = vmatpush1.msra.mxu0 0.0
  %4467 = vmatprep.subr.mxu0 0.0
  %4468 = vmatpush1.msra.mxu0 0.0
  %4469 = vmatprep.subr.mxu0 0.0
  %4470 = vmatpush1.msra.mxu0 0.0
  %4471 = vmatprep.subr.mxu0 0.0
  %4472 = vmatpush1.msra.mxu0 0.0
  %4473 = vmatprep.subr.mxu0 0.0
  %4474 = vmatpush1.msra.mxu0 0.0
  %4475 = vmatprep.subr.mxu0 0.0
  %4476 = vmatpush1.msra.mxu0 0.0
  %4477 = vmatprep.subr.mxu0 0.0
  %4478 = vmatpush1.msra.mxu0 0.0
  %4479 = vmatprep.subr.mxu0 0.0
  %4480 = vmatpush1.msra.mxu0 0.0
  %4481 = vmatprep.subr.mxu0 0.0
  %4482 = vmatpush1.msra.mxu0 0.0
  %4483 = vmatprep.subr.mxu0 0.0
  %4484 = vmatpush1.msra.mxu0 0.0
  %4485 = vmatprep.subr.mxu0 0.0
  %4486 = vmatpush1.msra.mxu0 0.0
  %4487 = vmatprep.subr.mxu0 0.0
  %4488 = vmatpush1.msra.mxu0 0.0
  %4489 = vmatprep.subr.mxu0 0.0
  %4490 = vmatpush1.msra.mxu0 0.0
  %4491 = vmatprep.subr.mxu0 0.0
  %4492 = vmatpush1.msra.mxu0 0.0
  %4493 = vmatprep.subr.mxu0 0.0
  %4494 = vmatpush1.msra.mxu0 0.0
  %4495 = vmatprep.subr.mxu0 0.0
  %4496 = vmatpush1.msra.mxu0 0.0
  %4497 = vmatprep.subr.mxu0 0.0
  %4498 = vmatpush1.msra.mxu0 0.0
  %4499 = vmatprep.subr.mxu0 0.0
  %4500 = vmatpush1.msra.mxu0 0.0
  %4501 = vmatprep.mubr.f32.mxu0 0.0
  %4502 = vmatmul.mubr.f32.gmra.mrb[0].mxu0 %v4435
  %v4503 = vpop.f32.mrb[0].mxu0
  %v4504 = vadd.f32 0.0, %v4503
  %v4505 = vpop.f32.mrb[0].mxu0
  %4506 = vdwg.mxu0
  %v4507 = vadd.f32 %v4424, %v4504
  %v4508 = vld [vmem:[%s6] sm:$0x1]
  %v4510 = vlaneseq
  %v4511 = vshrl.u32 %v4510, 7
  %v4512 = vsub.s32 0, %v4511
  %v4513 = vrot.slane %v4508, %v4512
  %v4515 = vadd.f32 %v4507, %v4513
  %v4516 = vmax.f32 %v4515, 0.0
  %v4517 = vld [vmem:[%s7] sm:$0xff]
  %v4518 = vld [vmem:[%s7 + $0x8] sm:$0xff]
  %v4519 = vld [vmem:[%s7 + $0x10] sm:$0xff]
  %v4520 = vld [vmem:[%s7 + $0x18] sm:$0xff]
  %v4521 = vld [vmem:[%s7 + $0x20] sm:$0xff]
  %v4522 = vld [vmem:[%s7 + $0x28] sm:$0xff]
  %v4523 = vld [vmem:[%s7 + $0x30] sm:$0xff]
  %v4524 = vld [vmem:[%s7 + $0x38] sm:$0xff]
  %v4525 = vld [vmem:[%s7 + $0x40] sm:$0xff]
  %v4526 = vld [vmem:[%s7 + $0x48] sm:$0xff]
  %v4527 = vld [vmem:[%s7 + $0x50] sm:$0xff]
  %v4528 = vld [vmem:[%s7 + $0x58] sm:$0xff]
  %v4529 = vld [vmem:[%s7 + $0x60] sm:$0xff]
  %v4530 = vld [vmem:[%s7 + $0x68] sm:$0xff]
  %v4531 = vld [vmem:[%s7 + $0x70] sm:$0xff]
  %v4532 = vld [vmem:[%s7 + $0x78] sm:$0xff]
  %v4533 = vld [vmem:[%s8] sm:$0x1]
  %v4535 = vlaneseq
  %v4536 = vshrl.u32 %v4535, 7
  %v4537 = vsub.s32 0, %v4536
  %v4538 = vrot.slane %v4533, %v4537
  %4540 = vmatprep.subr.mxu0 0.0
  %4541 = vmatpush1.msra.mxu0 %v4517
  %4542 = vmatprep.subr.mxu0 0.0
  %4543 = vmatpush1.msra.mxu0 %v4518
  %4544 = vmatprep.subr.mxu0 0.0
  %4545 = vmatpush1.msra.mxu0 %v4519
  %4546 = vmatprep.subr.mxu0 0.0
  %4547 = vmatpush1.msra.mxu0 %v4520
  %4548 = vmatprep.subr.mxu0 0.0
  %4549 = vmatpush1.msra.mxu0 %v4521
  %4550 = vmatprep.subr.mxu0 0.0
  %4551 = vmatpush1.msra.mxu0 %v4522
  %4552 = vmatprep.subr.mxu0 0.0
  %4553 = vmatpush1.msra.mxu0 %v4523
  %4554 = vmatprep.subr.mxu0 0.0
  %4555 = vmatpush1.msra.mxu0 %v4524
  %4556 = vmatprep.subr.mxu0 0.0
  %4557 = vmatpush1.msra.mxu0 %v4525
  %4558 = vmatprep.subr.mxu0 0.0
  %4559 = vmatpush1.msra.mxu0 %v4526
  %4560 = vmatprep.subr.mxu0 0.0
  %4561 = vmatpush1.msra.mxu0 %v4527
  %4562 = vmatprep.subr.mxu0 0.0
  %4563 = vmatpush1.msra.mxu0 %v4528
  %4564 = vmatprep.subr.mxu0 0.0
  %4565 = vmatpush1.msra.mxu0 %v4529
  %4566 = vmatprep.subr.mxu0 0.0
  %4567 = vmatpush1.msra.mxu0 %v4530
  %4568 = vmatprep.subr.mxu0 0.0
  %4569 = vmatpush1.msra.mxu0 %v4531
  %4570 = vmatprep.subr.mxu0 0.0
  %4571 = vmatpush1.msra.mxu0 %v4532
  %4572 = vmatprep.subr.mxu0 0.0
  %4573 = vmatpush1.msra.mxu0 0.0
  %4574 = vmatprep.subr.mxu0 0.0
  %4575 = vmatpush1.msra.mxu0 0.0
  %4576 = vmatprep.subr.mxu0 0.0
  %4577 = vmatpush1.msra.mxu0 0.0
  %4578 = vmatprep.subr.mxu0 0.0
  %4579 = vmatpush1.msra.mxu0 0.0
  %4580 = vmatprep.subr.mxu0 0.0
  %4581 = vmatpush1.msra.mxu0 0.0
  %4582 = vmatprep.subr.mxu0 0.0
  %4583 = vmatpush1.msra.mxu0 0.0
  %4584 = vmatprep.subr.mxu0 0.0
  %4585 = vmatpush1.msra.mxu0 0.0
  %4586 = vmatprep.subr.mxu0 0.0
  %4587 = vmatpush1.msra.mxu0 0.0
  %4588 = vmatprep.subr.mxu0 0.0
  %4589 = vmatpush1.msra.mxu0 0.0
  %4590 = vmatprep.subr.mxu0 0.0
  %4591 = vmatpush1.msra.mxu0 0.0
  %4592 = vmatprep.subr.mxu0 0.0
  %4593 = vmatpush1.msra.mxu0 0.0
  %4594 = vmatprep.subr.mxu0 0.0
  %4595 = vmatpush1.msra.mxu0 0.0
  %4596 = vmatprep.subr.mxu0 0.0
  %4597 = vmatpush1.msra.mxu0 0.0
  %4598 = vmatprep.subr.mxu0 0.0
  %4599 = vmatpush1.msra.mxu0 0.0
  %4600 = vmatprep.subr.mxu0 0.0
  %4601 = vmatpush1.msra.mxu0 0.0
  %4602 = vmatprep.subr.mxu0 0.0
  %4603 = vmatpush1.msra.mxu0 0.0
  %4604 = vmatprep.mubr.f32.mxu0 0.0
  %4605 = vmatmul.mubr.f32.gmra.mrb[0].mxu0 %v4516
  %v4606 = vpop.f32.mrb[0].mxu0
  %v4607 = vadd.f32 %v4538, %v4606
  %v4608 = vpop.f32.mrb[0].mxu0
  %4609 = vdwg.mxu0
  %v4610 = vmax.f32 %v4607, 0.0
  %v4611 = vld [vmem:[%s9] sm:$0xff]
  %v4612 = vld [vmem:[%s9 + $0x8] sm:$0xff]
  %v4613 = vld [vmem:[%s9 + $0x10] sm:$0xff]
  %v4614 = vld [vmem:[%s9 + $0x18] sm:$0xff]
  %v4615 = vld [vmem:[%s9 + $0x20] sm:$0xff]
  %v4616 = vld [vmem:[%s9 + $0x28] sm:$0xff]
  %v4617 = vld [vmem:[%s9 + $0x30] sm:$0xff]
  %v4618 = vld [vmem:[%s9 + $0x38] sm:$0xff]
  %v4619 = vld [vmem:[%s9 + $0x40] sm:$0xff]
  %v4620 = vld [vmem:[%s9 + $0x48] sm:$0xff]
  %v4621 = vld [vmem:[%s9 + $0x50] sm:$0xff]
  %v4622 = vld [vmem:[%s9 + $0x58] sm:$0xff]
  %v4623 = vld [vmem:[%s9 + $0x60] sm:$0xff]
  %v4624 = vld [vmem:[%s9 + $0x68] sm:$0xff]
  %v4625 = vld [vmem:[%s9 + $0x70] sm:$0xff]
  %v4626 = vld [vmem:[%s9 + $0x78] sm:$0xff]
  %v4627 = vld [vmem:[%s10] sm:$0x1]
  %v4629 = vlaneseq
  %v4630 = vshrl.u32 %v4629, 7
  %v4631 = vsub.s32 0, %v4630
  %v4632 = vrot.slane %v4627, %v4631
  %4634 = vmatprep.subr.mxu0 0.0
  %4635 = vmatpush1.msra.mxu0 %v4611
  %4636 = vmatprep.subr.mxu0 0.0
  %4637 = vmatpush1.msra.mxu0 %v4612
  %4638 = vmatprep.subr.mxu0 0.0
  %4639 = vmatpush1.msra.mxu0 %v4613
  %4640 = vmatprep.subr.mxu0 0.0
  %4641 = vmatpush1.msra.mxu0 %v4614
  %4642 = vmatprep.subr.mxu0 0.0
  %4643 = vmatpush1.msra.mxu0 %v4615
  %4644 = vmatprep.subr.mxu0 0.0
  %4645 = vmatpush1.msra.mxu0 %v4616
  %4646 = vmatprep.subr.mxu0 0.0
  %4647 = vmatpush1.msra.mxu0 %v4617
  %4648 = vmatprep.subr.mxu0 0.0
  %4649 = vmatpush1.msra.mxu0 %v4618
  %4650 = vmatprep.subr.mxu0 0.0
  %4651 = vmatpush1.msra.mxu0 %v4619
  %4652 = vmatprep.subr.mxu0 0.0
  %4653 = vmatpush1.msra.mxu0 %v4620
  %4654 = vmatprep.subr.mxu0 0.0
  %4655 = vmatpush1.msra.mxu0 %v4621
  %4656 = vmatprep.subr.mxu0 0.0
  %4657 = vmatpush1.msra.mxu0 %v4622
  %4658 = vmatprep.subr.mxu0 0.0
  %4659 = vmatpush1.msra.mxu0 %v4623
  %4660 = vmatprep.subr.mxu0 0.0
  %4661 = vmatpush1.msra.mxu0 %v4624
  %4662 = vmatprep.subr.mxu0 0.0
  %4663 = vmatpush1.msra.mxu0 %v4625
  %4664 = vmatprep.subr.mxu0 0.0
  %4665 = vmatpush1.msra.mxu0 %v4626
  %4666 = vmatprep.subr.mxu0 0.0
  %4667 = vmatpush1.msra.mxu0 0.0
  %4668 = vmatprep.subr.mxu0 0.0
  %4669 = vmatpush1.msra.mxu0 0.0
  %4670 = vmatprep.subr.mxu0 0.0
  %4671 = vmatpush1.msra.mxu0 0.0
  %4672 = vmatprep.subr.mxu0 0.0
  %4673 = vmatpush1.msra.mxu0 0.0
  %4674 = vmatprep.subr.mxu0 0.0
  %4675 = vmatpush1.msra.mxu0 0.0
  %4676 = vmatprep.subr.mxu0 0.0
  %4677 = vmatpush1.msra.mxu0 0.0
  %4678 = vmatprep.subr.mxu0 0.0
  %4679 = vmatpush1.msra.mxu0 0.0
  %4680 = vmatprep.subr.mxu0 0.0
  %4681 = vmatpush1.msra.mxu0 0.0
  %4682 = vmatprep.subr.mxu0 0.0
  %4683 = vmatpush1.msra.mxu0 0.0
  %4684 = vmatprep.subr.mxu0 0.0
  %4685 = vmatpush1.msra.mxu0 0.0
  %4686 = vmatprep.subr.mxu0 0.0
  %4687 = vmatpush1.msra.mxu0 0.0
  %4688 = vmatprep.subr.mxu0 0.0
  %4689 = vmatpush1.msra.mxu0 0.0
  %4690 = vmatprep.subr.mxu0 0.0
  %4691 = vmatpush1.msra.mxu0 0.0
  %4692 = vmatprep.subr.mxu0 0.0
  %4693 = vmatpush1.msra.mxu0 0.0
  %4694 = vmatprep.subr.mxu0 0.0
  %4695 = vmatpush1.msra.mxu0 0.0
  %4696 = vmatprep.subr.mxu0 0.0
  %4697 = vmatpush1.msra.mxu0 0.0
  %4698 = vmatprep.mubr.f32.mxu0 0.0
  %4699 = vmatmul.mubr.f32.gmra.mrb[0].mxu0 %v4610
  %v4700 = vpop.f32.mrb[0].mxu0
  %v4701 = vadd.f32 %v4632, %v4700
  %v4702 = vpop.f32.mrb[0].mxu0
  %4703 = vdwg.mxu0
  %v4704 = vmax.f32 %v4701, 0.0
  %v4705 = vld [vmem:[%s11] sm:$0xff]
  %v4706 = vld [vmem:[%s11 + $0x8] sm:$0xff]
  %v4707 = vld [vmem:[%s11 + $0x10] sm:$0xff]
  %v4708 = vld [vmem:[%s11 + $0x18] sm:$0xff]
  %v4709 = vld [vmem:[%s11 + $0x20] sm:$0xff]
  %v4710 = vld [vmem:[%s11 + $0x28] sm:$0xff]
  %v4711 = vld [vmem:[%s11 + $0x30] sm:$0xff]
  %v4712 = vld [vmem:[%s11 + $0x38] sm:$0xff]
  %v4713 = vld [vmem:[%s11 + $0x40] sm:$0xff]
  %v4714 = vld [vmem:[%s11 + $0x48] sm:$0xff]
  %v4715 = vld [vmem:[%s11 + $0x50] sm:$0xff]
  %v4716 = vld [vmem:[%s11 + $0x58] sm:$0xff]
  %v4717 = vld [vmem:[%s11 + $0x60] sm:$0xff]
  %v4718 = vld [vmem:[%s11 + $0x68] sm:$0xff]
  %v4719 = vld [vmem:[%s11 + $0x70] sm:$0xff]
  %v4720 = vld [vmem:[%s11 + $0x78] sm:$0xff]
  %v4721 = vld [vmem:[%s12] sm:$0x1]
  %v4723 = vlaneseq
  %v4724 = vshrl.u32 %v4723, 7
  %v4725 = vsub.s32 0, %v4724
  %v4726 = vrot.slane %v4721, %v4725
  %4728 = vmatprep.subr.mxu0 0.0
  %4729 = vmatpush1.msra.mxu0 %v4705
  %4730 = vmatprep.subr.mxu0 0.0
  %4731 = vmatpush1.msra.mxu0 %v4706
  %4732 = vmatprep.subr.mxu0 0.0
  %4733 = vmatpush1.msra.mxu0 %v4707
  %4734 = vmatprep.subr.mxu0 0.0
  %4735 = vmatpush1.msra.mxu0 %v4708
  %4736 = vmatprep.subr.mxu0 0.0
  %4737 = vmatpush1.msra.mxu0 %v4709
  %4738 = vmatprep.subr.mxu0 0.0
  %4739 = vmatpush1.msra.mxu0 %v4710
  %4740 = vmatprep.subr.mxu0 0.0
  %4741 = vmatpush1.msra.mxu0 %v4711
  %4742 = vmatprep.subr.mxu0 0.0
  %4743 = vmatpush1.msra.mxu0 %v4712
  %4744 = vmatprep.subr.mxu0 0.0
  %4745 = vmatpush1.msra.mxu0 %v4713
  %4746 = vmatprep.subr.mxu0 0.0
  %4747 = vmatpush1.msra.mxu0 %v4714
  %4748 = vmatprep.subr.mxu0 0.0
  %4749 = vmatpush1.msra.mxu0 %v4715
  %4750 = vmatprep.subr.mxu0 0.0
  %4751 = vmatpush1.msra.mxu0 %v4716
  %4752 = vmatprep.subr.mxu0 0.0
  %4753 = vmatpush1.msra.mxu0 %v4717
  %4754 = vmatprep.subr.mxu0 0.0
  %4755 = vmatpush1.msra.mxu0 %v4718
  %4756 = vmatprep.subr.mxu0 0.0
  %4757 = vmatpush1.msra.mxu0 %v4719
  %4758 = vmatprep.subr.mxu0 0.0
  %4759 = vmatpush1.msra.mxu0 %v4720
  %4760 = vmatprep.subr.mxu0 0.0
  %4761 = vmatpush1.msra.mxu0 0.0
  %4762 = vmatprep.subr.mxu0 0.0
  %4763 = vmatpush1.msra.mxu0 0.0
  %4764 = vmatprep.subr.mxu0 0.0
  %4765 = vmatpush1.msra.mxu0 0.0
  %4766 = vmatprep.subr.mxu0 0.0
  %4767 = vmatpush1.msra.mxu0 0.0
  %4768 = vmatprep.subr.mxu0 0.0
  %4769 = vmatpush1.msra.mxu0 0.0
  %4770 = vmatprep.subr.mxu0 0.0
  %4771 = vmatpush1.msra.mxu0 0.0
  %4772 = vmatprep.subr.mxu0 0.0
  %4773 = vmatpush1.msra.mxu0 0.0
  %4774 = vmatprep.subr.mxu0 0.0
  %4775 = vmatpush1.msra.mxu0 0.0
  %4776 = vmatprep.subr.mxu0 0.0
  %4777 = vmatpush1.msra.mxu0 0.0
  %4778 = vmatprep.subr.mxu0 0.0
  %4779 = vmatpush1.msra.mxu0 0.0
  %4780 = vmatprep.subr.mxu0 0.0
  %4781 = vmatpush1.msra.mxu0 0.0
  %4782 = vmatprep.subr.mxu0 0.0
  %4783 = vmatpush1.msra.mxu0 0.0
  %4784 = vmatprep.subr.mxu0 0.0
  %4785 = vmatpush1.msra.mxu0 0.0
  %4786 = vmatprep.subr.mxu0 0.0
  %4787 = vmatpush1.msra.mxu0 0.0
  %4788 = vmatprep.subr.mxu0 0.0
  %4789 = vmatpush1.msra.mxu0 0.0
  %4790 = vmatprep.subr.mxu0 0.0
  %4791 = vmatpush1.msra.mxu0 0.0
  %4792 = vmatprep.mubr.f32.mxu0 0.0
  %4793 = vmatmul.mubr.f32.gmra.mrb[0].mxu0 %v4704
  %v4794 = vpop.f32.mrb[0].mxu0
  %v4795 = vadd.f32 %v4726, %v4794
  %v4796 = vpop.f32.mrb[0].mxu0
  %4797 = vdwg.mxu0
  %4798 = vst [vmem:[%s13] sm:$0xff] 0.0
  %4799 = vst [vmem:[%s13] sm:$0x3] %v4795
  // Predicated region
  $region54: #{nvidia_model_forward.7} parent=0 // pred_check
    _
  $region55: #{nvidia_model_forward.7} parent=0 // pred_check_branch
    %4801 = sbr.rel (0) target = $region57
  $region56: #{nvidia_model_forward.7} parent=0 // pred_region
    _
  $region57: #{nvidia_model_forward.7} parent=0 // pred_fallthru
    _
  // Predicated region
  $region58: #{nvidia_model_forward.7} parent=0 // pred_check
    _
  $region59: #{nvidia_model_forward.7} parent=0 // pred_check_branch
    %4803 = sbr.rel (0) target = $region61
  $region60: #{nvidia_model_forward.7} parent=0 // pred_region
    _
  $region61: #{nvidia_model_forward.7} parent=0 // pred_fallthru
    _

</llo_original>
